<compile_context>
chip_gen: v6e
topology: v6e:2x2x1
jax: 0.10.0
libtpu: 0.0.40
codegen_flags: <defaults>
</compile_context>

<pallas_src>
import jax
import jax.numpy as jnp
from jax.experimental import pallas as pl
from jax.experimental.pallas import tpu as pltpu

NEG_SLOPE = 0.001        # leaky_relu negative_slope from the PyTorch module
OUT_PAD = 128            # lane-dense slab width for the 1-wide fc3 output


def _round_up(v, m):
    return ((v + m - 1) // m) * m


def _cdiv(a, b):
    return -(-a // b)


def minenet_kernel(xin_ref, w1_ref, b1_ref, w2_ref, b2_ref, w3_ref, b3_ref,
                   o_ref):
    # fc1: single K=20 matmul on the pre-concatenated bf16 input.
    h1 = (jnp.dot(xin_ref[...], w1_ref[...],
                  preferred_element_type=jnp.float32) + b1_ref[...])
    h1 = h1.astype(jnp.bfloat16)                 # bf16 elementwise (v6e/v7x VPU)
    h1 = jnp.maximum(h1, NEG_SLOPE * h1)         # leaky_relu

    # fc2 + leaky_relu.
    h2 = (jnp.dot(h1, w2_ref[...],
                  preferred_element_type=jnp.float32) + b2_ref[...])
    h2 = h2.astype(jnp.bfloat16)
    h2 = jnp.maximum(h2, NEG_SLOPE * h2)

    # fc3 (lane-dense 128-wide slab; only column 0 is the real logit).
    o_ref[...] = (jnp.dot(h2, w3_ref[...],
                          preferred_element_type=jnp.float32) + b3_ref[...])


def _choose_tiling(B, block_b):
    """TB multiple of 8, minimal batch padding, and >=2 grid steps when
    possible so v7x's second TensorCore gets work."""
    block_b = max(8, _round_up(int(block_b), 8))
    n_tiles = max(_cdiv(B, block_b), 2 if B > 8 else 1)
    TB = _round_up(_cdiv(B, n_tiles), 8)
    Bp = TB * n_tiles
    return TB, Bp, n_tiles


def minenet_forward(x, t, w1, b1, w2, b2, w3, b3, *, block_b=512):
    """MINEnet forward.  x:[B,dx], t:[B,dt]; weights stored [in, out]
    (already transposed relative to PyTorch's [out, in])."""
    B, dx = x.shape
    Bt, dt = t.shape
    assert Bt == B
    d_in, H = w1.shape
    assert d_in == dx + dt and w2.shape == (H, H) and w3.shape == (H, 1)

    HP = _round_up(H, 128)          # 1500 -> 1536: clean MXU K/N, no pad waste
    f32, bf16 = jnp.float32, jnp.bfloat16

    # One-time parameter padding/casting (padded hidden units have zero weight
    # AND zero bias -> stay exactly 0 through leaky_relu, contribute nothing).
    w1p = jnp.pad(w1, ((0, 0), (0, HP - H))).astype(bf16)
    b1p = jnp.pad(b1.reshape(1, -1), ((0, 0), (0, HP - H))).astype(f32)
    w2p = jnp.pad(w2, ((0, HP - H), (0, HP - H))).astype(bf16)
    b2p = jnp.pad(b2.reshape(1, -1), ((0, 0), (0, HP - H))).astype(f32)
    w3p = jnp.pad(w3, ((0, HP - H), (0, OUT_PAD - 1))).astype(bf16)
    b3p = jnp.pad(b3.reshape(1, -1), ((0, 0), (0, OUT_PAD - 1))).astype(f32)

    # torch.cat((x, t), 1) done once in the wrapper, cast to bf16 (MXU operand
    # dtype) so the kernel needs no per-tile casts on the inputs.
    xin = jnp.concatenate([x, t], axis=1).astype(bf16)

    TB, Bp, n_tiles = _choose_tiling(B, block_b)
    if Bp != B:
        xin = jnp.pad(xin, ((0, Bp - B), (0, 0)))

    # Resident (constant index_map) parameters: single-buffered.
    def const_spec(shape):
        return pl.BlockSpec(shape, lambda i: (0,) * len(shape),
                            pipeline_mode=pl.Buffered(1))

    # VMEM budget: single-buffered params + double-buffered activation tiles
    # + f32/bf16 h1,h2 temps, with headroom; clamp to [32 MiB, 64 MiB].
    param_bytes = ((w1p.size + w2p.size + w3p.size) * 2
                   + (b1p.size + b2p.size + b3p.size) * 4)
    act_bytes = 2 * (TB * d_in * 2 + TB * OUT_PAD * 4)
    inter_bytes = 2 * TB * HP * 4 + 2 * TB * HP * 2
    vmem_limit = min(64 * 1024 * 1024,
                     max(32 * 1024 * 1024,
                         int(1.25 * (param_bytes + act_bytes + inter_bytes))
                         + 8 * 1024 * 1024))

    flops = 2 * Bp * HP * (d_in + HP + OUT_PAD)
    bytes_accessed = param_bytes + Bp * d_in * 2 + Bp * OUT_PAD * 4

    out = pl.pallas_call(
        minenet_kernel,
        out_shape=jax.ShapeDtypeStruct((Bp, OUT_PAD), jnp.float32),
        grid_spec=pltpu.PrefetchScalarGridSpec(
            num_scalar_prefetch=0,
            grid=(n_tiles,),
            in_specs=[
                pl.BlockSpec((TB, d_in), lambda i: (i, 0)),   # [x|t] tile
                const_spec((d_in, HP)),                       # W1   (resident)
                const_spec((1, HP)),                          # b1
                const_spec((HP, HP)),                         # W2   (resident)
                const_spec((1, HP)),                          # b2
                const_spec((HP, OUT_PAD)),                    # W3   (resident)
                const_spec((1, OUT_PAD)),                     # b3
            ],
            out_specs=pl.BlockSpec((TB, OUT_PAD), lambda i: (i, 0)),
        ),
        compiler_params=pltpu.CompilerParams(
            dimension_semantics=("parallel",),    # megacore / v7x 2-TC sharding
            vmem_limit_bytes=vmem_limit,
        ),
        cost_estimate=pl.CostEstimate(
            flops=int(flops), transcendentals=0,
            bytes_accessed=int(bytes_accessed)),
    )(xin, w1p, b1p, w2p, b2p, w3p, b3p)

    return out[:B, :1]                            # drop batch + lane padding


def init_params(key, d_in=20, d_h=1500, d_out=1):
    # PyTorch-Linear-style uniform init; weights stored as [in, out].
    ks = jax.random.split(key, 6)

    def lin(kw, kb, fan_in, fan_out):
        bound = 1.0 / (fan_in ** 0.5)
        w = jax.random.uniform(kw, (fan_in, fan_out), jnp.float32, -bound, bound)
        b = jax.random.uniform(kb, (1, fan_out), jnp.float32, -bound, bound)
        return w, b

    w1, b1 = lin(ks[0], ks[1], d_in, d_h)
    w2, b2 = lin(ks[2], ks[3], d_h, d_h)
    w3, b3 = lin(ks[4], ks[5], d_h, d_out)
    return w1, b1, w2, b2, w3, b3


def reference(x, t, w1, b1, w2, b2, w3, b3):
    # Pure-JAX reference using the SAME numerics as the kernel: bf16 matmul
    # operands, f32 accumulation + bias add, bf16 leaky_relu intermediates.
    def mm(a, w):
        return jnp.dot(a.astype(jnp.bfloat16), w.astype(jnp.bfloat16),
                       preferred_element_type=jnp.float32)

    xin = jnp.concatenate([x, t], axis=1)
    h1 = (mm(xin, w1) + b1).astype(jnp.bfloat16)
    h1 = jnp.maximum(h1, NEG_SLOPE * h1)
    h2 = (mm(h1, w2) + b2).astype(jnp.bfloat16)
    h2 = jnp.maximum(h2, NEG_SLOPE * h2)
    return mm(h2, w3) + b3


if __name__ == "__main__":
    key = jax.random.PRNGKey(0)
    kx, kt, kp = jax.random.split(key, 3)
    B, DX, DT = 128, 10, 10                       # input_dim = DX + DT = 20
    x = jax.random.normal(kx, (B, DX), jnp.float32)
    t = jax.random.normal(kt, (B, DT), jnp.float32)
    params = init_params(kp, DX + DT, 1500, 1)

    # Default block_b; tiling logic forces >=2 grid steps (TB=64, grid=(2,)),
    # exercising both the batch grid and the megacore "parallel" axis.
    h3 = minenet_forward(x, t, *params)
    h3 = jax.block_until_ready(h3)

    ref = jax.block_until_ready(reference(x, t, *params))
    assert h3.shape == (B, 1) and h3.dtype == jnp.float32
    assert jnp.allclose(h3, ref, atol=2e-3, rtol=2e-3), "mismatch vs reference"

    print("KERNEL_OK")
</pallas_src>

<mosaic_0001>
module attributes {stable_mosaic.version = 11 : i64} {
  func.func @minenet_kernel(%arg0: i32, %arg1: memref<64x20xbf16, #tpu.memory_space<vmem>>, %arg2: memref<20x1536xbf16, #tpu.memory_space<vmem>>, %arg3: memref<1x1536xf32, #tpu.memory_space<vmem>>, %arg4: memref<1536x1536xbf16, #tpu.memory_space<vmem>>, %arg5: memref<1x1536xf32, #tpu.memory_space<vmem>>, %arg6: memref<1536x128xbf16, #tpu.memory_space<vmem>>, %arg7: memref<1x128xf32, #tpu.memory_space<vmem>>, %arg8: memref<64x128xf32, #tpu.memory_space<vmem>>) attributes {dimension_semantics = [#tpu.dimension_semantics<parallel>], iteration_bounds = array<i64: 2>, scalar_prefetch = 0 : i64, scratch_operands = 0 : i64, tpu.core_type = #tpu.core_type<tc>, window_params = [{transform_indices = @transform_0, window_bounds = array<i64: 64, 20>}, {pipeline_mode = #tpu.pipeline_mode<synchronous>, transform_indices = @transform_1, window_bounds = array<i64: 20, 1536>}, {pipeline_mode = #tpu.pipeline_mode<synchronous>, transform_indices = @transform_2, window_bounds = array<i64: 1, 1536>}, {pipeline_mode = #tpu.pipeline_mode<synchronous>, transform_indices = @transform_3, window_bounds = array<i64: 1536, 1536>}, {pipeline_mode = #tpu.pipeline_mode<synchronous>, transform_indices = @transform_4, window_bounds = array<i64: 1, 1536>}, {pipeline_mode = #tpu.pipeline_mode<synchronous>, transform_indices = @transform_5, window_bounds = array<i64: 1536, 128>}, {pipeline_mode = #tpu.pipeline_mode<synchronous>, transform_indices = @transform_6, window_bounds = array<i64: 1, 128>}, {transform_indices = @transform_7, window_bounds = array<i64: 64, 128>}]} {
    %c0 = arith.constant 0 : index
    %c0_0 = arith.constant 0 : index
    %0 = vector.load %arg1[%c0, %c0_0] : memref<64x20xbf16, #tpu.memory_space<vmem>>, vector<64x20xbf16>
    %c0_1 = arith.constant 0 : index
    %c0_2 = arith.constant 0 : index
    %1 = vector.load %arg2[%c0_1, %c0_2] : memref<20x1536xbf16, #tpu.memory_space<vmem>>, vector<20x1536xbf16>
    %cst = arith.constant dense<0.000000e+00> : vector<64x1536xf32>
    %2 = tpu.matmul %0, %1, %cst {dimension_numbers = #tpu.dot_dimension_numbers<[1], [0], [0], [1], [0, 0, 1, 1], [], []>} : vector<64x20xbf16>, vector<20x1536xbf16>, vector<64x1536xf32> -> vector<64x1536xf32>
    %c0_3 = arith.constant 0 : index
    %c0_4 = arith.constant 0 : index
    %3 = vector.load %arg3[%c0_3, %c0_4] : memref<1x1536xf32, #tpu.memory_space<vmem>>, vector<1x1536xf32>
    %4 = vector.broadcast %3 : vector<1x1536xf32> to vector<64x1536xf32>
    %5 = arith.addf %2, %4 : vector<64x1536xf32>
    %6 = arith.truncf %5 : vector<64x1536xf32> to vector<64x1536xbf16>
    %cst_5 = arith.constant 9.994500e-04 : bf16
    %7 = vector.broadcast %cst_5 : bf16 to vector<64x1536xbf16>
    %8 = arith.mulf %7, %6 : vector<64x1536xbf16>
    %9 = arith.maximumf %6, %8 : vector<64x1536xbf16>
    %c0_6 = arith.constant 0 : index
    %c0_7 = arith.constant 0 : index
    %10 = vector.load %arg4[%c0_6, %c0_7] : memref<1536x1536xbf16, #tpu.memory_space<vmem>>, vector<1536x1536xbf16>
    %cst_8 = arith.constant dense<0.000000e+00> : vector<64x1536xf32>
    %11 = tpu.matmul %9, %10, %cst_8 {dimension_numbers = #tpu.dot_dimension_numbers<[1], [0], [0], [1], [0, 0, 1, 1], [], []>} : vector<64x1536xbf16>, vector<1536x1536xbf16>, vector<64x1536xf32> -> vector<64x1536xf32>
    %c0_9 = arith.constant 0 : index
    %c0_10 = arith.constant 0 : index
    %12 = vector.load %arg5[%c0_9, %c0_10] : memref<1x1536xf32, #tpu.memory_space<vmem>>, vector<1x1536xf32>
    %13 = vector.broadcast %12 : vector<1x1536xf32> to vector<64x1536xf32>
    %14 = arith.addf %11, %13 : vector<64x1536xf32>
    %15 = arith.truncf %14 : vector<64x1536xf32> to vector<64x1536xbf16>
    %cst_11 = arith.constant 9.994500e-04 : bf16
    %16 = vector.broadcast %cst_11 : bf16 to vector<64x1536xbf16>
    %17 = arith.mulf %16, %15 : vector<64x1536xbf16>
    %18 = arith.maximumf %15, %17 : vector<64x1536xbf16>
    %c0_12 = arith.constant 0 : index
    %c0_13 = arith.constant 0 : index
    %19 = vector.load %arg6[%c0_12, %c0_13] : memref<1536x128xbf16, #tpu.memory_space<vmem>>, vector<1536x128xbf16>
    %cst_14 = arith.constant dense<0.000000e+00> : vector<64x128xf32>
    %20 = tpu.matmul %18, %19, %cst_14 {dimension_numbers = #tpu.dot_dimension_numbers<[1], [0], [0], [1], [0, 0, 1, 1], [], []>} : vector<64x1536xbf16>, vector<1536x128xbf16>, vector<64x128xf32> -> vector<64x128xf32>
    %c0_15 = arith.constant 0 : index
    %c0_16 = arith.constant 0 : index
    %21 = vector.load %arg7[%c0_15, %c0_16] : memref<1x128xf32, #tpu.memory_space<vmem>>, vector<1x128xf32>
    %22 = vector.broadcast %21 : vector<1x128xf32> to vector<64x128xf32>
    %23 = arith.addf %20, %22 : vector<64x128xf32>
    %c0_17 = arith.constant 0 : index
    %c0_18 = arith.constant 0 : index
    %24 = vector.load %arg8[%c0_17, %c0_18] : memref<64x128xf32, #tpu.memory_space<vmem>>, vector<64x128xf32>
    tpu.vector_store %arg8[%c0_17, %c0_18], %23 {strides = array<i32>} : memref<64x128xf32, #tpu.memory_space<vmem>>, vector<64x128xf32>,
    return
  }
  func.func @transform_0(%arg0: i32) -> (i32, i32) {
    %c0_i32 = arith.constant 0 : i32
    %c0_i32_0 = arith.constant 0 : i32
    return %arg0, %c0_i32 : i32, i32
  }
  func.func @transform_1(%arg0: i32) -> (i32, i32) {
    %c0_i32 = arith.constant 0 : i32
    %c0_i32_0 = arith.constant 0 : i32
    %c0_i32_1 = arith.constant 0 : i32
    return %c0_i32, %c0_i32_0 : i32, i32
  }
  func.func @transform_2(%arg0: i32) -> (i32, i32) {
    %c0_i32 = arith.constant 0 : i32
    %c0_i32_0 = arith.constant 0 : i32
    %c0_i32_1 = arith.constant 0 : i32
    return %c0_i32, %c0_i32_0 : i32, i32
  }
  func.func @transform_3(%arg0: i32) -> (i32, i32) {
    %c0_i32 = arith.constant 0 : i32
    %c0_i32_0 = arith.constant 0 : i32
    %c0_i32_1 = arith.constant 0 : i32
    return %c0_i32, %c0_i32_0 : i32, i32
  }
  func.func @transform_4(%arg0: i32) -> (i32, i32) {
    %c0_i32 = arith.constant 0 : i32
    %c0_i32_0 = arith.constant 0 : i32
    %c0_i32_1 = arith.constant 0 : i32
    return %c0_i32, %c0_i32_0 : i32, i32
  }
  func.func @transform_5(%arg0: i32) -> (i32, i32) {
    %c0_i32 = arith.constant 0 : i32
    %c0_i32_0 = arith.constant 0 : i32
    %c0_i32_1 = arith.constant 0 : i32
    return %c0_i32, %c0_i32_0 : i32, i32
  }
  func.func @transform_6(%arg0: i32) -> (i32, i32) {
    %c0_i32 = arith.constant 0 : i32
    %c0_i32_0 = arith.constant 0 : i32
    %c0_i32_1 = arith.constant 0 : i32
    return %c0_i32, %c0_i32_0 : i32, i32
  }
  func.func @transform_7(%arg0: i32) -> (i32, i32) {
    %c0_i32 = arith.constant 0 : i32
    %c0_i32_0 = arith.constant 0 : i32
    return %arg0, %c0_i32 : i32, i32
  }
}

</mosaic_0001>

<llo_original>
// kernel: tpu_custom_call.1
$region0: #{tpu_custom_call.1}
  #allocation0 [shape = 'u32[]', space=smem, size = 0x4, offset = 0x4, fixed_abs, tag = 'smem constant byte address 0x4 - core index']
  #allocation1 [shape = 'u32[144,128]{1,0:T(1,128)}', space=vmem, size = 0x12000, scoped, tag = 'internal scratch']
  %s0 = inlined_call_operand.vmem [shape: bf16[128,20], index: 0, kind: input, shape index: {}]
  %s1 = inlined_call_operand.hbm [shape: bf16[20,1536], index: 1, kind: input, shape index: {}]
  %s2 = inlined_call_operand.hbm [shape: f32[1,1536], index: 2, kind: input, shape index: {}]
  %s3 = inlined_call_operand.hbm [shape: bf16[1536,1536], index: 3, kind: input, shape index: {}]
  %s4 = inlined_call_operand.hbm [shape: f32[1,1536], index: 4, kind: input, shape index: {}]
  %s5 = inlined_call_operand.hbm [shape: bf16[1536,128], index: 5, kind: input, shape index: {}]
  %s6 = inlined_call_operand.hbm [shape: f32[1,128], index: 6, kind: input, shape index: {}]
  %s7 = inlined_call_operand.hbm [shape: f32[128,128], index: 7, kind: output, shape index: {}]
  %s8 = sld [smem:[#allocation0]]
  $region85: #{tpu_custom_call.1} parent=0
    _
  %s10 = ssub.s32 1, %s8
  %s11 = scalar_select 0, %s10, %s8
  $region1: #{tpu_custom_call.1} parent=0
    #allocation2 [shape = 'u8[73728]{0}', space=vmem, size = 0x12000, scoped, tag = 'input window, operand 1, single buffered']
    #allocation3 [shape = 's32[2]{0}', space=sflag, size = 0x8, scoped, tag = 'scoped memory for tpu_custom_call.1']
    #allocation4 [shape = 's32[2]{0}', space=sflag, size = 0x8, scoped, tag = 'scoped memory for tpu_custom_call.1']
    #allocation5 [shape = 'u8[6144]{0}', space=vmem, size = 0x1800, scoped, tag = 'input window, operand 2, single buffered']
    #allocation6 [shape = 's32[1]{0}', space=sflag, size = 0x4, scoped, tag = 'scoped memory for tpu_custom_call.1']
    #allocation7 [shape = 'u8[4718592]{0}', space=vmem, size = 0x480000, scoped, tag = 'input window, operand 3, single buffered']
    #allocation8 [shape = 'u8[6144]{0}', space=vmem, size = 0x1800, scoped, tag = 'input window, operand 4, single buffered']
    #allocation9 [shape = 's32[1]{0}', space=sflag, size = 0x4, scoped, tag = 'scoped memory for tpu_custom_call.1']
    #allocation10 [shape = 'u8[393216]{0}', space=vmem, size = 0x60000, scoped, tag = 'input window, operand 5, single buffered']
    #allocation11 [shape = 'u8[512]{0}', space=vmem, size = 0x400, scoped, tag = 'input window, operand 6, single buffered']
    #allocation12 [shape = 's32[1]{0}', space=sflag, size = 0x4, scoped, tag = 'scoped memory for tpu_custom_call.1']
    #allocation13 [shape = 'u8[65536]{0}', space=vmem, size = 0x10000, scoped, tag = 'output window, operand 0']
    %12 = vsyncpa [#allocation3], 0
    %13 = vsyncpa [#allocation6], 0
    %14 = vsyncpa [#allocation9], 0
    %15 = vsyncpa [#allocation12], 0
    %16 = vsyncpa [#allocation4], 0
    %s17 = scalar_lea.sflag [#allocation4], 1
    %18 = vsyncpa %s17, 0
    loop: start=0, step=1, limit=4
    $region2: #{tpu_custom_call.1} parent=1 // loop_pre_header
      _
    $region3: #{tpu_custom_call.1} parent=1 // loop_header
      %s20 = sphi 0, %s24
      %p21 = scmp.ge.s32.totalorder %s20, 4
      %s30 = sphi 0, %s32
      %s33 = sphi 0, %s30
      %s34 = sphi 0, %s33
      %s50 = sphi 0, %s34
      %s54 = sphi 0, %s54
      %s56 = sphi 0, %s54
      %s57 = sphi 0, %s56
      %s71 = sphi 0, %s57
      %s75 = sphi 0, %s75
      %s77 = sphi 0, %s75
      %s78 = sphi 0, %s77
      %s92 = sphi 0, %s78
      %s96 = sphi 0, %s96
      %s98 = sphi 0, %s96
      %s99 = sphi 0, %s98
      %s113 = sphi 0, %s99
      %s117 = sphi 0, %s117
      %s119 = sphi 0, %s117
      %s120 = sphi 0, %s119
      %s134 = sphi 0, %s120
      %s138 = sphi 0, %s138
      %s140 = sphi 0, %s138
      %s141 = sphi 0, %s140
      %s155 = sphi 0, %s141
      %s159 = sphi 0, %s159
      %s161 = sphi 0, %s159
      %s162 = sphi 0, %s161
      %s176 = sphi 0, %s162
      %s182 = sphi 0, %s184
      %s185 = sphi 0, %s182
      %s186 = sphi 0, %s185
      %s202 = sphi 0, %s186
    $region4: #{tpu_custom_call.1} parent=1 // loop_header_branch
      %23 = sbr.rel (%p21) target = $region8
    $region5: #{tpu_custom_call.1} parent=1 // loop_body
      %s25 = ssub.s32 %s20, 1
      %s26 = ssub.s32 %s20, 2
      %s27 = sadd.s32 %s20, 1
      %s28 = ssub.s32 %s20, %s27
      %p29 = scmp.eq.s32.totalorder %s28, 0
      %s31 = sadd.s32 %s30, 1
      %s32 = scalar_select %p29, %s30, %s31
      %p35 = pneg %p29
      %p36 = scmp.eq.s32.totalorder %s20, 1
      %p37 = por %p35, %p36
      %p38 = scmp.ne.s32.totalorder %s30, %s33
      %p39 = scmp.eq.s32.totalorder %s20, 0
      %p40 = por %p38, %p39
      %p41 = scmp.ne.s32.totalorder %s30, %s33
      %p42 = scmp.eq.s32.totalorder %s25, 1
      %p43 = por %p41, %p42
      %p44 = scmp.ne.s32.totalorder %s33, %s34
      %p45 = scmp.eq.s32.totalorder %s25, 0
      %p46 = por %p44, %p45
      %p47 = scmp.ne.s32.totalorder %s33, %s34
      %p48 = scmp.eq.s32.totalorder %s26, 1
      %p49 = por %p47, %p48
      %p51 = scmp.ne.s32.totalorder %s34, %s50
      %p52 = scmp.eq.s32.totalorder %s26, 0
      %p53 = por %p51, %p52
      %s55 = sadd.s32 %s54, 1
      %p58 = scmp.eq.s32.totalorder %s20, 1
      %p59 = scmp.ne.s32.totalorder %s54, %s56
      %p60 = scmp.eq.s32.totalorder %s20, 0
      %p61 = por %p59, %p60
      %p62 = scmp.ne.s32.totalorder %s54, %s56
      %p63 = scmp.eq.s32.totalorder %s25, 1
      %p64 = por %p62, %p63
      %p65 = scmp.ne.s32.totalorder %s56, %s57
      %p66 = scmp.eq.s32.totalorder %s25, 0
      %p67 = por %p65, %p66
      %p68 = scmp.ne.s32.totalorder %s56, %s57
      %p69 = scmp.eq.s32.totalorder %s26, 1
      %p70 = por %p68, %p69
      %p72 = scmp.ne.s32.totalorder %s57, %s71
      %p73 = scmp.eq.s32.totalorder %s26, 0
      %p74 = por %p72, %p73
      %s76 = sadd.s32 %s75, 1
      %p79 = scmp.eq.s32.totalorder %s20, 1
      %p80 = scmp.ne.s32.totalorder %s75, %s77
      %p81 = scmp.eq.s32.totalorder %s20, 0
      %p82 = por %p80, %p81
      %p83 = scmp.ne.s32.totalorder %s75, %s77
      %p84 = scmp.eq.s32.totalorder %s25, 1
      %p85 = por %p83, %p84
      %p86 = scmp.ne.s32.totalorder %s77, %s78
      %p87 = scmp.eq.s32.totalorder %s25, 0
      %p88 = por %p86, %p87
      %p89 = scmp.ne.s32.totalorder %s77, %s78
      %p90 = scmp.eq.s32.totalorder %s26, 1
      %p91 = por %p89, %p90
      %p93 = scmp.ne.s32.totalorder %s78, %s92
      %p94 = scmp.eq.s32.totalorder %s26, 0
      %p95 = por %p93, %p94
      %s97 = sadd.s32 %s96, 1
      %p100 = scmp.eq.s32.totalorder %s20, 1
      %p101 = scmp.ne.s32.totalorder %s96, %s98
      %p102 = scmp.eq.s32.totalorder %s20, 0
      %p103 = por %p101, %p102
      %p104 = scmp.ne.s32.totalorder %s96, %s98
      %p105 = scmp.eq.s32.totalorder %s25, 1
      %p106 = por %p104, %p105
      %p107 = scmp.ne.s32.totalorder %s98, %s99
      %p108 = scmp.eq.s32.totalorder %s25, 0
      %p109 = por %p107, %p108
      %p110 = scmp.ne.s32.totalorder %s98, %s99
      %p111 = scmp.eq.s32.totalorder %s26, 1
      %p112 = por %p110, %p111
      %p114 = scmp.ne.s32.totalorder %s99, %s113
      %p115 = scmp.eq.s32.totalorder %s26, 0
      %p116 = por %p114, %p115
      %s118 = sadd.s32 %s117, 1
      %p121 = scmp.eq.s32.totalorder %s20, 1
      %p122 = scmp.ne.s32.totalorder %s117, %s119
      %p123 = scmp.eq.s32.totalorder %s20, 0
      %p124 = por %p122, %p123
      %p125 = scmp.ne.s32.totalorder %s117, %s119
      %p126 = scmp.eq.s32.totalorder %s25, 1
      %p127 = por %p125, %p126
      %p128 = scmp.ne.s32.totalorder %s119, %s120
      %p129 = scmp.eq.s32.totalorder %s25, 0
      %p130 = por %p128, %p129
      %p131 = scmp.ne.s32.totalorder %s119, %s120
      %p132 = scmp.eq.s32.totalorder %s26, 1
      %p133 = por %p131, %p132
      %p135 = scmp.ne.s32.totalorder %s120, %s134
      %p136 = scmp.eq.s32.totalorder %s26, 0
      %p137 = por %p135, %p136
      %s139 = sadd.s32 %s138, 1
      %p142 = scmp.eq.s32.totalorder %s20, 1
      %p143 = scmp.ne.s32.totalorder %s138, %s140
      %p144 = scmp.eq.s32.totalorder %s20, 0
      %p145 = por %p143, %p144
      %p146 = scmp.ne.s32.totalorder %s138, %s140
      %p147 = scmp.eq.s32.totalorder %s25, 1
      %p148 = por %p146, %p147
      %p149 = scmp.ne.s32.totalorder %s140, %s141
      %p150 = scmp.eq.s32.totalorder %s25, 0
      %p151 = por %p149, %p150
      %p152 = scmp.ne.s32.totalorder %s140, %s141
      %p153 = scmp.eq.s32.totalorder %s26, 1
      %p154 = por %p152, %p153
      %p156 = scmp.ne.s32.totalorder %s141, %s155
      %p157 = scmp.eq.s32.totalorder %s26, 0
      %p158 = por %p156, %p157
      %s160 = sadd.s32 %s159, 1
      %p163 = scmp.eq.s32.totalorder %s20, 1
      %p164 = scmp.ne.s32.totalorder %s159, %s161
      %p165 = scmp.eq.s32.totalorder %s20, 0
      %p166 = por %p164, %p165
      %p167 = scmp.ne.s32.totalorder %s159, %s161
      %p168 = scmp.eq.s32.totalorder %s25, 1
      %p169 = por %p167, %p168
      %p170 = scmp.ne.s32.totalorder %s161, %s162
      %p171 = scmp.eq.s32.totalorder %s25, 0
      %p172 = por %p170, %p171
      %p173 = scmp.ne.s32.totalorder %s161, %s162
      %p174 = scmp.eq.s32.totalorder %s26, 1
      %p175 = por %p173, %p174
      %p177 = scmp.ne.s32.totalorder %s162, %s176
      %p178 = scmp.eq.s32.totalorder %s26, 0
      %p179 = por %p177, %p178
      %s180 = ssub.s32 %s20, %s27
      %p181 = scmp.eq.s32.totalorder %s180, 0
      %s183 = sadd.s32 %s182, 1
      %s184 = scalar_select %p181, %s182, %s183
      %p187 = pneg %p181
      %p188 = scmp.eq.s32.totalorder %s20, 1
      %p189 = por %p187, %p188
      %p190 = scmp.ne.s32.totalorder %s182, %s185
      %p191 = scmp.eq.s32.totalorder %s20, 0
      %p192 = por %p190, %p191
      %p193 = scmp.ne.s32.totalorder %s182, %s185
      %p194 = scmp.eq.s32.totalorder %s25, 1
      %p195 = por %p193, %p194
      %p196 = scmp.ne.s32.totalorder %s185, %s186
      %p197 = scmp.eq.s32.totalorder %s25, 0
      %p198 = por %p196, %p197
      %p199 = scmp.ne.s32.totalorder %s185, %s186
      %p200 = scmp.eq.s32.totalorder %s26, 1
      %p201 = por %p199, %p200
      %p203 = scmp.ne.s32.totalorder %s186, %s202
      %p204 = scmp.eq.s32.totalorder %s26, 0
      %p205 = por %p203, %p204
      %p206 = scmp.le.s32.totalorder 1, %s20
      %p207 = scmp.lt.s32.totalorder %s20, 3
      %p208 = pnand %p206, %p207
      %p209 = pneg %p208
      // Predicated region
      $region9: #{tpu_custom_call.1} parent=5 // pred_check
        _
      $region10: #{tpu_custom_call.1} parent=5 // pred_check_branch
        %211 = sbr.rel (%p208) target = $region12
      $region11: #{tpu_custom_call.1} parent=5 // pred_region
        %s212 = ssub.s32 %s20, 1
        // Predicated region
        $region13: #{tpu_custom_call.1} parent=11 // pred_check
          %p213 = pneg %p67
        $region14: #{tpu_custom_call.1} parent=11 // pred_check_branch
          %215 = sbr.rel (%p213) target = $region16
        $region15: #{tpu_custom_call.1} parent=11 // pred_region
          %s217 = ssub.s32 2304, 2304
          %218 = vsyncadd [#allocation3], %s217
          %s219 = sshll.u32 [#allocation2], 4
          %s220 = int_to_ptr.vmem [resolvable:$true] %s219
          %225 = dma.hbm_to_vmem [thread:$0]  %s1, 2304, %s220, [#allocation3], 768, 768, 48
        $region16: #{tpu_custom_call.1} parent=11 // pred_fallthru
          _
        // Predicated region
        $region17: #{tpu_custom_call.1} parent=11 // pred_check
          %p226 = pneg %p88
        $region18: #{tpu_custom_call.1} parent=11 // pred_check_branch
          %228 = sbr.rel (%p226) target = $region20
        $region19: #{tpu_custom_call.1} parent=11 // pred_region
          %s230 = ssub.s32 192, 192
          %231 = vsyncadd [#allocation6], %s230
          %s233 = sshll.u32 [#allocation5], 4
          %s234 = int_to_ptr.vmem [resolvable:$true] %s233
          %236 = dma.hbm_to_vmem [thread:$0]  %s2, 192, %s234, [#allocation6]
        $region20: #{tpu_custom_call.1} parent=11 // pred_fallthru
          _
        // Predicated region
        $region21: #{tpu_custom_call.1} parent=11 // pred_check
          %p237 = pneg %p109
        $region22: #{tpu_custom_call.1} parent=11 // pred_check_branch
          %239 = sbr.rel (%p237) target = $region24
        $region23: #{tpu_custom_call.1} parent=11 // pred_region
          %s241 = ssub.s32 147456, 147456
          %242 = vsyncadd [#allocation6], %s241
          %s243 = sshll.u32 [#allocation7], 4
          %s244 = int_to_ptr.vmem [resolvable:$true] %s243
          %249 = dma.hbm_to_vmem [thread:$0]  %s3, 147456, %s244, [#allocation6], 768, 768, 48
        $region24: #{tpu_custom_call.1} parent=11 // pred_fallthru
          _
        // Predicated region
        $region25: #{tpu_custom_call.1} parent=11 // pred_check
          %p250 = pneg %p130
        $region26: #{tpu_custom_call.1} parent=11 // pred_check_branch
          %252 = sbr.rel (%p250) target = $region28
        $region27: #{tpu_custom_call.1} parent=11 // pred_region
          %s254 = ssub.s32 192, 192
          %255 = vsyncadd [#allocation9], %s254
          %s257 = sshll.u32 [#allocation8], 4
          %s258 = int_to_ptr.vmem [resolvable:$true] %s257
          %260 = dma.hbm_to_vmem [thread:$0]  %s4, 192, %s258, [#allocation9]
        $region28: #{tpu_custom_call.1} parent=11 // pred_fallthru
          _
        // Predicated region
        $region29: #{tpu_custom_call.1} parent=11 // pred_check
          %p261 = pneg %p151
        $region30: #{tpu_custom_call.1} parent=11 // pred_check_branch
          %263 = sbr.rel (%p261) target = $region32
        $region31: #{tpu_custom_call.1} parent=11 // pred_region
          %s265 = ssub.s32 12288, 12288
          %266 = vsyncadd [#allocation9], %s265
          %s267 = sshll.u32 [#allocation10], 4
          %s268 = int_to_ptr.vmem [resolvable:$true] %s267
          %273 = dma.hbm_to_vmem [thread:$0]  %s5, 12288, %s268, [#allocation9], 64, 64, 4
        $region32: #{tpu_custom_call.1} parent=11 // pred_fallthru
          _
        // Predicated region
        $region33: #{tpu_custom_call.1} parent=11 // pred_check
          %p274 = pneg %p172
        $region34: #{tpu_custom_call.1} parent=11 // pred_check_branch
          %276 = sbr.rel (%p274) target = $region36
        $region35: #{tpu_custom_call.1} parent=11 // pred_region
          %s278 = ssub.s32 16, 16
          %279 = vsyncadd [#allocation12], %s278
          %s281 = sshll.u32 [#allocation11], 4
          %s282 = int_to_ptr.vmem [resolvable:$true] %s281
          %284 = dma.hbm_to_vmem [thread:$0]  %s6, 16, %s282, [#allocation12]
        $region36: #{tpu_custom_call.1} parent=11 // pred_fallthru
          _
      $region12: #{tpu_custom_call.1} parent=5 // pred_fallthru
        _
      %p285 = scmp.lt.s32.totalorder %s20, 2
      // Predicated region
      $region37: #{tpu_custom_call.1} parent=5 // pred_check
        %p286 = pneg %p285
      $region38: #{tpu_custom_call.1} parent=5 // pred_check_branch
        %288 = sbr.rel (%p286) target = $region40
      $region39: #{tpu_custom_call.1} parent=5 // pred_region
        // Predicated region
        $region41: #{tpu_custom_call.1} parent=39 // pred_check
          %p289 = pneg %p40
        $region42: #{tpu_custom_call.1} parent=39 // pred_check_branch
          %291 = sbr.rel (%p289) target = $region44
        $region43: #{tpu_custom_call.1} parent=39 // pred_region
          %s292 = smul.u32 8, %s20
          %p293 = scmp.lt.s32.totalorder %s292, 15
          %s294 = scalar_select %p293, %s292, 15
          %s295 = smul.addr %s294, 4
          %s296 = scalar_lea.vmem %s0, %s295
          %s297 = smul.u32 8, %s20
        $region44: #{tpu_custom_call.1} parent=39 // pred_fallthru
          _
      $region40: #{tpu_custom_call.1} parent=5 // pred_fallthru
        _
      %p298 = scmp.le.s32.totalorder 1, %s20
      %p299 = scmp.lt.s32.totalorder %s20, 3
      %p300 = pnand %p298, %p299
      %p301 = pneg %p300
      // Predicated region
      $region45: #{tpu_custom_call.1} parent=5 // pred_check
        _
      $region46: #{tpu_custom_call.1} parent=5 // pred_check_branch
        %303 = sbr.rel (%p300) target = $region48
      $region47: #{tpu_custom_call.1} parent=5 // pred_region
        %s304 = ssub.s32 %s20, 1
        // Predicated region
        $region49: #{tpu_custom_call.1} parent=47 // pred_check
          %p305 = pneg %p67
        $region50: #{tpu_custom_call.1} parent=47 // pred_check_branch
          %307 = sbr.rel (%p305) target = $region52
        $region51: #{tpu_custom_call.1} parent=47 // pred_region
          %308 = dma.done [#allocation3], 2304
        $region52: #{tpu_custom_call.1} parent=47 // pred_fallthru
          _
        // Predicated region
        $region53: #{tpu_custom_call.1} parent=47 // pred_check
          %p309 = pneg %p88
        $region54: #{tpu_custom_call.1} parent=47 // pred_check_branch
          %311 = sbr.rel (%p309) target = $region56
        $region55: #{tpu_custom_call.1} parent=47 // pred_region
          %312 = dma.done [#allocation6], 192
        $region56: #{tpu_custom_call.1} parent=47 // pred_fallthru
          _
        // Predicated region
        $region57: #{tpu_custom_call.1} parent=47 // pred_check
          %p313 = pneg %p109
        $region58: #{tpu_custom_call.1} parent=47 // pred_check_branch
          %315 = sbr.rel (%p313) target = $region60
        $region59: #{tpu_custom_call.1} parent=47 // pred_region
          %316 = dma.done [#allocation6], 147456
        $region60: #{tpu_custom_call.1} parent=47 // pred_fallthru
          _
        // Predicated region
        $region61: #{tpu_custom_call.1} parent=47 // pred_check
          %p317 = pneg %p130
        $region62: #{tpu_custom_call.1} parent=47 // pred_check_branch
          %319 = sbr.rel (%p317) target = $region64
        $region63: #{tpu_custom_call.1} parent=47 // pred_region
          %320 = dma.done [#allocation9], 192
        $region64: #{tpu_custom_call.1} parent=47 // pred_fallthru
          _
        // Predicated region
        $region65: #{tpu_custom_call.1} parent=47 // pred_check
          %p321 = pneg %p151
        $region66: #{tpu_custom_call.1} parent=47 // pred_check_branch
          %323 = sbr.rel (%p321) target = $region68
        $region67: #{tpu_custom_call.1} parent=47 // pred_region
          %324 = dma.done [#allocation9], 12288
        $region68: #{tpu_custom_call.1} parent=47 // pred_fallthru
          _
        // Predicated region
        $region69: #{tpu_custom_call.1} parent=47 // pred_check
          %p325 = pneg %p172
        $region70: #{tpu_custom_call.1} parent=47 // pred_check_branch
          %327 = sbr.rel (%p325) target = $region72
        $region71: #{tpu_custom_call.1} parent=47 // pred_region
          %328 = dma.done [#allocation12], 16
        $region72: #{tpu_custom_call.1} parent=47 // pred_fallthru
          _
        %s329 = smul.u32 8, %s25
        %p330 = scmp.lt.s32.totalorder %s329, 15
        %s331 = scalar_select %p330, %s329, 15
        %s332 = smul.addr %s331, 4
        %s333 = scalar_lea.vmem %s0, %s332
        %p334 = pneg %p46
        %p335 = pneg %p43
        %p336 = pneg %p67
        %p337 = pneg %p64
        %p338 = pneg %p88
        %p339 = pneg %p85
        %p340 = pneg %p109
        %p341 = pneg %p106
        %p342 = pneg %p130
        %p343 = pneg %p127
        %p344 = pneg %p151
        %p345 = pneg %p148
        %p346 = pneg %p172
        %p347 = pneg %p169
        %p348 = pneg %p198
        %p349 = pneg %p195
        %s350 = sand.u32 %s185, 1
        %s351 = scalar_lea.sflag [#allocation4], %s350
        %s352 = sand.u32 %s185, 1
        %s353 = smul.addr %s352, 64
        %s354 = scalar_lea.vmem [#allocation13], %s353
        %s355 = smul.u32 8, %s25
        %p356 = scmp.lt.s32.totalorder %s355, 15
        %s357 = scalar_select %p356, %s355, 15
        %s358 = smul.addr %s357, 4
        %s359 = scalar_lea.vmem %s0, %s358
        %s360 = smul.u32 8, %s25
        %s361 = smul.u32 8, %s25
        %v364 = vld [vmem:[%s359] sm:$0xf]
        %v365 = vld [vmem:[%s359 + $0x4] sm:$0xf]
        %v366 = vld [vmem:[%s359 + $0x8] sm:$0xf]
        %v367 = vld [vmem:[%s359 + $0xc] sm:$0xf]
        %v368 = vld [vmem:[%s359 + $0x10] sm:$0xf]
        %v369 = vld [vmem:[%s359 + $0x14] sm:$0xf]
        %v370 = vld [vmem:[%s359 + $0x18] sm:$0xf]
        %v371 = vld [vmem:[%s359 + $0x1c] sm:$0xf]
        %v372 = vld [vmem:[#allocation2] sm:$0xff]
        %v373 = vld [vmem:[#allocation2 + $0x8] sm:$0xff]
        %v374 = vld [vmem:[#allocation2 + $0x10] sm:$0xff]
        %v375 = vld [vmem:[#allocation2 + $0x18] sm:$0xff]
        %v376 = vld [vmem:[#allocation2 + $0x20] sm:$0xff]
        %v377 = vld [vmem:[#allocation2 + $0x28] sm:$0xff]
        %v378 = vld [vmem:[#allocation2 + $0x30] sm:$0xff]
        %v379 = vld [vmem:[#allocation2 + $0x38] sm:$0xff]
        %v380 = vld [vmem:[#allocation2 + $0x40] sm:$0xff]
        %v381 = vld [vmem:[#allocation2 + $0x48] sm:$0xff]
        %v382 = vld [vmem:[#allocation2 + $0x50] sm:$0xff]
        %v383 = vld [vmem:[#allocation2 + $0x58] sm:$0xff]
        %v384 = vld [vmem:[#allocation2 + $0x60] sm:$0x33]
        %v385 = vld [vmem:[#allocation2 + $0x68] sm:$0x33]
        %v386 = vld [vmem:[#allocation2 + $0x70] sm:$0x33]
        %v387 = vld [vmem:[#allocation2 + $0x78] sm:$0x33]
        %v388 = vld [vmem:[#allocation2 + $0x80] sm:$0x33]
        %v389 = vld [vmem:[#allocation2 + $0x88] sm:$0x33]
        %v390 = vld [vmem:[#allocation5] sm:$0xff]
        %v391 = vld [vmem:[#allocation5 + $0x8] sm:$0xf]
        %v394 = vlaneseq
        %v395 = vshrl.u32 %v394, 7
        %v396 = vsub.s32 0, %v395
        %v397 = vrot.slane %v390, %v396
        %v398 = vlaneseq
        %v399 = vshrl.u32 %v398, 7
        %v400 = vsub.s32 1, %v399
        %v401 = vrot.slane %v390, %v400
        %v402 = vlaneseq
        %v403 = vshrl.u32 %v402, 7
        %v404 = vsub.s32 2, %v403
        %v405 = vrot.slane %v390, %v404
        %v406 = vlaneseq
        %v407 = vshrl.u32 %v406, 7
        %v408 = vsub.s32 3, %v407
        %v409 = vrot.slane %v390, %v408
        %v410 = vlaneseq
        %v411 = vshrl.u32 %v410, 7
        %v412 = vsub.s32 4, %v411
        %v413 = vrot.slane %v390, %v412
        %v414 = vlaneseq
        %v415 = vshrl.u32 %v414, 7
        %v416 = vsub.s32 5, %v415
        %v417 = vrot.slane %v390, %v416
        %v418 = vlaneseq
        %v419 = vshrl.u32 %v418, 7
        %v420 = vsub.s32 6, %v419
        %v421 = vrot.slane %v390, %v420
        %v422 = vlaneseq
        %v423 = vshrl.u32 %v422, 7
        %v424 = vsub.s32 7, %v423
        %v425 = vrot.slane %v390, %v424
        %v426 = vlaneseq
        %v427 = vshrl.u32 %v426, 7
        %v428 = vsub.s32 0, %v427
        %v429 = vrot.slane %v391, %v428
        %v430 = vlaneseq
        %v431 = vshrl.u32 %v430, 7
        %v432 = vsub.s32 1, %v431
        %v433 = vrot.slane %v391, %v432
        %v434 = vlaneseq
        %v435 = vshrl.u32 %v434, 7
        %v436 = vsub.s32 2, %v435
        %v437 = vrot.slane %v391, %v436
        %v438 = vlaneseq
        %v439 = vshrl.u32 %v438, 7
        %v440 = vsub.s32 3, %v439
        %v441 = vrot.slane %v391, %v440
        %v462 = vunpack.c.l.b16 %v364
        %v463 = vunpack.c.l.b16 %v365
        %v464 = vunpack.c.l.b16 %v366
        %v465 = vunpack.c.l.b16 %v367
        %v466 = vunpack.c.l.b16 %v368
        %v467 = vunpack.c.l.b16 %v369
        %v468 = vunpack.c.l.b16 %v370
        %v469 = vunpack.c.l.b16 %v371
        %v470 = vpack.c.b16 %v463, %v462
        %v471 = vpack.c.b16 %v465, %v464
        %v472 = vpack.c.b16 %v467, %v466
        %v473 = vpack.c.b16 %v469, %v468
        %v492 = vunpack.c.l.b16 %v372
        %v493 = vunpack.c.h.b16 %v372
        %v494 = vunpack.c.l.b16 %v373
        %v495 = vunpack.c.h.b16 %v373
        %v496 = vunpack.c.l.b16 %v374
        %v497 = vunpack.c.h.b16 %v374
        %v498 = vunpack.c.l.b16 %v375
        %v499 = vunpack.c.h.b16 %v375
        %v500 = vunpack.c.l.b16 %v376
        %v501 = vunpack.c.h.b16 %v376
        %v502 = vunpack.c.l.b16 %v377
        %v503 = vunpack.c.h.b16 %v377
        %v504 = vunpack.c.l.b16 %v378
        %v505 = vunpack.c.h.b16 %v378
        %v506 = vunpack.c.l.b16 %v379
        %v507 = vunpack.c.h.b16 %v379
        %v508 = vunpack.c.l.b16 %v380
        %v509 = vunpack.c.h.b16 %v380
        %v510 = vunpack.c.l.b16 %v381
        %v511 = vunpack.c.h.b16 %v381
        %v512 = vunpack.c.l.b16 %v382
        %v513 = vunpack.c.h.b16 %v382
        %v514 = vunpack.c.l.b16 %v383
        %v515 = vunpack.c.h.b16 %v383
        %v516 = vunpack.c.l.b16 %v384
        %v517 = vunpack.c.h.b16 %v384
        %v518 = vunpack.c.l.b16 %v385
        %v519 = vunpack.c.h.b16 %v385
        %v520 = vunpack.c.l.b16 %v386
        %v521 = vunpack.c.h.b16 %v386
        %v522 = vunpack.c.l.b16 %v387
        %v523 = vunpack.c.h.b16 %v387
        %v524 = vunpack.c.l.b16 %v388
        %v525 = vunpack.c.h.b16 %v388
        %v526 = vunpack.c.l.b16 %v389
        %v527 = vunpack.c.h.b16 %v389
        %v528 = vpack.c.b16 %v504, %v492
        %v529 = vpack.c.b16 %v505, %v493
        %v530 = vpack.c.b16 %v506, %v494
        %v531 = vpack.c.b16 %v507, %v495
        %v532 = vpack.c.b16 %v508, %v496
        %v533 = vpack.c.b16 %v509, %v497
        %v534 = vpack.c.b16 %v510, %v498
        %v535 = vpack.c.b16 %v511, %v499
        %v536 = vpack.c.b16 %v512, %v500
        %v537 = vpack.c.b16 %v513, %v501
        %v538 = vpack.c.b16 %v514, %v502
        %v539 = vpack.c.b16 %v515, %v503
        %v540 = vpack.c.b16 %v516, %v516
        %v541 = vpack.c.b16 %v517, %v517
        %v542 = vpack.c.b16 %v518, %v518
        %v543 = vpack.c.b16 %v519, %v519
        %v544 = vpack.c.b16 %v520, %v520
        %v545 = vpack.c.b16 %v521, %v521
        %v546 = vpack.c.b16 %v522, %v522
        %v547 = vpack.c.b16 %v523, %v523
        %v548 = vpack.c.b16 %v524, %v524
        %v549 = vpack.c.b16 %v525, %v525
        %v550 = vpack.c.b16 %v526, %v526
        %v551 = vpack.c.b16 %v527, %v527
        %vm564 = vcmask 162816
        %v566 = vsel %vm564, %v470, 0
        %v569 = vsel %vm564, %v471, 0
        %v572 = vsel %vm564, %v472, 0
        %v575 = vsel %vm564, %v473, 0
        %vm577 = vcmask 1041408
        %v579 = vsel %vm577, %v540, 0
        %v582 = vsel %vm577, %v541, 0
        %v585 = vsel %vm577, %v542, 0
        %v588 = vsel %vm577, %v543, 0
        %v591 = vsel %vm577, %v544, 0
        %v594 = vsel %vm577, %v545, 0
        %v597 = vsel %vm577, %v546, 0
        %v600 = vsel %vm577, %v547, 0
        %v603 = vsel %vm577, %v548, 0
        %v606 = vsel %vm577, %v549, 0
        %v609 = vsel %vm577, %v550, 0
        %v612 = vsel %vm577, %v551, 0
        %614 = vmatprep.subr.bf16.mxu0 0
        %615 = vmatpush1.bf16.msra.mxu0 0
        %616 = vmatprep.subr.bf16.mxu0 0
        %617 = vmatpush1.bf16.msra.mxu0 0
        %618 = vmatprep.subr.bf16.mxu0 0
        %619 = vmatpush1.bf16.msra.mxu0 0
        %620 = vmatprep.subr.bf16.mxu0 0
        %621 = vmatpush1.bf16.msra.mxu0 0
        %622 = vmatprep.subr.bf16.mxu0 0
        %623 = vmatpush1.bf16.msra.mxu0 0
        %624 = vmatprep.subr.bf16.mxu0 0
        %625 = vmatpush1.bf16.msra.mxu0 0
        %626 = vmatprep.subr.bf16.mxu0 %v582
        %627 = vmatpush1.bf16.msra.mxu0 %v579
        %628 = vmatprep.subr.bf16.mxu0 %v529
        %629 = vmatpush1.bf16.msra.mxu0 %v528
        %630 = vmatprep.subr.bf16.mxu0 0
        %631 = vmatpush2.bf16.msra.mxu0 0
        %632 = vmatprep.subr.bf16.mxu0 0
        %633 = vmatpush2.bf16.msra.mxu0 0
        %634 = vmatprep.subr.bf16.mxu0 0
        %635 = vmatpush2.bf16.msra.mxu0 0
        %636 = vmatprep.subr.bf16.mxu0 0
        %637 = vmatpush2.bf16.msra.mxu0 0
        %638 = vmatprep.subr.bf16.mxu0 0
        %639 = vmatpush2.bf16.msra.mxu0 0
        %640 = vmatprep.subr.bf16.mxu0 0
        %641 = vmatpush2.bf16.msra.mxu0 0
        %642 = vmatprep.subr.bf16.mxu0 0
        %643 = vmatpush2.bf16.msra.mxu0 0
        %644 = vmatprep.subr.bf16.mxu0 0
        %645 = vmatpush2.bf16.msra.mxu0 0
        %646 = vmatprep.mubr.bf16.mxu0 0
        %647 = vmatmul.mubr.bf16.gmra.mxu0 %v566
        %v648 = vpop.f32.mrf.mxu0
        %v649 = vadd.f32 %v397, %v648
        %v650 = vpop.f32.mrf.mxu0
        %v651 = vadd.f32 %v401, %v650
        %v652 = vpop.f32.mrf.mxu0
        %v653 = vadd.f32 %v397, %v652
        %v654 = vpop.f32.mrf.mxu0
        %v655 = vadd.f32 %v401, %v654
        %656 = vmatprep.mubr.bf16.mxu0 0
        %657 = vmatmul.mubr.bf16.gmra.mxu0 %v569
        %v658 = vpop.f32.mrf.mxu0
        %v659 = vadd.f32 %v397, %v658
        %v660 = vpop.f32.mrf.mxu0
        %v661 = vadd.f32 %v401, %v660
        %v662 = vpop.f32.mrf.mxu0
        %v663 = vadd.f32 %v397, %v662
        %v664 = vpop.f32.mrf.mxu0
        %v665 = vadd.f32 %v401, %v664
        %666 = vmatprep.mubr.bf16.mxu0 0
        %667 = vmatmul.mubr.bf16.gmra.mxu0 %v572
        %v668 = vpop.f32.mrf.mxu0
        %v669 = vadd.f32 %v397, %v668
        %v670 = vpop.f32.mrf.mxu0
        %v671 = vadd.f32 %v401, %v670
        %v672 = vpop.f32.mrf.mxu0
        %v673 = vadd.f32 %v397, %v672
        %v674 = vpop.f32.mrf.mxu0
        %v675 = vadd.f32 %v401, %v674
        %676 = vmatprep.mubr.bf16.mxu0 0
        %677 = vmatmul.mubr.bf16.gmra.mxu0 %v575
        %v678 = vpop.f32.mrf.mxu0
        %v679 = vadd.f32 %v397, %v678
        %v680 = vpop.f32.mrf.mxu0
        %v681 = vadd.f32 %v401, %v680
        %v682 = vpop.f32.mrf.mxu0
        %v683 = vadd.f32 %v397, %v682
        %v684 = vpop.f32.mrf.mxu0
        %v685 = vadd.f32 %v401, %v684
        %686 = vdwg.mxu0
        %687 = vmatprep.subr.bf16.mxu0 0
        %688 = vmatpush1.bf16.msra.mxu0 0
        %689 = vmatprep.subr.bf16.mxu0 0
        %690 = vmatpush1.bf16.msra.mxu0 0
        %691 = vmatprep.subr.bf16.mxu0 0
        %692 = vmatpush1.bf16.msra.mxu0 0
        %693 = vmatprep.subr.bf16.mxu0 0
        %694 = vmatpush1.bf16.msra.mxu0 0
        %695 = vmatprep.subr.bf16.mxu0 0
        %696 = vmatpush1.bf16.msra.mxu0 0
        %697 = vmatprep.subr.bf16.mxu0 0
        %698 = vmatpush1.bf16.msra.mxu0 0
        %699 = vmatprep.subr.bf16.mxu0 %v588
        %700 = vmatpush1.bf16.msra.mxu0 %v585
        %701 = vmatprep.subr.bf16.mxu0 %v531
        %702 = vmatpush1.bf16.msra.mxu0 %v530
        %703 = vmatprep.subr.bf16.mxu0 0
        %704 = vmatpush2.bf16.msra.mxu0 0
        %705 = vmatprep.subr.bf16.mxu0 0
        %706 = vmatpush2.bf16.msra.mxu0 0
        %707 = vmatprep.subr.bf16.mxu0 0
        %708 = vmatpush2.bf16.msra.mxu0 0
        %709 = vmatprep.subr.bf16.mxu0 0
        %710 = vmatpush2.bf16.msra.mxu0 0
        %711 = vmatprep.subr.bf16.mxu0 0
        %712 = vmatpush2.bf16.msra.mxu0 0
        %713 = vmatprep.subr.bf16.mxu0 0
        %714 = vmatpush2.bf16.msra.mxu0 0
        %715 = vmatprep.subr.bf16.mxu0 0
        %716 = vmatpush2.bf16.msra.mxu0 0
        %717 = vmatprep.subr.bf16.mxu0 0
        %718 = vmatpush2.bf16.msra.mxu0 0
        %719 = vmatprep.mubr.bf16.mxu0 0
        %720 = vmatmul.mubr.bf16.gmra.mxu0 %v566
        %v721 = vpop.f32.mrf.mxu0
        %v722 = vadd.f32 %v405, %v721
        %v723 = vpop.f32.mrf.mxu0
        %v724 = vadd.f32 %v409, %v723
        %v725 = vpop.f32.mrf.mxu0
        %v726 = vadd.f32 %v405, %v725
        %v727 = vpop.f32.mrf.mxu0
        %v728 = vadd.f32 %v409, %v727
        %729 = vmatprep.mubr.bf16.mxu0 0
        %730 = vmatmul.mubr.bf16.gmra.mxu0 %v569
        %v731 = vpop.f32.mrf.mxu0
        %v732 = vadd.f32 %v405, %v731
        %v733 = vpop.f32.mrf.mxu0
        %v734 = vadd.f32 %v409, %v733
        %v735 = vpop.f32.mrf.mxu0
        %v736 = vadd.f32 %v405, %v735
        %v737 = vpop.f32.mrf.mxu0
        %v738 = vadd.f32 %v409, %v737
        %739 = vmatprep.mubr.bf16.mxu0 0
        %740 = vmatmul.mubr.bf16.gmra.mxu0 %v572
        %v741 = vpop.f32.mrf.mxu0
        %v742 = vadd.f32 %v405, %v741
        %v743 = vpop.f32.mrf.mxu0
        %v744 = vadd.f32 %v409, %v743
        %v745 = vpop.f32.mrf.mxu0
        %v746 = vadd.f32 %v405, %v745
        %v747 = vpop.f32.mrf.mxu0
        %v748 = vadd.f32 %v409, %v747
        %749 = vmatprep.mubr.bf16.mxu0 0
        %750 = vmatmul.mubr.bf16.gmra.mxu0 %v575
        %v751 = vpop.f32.mrf.mxu0
        %v752 = vadd.f32 %v405, %v751
        %v753 = vpop.f32.mrf.mxu0
        %v754 = vadd.f32 %v409, %v753
        %v755 = vpop.f32.mrf.mxu0
        %v756 = vadd.f32 %v405, %v755
        %v757 = vpop.f32.mrf.mxu0
        %v758 = vadd.f32 %v409, %v757
        %759 = vdwg.mxu0
        %760 = vmatprep.subr.bf16.mxu0 0
        %761 = vmatpush1.bf16.msra.mxu0 0
        %762 = vmatprep.subr.bf16.mxu0 0
        %763 = vmatpush1.bf16.msra.mxu0 0
        %764 = vmatprep.subr.bf16.mxu0 0
        %765 = vmatpush1.bf16.msra.mxu0 0
        %766 = vmatprep.subr.bf16.mxu0 0
        %767 = vmatpush1.bf16.msra.mxu0 0
        %768 = vmatprep.subr.bf16.mxu0 0
        %769 = vmatpush1.bf16.msra.mxu0 0
        %770 = vmatprep.subr.bf16.mxu0 0
        %771 = vmatpush1.bf16.msra.mxu0 0
        %772 = vmatprep.subr.bf16.mxu0 %v594
        %773 = vmatpush1.bf16.msra.mxu0 %v591
        %774 = vmatprep.subr.bf16.mxu0 %v533
        %775 = vmatpush1.bf16.msra.mxu0 %v532
        %776 = vmatprep.subr.bf16.mxu0 0
        %777 = vmatpush2.bf16.msra.mxu0 0
        %778 = vmatprep.subr.bf16.mxu0 0
        %779 = vmatpush2.bf16.msra.mxu0 0
        %780 = vmatprep.subr.bf16.mxu0 0
        %781 = vmatpush2.bf16.msra.mxu0 0
        %782 = vmatprep.subr.bf16.mxu0 0
        %783 = vmatpush2.bf16.msra.mxu0 0
        %784 = vmatprep.subr.bf16.mxu0 0
        %785 = vmatpush2.bf16.msra.mxu0 0
        %786 = vmatprep.subr.bf16.mxu0 0
        %787 = vmatpush2.bf16.msra.mxu0 0
        %788 = vmatprep.subr.bf16.mxu0 0
        %789 = vmatpush2.bf16.msra.mxu0 0
        %790 = vmatprep.subr.bf16.mxu0 0
        %791 = vmatpush2.bf16.msra.mxu0 0
        %792 = vmatprep.mubr.bf16.mxu0 0
        %793 = vmatmul.mubr.bf16.gmra.mxu0 %v566
        %v794 = vpop.f32.mrf.mxu0
        %v795 = vadd.f32 %v413, %v794
        %v796 = vpop.f32.mrf.mxu0
        %v797 = vadd.f32 %v417, %v796
        %v798 = vpop.f32.mrf.mxu0
        %v799 = vadd.f32 %v413, %v798
        %v800 = vpop.f32.mrf.mxu0
        %v801 = vadd.f32 %v417, %v800
        %802 = vmatprep.mubr.bf16.mxu0 0
        %803 = vmatmul.mubr.bf16.gmra.mxu0 %v569
        %v804 = vpop.f32.mrf.mxu0
        %v805 = vadd.f32 %v413, %v804
        %v806 = vpop.f32.mrf.mxu0
        %v807 = vadd.f32 %v417, %v806
        %v808 = vpop.f32.mrf.mxu0
        %v809 = vadd.f32 %v413, %v808
        %v810 = vpop.f32.mrf.mxu0
        %v811 = vadd.f32 %v417, %v810
        %812 = vmatprep.mubr.bf16.mxu0 0
        %813 = vmatmul.mubr.bf16.gmra.mxu0 %v572
        %v814 = vpop.f32.mrf.mxu0
        %v815 = vadd.f32 %v413, %v814
        %v816 = vpop.f32.mrf.mxu0
        %v817 = vadd.f32 %v417, %v816
        %v818 = vpop.f32.mrf.mxu0
        %v819 = vadd.f32 %v413, %v818
        %v820 = vpop.f32.mrf.mxu0
        %v821 = vadd.f32 %v417, %v820
        %822 = vmatprep.mubr.bf16.mxu0 0
        %823 = vmatmul.mubr.bf16.gmra.mxu0 %v575
        %v824 = vpop.f32.mrf.mxu0
        %v825 = vadd.f32 %v413, %v824
        %v826 = vpop.f32.mrf.mxu0
        %v827 = vadd.f32 %v417, %v826
        %v828 = vpop.f32.mrf.mxu0
        %v829 = vadd.f32 %v413, %v828
        %v830 = vpop.f32.mrf.mxu0
        %v831 = vadd.f32 %v417, %v830
        %832 = vdwg.mxu0
        %833 = vmatprep.subr.bf16.mxu0 0
        %834 = vmatpush1.bf16.msra.mxu0 0
        %835 = vmatprep.subr.bf16.mxu0 0
        %836 = vmatpush1.bf16.msra.mxu0 0
        %837 = vmatprep.subr.bf16.mxu0 0
        %838 = vmatpush1.bf16.msra.mxu0 0
        %839 = vmatprep.subr.bf16.mxu0 0
        %840 = vmatpush1.bf16.msra.mxu0 0
        %841 = vmatprep.subr.bf16.mxu0 0
        %842 = vmatpush1.bf16.msra.mxu0 0
        %843 = vmatprep.subr.bf16.mxu0 0
        %844 = vmatpush1.bf16.msra.mxu0 0
        %845 = vmatprep.subr.bf16.mxu0 %v600
        %846 = vmatpush1.bf16.msra.mxu0 %v597
        %847 = vmatprep.subr.bf16.mxu0 %v535
        %848 = vmatpush1.bf16.msra.mxu0 %v534
        %849 = vmatprep.subr.bf16.mxu0 0
        %850 = vmatpush2.bf16.msra.mxu0 0
        %851 = vmatprep.subr.bf16.mxu0 0
        %852 = vmatpush2.bf16.msra.mxu0 0
        %853 = vmatprep.subr.bf16.mxu0 0
        %854 = vmatpush2.bf16.msra.mxu0 0
        %855 = vmatprep.subr.bf16.mxu0 0
        %856 = vmatpush2.bf16.msra.mxu0 0
        %857 = vmatprep.subr.bf16.mxu0 0
        %858 = vmatpush2.bf16.msra.mxu0 0
        %859 = vmatprep.subr.bf16.mxu0 0
        %860 = vmatpush2.bf16.msra.mxu0 0
        %861 = vmatprep.subr.bf16.mxu0 0
        %862 = vmatpush2.bf16.msra.mxu0 0
        %863 = vmatprep.subr.bf16.mxu0 0
        %864 = vmatpush2.bf16.msra.mxu0 0
        %865 = vmatprep.mubr.bf16.mxu0 0
        %866 = vmatmul.mubr.bf16.gmra.mxu0 %v566
        %v867 = vpop.f32.mrf.mxu0
        %v868 = vadd.f32 %v421, %v867
        %v869 = vpop.f32.mrf.mxu0
        %v870 = vadd.f32 %v425, %v869
        %v871 = vpop.f32.mrf.mxu0
        %v872 = vadd.f32 %v421, %v871
        %v873 = vpop.f32.mrf.mxu0
        %v874 = vadd.f32 %v425, %v873
        %875 = vmatprep.mubr.bf16.mxu0 0
        %876 = vmatmul.mubr.bf16.gmra.mxu0 %v569
        %v877 = vpop.f32.mrf.mxu0
        %v878 = vadd.f32 %v421, %v877
        %v879 = vpop.f32.mrf.mxu0
        %v880 = vadd.f32 %v425, %v879
        %v881 = vpop.f32.mrf.mxu0
        %v882 = vadd.f32 %v421, %v881
        %v883 = vpop.f32.mrf.mxu0
        %v884 = vadd.f32 %v425, %v883
        %885 = vmatprep.mubr.bf16.mxu0 0
        %886 = vmatmul.mubr.bf16.gmra.mxu0 %v572
        %v887 = vpop.f32.mrf.mxu0
        %v888 = vadd.f32 %v421, %v887
        %v889 = vpop.f32.mrf.mxu0
        %v890 = vadd.f32 %v425, %v889
        %v891 = vpop.f32.mrf.mxu0
        %v892 = vadd.f32 %v421, %v891
        %v893 = vpop.f32.mrf.mxu0
        %v894 = vadd.f32 %v425, %v893
        %895 = vmatprep.mubr.bf16.mxu0 0
        %896 = vmatmul.mubr.bf16.gmra.mxu0 %v575
        %v897 = vpop.f32.mrf.mxu0
        %v898 = vadd.f32 %v421, %v897
        %v899 = vpop.f32.mrf.mxu0
        %v900 = vadd.f32 %v425, %v899
        %v901 = vpop.f32.mrf.mxu0
        %v902 = vadd.f32 %v421, %v901
        %v903 = vpop.f32.mrf.mxu0
        %v904 = vadd.f32 %v425, %v903
        %905 = vdwg.mxu0
        %906 = vmatprep.subr.bf16.mxu0 0
        %907 = vmatpush1.bf16.msra.mxu0 0
        %908 = vmatprep.subr.bf16.mxu0 0
        %909 = vmatpush1.bf16.msra.mxu0 0
        %910 = vmatprep.subr.bf16.mxu0 0
        %911 = vmatpush1.bf16.msra.mxu0 0
        %912 = vmatprep.subr.bf16.mxu0 0
        %913 = vmatpush1.bf16.msra.mxu0 0
        %914 = vmatprep.subr.bf16.mxu0 0
        %915 = vmatpush1.bf16.msra.mxu0 0
        %916 = vmatprep.subr.bf16.mxu0 0
        %917 = vmatpush1.bf16.msra.mxu0 0
        %918 = vmatprep.subr.bf16.mxu0 %v606
        %919 = vmatpush1.bf16.msra.mxu0 %v603
        %920 = vmatprep.subr.bf16.mxu0 %v537
        %921 = vmatpush1.bf16.msra.mxu0 %v536
        %922 = vmatprep.subr.bf16.mxu0 0
        %923 = vmatpush2.bf16.msra.mxu0 0
        %924 = vmatprep.subr.bf16.mxu0 0
        %925 = vmatpush2.bf16.msra.mxu0 0
        %926 = vmatprep.subr.bf16.mxu0 0
        %927 = vmatpush2.bf16.msra.mxu0 0
        %928 = vmatprep.subr.bf16.mxu0 0
        %929 = vmatpush2.bf16.msra.mxu0 0
        %930 = vmatprep.subr.bf16.mxu0 0
        %931 = vmatpush2.bf16.msra.mxu0 0
        %932 = vmatprep.subr.bf16.mxu0 0
        %933 = vmatpush2.bf16.msra.mxu0 0
        %934 = vmatprep.subr.bf16.mxu0 0
        %935 = vmatpush2.bf16.msra.mxu0 0
        %936 = vmatprep.subr.bf16.mxu0 0
        %937 = vmatpush2.bf16.msra.mxu0 0
        %938 = vmatprep.mubr.bf16.mxu0 0
        %939 = vmatmul.mubr.bf16.gmra.mxu0 %v566
        %v940 = vpop.f32.mrf.mxu0
        %v941 = vadd.f32 %v429, %v940
        %v942 = vpop.f32.mrf.mxu0
        %v943 = vadd.f32 %v433, %v942
        %v944 = vpop.f32.mrf.mxu0
        %v945 = vadd.f32 %v429, %v944
        %v946 = vpop.f32.mrf.mxu0
        %v947 = vadd.f32 %v433, %v946
        %948 = vmatprep.mubr.bf16.mxu0 0
        %949 = vmatmul.mubr.bf16.gmra.mxu0 %v569
        %v950 = vpop.f32.mrf.mxu0
        %v951 = vadd.f32 %v429, %v950
        %v952 = vpop.f32.mrf.mxu0
        %v953 = vadd.f32 %v433, %v952
        %v954 = vpop.f32.mrf.mxu0
        %v955 = vadd.f32 %v429, %v954
        %v956 = vpop.f32.mrf.mxu0
        %v957 = vadd.f32 %v433, %v956
        %958 = vmatprep.mubr.bf16.mxu0 0
        %959 = vmatmul.mubr.bf16.gmra.mxu0 %v572
        %v960 = vpop.f32.mrf.mxu0
        %v961 = vadd.f32 %v429, %v960
        %v962 = vpop.f32.mrf.mxu0
        %v963 = vadd.f32 %v433, %v962
        %v964 = vpop.f32.mrf.mxu0
        %v965 = vadd.f32 %v429, %v964
        %v966 = vpop.f32.mrf.mxu0
        %v967 = vadd.f32 %v433, %v966
        %968 = vmatprep.mubr.bf16.mxu0 0
        %969 = vmatmul.mubr.bf16.gmra.mxu0 %v575
        %v970 = vpop.f32.mrf.mxu0
        %v971 = vadd.f32 %v429, %v970
        %v972 = vpop.f32.mrf.mxu0
        %v973 = vadd.f32 %v433, %v972
        %v974 = vpop.f32.mrf.mxu0
        %v975 = vadd.f32 %v429, %v974
        %v976 = vpop.f32.mrf.mxu0
        %v977 = vadd.f32 %v433, %v976
        %978 = vdwg.mxu0
        %979 = vmatprep.subr.bf16.mxu0 0
        %980 = vmatpush1.bf16.msra.mxu0 0
        %981 = vmatprep.subr.bf16.mxu0 0
        %982 = vmatpush1.bf16.msra.mxu0 0
        %983 = vmatprep.subr.bf16.mxu0 0
        %984 = vmatpush1.bf16.msra.mxu0 0
        %985 = vmatprep.subr.bf16.mxu0 0
        %986 = vmatpush1.bf16.msra.mxu0 0
        %987 = vmatprep.subr.bf16.mxu0 0
        %988 = vmatpush1.bf16.msra.mxu0 0
        %989 = vmatprep.subr.bf16.mxu0 0
        %990 = vmatpush1.bf16.msra.mxu0 0
        %991 = vmatprep.subr.bf16.mxu0 %v612
        %992 = vmatpush1.bf16.msra.mxu0 %v609
        %993 = vmatprep.subr.bf16.mxu0 %v539
        %994 = vmatpush1.bf16.msra.mxu0 %v538
        %995 = vmatprep.subr.bf16.mxu0 0
        %996 = vmatpush2.bf16.msra.mxu0 0
        %997 = vmatprep.subr.bf16.mxu0 0
        %998 = vmatpush2.bf16.msra.mxu0 0
        %999 = vmatprep.subr.bf16.mxu0 0
        %1000 = vmatpush2.bf16.msra.mxu0 0
        %1001 = vmatprep.subr.bf16.mxu0 0
        %1002 = vmatpush2.bf16.msra.mxu0 0
        %1003 = vmatprep.subr.bf16.mxu0 0
        %1004 = vmatpush2.bf16.msra.mxu0 0
        %1005 = vmatprep.subr.bf16.mxu0 0
        %1006 = vmatpush2.bf16.msra.mxu0 0
        %1007 = vmatprep.subr.bf16.mxu0 0
        %1008 = vmatpush2.bf16.msra.mxu0 0
        %1009 = vmatprep.subr.bf16.mxu0 0
        %1010 = vmatpush2.bf16.msra.mxu0 0
        %1011 = vmatprep.mubr.bf16.mxu0 0
        %1012 = vmatmul.mubr.bf16.gmra.mxu0 %v566
        %v1013 = vpop.f32.mrf.mxu0
        %v1014 = vadd.f32 %v437, %v1013
        %v1015 = vpop.f32.mrf.mxu0
        %v1016 = vadd.f32 %v441, %v1015
        %v1017 = vpop.f32.mrf.mxu0
        %v1018 = vadd.f32 %v437, %v1017
        %v1019 = vpop.f32.mrf.mxu0
        %v1020 = vadd.f32 %v441, %v1019
        %1021 = vmatprep.mubr.bf16.mxu0 0
        %1022 = vmatmul.mubr.bf16.gmra.mxu0 %v569
        %v1023 = vpop.f32.mrf.mxu0
        %v1024 = vadd.f32 %v437, %v1023
        %v1025 = vpop.f32.mrf.mxu0
        %v1026 = vadd.f32 %v441, %v1025
        %v1027 = vpop.f32.mrf.mxu0
        %v1028 = vadd.f32 %v437, %v1027
        %v1029 = vpop.f32.mrf.mxu0
        %v1030 = vadd.f32 %v441, %v1029
        %1031 = vmatprep.mubr.bf16.mxu0 0
        %1032 = vmatmul.mubr.bf16.gmra.mxu0 %v572
        %v1033 = vpop.f32.mrf.mxu0
        %v1034 = vadd.f32 %v437, %v1033
        %v1035 = vpop.f32.mrf.mxu0
        %v1036 = vadd.f32 %v441, %v1035
        %v1037 = vpop.f32.mrf.mxu0
        %v1038 = vadd.f32 %v437, %v1037
        %v1039 = vpop.f32.mrf.mxu0
        %v1040 = vadd.f32 %v441, %v1039
        %1041 = vmatprep.mubr.bf16.mxu0 0
        %1042 = vmatmul.mubr.bf16.gmra.mxu0 %v575
        %v1043 = vpop.f32.mrf.mxu0
        %v1044 = vadd.f32 %v437, %v1043
        %v1045 = vpop.f32.mrf.mxu0
        %v1046 = vadd.f32 %v441, %v1045
        %v1047 = vpop.f32.mrf.mxu0
        %v1048 = vadd.f32 %v437, %v1047
        %v1049 = vpop.f32.mrf.mxu0
        %v1050 = vadd.f32 %v441, %v1049
        %1051 = vdwg.mxu0
        %v1052 = vpack.c.bf16 %v653, %v649
        %v1053 = vpack.c.bf16 %v655, %v651
        %v1054 = vpack.c.bf16 %v726, %v722
        %v1055 = vpack.c.bf16 %v728, %v724
        %v1056 = vpack.c.bf16 %v799, %v795
        %v1057 = vpack.c.bf16 %v801, %v797
        %v1058 = vpack.c.bf16 %v872, %v868
        %v1059 = vpack.c.bf16 %v874, %v870
        %v1060 = vpack.c.bf16 %v945, %v941
        %v1061 = vpack.c.bf16 %v947, %v943
        %v1062 = vpack.c.bf16 %v1018, %v1014
        %v1063 = vpack.c.bf16 %v1020, %v1016
        %v1064 = vpack.c.bf16 %v663, %v659
        %v1065 = vpack.c.bf16 %v665, %v661
        %v1066 = vpack.c.bf16 %v736, %v732
        %v1067 = vpack.c.bf16 %v738, %v734
        %v1068 = vpack.c.bf16 %v809, %v805
        %v1069 = vpack.c.bf16 %v811, %v807
        %v1070 = vpack.c.bf16 %v882, %v878
        %v1071 = vpack.c.bf16 %v884, %v880
        %v1072 = vpack.c.bf16 %v955, %v951
        %v1073 = vpack.c.bf16 %v957, %v953
        %v1074 = vpack.c.bf16 %v1028, %v1024
        %v1075 = vpack.c.bf16 %v1030, %v1026
        %v1076 = vpack.c.bf16 %v673, %v669
        %v1077 = vpack.c.bf16 %v675, %v671
        %v1078 = vpack.c.bf16 %v746, %v742
        %v1079 = vpack.c.bf16 %v748, %v744
        %v1080 = vpack.c.bf16 %v819, %v815
        %v1081 = vpack.c.bf16 %v821, %v817
        %v1082 = vpack.c.bf16 %v892, %v888
        %v1083 = vpack.c.bf16 %v894, %v890
        %v1084 = vpack.c.bf16 %v965, %v961
        %v1085 = vpack.c.bf16 %v967, %v963
        %v1086 = vpack.c.bf16 %v1038, %v1034
        %v1087 = vpack.c.bf16 %v1040, %v1036
        %v1088 = vpack.c.bf16 %v683, %v679
        %v1089 = vpack.c.bf16 %v685, %v681
        %v1090 = vpack.c.bf16 %v756, %v752
        %v1091 = vpack.c.bf16 %v758, %v754
        %v1092 = vpack.c.bf16 %v829, %v825
        %v1093 = vpack.c.bf16 %v831, %v827
        %v1094 = vpack.c.bf16 %v902, %v898
        %v1095 = vpack.c.bf16 %v904, %v900
        %v1096 = vpack.c.bf16 %v975, %v971
        %v1097 = vpack.c.bf16 %v977, %v973
        %v1098 = vpack.c.bf16 %v1048, %v1044
        %v1099 = vpack.c.bf16 %v1050, %v1046
        %v1100 = vmul.bf16 %v1052, 981678723
        %v1101 = vmul.bf16 %v1053, 981678723
        %v1102 = vmul.bf16 %v1054, 981678723
        %v1103 = vmul.bf16 %v1055, 981678723
        %v1104 = vmul.bf16 %v1056, 981678723
        %v1105 = vmul.bf16 %v1057, 981678723
        %v1106 = vmul.bf16 %v1058, 981678723
        %v1107 = vmul.bf16 %v1059, 981678723
        %v1108 = vmul.bf16 %v1060, 981678723
        %v1109 = vmul.bf16 %v1061, 981678723
        %v1110 = vmul.bf16 %v1062, 981678723
        %v1111 = vmul.bf16 %v1063, 981678723
        %v1112 = vmul.bf16 %v1064, 981678723
        %v1113 = vmul.bf16 %v1065, 981678723
        %v1114 = vmul.bf16 %v1066, 981678723
        %v1115 = vmul.bf16 %v1067, 981678723
        %v1116 = vmul.bf16 %v1068, 981678723
        %v1117 = vmul.bf16 %v1069, 981678723
        %v1118 = vmul.bf16 %v1070, 981678723
        %v1119 = vmul.bf16 %v1071, 981678723
        %v1120 = vmul.bf16 %v1072, 981678723
        %v1121 = vmul.bf16 %v1073, 981678723
        %v1122 = vmul.bf16 %v1074, 981678723
        %v1123 = vmul.bf16 %v1075, 981678723
        %v1124 = vmul.bf16 %v1076, 981678723
        %v1125 = vmul.bf16 %v1077, 981678723
        %v1126 = vmul.bf16 %v1078, 981678723
        %v1127 = vmul.bf16 %v1079, 981678723
        %v1128 = vmul.bf16 %v1080, 981678723
        %v1129 = vmul.bf16 %v1081, 981678723
        %v1130 = vmul.bf16 %v1082, 981678723
        %v1131 = vmul.bf16 %v1083, 981678723
        %v1132 = vmul.bf16 %v1084, 981678723
        %v1133 = vmul.bf16 %v1085, 981678723
        %v1134 = vmul.bf16 %v1086, 981678723
        %v1135 = vmul.bf16 %v1087, 981678723
        %v1136 = vmul.bf16 %v1088, 981678723
        %v1137 = vmul.bf16 %v1089, 981678723
        %v1138 = vmul.bf16 %v1090, 981678723
        %v1139 = vmul.bf16 %v1091, 981678723
        %v1140 = vmul.bf16 %v1092, 981678723
        %v1141 = vmul.bf16 %v1093, 981678723
        %v1142 = vmul.bf16 %v1094, 981678723
        %v1143 = vmul.bf16 %v1095, 981678723
        %v1144 = vmul.bf16 %v1096, 981678723
        %v1145 = vmul.bf16 %v1097, 981678723
        %v1146 = vmul.bf16 %v1098, 981678723
        %v1147 = vmul.bf16 %v1099, 981678723
        %v1148 = vmax.bf16 %v1052, %v1100
        %v1149 = vmax.bf16 %v1053, %v1101
        %v1150 = vmax.bf16 %v1054, %v1102
        %v1151 = vmax.bf16 %v1055, %v1103
        %v1152 = vmax.bf16 %v1056, %v1104
        %v1153 = vmax.bf16 %v1057, %v1105
        %v1154 = vmax.bf16 %v1058, %v1106
        %v1155 = vmax.bf16 %v1059, %v1107
        %v1156 = vmax.bf16 %v1060, %v1108
        %v1157 = vmax.bf16 %v1061, %v1109
        %v1158 = vmax.bf16 %v1062, %v1110
        %v1159 = vmax.bf16 %v1063, %v1111
        %v1160 = vmax.bf16 %v1064, %v1112
        %v1161 = vmax.bf16 %v1065, %v1113
        %v1162 = vmax.bf16 %v1066, %v1114
        %v1163 = vmax.bf16 %v1067, %v1115
        %v1164 = vmax.bf16 %v1068, %v1116
        %v1165 = vmax.bf16 %v1069, %v1117
        %v1166 = vmax.bf16 %v1070, %v1118
        %v1167 = vmax.bf16 %v1071, %v1119
        %v1168 = vmax.bf16 %v1072, %v1120
        %v1169 = vmax.bf16 %v1073, %v1121
        %v1170 = vmax.bf16 %v1074, %v1122
        %v1171 = vmax.bf16 %v1075, %v1123
        %v1172 = vmax.bf16 %v1076, %v1124
        %v1173 = vmax.bf16 %v1077, %v1125
        %v1174 = vmax.bf16 %v1078, %v1126
        %v1175 = vmax.bf16 %v1079, %v1127
        %v1176 = vmax.bf16 %v1080, %v1128
        %v1177 = vmax.bf16 %v1081, %v1129
        %v1178 = vmax.bf16 %v1082, %v1130
        %v1179 = vmax.bf16 %v1083, %v1131
        %v1180 = vmax.bf16 %v1084, %v1132
        %v1181 = vmax.bf16 %v1085, %v1133
        %v1182 = vmax.bf16 %v1086, %v1134
        %v1183 = vmax.bf16 %v1087, %v1135
        %v1184 = vmax.bf16 %v1088, %v1136
        %v1185 = vmax.bf16 %v1089, %v1137
        %v1186 = vmax.bf16 %v1090, %v1138
        %v1187 = vmax.bf16 %v1091, %v1139
        %v1188 = vmax.bf16 %v1092, %v1140
        %v1189 = vmax.bf16 %v1093, %v1141
        %v1190 = vmax.bf16 %v1094, %v1142
        %v1191 = vmax.bf16 %v1095, %v1143
        %v1192 = vmax.bf16 %v1096, %v1144
        %v1193 = vmax.bf16 %v1097, %v1145
        %v1194 = vmax.bf16 %v1098, %v1146
        %v1195 = vmax.bf16 %v1099, %v1147
        %v1196 = vld [vmem:[#allocation7] sm:$0xff]
        %v1197 = vld [vmem:[#allocation7 + $0x8] sm:$0xff]
        %v1198 = vld [vmem:[#allocation7 + $0x10] sm:$0xff]
        %v1199 = vld [vmem:[#allocation7 + $0x18] sm:$0xff]
        %v1200 = vld [vmem:[#allocation7 + $0x20] sm:$0xff]
        %v1201 = vld [vmem:[#allocation7 + $0x28] sm:$0xff]
        %v1202 = vld [vmem:[#allocation7 + $0x30] sm:$0xff]
        %v1203 = vld [vmem:[#allocation7 + $0x38] sm:$0xff]
        %v1204 = vld [vmem:[#allocation7 + $0x40] sm:$0xff]
        %v1205 = vld [vmem:[#allocation7 + $0x48] sm:$0xff]
        %v1206 = vld [vmem:[#allocation7 + $0x50] sm:$0xff]
        %v1207 = vld [vmem:[#allocation7 + $0x58] sm:$0xff]
        %v1208 = vld [vmem:[#allocation7 + $0x60] sm:$0xff]
        %v1209 = vld [vmem:[#allocation7 + $0x68] sm:$0xff]
        %v1210 = vld [vmem:[#allocation7 + $0x70] sm:$0xff]
        %v1211 = vld [vmem:[#allocation7 + $0x78] sm:$0xff]
        %v1212 = vld [vmem:[#allocation7 + $0x80] sm:$0xff]
        %v1213 = vld [vmem:[#allocation7 + $0x88] sm:$0xff]
        %v1214 = vld [vmem:[#allocation7 + $0x90] sm:$0xff]
        %v1215 = vld [vmem:[#allocation7 + $0x98] sm:$0xff]
        %v1216 = vld [vmem:[#allocation7 + $0xa0] sm:$0xff]
        %v1217 = vld [vmem:[#allocation7 + $0xa8] sm:$0xff]
        %v1218 = vld [vmem:[#allocation7 + $0xb0] sm:$0xff]
        %v1219 = vld [vmem:[#allocation7 + $0xb8] sm:$0xff]
        %v1220 = vld [vmem:[#allocation7 + $0xc0] sm:$0xff]
        %v1221 = vld [vmem:[#allocation7 + $0xc8] sm:$0xff]
        %v1222 = vld [vmem:[#allocation7 + $0xd0] sm:$0xff]
        %v1223 = vld [vmem:[#allocation7 + $0xd8] sm:$0xff]
        %v1224 = vld [vmem:[#allocation7 + $0xe0] sm:$0xff]
        %v1225 = vld [vmem:[#allocation7 + $0xe8] sm:$0xff]
        %v1226 = vld [vmem:[#allocation7 + $0xf0] sm:$0xff]
        %v1227 = vld [vmem:[#allocation7 + $0xf8] sm:$0xff]
        %v1228 = vld [vmem:[#allocation7 + $0x100] sm:$0xff]
        %v1229 = vld [vmem:[#allocation7 + $0x108] sm:$0xff]
        %v1230 = vld [vmem:[#allocation7 + $0x110] sm:$0xff]
        %v1231 = vld [vmem:[#allocation7 + $0x118] sm:$0xff]
        %v1232 = vld [vmem:[#allocation7 + $0x120] sm:$0xff]
        %v1233 = vld [vmem:[#allocation7 + $0x128] sm:$0xff]
        %v1234 = vld [vmem:[#allocation7 + $0x130] sm:$0xff]
        %v1235 = vld [vmem:[#allocation7 + $0x138] sm:$0xff]
        %v1236 = vld [vmem:[#allocation7 + $0x140] sm:$0xff]
        %v1237 = vld [vmem:[#allocation7 + $0x148] sm:$0xff]
        %v1238 = vld [vmem:[#allocation7 + $0x150] sm:$0xff]
        %v1239 = vld [vmem:[#allocation7 + $0x158] sm:$0xff]
        %v1240 = vld [vmem:[#allocation7 + $0x160] sm:$0xff]
        %v1241 = vld [vmem:[#allocation7 + $0x168] sm:$0xff]
        %v1242 = vld [vmem:[#allocation7 + $0x170] sm:$0xff]
        %v1243 = vld [vmem:[#allocation7 + $0x178] sm:$0xff]
        %v1244 = vld [vmem:[#allocation7 + $0x180] sm:$0xff]
        %v1245 = vld [vmem:[#allocation7 + $0x188] sm:$0xff]
        %v1246 = vld [vmem:[#allocation7 + $0x190] sm:$0xff]
        %v1247 = vld [vmem:[#allocation7 + $0x198] sm:$0xff]
        %v1248 = vld [vmem:[#allocation7 + $0x1a0] sm:$0xff]
        %v1249 = vld [vmem:[#allocation7 + $0x1a8] sm:$0xff]
        %v1250 = vld [vmem:[#allocation7 + $0x1b0] sm:$0xff]
        %v1251 = vld [vmem:[#allocation7 + $0x1b8] sm:$0xff]
        %v1252 = vld [vmem:[#allocation7 + $0x1c0] sm:$0xff]
        %v1253 = vld [vmem:[#allocation7 + $0x1c8] sm:$0xff]
        %v1254 = vld [vmem:[#allocation7 + $0x1d0] sm:$0xff]
        %v1255 = vld [vmem:[#allocation7 + $0x1d8] sm:$0xff]
        %v1256 = vld [vmem:[#allocation7 + $0x1e0] sm:$0xff]
        %v1257 = vld [vmem:[#allocation7 + $0x1e8] sm:$0xff]
        %v1258 = vld [vmem:[#allocation7 + $0x1f0] sm:$0xff]
        %v1259 = vld [vmem:[#allocation7 + $0x1f8] sm:$0xff]
        %v1260 = vld [vmem:[#allocation7 + $0x200] sm:$0xff]
        %v1261 = vld [vmem:[#allocation7 + $0x208] sm:$0xff]
        %v1262 = vld [vmem:[#allocation7 + $0x210] sm:$0xff]
        %v1263 = vld [vmem:[#allocation7 + $0x218] sm:$0xff]
        %v1264 = vld [vmem:[#allocation7 + $0x220] sm:$0xff]
        %v1265 = vld [vmem:[#allocation7 + $0x228] sm:$0xff]
        %v1266 = vld [vmem:[#allocation7 + $0x230] sm:$0xff]
        %v1267 = vld [vmem:[#allocation7 + $0x238] sm:$0xff]
        %v1268 = vld [vmem:[#allocation7 + $0x240] sm:$0xff]
        %v1269 = vld [vmem:[#allocation7 + $0x248] sm:$0xff]
        %v1270 = vld [vmem:[#allocation7 + $0x250] sm:$0xff]
        %v1271 = vld [vmem:[#allocation7 + $0x258] sm:$0xff]
        %v1272 = vld [vmem:[#allocation7 + $0x260] sm:$0xff]
        %v1273 = vld [vmem:[#allocation7 + $0x268] sm:$0xff]
        %v1274 = vld [vmem:[#allocation7 + $0x270] sm:$0xff]
        %v1275 = vld [vmem:[#allocation7 + $0x278] sm:$0xff]
        %v1276 = vld [vmem:[#allocation7 + $0x280] sm:$0xff]
        %v1277 = vld [vmem:[#allocation7 + $0x288] sm:$0xff]
        %v1278 = vld [vmem:[#allocation7 + $0x290] sm:$0xff]
        %v1279 = vld [vmem:[#allocation7 + $0x298] sm:$0xff]
        %v1280 = vld [vmem:[#allocation7 + $0x2a0] sm:$0xff]
        %v1281 = vld [vmem:[#allocation7 + $0x2a8] sm:$0xff]
        %v1282 = vld [vmem:[#allocation7 + $0x2b0] sm:$0xff]
        %v1283 = vld [vmem:[#allocation7 + $0x2b8] sm:$0xff]
        %v1284 = vld [vmem:[#allocation7 + $0x2c0] sm:$0xff]
        %v1285 = vld [vmem:[#allocation7 + $0x2c8] sm:$0xff]
        %v1286 = vld [vmem:[#allocation7 + $0x2d0] sm:$0xff]
        %v1287 = vld [vmem:[#allocation7 + $0x2d8] sm:$0xff]
        %v1288 = vld [vmem:[#allocation7 + $0x2e0] sm:$0xff]
        %v1289 = vld [vmem:[#allocation7 + $0x2e8] sm:$0xff]
        %v1290 = vld [vmem:[#allocation7 + $0x2f0] sm:$0xff]
        %v1291 = vld [vmem:[#allocation7 + $0x2f8] sm:$0xff]
        %v1292 = vld [vmem:[#allocation7 + $0x300] sm:$0xff]
        %v1293 = vld [vmem:[#allocation7 + $0x308] sm:$0xff]
        %v1294 = vld [vmem:[#allocation7 + $0x310] sm:$0xff]
        %v1295 = vld [vmem:[#allocation7 + $0x318] sm:$0xff]
        %v1296 = vld [vmem:[#allocation7 + $0x320] sm:$0xff]
        %v1297 = vld [vmem:[#allocation7 + $0x328] sm:$0xff]
        %v1298 = vld [vmem:[#allocation7 + $0x330] sm:$0xff]
        %v1299 = vld [vmem:[#allocation7 + $0x338] sm:$0xff]
        %v1300 = vld [vmem:[#allocation7 + $0x340] sm:$0xff]
        %v1301 = vld [vmem:[#allocation7 + $0x348] sm:$0xff]
        %v1302 = vld [vmem:[#allocation7 + $0x350] sm:$0xff]
        %v1303 = vld [vmem:[#allocation7 + $0x358] sm:$0xff]
        %v1304 = vld [vmem:[#allocation7 + $0x360] sm:$0xff]
        %v1305 = vld [vmem:[#allocation7 + $0x368] sm:$0xff]
        %v1306 = vld [vmem:[#allocation7 + $0x370] sm:$0xff]
        %v1307 = vld [vmem:[#allocation7 + $0x378] sm:$0xff]
        %v1308 = vld [vmem:[#allocation7 + $0x380] sm:$0xff]
        %v1309 = vld [vmem:[#allocation7 + $0x388] sm:$0xff]
        %v1310 = vld [vmem:[#allocation7 + $0x390] sm:$0xff]
        %v1311 = vld [vmem:[#allocation7 + $0x398] sm:$0xff]
        %v1312 = vld [vmem:[#allocation7 + $0x3a0] sm:$0xff]
        %v1313 = vld [vmem:[#allocation7 + $0x3a8] sm:$0xff]
        %v1314 = vld [vmem:[#allocation7 + $0x3b0] sm:$0xff]
        %v1315 = vld [vmem:[#allocation7 + $0x3b8] sm:$0xff]
        %v1316 = vld [vmem:[#allocation7 + $0x3c0] sm:$0xff]
        %v1317 = vld [vmem:[#allocation7 + $0x3c8] sm:$0xff]
        %v1318 = vld [vmem:[#allocation7 + $0x3d0] sm:$0xff]
        %v1319 = vld [vmem:[#allocation7 + $0x3d8] sm:$0xff]
        %v1320 = vld [vmem:[#allocation7 + $0x3e0] sm:$0xff]
        %v1321 = vld [vmem:[#allocation7 + $0x3e8] sm:$0xff]
        %v1322 = vld [vmem:[#allocation7 + $0x3f0] sm:$0xff]
        %v1323 = vld [vmem:[#allocation7 + $0x3f8] sm:$0xff]
        %v1324 = vld [vmem:[#allocation7 + $0x400] sm:$0xff]
        %v1325 = vld [vmem:[#allocation7 + $0x408] sm:$0xff]
        %v1326 = vld [vmem:[#allocation7 + $0x410] sm:$0xff]
        %v1327 = vld [vmem:[#allocation7 + $0x418] sm:$0xff]
        %v1328 = vld [vmem:[#allocation7 + $0x420] sm:$0xff]
        %v1329 = vld [vmem:[#allocation7 + $0x428] sm:$0xff]
        %v1330 = vld [vmem:[#allocation7 + $0x430] sm:$0xff]
        %v1331 = vld [vmem:[#allocation7 + $0x438] sm:$0xff]
        %v1332 = vld [vmem:[#allocation7 + $0x440] sm:$0xff]
        %v1333 = vld [vmem:[#allocation7 + $0x448] sm:$0xff]
        %v1334 = vld [vmem:[#allocation7 + $0x450] sm:$0xff]
        %v1335 = vld [vmem:[#allocation7 + $0x458] sm:$0xff]
        %v1336 = vld [vmem:[#allocation7 + $0x460] sm:$0xff]
        %v1337 = vld [vmem:[#allocation7 + $0x468] sm:$0xff]
        %v1338 = vld [vmem:[#allocation7 + $0x470] sm:$0xff]
        %v1339 = vld [vmem:[#allocation7 + $0x478] sm:$0xff]
        %v1340 = vld [vmem:[#allocation7 + $0x480] sm:$0xff]
        %v1341 = vld [vmem:[#allocation7 + $0x488] sm:$0xff]
        %v1342 = vld [vmem:[#allocation7 + $0x490] sm:$0xff]
        %v1343 = vld [vmem:[#allocation7 + $0x498] sm:$0xff]
        %v1344 = vld [vmem:[#allocation7 + $0x4a0] sm:$0xff]
        %v1345 = vld [vmem:[#allocation7 + $0x4a8] sm:$0xff]
        %v1346 = vld [vmem:[#allocation7 + $0x4b0] sm:$0xff]
        %v1347 = vld [vmem:[#allocation7 + $0x4b8] sm:$0xff]
        %v1348 = vld [vmem:[#allocation7 + $0x4c0] sm:$0xff]
        %v1349 = vld [vmem:[#allocation7 + $0x4c8] sm:$0xff]
        %v1350 = vld [vmem:[#allocation7 + $0x4d0] sm:$0xff]
        %v1351 = vld [vmem:[#allocation7 + $0x4d8] sm:$0xff]
        %v1352 = vld [vmem:[#allocation7 + $0x4e0] sm:$0xff]
        %v1353 = vld [vmem:[#allocation7 + $0x4e8] sm:$0xff]
        %v1354 = vld [vmem:[#allocation7 + $0x4f0] sm:$0xff]
        %v1355 = vld [vmem:[#allocation7 + $0x4f8] sm:$0xff]
        %v1356 = vld [vmem:[#allocation7 + $0x500] sm:$0xff]
        %v1357 = vld [vmem:[#allocation7 + $0x508] sm:$0xff]
        %v1358 = vld [vmem:[#allocation7 + $0x510] sm:$0xff]
        %v1359 = vld [vmem:[#allocation7 + $0x518] sm:$0xff]
        %v1360 = vld [vmem:[#allocation7 + $0x520] sm:$0xff]
        %v1361 = vld [vmem:[#allocation7 + $0x528] sm:$0xff]
        %v1362 = vld [vmem:[#allocation7 + $0x530] sm:$0xff]
        %v1363 = vld [vmem:[#allocation7 + $0x538] sm:$0xff]
        %v1364 = vld [vmem:[#allocation7 + $0x540] sm:$0xff]
        %v1365 = vld [vmem:[#allocation7 + $0x548] sm:$0xff]
        %v1366 = vld [vmem:[#allocation7 + $0x550] sm:$0xff]
        %v1367 = vld [vmem:[#allocation7 + $0x558] sm:$0xff]
        %v1368 = vld [vmem:[#allocation7 + $0x560] sm:$0xff]
        %v1369 = vld [vmem:[#allocation7 + $0x568] sm:$0xff]
        %v1370 = vld [vmem:[#allocation7 + $0x570] sm:$0xff]
        %v1371 = vld [vmem:[#allocation7 + $0x578] sm:$0xff]
        %v1372 = vld [vmem:[#allocation7 + $0x580] sm:$0xff]
        %v1373 = vld [vmem:[#allocation7 + $0x588] sm:$0xff]
        %v1374 = vld [vmem:[#allocation7 + $0x590] sm:$0xff]
        %v1375 = vld [vmem:[#allocation7 + $0x598] sm:$0xff]
        %v1376 = vld [vmem:[#allocation7 + $0x5a0] sm:$0xff]
        %v1377 = vld [vmem:[#allocation7 + $0x5a8] sm:$0xff]
        %v1378 = vld [vmem:[#allocation7 + $0x5b0] sm:$0xff]
        %v1379 = vld [vmem:[#allocation7 + $0x5b8] sm:$0xff]
        %v1380 = vld [vmem:[#allocation7 + $0x5c0] sm:$0xff]
        %v1381 = vld [vmem:[#allocation7 + $0x5c8] sm:$0xff]
        %v1382 = vld [vmem:[#allocation7 + $0x5d0] sm:$0xff]
        %v1383 = vld [vmem:[#allocation7 + $0x5d8] sm:$0xff]
        %v1384 = vld [vmem:[#allocation7 + $0x5e0] sm:$0xff]
        %v1385 = vld [vmem:[#allocation7 + $0x5e8] sm:$0xff]
        %v1386 = vld [vmem:[#allocation7 + $0x5f0] sm:$0xff]
        %v1387 = vld [vmem:[#allocation7 + $0x5f8] sm:$0xff]
        %v1388 = vld [vmem:[#allocation7 + $0x600] sm:$0xff]
        %v1389 = vld [vmem:[#allocation7 + $0x608] sm:$0xff]
        %v1390 = vld [vmem:[#allocation7 + $0x610] sm:$0xff]
        %v1391 = vld [vmem:[#allocation7 + $0x618] sm:$0xff]
        %v1392 = vld [vmem:[#allocation7 + $0x620] sm:$0xff]
        %v1393 = vld [vmem:[#allocation7 + $0x628] sm:$0xff]
        %v1394 = vld [vmem:[#allocation7 + $0x630] sm:$0xff]
        %v1395 = vld [vmem:[#allocation7 + $0x638] sm:$0xff]
        %v1396 = vld [vmem:[#allocation7 + $0x640] sm:$0xff]
        %v1397 = vld [vmem:[#allocation7 + $0x648] sm:$0xff]
        %v1398 = vld [vmem:[#allocation7 + $0x650] sm:$0xff]
        %v1399 = vld [vmem:[#allocation7 + $0x658] sm:$0xff]
        %v1400 = vld [vmem:[#allocation7 + $0x660] sm:$0xff]
        %v1401 = vld [vmem:[#allocation7 + $0x668] sm:$0xff]
        %v1402 = vld [vmem:[#allocation7 + $0x670] sm:$0xff]
        %v1403 = vld [vmem:[#allocation7 + $0x678] sm:$0xff]
        %v1404 = vld [vmem:[#allocation7 + $0x680] sm:$0xff]
        %v1405 = vld [vmem:[#allocation7 + $0x688] sm:$0xff]
        %v1406 = vld [vmem:[#allocation7 + $0x690] sm:$0xff]
        %v1407 = vld [vmem:[#allocation7 + $0x698] sm:$0xff]
        %v1408 = vld [vmem:[#allocation7 + $0x6a0] sm:$0xff]
        %v1409 = vld [vmem:[#allocation7 + $0x6a8] sm:$0xff]
        %v1410 = vld [vmem:[#allocation7 + $0x6b0] sm:$0xff]
        %v1411 = vld [vmem:[#allocation7 + $0x6b8] sm:$0xff]
        %v1412 = vld [vmem:[#allocation7 + $0x6c0] sm:$0xff]
        %v1413 = vld [vmem:[#allocation7 + $0x6c8] sm:$0xff]
        %v1414 = vld [vmem:[#allocation7 + $0x6d0] sm:$0xff]
        %v1415 = vld [vmem:[#allocation7 + $0x6d8] sm:$0xff]
        %v1416 = vld [vmem:[#allocation7 + $0x6e0] sm:$0xff]
        %v1417 = vld [vmem:[#allocation7 + $0x6e8] sm:$0xff]
        %v1418 = vld [vmem:[#allocation7 + $0x6f0] sm:$0xff]
        %v1419 = vld [vmem:[#allocation7 + $0x6f8] sm:$0xff]
        %v1420 = vld [vmem:[#allocation7 + $0x700] sm:$0xff]
        %v1421 = vld [vmem:[#allocation7 + $0x708] sm:$0xff]
        %v1422 = vld [vmem:[#allocation7 + $0x710] sm:$0xff]
        %v1423 = vld [vmem:[#allocation7 + $0x718] sm:$0xff]
        %v1424 = vld [vmem:[#allocation7 + $0x720] sm:$0xff]
        %v1425 = vld [vmem:[#allocation7 + $0x728] sm:$0xff]
        %v1426 = vld [vmem:[#allocation7 + $0x730] sm:$0xff]
        %v1427 = vld [vmem:[#allocation7 + $0x738] sm:$0xff]
        %v1428 = vld [vmem:[#allocation7 + $0x740] sm:$0xff]
        %v1429 = vld [vmem:[#allocation7 + $0x748] sm:$0xff]
        %v1430 = vld [vmem:[#allocation7 + $0x750] sm:$0xff]
        %v1431 = vld [vmem:[#allocation7 + $0x758] sm:$0xff]
        %v1432 = vld [vmem:[#allocation7 + $0x760] sm:$0xff]
        %v1433 = vld [vmem:[#allocation7 + $0x768] sm:$0xff]
        %v1434 = vld [vmem:[#allocation7 + $0x770] sm:$0xff]
        %v1435 = vld [vmem:[#allocation7 + $0x778] sm:$0xff]
        %v1436 = vld [vmem:[#allocation7 + $0x780] sm:$0xff]
        %v1437 = vld [vmem:[#allocation7 + $0x788] sm:$0xff]
        %v1438 = vld [vmem:[#allocation7 + $0x790] sm:$0xff]
        %v1439 = vld [vmem:[#allocation7 + $0x798] sm:$0xff]
        %v1440 = vld [vmem:[#allocation7 + $0x7a0] sm:$0xff]
        %v1441 = vld [vmem:[#allocation7 + $0x7a8] sm:$0xff]
        %v1442 = vld [vmem:[#allocation7 + $0x7b0] sm:$0xff]
        %v1443 = vld [vmem:[#allocation7 + $0x7b8] sm:$0xff]
        %v1444 = vld [vmem:[#allocation7 + $0x7c0] sm:$0xff]
        %v1445 = vld [vmem:[#allocation7 + $0x7c8] sm:$0xff]
        %v1446 = vld [vmem:[#allocation7 + $0x7d0] sm:$0xff]
        %v1447 = vld [vmem:[#allocation7 + $0x7d8] sm:$0xff]
        %v1448 = vld [vmem:[#allocation7 + $0x7e0] sm:$0xff]
        %v1449 = vld [vmem:[#allocation7 + $0x7e8] sm:$0xff]
        %v1450 = vld [vmem:[#allocation7 + $0x7f0] sm:$0xff]
        %v1451 = vld [vmem:[#allocation7 + $0x7f8] sm:$0xff]
        %v1452 = vld [vmem:[#allocation7 + $0x800] sm:$0xff]
        %v1453 = vld [vmem:[#allocation7 + $0x808] sm:$0xff]
        %v1454 = vld [vmem:[#allocation7 + $0x810] sm:$0xff]
        %v1455 = vld [vmem:[#allocation7 + $0x818] sm:$0xff]
        %v1456 = vld [vmem:[#allocation7 + $0x820] sm:$0xff]
        %v1457 = vld [vmem:[#allocation7 + $0x828] sm:$0xff]
        %v1458 = vld [vmem:[#allocation7 + $0x830] sm:$0xff]
        %v1459 = vld [vmem:[#allocation7 + $0x838] sm:$0xff]
        %v1460 = vld [vmem:[#allocation7 + $0x840] sm:$0xff]
        %v1461 = vld [vmem:[#allocation7 + $0x848] sm:$0xff]
        %v1462 = vld [vmem:[#allocation7 + $0x850] sm:$0xff]
        %v1463 = vld [vmem:[#allocation7 + $0x858] sm:$0xff]
        %v1464 = vld [vmem:[#allocation7 + $0x860] sm:$0xff]
        %v1465 = vld [vmem:[#allocation7 + $0x868] sm:$0xff]
        %v1466 = vld [vmem:[#allocation7 + $0x870] sm:$0xff]
        %v1467 = vld [vmem:[#allocation7 + $0x878] sm:$0xff]
        %v1468 = vld [vmem:[#allocation7 + $0x880] sm:$0xff]
        %v1469 = vld [vmem:[#allocation7 + $0x888] sm:$0xff]
        %v1470 = vld [vmem:[#allocation7 + $0x890] sm:$0xff]
        %v1471 = vld [vmem:[#allocation7 + $0x898] sm:$0xff]
        %v1472 = vld [vmem:[#allocation7 + $0x8a0] sm:$0xff]
        %v1473 = vld [vmem:[#allocation7 + $0x8a8] sm:$0xff]
        %v1474 = vld [vmem:[#allocation7 + $0x8b0] sm:$0xff]
        %v1475 = vld [vmem:[#allocation7 + $0x8b8] sm:$0xff]
        %v1476 = vld [vmem:[#allocation7 + $0x8c0] sm:$0xff]
        %v1477 = vld [vmem:[#allocation7 + $0x8c8] sm:$0xff]
        %v1478 = vld [vmem:[#allocation7 + $0x8d0] sm:$0xff]
        %v1479 = vld [vmem:[#allocation7 + $0x8d8] sm:$0xff]
        %v1480 = vld [vmem:[#allocation7 + $0x8e0] sm:$0xff]
        %v1481 = vld [vmem:[#allocation7 + $0x8e8] sm:$0xff]
        %v1482 = vld [vmem:[#allocation7 + $0x8f0] sm:$0xff]
        %v1483 = vld [vmem:[#allocation7 + $0x8f8] sm:$0xff]
        %v1484 = vld [vmem:[#allocation7 + $0x900] sm:$0xff]
        %v1485 = vld [vmem:[#allocation7 + $0x908] sm:$0xff]
        %v1486 = vld [vmem:[#allocation7 + $0x910] sm:$0xff]
        %v1487 = vld [vmem:[#allocation7 + $0x918] sm:$0xff]
        %v1488 = vld [vmem:[#allocation7 + $0x920] sm:$0xff]
        %v1489 = vld [vmem:[#allocation7 + $0x928] sm:$0xff]
        %v1490 = vld [vmem:[#allocation7 + $0x930] sm:$0xff]
        %v1491 = vld [vmem:[#allocation7 + $0x938] sm:$0xff]
        %v1492 = vld [vmem:[#allocation7 + $0x940] sm:$0xff]
        %v1493 = vld [vmem:[#allocation7 + $0x948] sm:$0xff]
        %v1494 = vld [vmem:[#allocation7 + $0x950] sm:$0xff]
        %v1495 = vld [vmem:[#allocation7 + $0x958] sm:$0xff]
        %v1496 = vld [vmem:[#allocation7 + $0x960] sm:$0xff]
        %v1497 = vld [vmem:[#allocation7 + $0x968] sm:$0xff]
        %v1498 = vld [vmem:[#allocation7 + $0x970] sm:$0xff]
        %v1499 = vld [vmem:[#allocation7 + $0x978] sm:$0xff]
        %v1500 = vld [vmem:[#allocation7 + $0x980] sm:$0xff]
        %v1501 = vld [vmem:[#allocation7 + $0x988] sm:$0xff]
        %v1502 = vld [vmem:[#allocation7 + $0x990] sm:$0xff]
        %v1503 = vld [vmem:[#allocation7 + $0x998] sm:$0xff]
        %v1504 = vld [vmem:[#allocation7 + $0x9a0] sm:$0xff]
        %v1505 = vld [vmem:[#allocation7 + $0x9a8] sm:$0xff]
        %v1506 = vld [vmem:[#allocation7 + $0x9b0] sm:$0xff]
        %v1507 = vld [vmem:[#allocation7 + $0x9b8] sm:$0xff]
        %v1508 = vld [vmem:[#allocation7 + $0x9c0] sm:$0xff]
        %v1509 = vld [vmem:[#allocation7 + $0x9c8] sm:$0xff]
        %v1510 = vld [vmem:[#allocation7 + $0x9d0] sm:$0xff]
        %v1511 = vld [vmem:[#allocation7 + $0x9d8] sm:$0xff]
        %v1512 = vld [vmem:[#allocation7 + $0x9e0] sm:$0xff]
        %v1513 = vld [vmem:[#allocation7 + $0x9e8] sm:$0xff]
        %v1514 = vld [vmem:[#allocation7 + $0x9f0] sm:$0xff]
        %v1515 = vld [vmem:[#allocation7 + $0x9f8] sm:$0xff]
        %v1516 = vld [vmem:[#allocation7 + $0xa00] sm:$0xff]
        %v1517 = vld [vmem:[#allocation7 + $0xa08] sm:$0xff]
        %v1518 = vld [vmem:[#allocation7 + $0xa10] sm:$0xff]
        %v1519 = vld [vmem:[#allocation7 + $0xa18] sm:$0xff]
        %v1520 = vld [vmem:[#allocation7 + $0xa20] sm:$0xff]
        %v1521 = vld [vmem:[#allocation7 + $0xa28] sm:$0xff]
        %v1522 = vld [vmem:[#allocation7 + $0xa30] sm:$0xff]
        %v1523 = vld [vmem:[#allocation7 + $0xa38] sm:$0xff]
        %v1524 = vld [vmem:[#allocation7 + $0xa40] sm:$0xff]
        %v1525 = vld [vmem:[#allocation7 + $0xa48] sm:$0xff]
        %v1526 = vld [vmem:[#allocation7 + $0xa50] sm:$0xff]
        %v1527 = vld [vmem:[#allocation7 + $0xa58] sm:$0xff]
        %v1528 = vld [vmem:[#allocation7 + $0xa60] sm:$0xff]
        %v1529 = vld [vmem:[#allocation7 + $0xa68] sm:$0xff]
        %v1530 = vld [vmem:[#allocation7 + $0xa70] sm:$0xff]
        %v1531 = vld [vmem:[#allocation7 + $0xa78] sm:$0xff]
        %v1532 = vld [vmem:[#allocation7 + $0xa80] sm:$0xff]
        %v1533 = vld [vmem:[#allocation7 + $0xa88] sm:$0xff]
        %v1534 = vld [vmem:[#allocation7 + $0xa90] sm:$0xff]
        %v1535 = vld [vmem:[#allocation7 + $0xa98] sm:$0xff]
        %v1536 = vld [vmem:[#allocation7 + $0xaa0] sm:$0xff]
        %v1537 = vld [vmem:[#allocation7 + $0xaa8] sm:$0xff]
        %v1538 = vld [vmem:[#allocation7 + $0xab0] sm:$0xff]
        %v1539 = vld [vmem:[#allocation7 + $0xab8] sm:$0xff]
        %v1540 = vld [vmem:[#allocation7 + $0xac0] sm:$0xff]
        %v1541 = vld [vmem:[#allocation7 + $0xac8] sm:$0xff]
        %v1542 = vld [vmem:[#allocation7 + $0xad0] sm:$0xff]
        %v1543 = vld [vmem:[#allocation7 + $0xad8] sm:$0xff]
        %v1544 = vld [vmem:[#allocation7 + $0xae0] sm:$0xff]
        %v1545 = vld [vmem:[#allocation7 + $0xae8] sm:$0xff]
        %v1546 = vld [vmem:[#allocation7 + $0xaf0] sm:$0xff]
        %v1547 = vld [vmem:[#allocation7 + $0xaf8] sm:$0xff]
        %v1548 = vld [vmem:[#allocation7 + $0xb00] sm:$0xff]
        %v1549 = vld [vmem:[#allocation7 + $0xb08] sm:$0xff]
        %v1550 = vld [vmem:[#allocation7 + $0xb10] sm:$0xff]
        %v1551 = vld [vmem:[#allocation7 + $0xb18] sm:$0xff]
        %v1552 = vld [vmem:[#allocation7 + $0xb20] sm:$0xff]
        %v1553 = vld [vmem:[#allocation7 + $0xb28] sm:$0xff]
        %v1554 = vld [vmem:[#allocation7 + $0xb30] sm:$0xff]
        %v1555 = vld [vmem:[#allocation7 + $0xb38] sm:$0xff]
        %v1556 = vld [vmem:[#allocation7 + $0xb40] sm:$0xff]
        %v1557 = vld [vmem:[#allocation7 + $0xb48] sm:$0xff]
        %v1558 = vld [vmem:[#allocation7 + $0xb50] sm:$0xff]
        %v1559 = vld [vmem:[#allocation7 + $0xb58] sm:$0xff]
        %v1560 = vld [vmem:[#allocation7 + $0xb60] sm:$0xff]
        %v1561 = vld [vmem:[#allocation7 + $0xb68] sm:$0xff]
        %v1562 = vld [vmem:[#allocation7 + $0xb70] sm:$0xff]
        %v1563 = vld [vmem:[#allocation7 + $0xb78] sm:$0xff]
        %v1564 = vld [vmem:[#allocation7 + $0xb80] sm:$0xff]
        %v1565 = vld [vmem:[#allocation7 + $0xb88] sm:$0xff]
        %v1566 = vld [vmem:[#allocation7 + $0xb90] sm:$0xff]
        %v1567 = vld [vmem:[#allocation7 + $0xb98] sm:$0xff]
        %v1568 = vld [vmem:[#allocation7 + $0xba0] sm:$0xff]
        %v1569 = vld [vmem:[#allocation7 + $0xba8] sm:$0xff]
        %v1570 = vld [vmem:[#allocation7 + $0xbb0] sm:$0xff]
        %v1571 = vld [vmem:[#allocation7 + $0xbb8] sm:$0xff]
        %v1572 = vld [vmem:[#allocation7 + $0xbc0] sm:$0xff]
        %v1573 = vld [vmem:[#allocation7 + $0xbc8] sm:$0xff]
        %v1574 = vld [vmem:[#allocation7 + $0xbd0] sm:$0xff]
        %v1575 = vld [vmem:[#allocation7 + $0xbd8] sm:$0xff]
        %v1576 = vld [vmem:[#allocation7 + $0xbe0] sm:$0xff]
        %v1577 = vld [vmem:[#allocation7 + $0xbe8] sm:$0xff]
        %v1578 = vld [vmem:[#allocation7 + $0xbf0] sm:$0xff]
        %v1579 = vld [vmem:[#allocation7 + $0xbf8] sm:$0xff]
        %v1580 = vld [vmem:[#allocation7 + $0xc00] sm:$0xff]
        %v1581 = vld [vmem:[#allocation7 + $0xc08] sm:$0xff]
        %v1582 = vld [vmem:[#allocation7 + $0xc10] sm:$0xff]
        %v1583 = vld [vmem:[#allocation7 + $0xc18] sm:$0xff]
        %v1584 = vld [vmem:[#allocation7 + $0xc20] sm:$0xff]
        %v1585 = vld [vmem:[#allocation7 + $0xc28] sm:$0xff]
        %v1586 = vld [vmem:[#allocation7 + $0xc30] sm:$0xff]
        %v1587 = vld [vmem:[#allocation7 + $0xc38] sm:$0xff]
        %v1588 = vld [vmem:[#allocation7 + $0xc40] sm:$0xff]
        %v1589 = vld [vmem:[#allocation7 + $0xc48] sm:$0xff]
        %v1590 = vld [vmem:[#allocation7 + $0xc50] sm:$0xff]
        %v1591 = vld [vmem:[#allocation7 + $0xc58] sm:$0xff]
        %v1592 = vld [vmem:[#allocation7 + $0xc60] sm:$0xff]
        %v1593 = vld [vmem:[#allocation7 + $0xc68] sm:$0xff]
        %v1594 = vld [vmem:[#allocation7 + $0xc70] sm:$0xff]
        %v1595 = vld [vmem:[#allocation7 + $0xc78] sm:$0xff]
        %v1596 = vld [vmem:[#allocation7 + $0xc80] sm:$0xff]
        %v1597 = vld [vmem:[#allocation7 + $0xc88] sm:$0xff]
        %v1598 = vld [vmem:[#allocation7 + $0xc90] sm:$0xff]
        %v1599 = vld [vmem:[#allocation7 + $0xc98] sm:$0xff]
        %v1600 = vld [vmem:[#allocation7 + $0xca0] sm:$0xff]
        %v1601 = vld [vmem:[#allocation7 + $0xca8] sm:$0xff]
        %v1602 = vld [vmem:[#allocation7 + $0xcb0] sm:$0xff]
        %v1603 = vld [vmem:[#allocation7 + $0xcb8] sm:$0xff]
        %v1604 = vld [vmem:[#allocation7 + $0xcc0] sm:$0xff]
        %v1605 = vld [vmem:[#allocation7 + $0xcc8] sm:$0xff]
        %v1606 = vld [vmem:[#allocation7 + $0xcd0] sm:$0xff]
        %v1607 = vld [vmem:[#allocation7 + $0xcd8] sm:$0xff]
        %v1608 = vld [vmem:[#allocation7 + $0xce0] sm:$0xff]
        %v1609 = vld [vmem:[#allocation7 + $0xce8] sm:$0xff]
        %v1610 = vld [vmem:[#allocation7 + $0xcf0] sm:$0xff]
        %v1611 = vld [vmem:[#allocation7 + $0xcf8] sm:$0xff]
        %v1612 = vld [vmem:[#allocation7 + $0xd00] sm:$0xff]
        %v1613 = vld [vmem:[#allocation7 + $0xd08] sm:$0xff]
        %v1614 = vld [vmem:[#allocation7 + $0xd10] sm:$0xff]
        %v1615 = vld [vmem:[#allocation7 + $0xd18] sm:$0xff]
        %v1616 = vld [vmem:[#allocation7 + $0xd20] sm:$0xff]
        %v1617 = vld [vmem:[#allocation7 + $0xd28] sm:$0xff]
        %v1618 = vld [vmem:[#allocation7 + $0xd30] sm:$0xff]
        %v1619 = vld [vmem:[#allocation7 + $0xd38] sm:$0xff]
        %v1620 = vld [vmem:[#allocation7 + $0xd40] sm:$0xff]
        %v1621 = vld [vmem:[#allocation7 + $0xd48] sm:$0xff]
        %v1622 = vld [vmem:[#allocation7 + $0xd50] sm:$0xff]
        %v1623 = vld [vmem:[#allocation7 + $0xd58] sm:$0xff]
        %v1624 = vld [vmem:[#allocation7 + $0xd60] sm:$0xff]
        %v1625 = vld [vmem:[#allocation7 + $0xd68] sm:$0xff]
        %v1626 = vld [vmem:[#allocation7 + $0xd70] sm:$0xff]
        %v1627 = vld [vmem:[#allocation7 + $0xd78] sm:$0xff]
        %v1628 = vld [vmem:[#allocation7 + $0xd80] sm:$0xff]
        %v1629 = vld [vmem:[#allocation7 + $0xd88] sm:$0xff]
        %v1630 = vld [vmem:[#allocation7 + $0xd90] sm:$0xff]
        %v1631 = vld [vmem:[#allocation7 + $0xd98] sm:$0xff]
        %v1632 = vld [vmem:[#allocation7 + $0xda0] sm:$0xff]
        %v1633 = vld [vmem:[#allocation7 + $0xda8] sm:$0xff]
        %v1634 = vld [vmem:[#allocation7 + $0xdb0] sm:$0xff]
        %v1635 = vld [vmem:[#allocation7 + $0xdb8] sm:$0xff]
        %v1636 = vld [vmem:[#allocation7 + $0xdc0] sm:$0xff]
        %v1637 = vld [vmem:[#allocation7 + $0xdc8] sm:$0xff]
        %v1638 = vld [vmem:[#allocation7 + $0xdd0] sm:$0xff]
        %v1639 = vld [vmem:[#allocation7 + $0xdd8] sm:$0xff]
        %v1640 = vld [vmem:[#allocation7 + $0xde0] sm:$0xff]
        %v1641 = vld [vmem:[#allocation7 + $0xde8] sm:$0xff]
        %v1642 = vld [vmem:[#allocation7 + $0xdf0] sm:$0xff]
        %v1643 = vld [vmem:[#allocation7 + $0xdf8] sm:$0xff]
        %v1644 = vld [vmem:[#allocation7 + $0xe00] sm:$0xff]
        %v1645 = vld [vmem:[#allocation7 + $0xe08] sm:$0xff]
        %v1646 = vld [vmem:[#allocation7 + $0xe10] sm:$0xff]
        %v1647 = vld [vmem:[#allocation7 + $0xe18] sm:$0xff]
        %v1648 = vld [vmem:[#allocation7 + $0xe20] sm:$0xff]
        %v1649 = vld [vmem:[#allocation7 + $0xe28] sm:$0xff]
        %v1650 = vld [vmem:[#allocation7 + $0xe30] sm:$0xff]
        %v1651 = vld [vmem:[#allocation7 + $0xe38] sm:$0xff]
        %v1652 = vld [vmem:[#allocation7 + $0xe40] sm:$0xff]
        %v1653 = vld [vmem:[#allocation7 + $0xe48] sm:$0xff]
        %v1654 = vld [vmem:[#allocation7 + $0xe50] sm:$0xff]
        %v1655 = vld [vmem:[#allocation7 + $0xe58] sm:$0xff]
        %v1656 = vld [vmem:[#allocation7 + $0xe60] sm:$0xff]
        %v1657 = vld [vmem:[#allocation7 + $0xe68] sm:$0xff]
        %v1658 = vld [vmem:[#allocation7 + $0xe70] sm:$0xff]
        %v1659 = vld [vmem:[#allocation7 + $0xe78] sm:$0xff]
        %v1660 = vld [vmem:[#allocation7 + $0xe80] sm:$0xff]
        %v1661 = vld [vmem:[#allocation7 + $0xe88] sm:$0xff]
        %v1662 = vld [vmem:[#allocation7 + $0xe90] sm:$0xff]
        %v1663 = vld [vmem:[#allocation7 + $0xe98] sm:$0xff]
        %v1664 = vld [vmem:[#allocation7 + $0xea0] sm:$0xff]
        %v1665 = vld [vmem:[#allocation7 + $0xea8] sm:$0xff]
        %v1666 = vld [vmem:[#allocation7 + $0xeb0] sm:$0xff]
        %v1667 = vld [vmem:[#allocation7 + $0xeb8] sm:$0xff]
        %v1668 = vld [vmem:[#allocation7 + $0xec0] sm:$0xff]
        %v1669 = vld [vmem:[#allocation7 + $0xec8] sm:$0xff]
        %v1670 = vld [vmem:[#allocation7 + $0xed0] sm:$0xff]
        %v1671 = vld [vmem:[#allocation7 + $0xed8] sm:$0xff]
        %v1672 = vld [vmem:[#allocation7 + $0xee0] sm:$0xff]
        %v1673 = vld [vmem:[#allocation7 + $0xee8] sm:$0xff]
        %v1674 = vld [vmem:[#allocation7 + $0xef0] sm:$0xff]
        %v1675 = vld [vmem:[#allocation7 + $0xef8] sm:$0xff]
        %v1676 = vld [vmem:[#allocation7 + $0xf00] sm:$0xff]
        %v1677 = vld [vmem:[#allocation7 + $0xf08] sm:$0xff]
        %v1678 = vld [vmem:[#allocation7 + $0xf10] sm:$0xff]
        %v1679 = vld [vmem:[#allocation7 + $0xf18] sm:$0xff]
        %v1680 = vld [vmem:[#allocation7 + $0xf20] sm:$0xff]
        %v1681 = vld [vmem:[#allocation7 + $0xf28] sm:$0xff]
        %v1682 = vld [vmem:[#allocation7 + $0xf30] sm:$0xff]
        %v1683 = vld [vmem:[#allocation7 + $0xf38] sm:$0xff]
        %v1684 = vld [vmem:[#allocation7 + $0xf40] sm:$0xff]
        %v1685 = vld [vmem:[#allocation7 + $0xf48] sm:$0xff]
        %v1686 = vld [vmem:[#allocation7 + $0xf50] sm:$0xff]
        %v1687 = vld [vmem:[#allocation7 + $0xf58] sm:$0xff]
        %v1688 = vld [vmem:[#allocation7 + $0xf60] sm:$0xff]
        %v1689 = vld [vmem:[#allocation7 + $0xf68] sm:$0xff]
        %v1690 = vld [vmem:[#allocation7 + $0xf70] sm:$0xff]
        %v1691 = vld [vmem:[#allocation7 + $0xf78] sm:$0xff]
        %v1692 = vld [vmem:[#allocation7 + $0xf80] sm:$0xff]
        %v1693 = vld [vmem:[#allocation7 + $0xf88] sm:$0xff]
        %v1694 = vld [vmem:[#allocation7 + $0xf90] sm:$0xff]
        %v1695 = vld [vmem:[#allocation7 + $0xf98] sm:$0xff]
        %v1696 = vld [vmem:[#allocation7 + $0xfa0] sm:$0xff]
        %v1697 = vld [vmem:[#allocation7 + $0xfa8] sm:$0xff]
        %v1698 = vld [vmem:[#allocation7 + $0xfb0] sm:$0xff]
        %v1699 = vld [vmem:[#allocation7 + $0xfb8] sm:$0xff]
        %v1700 = vld [vmem:[#allocation7 + $0xfc0] sm:$0xff]
        %v1701 = vld [vmem:[#allocation7 + $0xfc8] sm:$0xff]
        %v1702 = vld [vmem:[#allocation7 + $0xfd0] sm:$0xff]
        %v1703 = vld [vmem:[#allocation7 + $0xfd8] sm:$0xff]
        %v1704 = vld [vmem:[#allocation7 + $0xfe0] sm:$0xff]
        %v1705 = vld [vmem:[#allocation7 + $0xfe8] sm:$0xff]
        %v1706 = vld [vmem:[#allocation7 + $0xff0] sm:$0xff]
        %v1707 = vld [vmem:[#allocation7 + $0xff8] sm:$0xff]
        %v1708 = vld [vmem:[#allocation7 + $0x1000] sm:$0xff]
        %v1709 = vld [vmem:[#allocation7 + $0x1008] sm:$0xff]
        %v1710 = vld [vmem:[#allocation7 + $0x1010] sm:$0xff]
        %v1711 = vld [vmem:[#allocation7 + $0x1018] sm:$0xff]
        %v1712 = vld [vmem:[#allocation7 + $0x1020] sm:$0xff]
        %v1713 = vld [vmem:[#allocation7 + $0x1028] sm:$0xff]
        %v1714 = vld [vmem:[#allocation7 + $0x1030] sm:$0xff]
        %v1715 = vld [vmem:[#allocation7 + $0x1038] sm:$0xff]
        %v1716 = vld [vmem:[#allocation7 + $0x1040] sm:$0xff]
        %v1717 = vld [vmem:[#allocation7 + $0x1048] sm:$0xff]
        %v1718 = vld [vmem:[#allocation7 + $0x1050] sm:$0xff]
        %v1719 = vld [vmem:[#allocation7 + $0x1058] sm:$0xff]
        %v1720 = vld [vmem:[#allocation7 + $0x1060] sm:$0xff]
        %v1721 = vld [vmem:[#allocation7 + $0x1068] sm:$0xff]
        %v1722 = vld [vmem:[#allocation7 + $0x1070] sm:$0xff]
        %v1723 = vld [vmem:[#allocation7 + $0x1078] sm:$0xff]
        %v1724 = vld [vmem:[#allocation7 + $0x1080] sm:$0xff]
        %v1725 = vld [vmem:[#allocation7 + $0x1088] sm:$0xff]
        %v1726 = vld [vmem:[#allocation7 + $0x1090] sm:$0xff]
        %v1727 = vld [vmem:[#allocation7 + $0x1098] sm:$0xff]
        %v1728 = vld [vmem:[#allocation7 + $0x10a0] sm:$0xff]
        %v1729 = vld [vmem:[#allocation7 + $0x10a8] sm:$0xff]
        %v1730 = vld [vmem:[#allocation7 + $0x10b0] sm:$0xff]
        %v1731 = vld [vmem:[#allocation7 + $0x10b8] sm:$0xff]
        %v1732 = vld [vmem:[#allocation7 + $0x10c0] sm:$0xff]
        %v1733 = vld [vmem:[#allocation7 + $0x10c8] sm:$0xff]
        %v1734 = vld [vmem:[#allocation7 + $0x10d0] sm:$0xff]
        %v1735 = vld [vmem:[#allocation7 + $0x10d8] sm:$0xff]
        %v1736 = vld [vmem:[#allocation7 + $0x10e0] sm:$0xff]
        %v1737 = vld [vmem:[#allocation7 + $0x10e8] sm:$0xff]
        %v1738 = vld [vmem:[#allocation7 + $0x10f0] sm:$0xff]
        %v1739 = vld [vmem:[#allocation7 + $0x10f8] sm:$0xff]
        %v1740 = vld [vmem:[#allocation7 + $0x1100] sm:$0xff]
        %v1741 = vld [vmem:[#allocation7 + $0x1108] sm:$0xff]
        %v1742 = vld [vmem:[#allocation7 + $0x1110] sm:$0xff]
        %v1743 = vld [vmem:[#allocation7 + $0x1118] sm:$0xff]
        %v1744 = vld [vmem:[#allocation7 + $0x1120] sm:$0xff]
        %v1745 = vld [vmem:[#allocation7 + $0x1128] sm:$0xff]
        %v1746 = vld [vmem:[#allocation7 + $0x1130] sm:$0xff]
        %v1747 = vld [vmem:[#allocation7 + $0x1138] sm:$0xff]
        %v1748 = vld [vmem:[#allocation7 + $0x1140] sm:$0xff]
        %v1749 = vld [vmem:[#allocation7 + $0x1148] sm:$0xff]
        %v1750 = vld [vmem:[#allocation7 + $0x1150] sm:$0xff]
        %v1751 = vld [vmem:[#allocation7 + $0x1158] sm:$0xff]
        %v1752 = vld [vmem:[#allocation7 + $0x1160] sm:$0xff]
        %v1753 = vld [vmem:[#allocation7 + $0x1168] sm:$0xff]
        %v1754 = vld [vmem:[#allocation7 + $0x1170] sm:$0xff]
        %v1755 = vld [vmem:[#allocation7 + $0x1178] sm:$0xff]
        %v1756 = vld [vmem:[#allocation7 + $0x1180] sm:$0xff]
        %v1757 = vld [vmem:[#allocation7 + $0x1188] sm:$0xff]
        %v1758 = vld [vmem:[#allocation7 + $0x1190] sm:$0xff]
        %v1759 = vld [vmem:[#allocation7 + $0x1198] sm:$0xff]
        %v1760 = vld [vmem:[#allocation7 + $0x11a0] sm:$0xff]
        %v1761 = vld [vmem:[#allocation7 + $0x11a8] sm:$0xff]
        %v1762 = vld [vmem:[#allocation7 + $0x11b0] sm:$0xff]
        %v1763 = vld [vmem:[#allocation7 + $0x11b8] sm:$0xff]
        %v1764 = vld [vmem:[#allocation7 + $0x11c0] sm:$0xff]
        %v1765 = vld [vmem:[#allocation7 + $0x11c8] sm:$0xff]
        %v1766 = vld [vmem:[#allocation7 + $0x11d0] sm:$0xff]
        %v1767 = vld [vmem:[#allocation7 + $0x11d8] sm:$0xff]
        %v1768 = vld [vmem:[#allocation7 + $0x11e0] sm:$0xff]
        %v1769 = vld [vmem:[#allocation7 + $0x11e8] sm:$0xff]
        %v1770 = vld [vmem:[#allocation7 + $0x11f0] sm:$0xff]
        %v1771 = vld [vmem:[#allocation7 + $0x11f8] sm:$0xff]
        %v1772 = vld [vmem:[#allocation7 + $0x1200] sm:$0xff]
        %v1773 = vld [vmem:[#allocation7 + $0x1208] sm:$0xff]
        %v1774 = vld [vmem:[#allocation7 + $0x1210] sm:$0xff]
        %v1775 = vld [vmem:[#allocation7 + $0x1218] sm:$0xff]
        %v1776 = vld [vmem:[#allocation7 + $0x1220] sm:$0xff]
        %v1777 = vld [vmem:[#allocation7 + $0x1228] sm:$0xff]
        %v1778 = vld [vmem:[#allocation7 + $0x1230] sm:$0xff]
        %v1779 = vld [vmem:[#allocation7 + $0x1238] sm:$0xff]
        %v1780 = vld [vmem:[#allocation7 + $0x1240] sm:$0xff]
        %v1781 = vld [vmem:[#allocation7 + $0x1248] sm:$0xff]
        %v1782 = vld [vmem:[#allocation7 + $0x1250] sm:$0xff]
        %v1783 = vld [vmem:[#allocation7 + $0x1258] sm:$0xff]
        %v1784 = vld [vmem:[#allocation7 + $0x1260] sm:$0xff]
        %v1785 = vld [vmem:[#allocation7 + $0x1268] sm:$0xff]
        %v1786 = vld [vmem:[#allocation7 + $0x1270] sm:$0xff]
        %v1787 = vld [vmem:[#allocation7 + $0x1278] sm:$0xff]
        %v1788 = vld [vmem:[#allocation7 + $0x1280] sm:$0xff]
        %v1789 = vld [vmem:[#allocation7 + $0x1288] sm:$0xff]
        %v1790 = vld [vmem:[#allocation7 + $0x1290] sm:$0xff]
        %v1791 = vld [vmem:[#allocation7 + $0x1298] sm:$0xff]
        %v1792 = vld [vmem:[#allocation7 + $0x12a0] sm:$0xff]
        %v1793 = vld [vmem:[#allocation7 + $0x12a8] sm:$0xff]
        %v1794 = vld [vmem:[#allocation7 + $0x12b0] sm:$0xff]
        %v1795 = vld [vmem:[#allocation7 + $0x12b8] sm:$0xff]
        %v1796 = vld [vmem:[#allocation7 + $0x12c0] sm:$0xff]
        %v1797 = vld [vmem:[#allocation7 + $0x12c8] sm:$0xff]
        %v1798 = vld [vmem:[#allocation7 + $0x12d0] sm:$0xff]
        %v1799 = vld [vmem:[#allocation7 + $0x12d8] sm:$0xff]
        %v1800 = vld [vmem:[#allocation7 + $0x12e0] sm:$0xff]
        %v1801 = vld [vmem:[#allocation7 + $0x12e8] sm:$0xff]
        %v1802 = vld [vmem:[#allocation7 + $0x12f0] sm:$0xff]
        %v1803 = vld [vmem:[#allocation7 + $0x12f8] sm:$0xff]
        %v1804 = vld [vmem:[#allocation7 + $0x1300] sm:$0xff]
        %v1805 = vld [vmem:[#allocation7 + $0x1308] sm:$0xff]
        %v1806 = vld [vmem:[#allocation7 + $0x1310] sm:$0xff]
        %v1807 = vld [vmem:[#allocation7 + $0x1318] sm:$0xff]
        %v1808 = vld [vmem:[#allocation7 + $0x1320] sm:$0xff]
        %v1809 = vld [vmem:[#allocation7 + $0x1328] sm:$0xff]
        %v1810 = vld [vmem:[#allocation7 + $0x1330] sm:$0xff]
        %v1811 = vld [vmem:[#allocation7 + $0x1338] sm:$0xff]
        %v1812 = vld [vmem:[#allocation7 + $0x1340] sm:$0xff]
        %v1813 = vld [vmem:[#allocation7 + $0x1348] sm:$0xff]
        %v1814 = vld [vmem:[#allocation7 + $0x1350] sm:$0xff]
        %v1815 = vld [vmem:[#allocation7 + $0x1358] sm:$0xff]
        %v1816 = vld [vmem:[#allocation7 + $0x1360] sm:$0xff]
        %v1817 = vld [vmem:[#allocation7 + $0x1368] sm:$0xff]
        %v1818 = vld [vmem:[#allocation7 + $0x1370] sm:$0xff]
        %v1819 = vld [vmem:[#allocation7 + $0x1378] sm:$0xff]
        %v1820 = vld [vmem:[#allocation7 + $0x1380] sm:$0xff]
        %v1821 = vld [vmem:[#allocation7 + $0x1388] sm:$0xff]
        %v1822 = vld [vmem:[#allocation7 + $0x1390] sm:$0xff]
        %v1823 = vld [vmem:[#allocation7 + $0x1398] sm:$0xff]
        %v1824 = vld [vmem:[#allocation7 + $0x13a0] sm:$0xff]
        %v1825 = vld [vmem:[#allocation7 + $0x13a8] sm:$0xff]
        %v1826 = vld [vmem:[#allocation7 + $0x13b0] sm:$0xff]
        %v1827 = vld [vmem:[#allocation7 + $0x13b8] sm:$0xff]
        %v1828 = vld [vmem:[#allocation7 + $0x13c0] sm:$0xff]
        %v1829 = vld [vmem:[#allocation7 + $0x13c8] sm:$0xff]
        %v1830 = vld [vmem:[#allocation7 + $0x13d0] sm:$0xff]
        %v1831 = vld [vmem:[#allocation7 + $0x13d8] sm:$0xff]
        %v1832 = vld [vmem:[#allocation7 + $0x13e0] sm:$0xff]
        %v1833 = vld [vmem:[#allocation7 + $0x13e8] sm:$0xff]
        %v1834 = vld [vmem:[#allocation7 + $0x13f0] sm:$0xff]
        %v1835 = vld [vmem:[#allocation7 + $0x13f8] sm:$0xff]
        %v1836 = vld [vmem:[#allocation7 + $0x1400] sm:$0xff]
        %v1837 = vld [vmem:[#allocation7 + $0x1408] sm:$0xff]
        %v1838 = vld [vmem:[#allocation7 + $0x1410] sm:$0xff]
        %v1839 = vld [vmem:[#allocation7 + $0x1418] sm:$0xff]
        %v1840 = vld [vmem:[#allocation7 + $0x1420] sm:$0xff]
        %v1841 = vld [vmem:[#allocation7 + $0x1428] sm:$0xff]
        %v1842 = vld [vmem:[#allocation7 + $0x1430] sm:$0xff]
        %v1843 = vld [vmem:[#allocation7 + $0x1438] sm:$0xff]
        %v1844 = vld [vmem:[#allocation7 + $0x1440] sm:$0xff]
        %v1845 = vld [vmem:[#allocation7 + $0x1448] sm:$0xff]
        %v1846 = vld [vmem:[#allocation7 + $0x1450] sm:$0xff]
        %v1847 = vld [vmem:[#allocation7 + $0x1458] sm:$0xff]
        %v1848 = vld [vmem:[#allocation7 + $0x1460] sm:$0xff]
        %v1849 = vld [vmem:[#allocation7 + $0x1468] sm:$0xff]
        %v1850 = vld [vmem:[#allocation7 + $0x1470] sm:$0xff]
        %v1851 = vld [vmem:[#allocation7 + $0x1478] sm:$0xff]
        %v1852 = vld [vmem:[#allocation7 + $0x1480] sm:$0xff]
        %v1853 = vld [vmem:[#allocation7 + $0x1488] sm:$0xff]
        %v1854 = vld [vmem:[#allocation7 + $0x1490] sm:$0xff]
        %v1855 = vld [vmem:[#allocation7 + $0x1498] sm:$0xff]
        %v1856 = vld [vmem:[#allocation7 + $0x14a0] sm:$0xff]
        %v1857 = vld [vmem:[#allocation7 + $0x14a8] sm:$0xff]
        %v1858 = vld [vmem:[#allocation7 + $0x14b0] sm:$0xff]
        %v1859 = vld [vmem:[#allocation7 + $0x14b8] sm:$0xff]
        %v1860 = vld [vmem:[#allocation7 + $0x14c0] sm:$0xff]
        %v1861 = vld [vmem:[#allocation7 + $0x14c8] sm:$0xff]
        %v1862 = vld [vmem:[#allocation7 + $0x14d0] sm:$0xff]
        %v1863 = vld [vmem:[#allocation7 + $0x14d8] sm:$0xff]
        %v1864 = vld [vmem:[#allocation7 + $0x14e0] sm:$0xff]
        %v1865 = vld [vmem:[#allocation7 + $0x14e8] sm:$0xff]
        %v1866 = vld [vmem:[#allocation7 + $0x14f0] sm:$0xff]
        %v1867 = vld [vmem:[#allocation7 + $0x14f8] sm:$0xff]
        %v1868 = vld [vmem:[#allocation7 + $0x1500] sm:$0xff]
        %v1869 = vld [vmem:[#allocation7 + $0x1508] sm:$0xff]
        %v1870 = vld [vmem:[#allocation7 + $0x1510] sm:$0xff]
        %v1871 = vld [vmem:[#allocation7 + $0x1518] sm:$0xff]
        %v1872 = vld [vmem:[#allocation7 + $0x1520] sm:$0xff]
        %v1873 = vld [vmem:[#allocation7 + $0x1528] sm:$0xff]
        %v1874 = vld [vmem:[#allocation7 + $0x1530] sm:$0xff]
        %v1875 = vld [vmem:[#allocation7 + $0x1538] sm:$0xff]
        %v1876 = vld [vmem:[#allocation7 + $0x1540] sm:$0xff]
        %v1877 = vld [vmem:[#allocation7 + $0x1548] sm:$0xff]
        %v1878 = vld [vmem:[#allocation7 + $0x1550] sm:$0xff]
        %v1879 = vld [vmem:[#allocation7 + $0x1558] sm:$0xff]
        %v1880 = vld [vmem:[#allocation7 + $0x1560] sm:$0xff]
        %v1881 = vld [vmem:[#allocation7 + $0x1568] sm:$0xff]
        %v1882 = vld [vmem:[#allocation7 + $0x1570] sm:$0xff]
        %v1883 = vld [vmem:[#allocation7 + $0x1578] sm:$0xff]
        %v1884 = vld [vmem:[#allocation7 + $0x1580] sm:$0xff]
        %v1885 = vld [vmem:[#allocation7 + $0x1588] sm:$0xff]
        %v1886 = vld [vmem:[#allocation7 + $0x1590] sm:$0xff]
        %v1887 = vld [vmem:[#allocation7 + $0x1598] sm:$0xff]
        %v1888 = vld [vmem:[#allocation7 + $0x15a0] sm:$0xff]
        %v1889 = vld [vmem:[#allocation7 + $0x15a8] sm:$0xff]
        %v1890 = vld [vmem:[#allocation7 + $0x15b0] sm:$0xff]
        %v1891 = vld [vmem:[#allocation7 + $0x15b8] sm:$0xff]
        %v1892 = vld [vmem:[#allocation7 + $0x15c0] sm:$0xff]
        %v1893 = vld [vmem:[#allocation7 + $0x15c8] sm:$0xff]
        %v1894 = vld [vmem:[#allocation7 + $0x15d0] sm:$0xff]
        %v1895 = vld [vmem:[#allocation7 + $0x15d8] sm:$0xff]
        %v1896 = vld [vmem:[#allocation7 + $0x15e0] sm:$0xff]
        %v1897 = vld [vmem:[#allocation7 + $0x15e8] sm:$0xff]
        %v1898 = vld [vmem:[#allocation7 + $0x15f0] sm:$0xff]
        %v1899 = vld [vmem:[#allocation7 + $0x15f8] sm:$0xff]
        %v1900 = vld [vmem:[#allocation7 + $0x1600] sm:$0xff]
        %v1901 = vld [vmem:[#allocation7 + $0x1608] sm:$0xff]
        %v1902 = vld [vmem:[#allocation7 + $0x1610] sm:$0xff]
        %v1903 = vld [vmem:[#allocation7 + $0x1618] sm:$0xff]
        %v1904 = vld [vmem:[#allocation7 + $0x1620] sm:$0xff]
        %v1905 = vld [vmem:[#allocation7 + $0x1628] sm:$0xff]
        %v1906 = vld [vmem:[#allocation7 + $0x1630] sm:$0xff]
        %v1907 = vld [vmem:[#allocation7 + $0x1638] sm:$0xff]
        %v1908 = vld [vmem:[#allocation7 + $0x1640] sm:$0xff]
        %v1909 = vld [vmem:[#allocation7 + $0x1648] sm:$0xff]
        %v1910 = vld [vmem:[#allocation7 + $0x1650] sm:$0xff]
        %v1911 = vld [vmem:[#allocation7 + $0x1658] sm:$0xff]
        %v1912 = vld [vmem:[#allocation7 + $0x1660] sm:$0xff]
        %v1913 = vld [vmem:[#allocation7 + $0x1668] sm:$0xff]
        %v1914 = vld [vmem:[#allocation7 + $0x1670] sm:$0xff]
        %v1915 = vld [vmem:[#allocation7 + $0x1678] sm:$0xff]
        %v1916 = vld [vmem:[#allocation7 + $0x1680] sm:$0xff]
        %v1917 = vld [vmem:[#allocation7 + $0x1688] sm:$0xff]
        %v1918 = vld [vmem:[#allocation7 + $0x1690] sm:$0xff]
        %v1919 = vld [vmem:[#allocation7 + $0x1698] sm:$0xff]
        %v1920 = vld [vmem:[#allocation7 + $0x16a0] sm:$0xff]
        %v1921 = vld [vmem:[#allocation7 + $0x16a8] sm:$0xff]
        %v1922 = vld [vmem:[#allocation7 + $0x16b0] sm:$0xff]
        %v1923 = vld [vmem:[#allocation7 + $0x16b8] sm:$0xff]
        %v1924 = vld [vmem:[#allocation7 + $0x16c0] sm:$0xff]
        %v1925 = vld [vmem:[#allocation7 + $0x16c8] sm:$0xff]
        %v1926 = vld [vmem:[#allocation7 + $0x16d0] sm:$0xff]
        %v1927 = vld [vmem:[#allocation7 + $0x16d8] sm:$0xff]
        %v1928 = vld [vmem:[#allocation7 + $0x16e0] sm:$0xff]
        %v1929 = vld [vmem:[#allocation7 + $0x16e8] sm:$0xff]
        %v1930 = vld [vmem:[#allocation7 + $0x16f0] sm:$0xff]
        %v1931 = vld [vmem:[#allocation7 + $0x16f8] sm:$0xff]
        %v1932 = vld [vmem:[#allocation7 + $0x1700] sm:$0xff]
        %v1933 = vld [vmem:[#allocation7 + $0x1708] sm:$0xff]
        %v1934 = vld [vmem:[#allocation7 + $0x1710] sm:$0xff]
        %v1935 = vld [vmem:[#allocation7 + $0x1718] sm:$0xff]
        %v1936 = vld [vmem:[#allocation7 + $0x1720] sm:$0xff]
        %v1937 = vld [vmem:[#allocation7 + $0x1728] sm:$0xff]
        %v1938 = vld [vmem:[#allocation7 + $0x1730] sm:$0xff]
        %v1939 = vld [vmem:[#allocation7 + $0x1738] sm:$0xff]
        %v1940 = vld [vmem:[#allocation7 + $0x1740] sm:$0xff]
        %v1941 = vld [vmem:[#allocation7 + $0x1748] sm:$0xff]
        %v1942 = vld [vmem:[#allocation7 + $0x1750] sm:$0xff]
        %v1943 = vld [vmem:[#allocation7 + $0x1758] sm:$0xff]
        %v1944 = vld [vmem:[#allocation7 + $0x1760] sm:$0xff]
        %v1945 = vld [vmem:[#allocation7 + $0x1768] sm:$0xff]
        %v1946 = vld [vmem:[#allocation7 + $0x1770] sm:$0xff]
        %v1947 = vld [vmem:[#allocation7 + $0x1778] sm:$0xff]
        %v1948 = vld [vmem:[#allocation7 + $0x1780] sm:$0xff]
        %v1949 = vld [vmem:[#allocation7 + $0x1788] sm:$0xff]
        %v1950 = vld [vmem:[#allocation7 + $0x1790] sm:$0xff]
        %v1951 = vld [vmem:[#allocation7 + $0x1798] sm:$0xff]
        %v1952 = vld [vmem:[#allocation7 + $0x17a0] sm:$0xff]
        %v1953 = vld [vmem:[#allocation7 + $0x17a8] sm:$0xff]
        %v1954 = vld [vmem:[#allocation7 + $0x17b0] sm:$0xff]
        %v1955 = vld [vmem:[#allocation7 + $0x17b8] sm:$0xff]
        %v1956 = vld [vmem:[#allocation7 + $0x17c0] sm:$0xff]
        %v1957 = vld [vmem:[#allocation7 + $0x17c8] sm:$0xff]
        %v1958 = vld [vmem:[#allocation7 + $0x17d0] sm:$0xff]
        %v1959 = vld [vmem:[#allocation7 + $0x17d8] sm:$0xff]
        %v1960 = vld [vmem:[#allocation7 + $0x17e0] sm:$0xff]
        %v1961 = vld [vmem:[#allocation7 + $0x17e8] sm:$0xff]
        %v1962 = vld [vmem:[#allocation7 + $0x17f0] sm:$0xff]
        %v1963 = vld [vmem:[#allocation7 + $0x17f8] sm:$0xff]
        %v1964 = vld [vmem:[#allocation7 + $0x1800] sm:$0xff]
        %v1965 = vld [vmem:[#allocation7 + $0x1808] sm:$0xff]
        %v1966 = vld [vmem:[#allocation7 + $0x1810] sm:$0xff]
        %v1967 = vld [vmem:[#allocation7 + $0x1818] sm:$0xff]
        %v1968 = vld [vmem:[#allocation7 + $0x1820] sm:$0xff]
        %v1969 = vld [vmem:[#allocation7 + $0x1828] sm:$0xff]
        %v1970 = vld [vmem:[#allocation7 + $0x1830] sm:$0xff]
        %v1971 = vld [vmem:[#allocation7 + $0x1838] sm:$0xff]
        %v1972 = vld [vmem:[#allocation7 + $0x1840] sm:$0xff]
        %v1973 = vld [vmem:[#allocation7 + $0x1848] sm:$0xff]
        %v1974 = vld [vmem:[#allocation7 + $0x1850] sm:$0xff]
        %v1975 = vld [vmem:[#allocation7 + $0x1858] sm:$0xff]
        %v1976 = vld [vmem:[#allocation7 + $0x1860] sm:$0xff]
        %v1977 = vld [vmem:[#allocation7 + $0x1868] sm:$0xff]
        %v1978 = vld [vmem:[#allocation7 + $0x1870] sm:$0xff]
        %v1979 = vld [vmem:[#allocation7 + $0x1878] sm:$0xff]
        %v1980 = vld [vmem:[#allocation7 + $0x1880] sm:$0xff]
        %v1981 = vld [vmem:[#allocation7 + $0x1888] sm:$0xff]
        %v1982 = vld [vmem:[#allocation7 + $0x1890] sm:$0xff]
        %v1983 = vld [vmem:[#allocation7 + $0x1898] sm:$0xff]
        %v1984 = vld [vmem:[#allocation7 + $0x18a0] sm:$0xff]
        %v1985 = vld [vmem:[#allocation7 + $0x18a8] sm:$0xff]
        %v1986 = vld [vmem:[#allocation7 + $0x18b0] sm:$0xff]
        %v1987 = vld [vmem:[#allocation7 + $0x18b8] sm:$0xff]
        %v1988 = vld [vmem:[#allocation7 + $0x18c0] sm:$0xff]
        %v1989 = vld [vmem:[#allocation7 + $0x18c8] sm:$0xff]
        %v1990 = vld [vmem:[#allocation7 + $0x18d0] sm:$0xff]
        %v1991 = vld [vmem:[#allocation7 + $0x18d8] sm:$0xff]
        %v1992 = vld [vmem:[#allocation7 + $0x18e0] sm:$0xff]
        %v1993 = vld [vmem:[#allocation7 + $0x18e8] sm:$0xff]
        %v1994 = vld [vmem:[#allocation7 + $0x18f0] sm:$0xff]
        %v1995 = vld [vmem:[#allocation7 + $0x18f8] sm:$0xff]
        %v1996 = vld [vmem:[#allocation7 + $0x1900] sm:$0xff]
        %v1997 = vld [vmem:[#allocation7 + $0x1908] sm:$0xff]
        %v1998 = vld [vmem:[#allocation7 + $0x1910] sm:$0xff]
        %v1999 = vld [vmem:[#allocation7 + $0x1918] sm:$0xff]
        %v2000 = vld [vmem:[#allocation7 + $0x1920] sm:$0xff]
        %v2001 = vld [vmem:[#allocation7 + $0x1928] sm:$0xff]
        %v2002 = vld [vmem:[#allocation7 + $0x1930] sm:$0xff]
        %v2003 = vld [vmem:[#allocation7 + $0x1938] sm:$0xff]
        %v2004 = vld [vmem:[#allocation7 + $0x1940] sm:$0xff]
        %v2005 = vld [vmem:[#allocation7 + $0x1948] sm:$0xff]
        %v2006 = vld [vmem:[#allocation7 + $0x1950] sm:$0xff]
        %v2007 = vld [vmem:[#allocation7 + $0x1958] sm:$0xff]
        %v2008 = vld [vmem:[#allocation7 + $0x1960] sm:$0xff]
        %v2009 = vld [vmem:[#allocation7 + $0x1968] sm:$0xff]
        %v2010 = vld [vmem:[#allocation7 + $0x1970] sm:$0xff]
        %v2011 = vld [vmem:[#allocation7 + $0x1978] sm:$0xff]
        %v2012 = vld [vmem:[#allocation7 + $0x1980] sm:$0xff]
        %v2013 = vld [vmem:[#allocation7 + $0x1988] sm:$0xff]
        %v2014 = vld [vmem:[#allocation7 + $0x1990] sm:$0xff]
        %v2015 = vld [vmem:[#allocation7 + $0x1998] sm:$0xff]
        %v2016 = vld [vmem:[#allocation7 + $0x19a0] sm:$0xff]
        %v2017 = vld [vmem:[#allocation7 + $0x19a8] sm:$0xff]
        %v2018 = vld [vmem:[#allocation7 + $0x19b0] sm:$0xff]
        %v2019 = vld [vmem:[#allocation7 + $0x19b8] sm:$0xff]
        %v2020 = vld [vmem:[#allocation7 + $0x19c0] sm:$0xff]
        %v2021 = vld [vmem:[#allocation7 + $0x19c8] sm:$0xff]
        %v2022 = vld [vmem:[#allocation7 + $0x19d0] sm:$0xff]
        %v2023 = vld [vmem:[#allocation7 + $0x19d8] sm:$0xff]
        %v2024 = vld [vmem:[#allocation7 + $0x19e0] sm:$0xff]
        %v2025 = vld [vmem:[#allocation7 + $0x19e8] sm:$0xff]
        %v2026 = vld [vmem:[#allocation7 + $0x19f0] sm:$0xff]
        %v2027 = vld [vmem:[#allocation7 + $0x19f8] sm:$0xff]
        %v2028 = vld [vmem:[#allocation7 + $0x1a00] sm:$0xff]
        %v2029 = vld [vmem:[#allocation7 + $0x1a08] sm:$0xff]
        %v2030 = vld [vmem:[#allocation7 + $0x1a10] sm:$0xff]
        %v2031 = vld [vmem:[#allocation7 + $0x1a18] sm:$0xff]
        %v2032 = vld [vmem:[#allocation7 + $0x1a20] sm:$0xff]
        %v2033 = vld [vmem:[#allocation7 + $0x1a28] sm:$0xff]
        %v2034 = vld [vmem:[#allocation7 + $0x1a30] sm:$0xff]
        %v2035 = vld [vmem:[#allocation7 + $0x1a38] sm:$0xff]
        %v2036 = vld [vmem:[#allocation7 + $0x1a40] sm:$0xff]
        %v2037 = vld [vmem:[#allocation7 + $0x1a48] sm:$0xff]
        %v2038 = vld [vmem:[#allocation7 + $0x1a50] sm:$0xff]
        %v2039 = vld [vmem:[#allocation7 + $0x1a58] sm:$0xff]
        %v2040 = vld [vmem:[#allocation7 + $0x1a60] sm:$0xff]
        %v2041 = vld [vmem:[#allocation7 + $0x1a68] sm:$0xff]
        %v2042 = vld [vmem:[#allocation7 + $0x1a70] sm:$0xff]
        %v2043 = vld [vmem:[#allocation7 + $0x1a78] sm:$0xff]
        %v2044 = vld [vmem:[#allocation7 + $0x1a80] sm:$0xff]
        %v2045 = vld [vmem:[#allocation7 + $0x1a88] sm:$0xff]
        %v2046 = vld [vmem:[#allocation7 + $0x1a90] sm:$0xff]
        %v2047 = vld [vmem:[#allocation7 + $0x1a98] sm:$0xff]
        %v2048 = vld [vmem:[#allocation7 + $0x1aa0] sm:$0xff]
        %v2049 = vld [vmem:[#allocation7 + $0x1aa8] sm:$0xff]
        %v2050 = vld [vmem:[#allocation7 + $0x1ab0] sm:$0xff]
        %v2051 = vld [vmem:[#allocation7 + $0x1ab8] sm:$0xff]
        %v2052 = vld [vmem:[#allocation7 + $0x1ac0] sm:$0xff]
        %v2053 = vld [vmem:[#allocation7 + $0x1ac8] sm:$0xff]
        %v2054 = vld [vmem:[#allocation7 + $0x1ad0] sm:$0xff]
        %v2055 = vld [vmem:[#allocation7 + $0x1ad8] sm:$0xff]
        %v2056 = vld [vmem:[#allocation7 + $0x1ae0] sm:$0xff]
        %v2057 = vld [vmem:[#allocation7 + $0x1ae8] sm:$0xff]
        %v2058 = vld [vmem:[#allocation7 + $0x1af0] sm:$0xff]
        %v2059 = vld [vmem:[#allocation7 + $0x1af8] sm:$0xff]
        %v2060 = vld [vmem:[#allocation7 + $0x1b00] sm:$0xff]
        %v2061 = vld [vmem:[#allocation7 + $0x1b08] sm:$0xff]
        %v2062 = vld [vmem:[#allocation7 + $0x1b10] sm:$0xff]
        %v2063 = vld [vmem:[#allocation7 + $0x1b18] sm:$0xff]
        %v2064 = vld [vmem:[#allocation7 + $0x1b20] sm:$0xff]
        %v2065 = vld [vmem:[#allocation7 + $0x1b28] sm:$0xff]
        %v2066 = vld [vmem:[#allocation7 + $0x1b30] sm:$0xff]
        %v2067 = vld [vmem:[#allocation7 + $0x1b38] sm:$0xff]
        %v2068 = vld [vmem:[#allocation7 + $0x1b40] sm:$0xff]
        %v2069 = vld [vmem:[#allocation7 + $0x1b48] sm:$0xff]
        %v2070 = vld [vmem:[#allocation7 + $0x1b50] sm:$0xff]
        %v2071 = vld [vmem:[#allocation7 + $0x1b58] sm:$0xff]
        %v2072 = vld [vmem:[#allocation7 + $0x1b60] sm:$0xff]
        %v2073 = vld [vmem:[#allocation7 + $0x1b68] sm:$0xff]
        %v2074 = vld [vmem:[#allocation7 + $0x1b70] sm:$0xff]
        %v2075 = vld [vmem:[#allocation7 + $0x1b78] sm:$0xff]
        %v2076 = vld [vmem:[#allocation7 + $0x1b80] sm:$0xff]
        %v2077 = vld [vmem:[#allocation7 + $0x1b88] sm:$0xff]
        %v2078 = vld [vmem:[#allocation7 + $0x1b90] sm:$0xff]
        %v2079 = vld [vmem:[#allocation7 + $0x1b98] sm:$0xff]
        %v2080 = vld [vmem:[#allocation7 + $0x1ba0] sm:$0xff]
        %v2081 = vld [vmem:[#allocation7 + $0x1ba8] sm:$0xff]
        %v2082 = vld [vmem:[#allocation7 + $0x1bb0] sm:$0xff]
        %v2083 = vld [vmem:[#allocation7 + $0x1bb8] sm:$0xff]
        %v2084 = vld [vmem:[#allocation7 + $0x1bc0] sm:$0xff]
        %v2085 = vld [vmem:[#allocation7 + $0x1bc8] sm:$0xff]
        %v2086 = vld [vmem:[#allocation7 + $0x1bd0] sm:$0xff]
        %v2087 = vld [vmem:[#allocation7 + $0x1bd8] sm:$0xff]
        %v2088 = vld [vmem:[#allocation7 + $0x1be0] sm:$0xff]
        %v2089 = vld [vmem:[#allocation7 + $0x1be8] sm:$0xff]
        %v2090 = vld [vmem:[#allocation7 + $0x1bf0] sm:$0xff]
        %v2091 = vld [vmem:[#allocation7 + $0x1bf8] sm:$0xff]
        %v2092 = vld [vmem:[#allocation7 + $0x1c00] sm:$0xff]
        %v2093 = vld [vmem:[#allocation7 + $0x1c08] sm:$0xff]
        %v2094 = vld [vmem:[#allocation7 + $0x1c10] sm:$0xff]
        %v2095 = vld [vmem:[#allocation7 + $0x1c18] sm:$0xff]
        %v2096 = vld [vmem:[#allocation7 + $0x1c20] sm:$0xff]
        %v2097 = vld [vmem:[#allocation7 + $0x1c28] sm:$0xff]
        %v2098 = vld [vmem:[#allocation7 + $0x1c30] sm:$0xff]
        %v2099 = vld [vmem:[#allocation7 + $0x1c38] sm:$0xff]
        %v2100 = vld [vmem:[#allocation7 + $0x1c40] sm:$0xff]
        %v2101 = vld [vmem:[#allocation7 + $0x1c48] sm:$0xff]
        %v2102 = vld [vmem:[#allocation7 + $0x1c50] sm:$0xff]
        %v2103 = vld [vmem:[#allocation7 + $0x1c58] sm:$0xff]
        %v2104 = vld [vmem:[#allocation7 + $0x1c60] sm:$0xff]
        %v2105 = vld [vmem:[#allocation7 + $0x1c68] sm:$0xff]
        %v2106 = vld [vmem:[#allocation7 + $0x1c70] sm:$0xff]
        %v2107 = vld [vmem:[#allocation7 + $0x1c78] sm:$0xff]
        %v2108 = vld [vmem:[#allocation7 + $0x1c80] sm:$0xff]
        %v2109 = vld [vmem:[#allocation7 + $0x1c88] sm:$0xff]
        %v2110 = vld [vmem:[#allocation7 + $0x1c90] sm:$0xff]
        %v2111 = vld [vmem:[#allocation7 + $0x1c98] sm:$0xff]
        %v2112 = vld [vmem:[#allocation7 + $0x1ca0] sm:$0xff]
        %v2113 = vld [vmem:[#allocation7 + $0x1ca8] sm:$0xff]
        %v2114 = vld [vmem:[#allocation7 + $0x1cb0] sm:$0xff]
        %v2115 = vld [vmem:[#allocation7 + $0x1cb8] sm:$0xff]
        %v2116 = vld [vmem:[#allocation7 + $0x1cc0] sm:$0xff]
        %v2117 = vld [vmem:[#allocation7 + $0x1cc8] sm:$0xff]
        %v2118 = vld [vmem:[#allocation7 + $0x1cd0] sm:$0xff]
        %v2119 = vld [vmem:[#allocation7 + $0x1cd8] sm:$0xff]
        %v2120 = vld [vmem:[#allocation7 + $0x1ce0] sm:$0xff]
        %v2121 = vld [vmem:[#allocation7 + $0x1ce8] sm:$0xff]
        %v2122 = vld [vmem:[#allocation7 + $0x1cf0] sm:$0xff]
        %v2123 = vld [vmem:[#allocation7 + $0x1cf8] sm:$0xff]
        %v2124 = vld [vmem:[#allocation7 + $0x1d00] sm:$0xff]
        %v2125 = vld [vmem:[#allocation7 + $0x1d08] sm:$0xff]
        %v2126 = vld [vmem:[#allocation7 + $0x1d10] sm:$0xff]
        %v2127 = vld [vmem:[#allocation7 + $0x1d18] sm:$0xff]
        %v2128 = vld [vmem:[#allocation7 + $0x1d20] sm:$0xff]
        %v2129 = vld [vmem:[#allocation7 + $0x1d28] sm:$0xff]
        %v2130 = vld [vmem:[#allocation7 + $0x1d30] sm:$0xff]
        %v2131 = vld [vmem:[#allocation7 + $0x1d38] sm:$0xff]
        %v2132 = vld [vmem:[#allocation7 + $0x1d40] sm:$0xff]
        %v2133 = vld [vmem:[#allocation7 + $0x1d48] sm:$0xff]
        %v2134 = vld [vmem:[#allocation7 + $0x1d50] sm:$0xff]
        %v2135 = vld [vmem:[#allocation7 + $0x1d58] sm:$0xff]
        %v2136 = vld [vmem:[#allocation7 + $0x1d60] sm:$0xff]
        %v2137 = vld [vmem:[#allocation7 + $0x1d68] sm:$0xff]
        %v2138 = vld [vmem:[#allocation7 + $0x1d70] sm:$0xff]
        %v2139 = vld [vmem:[#allocation7 + $0x1d78] sm:$0xff]
        %v2140 = vld [vmem:[#allocation7 + $0x1d80] sm:$0xff]
        %v2141 = vld [vmem:[#allocation7 + $0x1d88] sm:$0xff]
        %v2142 = vld [vmem:[#allocation7 + $0x1d90] sm:$0xff]
        %v2143 = vld [vmem:[#allocation7 + $0x1d98] sm:$0xff]
        %v2144 = vld [vmem:[#allocation7 + $0x1da0] sm:$0xff]
        %v2145 = vld [vmem:[#allocation7 + $0x1da8] sm:$0xff]
        %v2146 = vld [vmem:[#allocation7 + $0x1db0] sm:$0xff]
        %v2147 = vld [vmem:[#allocation7 + $0x1db8] sm:$0xff]
        %v2148 = vld [vmem:[#allocation7 + $0x1dc0] sm:$0xff]
        %v2149 = vld [vmem:[#allocation7 + $0x1dc8] sm:$0xff]
        %v2150 = vld [vmem:[#allocation7 + $0x1dd0] sm:$0xff]
        %v2151 = vld [vmem:[#allocation7 + $0x1dd8] sm:$0xff]
        %v2152 = vld [vmem:[#allocation7 + $0x1de0] sm:$0xff]
        %v2153 = vld [vmem:[#allocation7 + $0x1de8] sm:$0xff]
        %v2154 = vld [vmem:[#allocation7 + $0x1df0] sm:$0xff]
        %v2155 = vld [vmem:[#allocation7 + $0x1df8] sm:$0xff]
        %v2156 = vld [vmem:[#allocation7 + $0x1e00] sm:$0xff]
        %v2157 = vld [vmem:[#allocation7 + $0x1e08] sm:$0xff]
        %v2158 = vld [vmem:[#allocation7 + $0x1e10] sm:$0xff]
        %v2159 = vld [vmem:[#allocation7 + $0x1e18] sm:$0xff]
        %v2160 = vld [vmem:[#allocation7 + $0x1e20] sm:$0xff]
        %v2161 = vld [vmem:[#allocation7 + $0x1e28] sm:$0xff]
        %v2162 = vld [vmem:[#allocation7 + $0x1e30] sm:$0xff]
        %v2163 = vld [vmem:[#allocation7 + $0x1e38] sm:$0xff]
        %v2164 = vld [vmem:[#allocation7 + $0x1e40] sm:$0xff]
        %v2165 = vld [vmem:[#allocation7 + $0x1e48] sm:$0xff]
        %v2166 = vld [vmem:[#allocation7 + $0x1e50] sm:$0xff]
        %v2167 = vld [vmem:[#allocation7 + $0x1e58] sm:$0xff]
        %v2168 = vld [vmem:[#allocation7 + $0x1e60] sm:$0xff]
        %v2169 = vld [vmem:[#allocation7 + $0x1e68] sm:$0xff]
        %v2170 = vld [vmem:[#allocation7 + $0x1e70] sm:$0xff]
        %v2171 = vld [vmem:[#allocation7 + $0x1e78] sm:$0xff]
        %v2172 = vld [vmem:[#allocation7 + $0x1e80] sm:$0xff]
        %v2173 = vld [vmem:[#allocation7 + $0x1e88] sm:$0xff]
        %v2174 = vld [vmem:[#allocation7 + $0x1e90] sm:$0xff]
        %v2175 = vld [vmem:[#allocation7 + $0x1e98] sm:$0xff]
        %v2176 = vld [vmem:[#allocation7 + $0x1ea0] sm:$0xff]
        %v2177 = vld [vmem:[#allocation7 + $0x1ea8] sm:$0xff]
        %v2178 = vld [vmem:[#allocation7 + $0x1eb0] sm:$0xff]
        %v2179 = vld [vmem:[#allocation7 + $0x1eb8] sm:$0xff]
        %v2180 = vld [vmem:[#allocation7 + $0x1ec0] sm:$0xff]
        %v2181 = vld [vmem:[#allocation7 + $0x1ec8] sm:$0xff]
        %v2182 = vld [vmem:[#allocation7 + $0x1ed0] sm:$0xff]
        %v2183 = vld [vmem:[#allocation7 + $0x1ed8] sm:$0xff]
        %v2184 = vld [vmem:[#allocation7 + $0x1ee0] sm:$0xff]
        %v2185 = vld [vmem:[#allocation7 + $0x1ee8] sm:$0xff]
        %v2186 = vld [vmem:[#allocation7 + $0x1ef0] sm:$0xff]
        %v2187 = vld [vmem:[#allocation7 + $0x1ef8] sm:$0xff]
        %v2188 = vld [vmem:[#allocation7 + $0x1f00] sm:$0xff]
        %v2189 = vld [vmem:[#allocation7 + $0x1f08] sm:$0xff]
        %v2190 = vld [vmem:[#allocation7 + $0x1f10] sm:$0xff]
        %v2191 = vld [vmem:[#allocation7 + $0x1f18] sm:$0xff]
        %v2192 = vld [vmem:[#allocation7 + $0x1f20] sm:$0xff]
        %v2193 = vld [vmem:[#allocation7 + $0x1f28] sm:$0xff]
        %v2194 = vld [vmem:[#allocation7 + $0x1f30] sm:$0xff]
        %v2195 = vld [vmem:[#allocation7 + $0x1f38] sm:$0xff]
        %v2196 = vld [vmem:[#allocation7 + $0x1f40] sm:$0xff]
        %v2197 = vld [vmem:[#allocation7 + $0x1f48] sm:$0xff]
        %v2198 = vld [vmem:[#allocation7 + $0x1f50] sm:$0xff]
        %v2199 = vld [vmem:[#allocation7 + $0x1f58] sm:$0xff]
        %v2200 = vld [vmem:[#allocation7 + $0x1f60] sm:$0xff]
        %v2201 = vld [vmem:[#allocation7 + $0x1f68] sm:$0xff]
        %v2202 = vld [vmem:[#allocation7 + $0x1f70] sm:$0xff]
        %v2203 = vld [vmem:[#allocation7 + $0x1f78] sm:$0xff]
        %v2204 = vld [vmem:[#allocation7 + $0x1f80] sm:$0xff]
        %v2205 = vld [vmem:[#allocation7 + $0x1f88] sm:$0xff]
        %v2206 = vld [vmem:[#allocation7 + $0x1f90] sm:$0xff]
        %v2207 = vld [vmem:[#allocation7 + $0x1f98] sm:$0xff]
        %v2208 = vld [vmem:[#allocation7 + $0x1fa0] sm:$0xff]
        %v2209 = vld [vmem:[#allocation7 + $0x1fa8] sm:$0xff]
        %v2210 = vld [vmem:[#allocation7 + $0x1fb0] sm:$0xff]
        %v2211 = vld [vmem:[#allocation7 + $0x1fb8] sm:$0xff]
        %v2212 = vld [vmem:[#allocation7 + $0x1fc0] sm:$0xff]
        %v2213 = vld [vmem:[#allocation7 + $0x1fc8] sm:$0xff]
        %v2214 = vld [vmem:[#allocation7 + $0x1fd0] sm:$0xff]
        %v2215 = vld [vmem:[#allocation7 + $0x1fd8] sm:$0xff]
        %v2216 = vld [vmem:[#allocation7 + $0x1fe0] sm:$0xff]
        %v2217 = vld [vmem:[#allocation7 + $0x1fe8] sm:$0xff]
        %v2218 = vld [vmem:[#allocation7 + $0x1ff0] sm:$0xff]
        %v2219 = vld [vmem:[#allocation7 + $0x1ff8] sm:$0xff]
        %v2220 = vld [vmem:[#allocation7 + $0x2000] sm:$0xff]
        %v2221 = vld [vmem:[#allocation7 + $0x2008] sm:$0xff]
        %v2222 = vld [vmem:[#allocation7 + $0x2010] sm:$0xff]
        %v2223 = vld [vmem:[#allocation7 + $0x2018] sm:$0xff]
        %v2224 = vld [vmem:[#allocation7 + $0x2020] sm:$0xff]
        %v2225 = vld [vmem:[#allocation7 + $0x2028] sm:$0xff]
        %v2226 = vld [vmem:[#allocation7 + $0x2030] sm:$0xff]
        %v2227 = vld [vmem:[#allocation7 + $0x2038] sm:$0xff]
        %v2228 = vld [vmem:[#allocation7 + $0x2040] sm:$0xff]
        %v2229 = vld [vmem:[#allocation7 + $0x2048] sm:$0xff]
        %v2230 = vld [vmem:[#allocation7 + $0x2050] sm:$0xff]
        %v2231 = vld [vmem:[#allocation7 + $0x2058] sm:$0xff]
        %v2232 = vld [vmem:[#allocation7 + $0x2060] sm:$0xff]
        %v2233 = vld [vmem:[#allocation7 + $0x2068] sm:$0xff]
        %v2234 = vld [vmem:[#allocation7 + $0x2070] sm:$0xff]
        %v2235 = vld [vmem:[#allocation7 + $0x2078] sm:$0xff]
        %v2236 = vld [vmem:[#allocation7 + $0x2080] sm:$0xff]
        %v2237 = vld [vmem:[#allocation7 + $0x2088] sm:$0xff]
        %v2238 = vld [vmem:[#allocation7 + $0x2090] sm:$0xff]
        %v2239 = vld [vmem:[#allocation7 + $0x2098] sm:$0xff]
        %v2240 = vld [vmem:[#allocation7 + $0x20a0] sm:$0xff]
        %v2241 = vld [vmem:[#allocation7 + $0x20a8] sm:$0xff]
        %v2242 = vld [vmem:[#allocation7 + $0x20b0] sm:$0xff]
        %v2243 = vld [vmem:[#allocation7 + $0x20b8] sm:$0xff]
        %v2244 = vld [vmem:[#allocation7 + $0x20c0] sm:$0xff]
        %v2245 = vld [vmem:[#allocation7 + $0x20c8] sm:$0xff]
        %v2246 = vld [vmem:[#allocation7 + $0x20d0] sm:$0xff]
        %v2247 = vld [vmem:[#allocation7 + $0x20d8] sm:$0xff]
        %v2248 = vld [vmem:[#allocation7 + $0x20e0] sm:$0xff]
        %v2249 = vld [vmem:[#allocation7 + $0x20e8] sm:$0xff]
        %v2250 = vld [vmem:[#allocation7 + $0x20f0] sm:$0xff]
        %v2251 = vld [vmem:[#allocation7 + $0x20f8] sm:$0xff]
        %v2252 = vld [vmem:[#allocation7 + $0x2100] sm:$0xff]
        %v2253 = vld [vmem:[#allocation7 + $0x2108] sm:$0xff]
        %v2254 = vld [vmem:[#allocation7 + $0x2110] sm:$0xff]
        %v2255 = vld [vmem:[#allocation7 + $0x2118] sm:$0xff]
        %v2256 = vld [vmem:[#allocation7 + $0x2120] sm:$0xff]
        %v2257 = vld [vmem:[#allocation7 + $0x2128] sm:$0xff]
        %v2258 = vld [vmem:[#allocation7 + $0x2130] sm:$0xff]
        %v2259 = vld [vmem:[#allocation7 + $0x2138] sm:$0xff]
        %v2260 = vld [vmem:[#allocation7 + $0x2140] sm:$0xff]
        %v2261 = vld [vmem:[#allocation7 + $0x2148] sm:$0xff]
        %v2262 = vld [vmem:[#allocation7 + $0x2150] sm:$0xff]
        %v2263 = vld [vmem:[#allocation7 + $0x2158] sm:$0xff]
        %v2264 = vld [vmem:[#allocation7 + $0x2160] sm:$0xff]
        %v2265 = vld [vmem:[#allocation7 + $0x2168] sm:$0xff]
        %v2266 = vld [vmem:[#allocation7 + $0x2170] sm:$0xff]
        %v2267 = vld [vmem:[#allocation7 + $0x2178] sm:$0xff]
        %v2268 = vld [vmem:[#allocation7 + $0x2180] sm:$0xff]
        %v2269 = vld [vmem:[#allocation7 + $0x2188] sm:$0xff]
        %v2270 = vld [vmem:[#allocation7 + $0x2190] sm:$0xff]
        %v2271 = vld [vmem:[#allocation7 + $0x2198] sm:$0xff]
        %v2272 = vld [vmem:[#allocation7 + $0x21a0] sm:$0xff]
        %v2273 = vld [vmem:[#allocation7 + $0x21a8] sm:$0xff]
        %v2274 = vld [vmem:[#allocation7 + $0x21b0] sm:$0xff]
        %v2275 = vld [vmem:[#allocation7 + $0x21b8] sm:$0xff]
        %v2276 = vld [vmem:[#allocation7 + $0x21c0] sm:$0xff]
        %v2277 = vld [vmem:[#allocation7 + $0x21c8] sm:$0xff]
        %v2278 = vld [vmem:[#allocation7 + $0x21d0] sm:$0xff]
        %v2279 = vld [vmem:[#allocation7 + $0x21d8] sm:$0xff]
        %v2280 = vld [vmem:[#allocation7 + $0x21e0] sm:$0xff]
        %v2281 = vld [vmem:[#allocation7 + $0x21e8] sm:$0xff]
        %v2282 = vld [vmem:[#allocation7 + $0x21f0] sm:$0xff]
        %v2283 = vld [vmem:[#allocation7 + $0x21f8] sm:$0xff]
        %v2284 = vld [vmem:[#allocation7 + $0x2200] sm:$0xff]
        %v2285 = vld [vmem:[#allocation7 + $0x2208] sm:$0xff]
        %v2286 = vld [vmem:[#allocation7 + $0x2210] sm:$0xff]
        %v2287 = vld [vmem:[#allocation7 + $0x2218] sm:$0xff]
        %v2288 = vld [vmem:[#allocation7 + $0x2220] sm:$0xff]
        %v2289 = vld [vmem:[#allocation7 + $0x2228] sm:$0xff]
        %v2290 = vld [vmem:[#allocation7 + $0x2230] sm:$0xff]
        %v2291 = vld [vmem:[#allocation7 + $0x2238] sm:$0xff]
        %v2292 = vld [vmem:[#allocation7 + $0x2240] sm:$0xff]
        %v2293 = vld [vmem:[#allocation7 + $0x2248] sm:$0xff]
        %v2294 = vld [vmem:[#allocation7 + $0x2250] sm:$0xff]
        %v2295 = vld [vmem:[#allocation7 + $0x2258] sm:$0xff]
        %v2296 = vld [vmem:[#allocation7 + $0x2260] sm:$0xff]
        %v2297 = vld [vmem:[#allocation7 + $0x2268] sm:$0xff]
        %v2298 = vld [vmem:[#allocation7 + $0x2270] sm:$0xff]
        %v2299 = vld [vmem:[#allocation7 + $0x2278] sm:$0xff]
        %v2300 = vld [vmem:[#allocation7 + $0x2280] sm:$0xff]
        %v2301 = vld [vmem:[#allocation7 + $0x2288] sm:$0xff]
        %v2302 = vld [vmem:[#allocation7 + $0x2290] sm:$0xff]
        %v2303 = vld [vmem:[#allocation7 + $0x2298] sm:$0xff]
        %v2304 = vld [vmem:[#allocation7 + $0x22a0] sm:$0xff]
        %v2305 = vld [vmem:[#allocation7 + $0x22a8] sm:$0xff]
        %v2306 = vld [vmem:[#allocation7 + $0x22b0] sm:$0xff]
        %v2307 = vld [vmem:[#allocation7 + $0x22b8] sm:$0xff]
        %v2308 = vld [vmem:[#allocation7 + $0x22c0] sm:$0xff]
        %v2309 = vld [vmem:[#allocation7 + $0x22c8] sm:$0xff]
        %v2310 = vld [vmem:[#allocation7 + $0x22d0] sm:$0xff]
        %v2311 = vld [vmem:[#allocation7 + $0x22d8] sm:$0xff]
        %v2312 = vld [vmem:[#allocation7 + $0x22e0] sm:$0xff]
        %v2313 = vld [vmem:[#allocation7 + $0x22e8] sm:$0xff]
        %v2314 = vld [vmem:[#allocation7 + $0x22f0] sm:$0xff]
        %v2315 = vld [vmem:[#allocation7 + $0x22f8] sm:$0xff]
        %v2316 = vld [vmem:[#allocation7 + $0x2300] sm:$0xff]
        %v2317 = vld [vmem:[#allocation7 + $0x2308] sm:$0xff]
        %v2318 = vld [vmem:[#allocation7 + $0x2310] sm:$0xff]
        %v2319 = vld [vmem:[#allocation7 + $0x2318] sm:$0xff]
        %v2320 = vld [vmem:[#allocation7 + $0x2320] sm:$0xff]
        %v2321 = vld [vmem:[#allocation7 + $0x2328] sm:$0xff]
        %v2322 = vld [vmem:[#allocation7 + $0x2330] sm:$0xff]
        %v2323 = vld [vmem:[#allocation7 + $0x2338] sm:$0xff]
        %v2324 = vld [vmem:[#allocation7 + $0x2340] sm:$0xff]
        %v2325 = vld [vmem:[#allocation7 + $0x2348] sm:$0xff]
        %v2326 = vld [vmem:[#allocation7 + $0x2350] sm:$0xff]
        %v2327 = vld [vmem:[#allocation7 + $0x2358] sm:$0xff]
        %v2328 = vld [vmem:[#allocation7 + $0x2360] sm:$0xff]
        %v2329 = vld [vmem:[#allocation7 + $0x2368] sm:$0xff]
        %v2330 = vld [vmem:[#allocation7 + $0x2370] sm:$0xff]
        %v2331 = vld [vmem:[#allocation7 + $0x2378] sm:$0xff]
        %v2332 = vld [vmem:[#allocation7 + $0x2380] sm:$0xff]
        %v2333 = vld [vmem:[#allocation7 + $0x2388] sm:$0xff]
        %v2334 = vld [vmem:[#allocation7 + $0x2390] sm:$0xff]
        %v2335 = vld [vmem:[#allocation7 + $0x2398] sm:$0xff]
        %v2336 = vld [vmem:[#allocation7 + $0x23a0] sm:$0xff]
        %v2337 = vld [vmem:[#allocation7 + $0x23a8] sm:$0xff]
        %v2338 = vld [vmem:[#allocation7 + $0x23b0] sm:$0xff]
        %v2339 = vld [vmem:[#allocation7 + $0x23b8] sm:$0xff]
        %v2340 = vld [vmem:[#allocation7 + $0x23c0] sm:$0xff]
        %v2341 = vld [vmem:[#allocation7 + $0x23c8] sm:$0xff]
        %v2342 = vld [vmem:[#allocation7 + $0x23d0] sm:$0xff]
        %v2343 = vld [vmem:[#allocation7 + $0x23d8] sm:$0xff]
        %v2344 = vld [vmem:[#allocation7 + $0x23e0] sm:$0xff]
        %v2345 = vld [vmem:[#allocation7 + $0x23e8] sm:$0xff]
        %v2346 = vld [vmem:[#allocation7 + $0x23f0] sm:$0xff]
        %v2347 = vld [vmem:[#allocation7 + $0x23f8] sm:$0xff]
        %v2348 = vld [vmem:[#allocation8] sm:$0xff]
        %v2349 = vld [vmem:[#allocation8 + $0x8] sm:$0xf]
        %v2352 = vlaneseq
        %v2353 = vshrl.u32 %v2352, 7
        %v2354 = vsub.s32 0, %v2353
        %v2355 = vrot.slane %v2348, %v2354
        %v2356 = vlaneseq
        %v2357 = vshrl.u32 %v2356, 7
        %v2358 = vsub.s32 1, %v2357
        %v2359 = vrot.slane %v2348, %v2358
        %v2360 = vlaneseq
        %v2361 = vshrl.u32 %v2360, 7
        %v2362 = vsub.s32 2, %v2361
        %v2363 = vrot.slane %v2348, %v2362
        %v2364 = vlaneseq
        %v2365 = vshrl.u32 %v2364, 7
        %v2366 = vsub.s32 3, %v2365
        %v2367 = vrot.slane %v2348, %v2366
        %v2368 = vlaneseq
        %v2369 = vshrl.u32 %v2368, 7
        %v2370 = vsub.s32 4, %v2369
        %v2371 = vrot.slane %v2348, %v2370
        %v2372 = vlaneseq
        %v2373 = vshrl.u32 %v2372, 7
        %v2374 = vsub.s32 5, %v2373
        %v2375 = vrot.slane %v2348, %v2374
        %v2376 = vlaneseq
        %v2377 = vshrl.u32 %v2376, 7
        %v2378 = vsub.s32 6, %v2377
        %v2379 = vrot.slane %v2348, %v2378
        %v2380 = vlaneseq
        %v2381 = vshrl.u32 %v2380, 7
        %v2382 = vsub.s32 7, %v2381
        %v2383 = vrot.slane %v2348, %v2382
        %v2384 = vlaneseq
        %v2385 = vshrl.u32 %v2384, 7
        %v2386 = vsub.s32 0, %v2385
        %v2387 = vrot.slane %v2349, %v2386
        %v2388 = vlaneseq
        %v2389 = vshrl.u32 %v2388, 7
        %v2390 = vsub.s32 1, %v2389
        %v2391 = vrot.slane %v2349, %v2390
        %v2392 = vlaneseq
        %v2393 = vshrl.u32 %v2392, 7
        %v2394 = vsub.s32 2, %v2393
        %v2395 = vrot.slane %v2349, %v2394
        %v2396 = vlaneseq
        %v2397 = vshrl.u32 %v2396, 7
        %v2398 = vsub.s32 3, %v2397
        %v2399 = vrot.slane %v2349, %v2398
        %v3564 = vunpack.c.l.b16 %v1196
        %v3565 = vunpack.c.h.b16 %v1196
        %v3566 = vunpack.c.l.b16 %v1197
        %v3567 = vunpack.c.h.b16 %v1197
        %v3568 = vunpack.c.l.b16 %v1198
        %v3569 = vunpack.c.h.b16 %v1198
        %v3570 = vunpack.c.l.b16 %v1199
        %v3571 = vunpack.c.h.b16 %v1199
        %v3572 = vunpack.c.l.b16 %v1200
        %v3573 = vunpack.c.h.b16 %v1200
        %v3574 = vunpack.c.l.b16 %v1201
        %v3575 = vunpack.c.h.b16 %v1201
        %v3576 = vunpack.c.l.b16 %v1202
        %v3577 = vunpack.c.h.b16 %v1202
        %v3578 = vunpack.c.l.b16 %v1203
        %v3579 = vunpack.c.h.b16 %v1203
        %v3580 = vunpack.c.l.b16 %v1204
        %v3581 = vunpack.c.h.b16 %v1204
        %v3582 = vunpack.c.l.b16 %v1205
        %v3583 = vunpack.c.h.b16 %v1205
        %v3584 = vunpack.c.l.b16 %v1206
        %v3585 = vunpack.c.h.b16 %v1206
        %v3586 = vunpack.c.l.b16 %v1207
        %v3587 = vunpack.c.h.b16 %v1207
        %v3588 = vunpack.c.l.b16 %v1208
        %v3589 = vunpack.c.h.b16 %v1208
        %v3590 = vunpack.c.l.b16 %v1209
        %v3591 = vunpack.c.h.b16 %v1209
        %v3592 = vunpack.c.l.b16 %v1210
        %v3593 = vunpack.c.h.b16 %v1210
        %v3594 = vunpack.c.l.b16 %v1211
        %v3595 = vunpack.c.h.b16 %v1211
        %v3596 = vunpack.c.l.b16 %v1212
        %v3597 = vunpack.c.h.b16 %v1212
        %v3598 = vunpack.c.l.b16 %v1213
        %v3599 = vunpack.c.h.b16 %v1213
        %v3600 = vunpack.c.l.b16 %v1214
        %v3601 = vunpack.c.h.b16 %v1214
        %v3602 = vunpack.c.l.b16 %v1215
        %v3603 = vunpack.c.h.b16 %v1215
        %v3604 = vunpack.c.l.b16 %v1216
        %v3605 = vunpack.c.h.b16 %v1216
        %v3606 = vunpack.c.l.b16 %v1217
        %v3607 = vunpack.c.h.b16 %v1217
        %v3608 = vunpack.c.l.b16 %v1218
        %v3609 = vunpack.c.h.b16 %v1218
        %v3610 = vunpack.c.l.b16 %v1219
        %v3611 = vunpack.c.h.b16 %v1219
        %v3612 = vunpack.c.l.b16 %v1220
        %v3613 = vunpack.c.h.b16 %v1220
        %v3614 = vunpack.c.l.b16 %v1221
        %v3615 = vunpack.c.h.b16 %v1221
        %v3616 = vunpack.c.l.b16 %v1222
        %v3617 = vunpack.c.h.b16 %v1222
        %v3618 = vunpack.c.l.b16 %v1223
        %v3619 = vunpack.c.h.b16 %v1223
        %v3620 = vunpack.c.l.b16 %v1224
        %v3621 = vunpack.c.h.b16 %v1224
        %v3622 = vunpack.c.l.b16 %v1225
        %v3623 = vunpack.c.h.b16 %v1225
        %v3624 = vunpack.c.l.b16 %v1226
        %v3625 = vunpack.c.h.b16 %v1226
        %v3626 = vunpack.c.l.b16 %v1227
        %v3627 = vunpack.c.h.b16 %v1227
        %v3628 = vunpack.c.l.b16 %v1228
        %v3629 = vunpack.c.h.b16 %v1228
        %v3630 = vunpack.c.l.b16 %v1229
        %v3631 = vunpack.c.h.b16 %v1229
        %v3632 = vunpack.c.l.b16 %v1230
        %v3633 = vunpack.c.h.b16 %v1230
        %v3634 = vunpack.c.l.b16 %v1231
        %v3635 = vunpack.c.h.b16 %v1231
        %v3636 = vunpack.c.l.b16 %v1232
        %v3637 = vunpack.c.h.b16 %v1232
        %v3638 = vunpack.c.l.b16 %v1233
        %v3639 = vunpack.c.h.b16 %v1233
        %v3640 = vunpack.c.l.b16 %v1234
        %v3641 = vunpack.c.h.b16 %v1234
        %v3642 = vunpack.c.l.b16 %v1235
        %v3643 = vunpack.c.h.b16 %v1235
        %v3644 = vunpack.c.l.b16 %v1236
        %v3645 = vunpack.c.h.b16 %v1236
        %v3646 = vunpack.c.l.b16 %v1237
        %v3647 = vunpack.c.h.b16 %v1237
        %v3648 = vunpack.c.l.b16 %v1238
        %v3649 = vunpack.c.h.b16 %v1238
        %v3650 = vunpack.c.l.b16 %v1239
        %v3651 = vunpack.c.h.b16 %v1239
        %v3652 = vunpack.c.l.b16 %v1240
        %v3653 = vunpack.c.h.b16 %v1240
        %v3654 = vunpack.c.l.b16 %v1241
        %v3655 = vunpack.c.h.b16 %v1241
        %v3656 = vunpack.c.l.b16 %v1242
        %v3657 = vunpack.c.h.b16 %v1242
        %v3658 = vunpack.c.l.b16 %v1243
        %v3659 = vunpack.c.h.b16 %v1243
        %v3660 = vunpack.c.l.b16 %v1244
        %v3661 = vunpack.c.h.b16 %v1244
        %v3662 = vunpack.c.l.b16 %v1245
        %v3663 = vunpack.c.h.b16 %v1245
        %v3664 = vunpack.c.l.b16 %v1246
        %v3665 = vunpack.c.h.b16 %v1246
        %v3666 = vunpack.c.l.b16 %v1247
        %v3667 = vunpack.c.h.b16 %v1247
        %v3668 = vunpack.c.l.b16 %v1248
        %v3669 = vunpack.c.h.b16 %v1248
        %v3670 = vunpack.c.l.b16 %v1249
        %v3671 = vunpack.c.h.b16 %v1249
        %v3672 = vunpack.c.l.b16 %v1250
        %v3673 = vunpack.c.h.b16 %v1250
        %v3674 = vunpack.c.l.b16 %v1251
        %v3675 = vunpack.c.h.b16 %v1251
        %v3676 = vunpack.c.l.b16 %v1252
        %v3677 = vunpack.c.h.b16 %v1252
        %v3678 = vunpack.c.l.b16 %v1253
        %v3679 = vunpack.c.h.b16 %v1253
        %v3680 = vunpack.c.l.b16 %v1254
        %v3681 = vunpack.c.h.b16 %v1254
        %v3682 = vunpack.c.l.b16 %v1255
        %v3683 = vunpack.c.h.b16 %v1255
        %v3684 = vunpack.c.l.b16 %v1256
        %v3685 = vunpack.c.h.b16 %v1256
        %v3686 = vunpack.c.l.b16 %v1257
        %v3687 = vunpack.c.h.b16 %v1257
        %v3688 = vunpack.c.l.b16 %v1258
        %v3689 = vunpack.c.h.b16 %v1258
        %v3690 = vunpack.c.l.b16 %v1259
        %v3691 = vunpack.c.h.b16 %v1259
        %v3692 = vunpack.c.l.b16 %v1260
        %v3693 = vunpack.c.h.b16 %v1260
        %v3694 = vunpack.c.l.b16 %v1261
        %v3695 = vunpack.c.h.b16 %v1261
        %v3696 = vunpack.c.l.b16 %v1262
        %v3697 = vunpack.c.h.b16 %v1262
        %v3698 = vunpack.c.l.b16 %v1263
        %v3699 = vunpack.c.h.b16 %v1263
        %v3700 = vunpack.c.l.b16 %v1264
        %v3701 = vunpack.c.h.b16 %v1264
        %v3702 = vunpack.c.l.b16 %v1265
        %v3703 = vunpack.c.h.b16 %v1265
        %v3704 = vunpack.c.l.b16 %v1266
        %v3705 = vunpack.c.h.b16 %v1266
        %v3706 = vunpack.c.l.b16 %v1267
        %v3707 = vunpack.c.h.b16 %v1267
        %v3708 = vunpack.c.l.b16 %v1268
        %v3709 = vunpack.c.h.b16 %v1268
        %v3710 = vunpack.c.l.b16 %v1269
        %v3711 = vunpack.c.h.b16 %v1269
        %v3712 = vunpack.c.l.b16 %v1270
        %v3713 = vunpack.c.h.b16 %v1270
        %v3714 = vunpack.c.l.b16 %v1271
        %v3715 = vunpack.c.h.b16 %v1271
        %v3716 = vunpack.c.l.b16 %v1272
        %v3717 = vunpack.c.h.b16 %v1272
        %v3718 = vunpack.c.l.b16 %v1273
        %v3719 = vunpack.c.h.b16 %v1273
        %v3720 = vunpack.c.l.b16 %v1274
        %v3721 = vunpack.c.h.b16 %v1274
        %v3722 = vunpack.c.l.b16 %v1275
        %v3723 = vunpack.c.h.b16 %v1275
        %v3724 = vunpack.c.l.b16 %v1276
        %v3725 = vunpack.c.h.b16 %v1276
        %v3726 = vunpack.c.l.b16 %v1277
        %v3727 = vunpack.c.h.b16 %v1277
        %v3728 = vunpack.c.l.b16 %v1278
        %v3729 = vunpack.c.h.b16 %v1278
        %v3730 = vunpack.c.l.b16 %v1279
        %v3731 = vunpack.c.h.b16 %v1279
        %v3732 = vunpack.c.l.b16 %v1280
        %v3733 = vunpack.c.h.b16 %v1280
        %v3734 = vunpack.c.l.b16 %v1281
        %v3735 = vunpack.c.h.b16 %v1281
        %v3736 = vunpack.c.l.b16 %v1282
        %v3737 = vunpack.c.h.b16 %v1282
        %v3738 = vunpack.c.l.b16 %v1283
        %v3739 = vunpack.c.h.b16 %v1283
        %v3740 = vunpack.c.l.b16 %v1284
        %v3741 = vunpack.c.h.b16 %v1284
        %v3742 = vunpack.c.l.b16 %v1285
        %v3743 = vunpack.c.h.b16 %v1285
        %v3744 = vunpack.c.l.b16 %v1286
        %v3745 = vunpack.c.h.b16 %v1286
        %v3746 = vunpack.c.l.b16 %v1287
        %v3747 = vunpack.c.h.b16 %v1287
        %v3748 = vunpack.c.l.b16 %v1288
        %v3749 = vunpack.c.h.b16 %v1288
        %v3750 = vunpack.c.l.b16 %v1289
        %v3751 = vunpack.c.h.b16 %v1289
        %v3752 = vunpack.c.l.b16 %v1290
        %v3753 = vunpack.c.h.b16 %v1290
        %v3754 = vunpack.c.l.b16 %v1291
        %v3755 = vunpack.c.h.b16 %v1291
        %v3756 = vunpack.c.l.b16 %v1292
        %v3757 = vunpack.c.h.b16 %v1292
        %v3758 = vunpack.c.l.b16 %v1293
        %v3759 = vunpack.c.h.b16 %v1293
        %v3760 = vunpack.c.l.b16 %v1294
        %v3761 = vunpack.c.h.b16 %v1294
        %v3762 = vunpack.c.l.b16 %v1295
        %v3763 = vunpack.c.h.b16 %v1295
        %v3764 = vunpack.c.l.b16 %v1296
        %v3765 = vunpack.c.h.b16 %v1296
        %v3766 = vunpack.c.l.b16 %v1297
        %v3767 = vunpack.c.h.b16 %v1297
        %v3768 = vunpack.c.l.b16 %v1298
        %v3769 = vunpack.c.h.b16 %v1298
        %v3770 = vunpack.c.l.b16 %v1299
        %v3771 = vunpack.c.h.b16 %v1299
        %v3772 = vunpack.c.l.b16 %v1300
        %v3773 = vunpack.c.h.b16 %v1300
        %v3774 = vunpack.c.l.b16 %v1301
        %v3775 = vunpack.c.h.b16 %v1301
        %v3776 = vunpack.c.l.b16 %v1302
        %v3777 = vunpack.c.h.b16 %v1302
        %v3778 = vunpack.c.l.b16 %v1303
        %v3779 = vunpack.c.h.b16 %v1303
        %v3780 = vunpack.c.l.b16 %v1304
        %v3781 = vunpack.c.h.b16 %v1304
        %v3782 = vunpack.c.l.b16 %v1305
        %v3783 = vunpack.c.h.b16 %v1305
        %v3784 = vunpack.c.l.b16 %v1306
        %v3785 = vunpack.c.h.b16 %v1306
        %v3786 = vunpack.c.l.b16 %v1307
        %v3787 = vunpack.c.h.b16 %v1307
        %v3788 = vunpack.c.l.b16 %v1308
        %v3789 = vunpack.c.h.b16 %v1308
        %v3790 = vunpack.c.l.b16 %v1309
        %v3791 = vunpack.c.h.b16 %v1309
        %v3792 = vunpack.c.l.b16 %v1310
        %v3793 = vunpack.c.h.b16 %v1310
        %v3794 = vunpack.c.l.b16 %v1311
        %v3795 = vunpack.c.h.b16 %v1311
        %v3796 = vunpack.c.l.b16 %v1312
        %v3797 = vunpack.c.h.b16 %v1312
        %v3798 = vunpack.c.l.b16 %v1313
        %v3799 = vunpack.c.h.b16 %v1313
        %v3800 = vunpack.c.l.b16 %v1314
        %v3801 = vunpack.c.h.b16 %v1314
        %v3802 = vunpack.c.l.b16 %v1315
        %v3803 = vunpack.c.h.b16 %v1315
        %v3804 = vunpack.c.l.b16 %v1316
        %v3805 = vunpack.c.h.b16 %v1316
        %v3806 = vunpack.c.l.b16 %v1317
        %v3807 = vunpack.c.h.b16 %v1317
        %v3808 = vunpack.c.l.b16 %v1318
        %v3809 = vunpack.c.h.b16 %v1318
        %v3810 = vunpack.c.l.b16 %v1319
        %v3811 = vunpack.c.h.b16 %v1319
        %v3812 = vunpack.c.l.b16 %v1320
        %v3813 = vunpack.c.h.b16 %v1320
        %v3814 = vunpack.c.l.b16 %v1321
        %v3815 = vunpack.c.h.b16 %v1321
        %v3816 = vunpack.c.l.b16 %v1322
        %v3817 = vunpack.c.h.b16 %v1322
        %v3818 = vunpack.c.l.b16 %v1323
        %v3819 = vunpack.c.h.b16 %v1323
        %v3820 = vunpack.c.l.b16 %v1324
        %v3821 = vunpack.c.h.b16 %v1324
        %v3822 = vunpack.c.l.b16 %v1325
        %v3823 = vunpack.c.h.b16 %v1325
        %v3824 = vunpack.c.l.b16 %v1326
        %v3825 = vunpack.c.h.b16 %v1326
        %v3826 = vunpack.c.l.b16 %v1327
        %v3827 = vunpack.c.h.b16 %v1327
        %v3828 = vunpack.c.l.b16 %v1328
        %v3829 = vunpack.c.h.b16 %v1328
        %v3830 = vunpack.c.l.b16 %v1329
        %v3831 = vunpack.c.h.b16 %v1329
        %v3832 = vunpack.c.l.b16 %v1330
        %v3833 = vunpack.c.h.b16 %v1330
        %v3834 = vunpack.c.l.b16 %v1331
        %v3835 = vunpack.c.h.b16 %v1331
        %v3836 = vunpack.c.l.b16 %v1332
        %v3837 = vunpack.c.h.b16 %v1332
        %v3838 = vunpack.c.l.b16 %v1333
        %v3839 = vunpack.c.h.b16 %v1333
        %v3840 = vunpack.c.l.b16 %v1334
        %v3841 = vunpack.c.h.b16 %v1334
        %v3842 = vunpack.c.l.b16 %v1335
        %v3843 = vunpack.c.h.b16 %v1335
        %v3844 = vunpack.c.l.b16 %v1336
        %v3845 = vunpack.c.h.b16 %v1336
        %v3846 = vunpack.c.l.b16 %v1337
        %v3847 = vunpack.c.h.b16 %v1337
        %v3848 = vunpack.c.l.b16 %v1338
        %v3849 = vunpack.c.h.b16 %v1338
        %v3850 = vunpack.c.l.b16 %v1339
        %v3851 = vunpack.c.h.b16 %v1339
        %v3852 = vunpack.c.l.b16 %v1340
        %v3853 = vunpack.c.h.b16 %v1340
        %v3854 = vunpack.c.l.b16 %v1341
        %v3855 = vunpack.c.h.b16 %v1341
        %v3856 = vunpack.c.l.b16 %v1342
        %v3857 = vunpack.c.h.b16 %v1342
        %v3858 = vunpack.c.l.b16 %v1343
        %v3859 = vunpack.c.h.b16 %v1343
        %v3860 = vunpack.c.l.b16 %v1344
        %v3861 = vunpack.c.h.b16 %v1344
        %v3862 = vunpack.c.l.b16 %v1345
        %v3863 = vunpack.c.h.b16 %v1345
        %v3864 = vunpack.c.l.b16 %v1346
        %v3865 = vunpack.c.h.b16 %v1346
        %v3866 = vunpack.c.l.b16 %v1347
        %v3867 = vunpack.c.h.b16 %v1347
        %v3868 = vunpack.c.l.b16 %v1348
        %v3869 = vunpack.c.h.b16 %v1348
        %v3870 = vunpack.c.l.b16 %v1349
        %v3871 = vunpack.c.h.b16 %v1349
        %v3872 = vunpack.c.l.b16 %v1350
        %v3873 = vunpack.c.h.b16 %v1350
        %v3874 = vunpack.c.l.b16 %v1351
        %v3875 = vunpack.c.h.b16 %v1351
        %v3876 = vunpack.c.l.b16 %v1352
        %v3877 = vunpack.c.h.b16 %v1352
        %v3878 = vunpack.c.l.b16 %v1353
        %v3879 = vunpack.c.h.b16 %v1353
        %v3880 = vunpack.c.l.b16 %v1354
        %v3881 = vunpack.c.h.b16 %v1354
        %v3882 = vunpack.c.l.b16 %v1355
        %v3883 = vunpack.c.h.b16 %v1355
        %v3884 = vunpack.c.l.b16 %v1356
        %v3885 = vunpack.c.h.b16 %v1356
        %v3886 = vunpack.c.l.b16 %v1357
        %v3887 = vunpack.c.h.b16 %v1357
        %v3888 = vunpack.c.l.b16 %v1358
        %v3889 = vunpack.c.h.b16 %v1358
        %v3890 = vunpack.c.l.b16 %v1359
        %v3891 = vunpack.c.h.b16 %v1359
        %v3892 = vunpack.c.l.b16 %v1360
        %v3893 = vunpack.c.h.b16 %v1360
        %v3894 = vunpack.c.l.b16 %v1361
        %v3895 = vunpack.c.h.b16 %v1361
        %v3896 = vunpack.c.l.b16 %v1362
        %v3897 = vunpack.c.h.b16 %v1362
        %v3898 = vunpack.c.l.b16 %v1363
        %v3899 = vunpack.c.h.b16 %v1363
        %v3900 = vunpack.c.l.b16 %v1364
        %v3901 = vunpack.c.h.b16 %v1364
        %v3902 = vunpack.c.l.b16 %v1365
        %v3903 = vunpack.c.h.b16 %v1365
        %v3904 = vunpack.c.l.b16 %v1366
        %v3905 = vunpack.c.h.b16 %v1366
        %v3906 = vunpack.c.l.b16 %v1367
        %v3907 = vunpack.c.h.b16 %v1367
        %v3908 = vunpack.c.l.b16 %v1368
        %v3909 = vunpack.c.h.b16 %v1368
        %v3910 = vunpack.c.l.b16 %v1369
        %v3911 = vunpack.c.h.b16 %v1369
        %v3912 = vunpack.c.l.b16 %v1370
        %v3913 = vunpack.c.h.b16 %v1370
        %v3914 = vunpack.c.l.b16 %v1371
        %v3915 = vunpack.c.h.b16 %v1371
        %v3916 = vunpack.c.l.b16 %v1372
        %v3917 = vunpack.c.h.b16 %v1372
        %v3918 = vunpack.c.l.b16 %v1373
        %v3919 = vunpack.c.h.b16 %v1373
        %v3920 = vunpack.c.l.b16 %v1374
        %v3921 = vunpack.c.h.b16 %v1374
        %v3922 = vunpack.c.l.b16 %v1375
        %v3923 = vunpack.c.h.b16 %v1375
        %v3924 = vunpack.c.l.b16 %v1376
        %v3925 = vunpack.c.h.b16 %v1376
        %v3926 = vunpack.c.l.b16 %v1377
        %v3927 = vunpack.c.h.b16 %v1377
        %v3928 = vunpack.c.l.b16 %v1378
        %v3929 = vunpack.c.h.b16 %v1378
        %v3930 = vunpack.c.l.b16 %v1379
        %v3931 = vunpack.c.h.b16 %v1379
        %v3932 = vunpack.c.l.b16 %v1380
        %v3933 = vunpack.c.h.b16 %v1380
        %v3934 = vunpack.c.l.b16 %v1381
        %v3935 = vunpack.c.h.b16 %v1381
        %v3936 = vunpack.c.l.b16 %v1382
        %v3937 = vunpack.c.h.b16 %v1382
        %v3938 = vunpack.c.l.b16 %v1383
        %v3939 = vunpack.c.h.b16 %v1383
        %v3940 = vunpack.c.l.b16 %v1384
        %v3941 = vunpack.c.h.b16 %v1384
        %v3942 = vunpack.c.l.b16 %v1385
        %v3943 = vunpack.c.h.b16 %v1385
        %v3944 = vunpack.c.l.b16 %v1386
        %v3945 = vunpack.c.h.b16 %v1386
        %v3946 = vunpack.c.l.b16 %v1387
        %v3947 = vunpack.c.h.b16 %v1387
        %v3948 = vunpack.c.l.b16 %v1388
        %v3949 = vunpack.c.h.b16 %v1388
        %v3950 = vunpack.c.l.b16 %v1389
        %v3951 = vunpack.c.h.b16 %v1389
        %v3952 = vunpack.c.l.b16 %v1390
        %v3953 = vunpack.c.h.b16 %v1390
        %v3954 = vunpack.c.l.b16 %v1391
        %v3955 = vunpack.c.h.b16 %v1391
        %v3956 = vunpack.c.l.b16 %v1392
        %v3957 = vunpack.c.h.b16 %v1392
        %v3958 = vunpack.c.l.b16 %v1393
        %v3959 = vunpack.c.h.b16 %v1393
        %v3960 = vunpack.c.l.b16 %v1394
        %v3961 = vunpack.c.h.b16 %v1394
        %v3962 = vunpack.c.l.b16 %v1395
        %v3963 = vunpack.c.h.b16 %v1395
        %v3964 = vunpack.c.l.b16 %v1396
        %v3965 = vunpack.c.h.b16 %v1396
        %v3966 = vunpack.c.l.b16 %v1397
        %v3967 = vunpack.c.h.b16 %v1397
        %v3968 = vunpack.c.l.b16 %v1398
        %v3969 = vunpack.c.h.b16 %v1398
        %v3970 = vunpack.c.l.b16 %v1399
        %v3971 = vunpack.c.h.b16 %v1399
        %v3972 = vunpack.c.l.b16 %v1400
        %v3973 = vunpack.c.h.b16 %v1400
        %v3974 = vunpack.c.l.b16 %v1401
        %v3975 = vunpack.c.h.b16 %v1401
        %v3976 = vunpack.c.l.b16 %v1402
        %v3977 = vunpack.c.h.b16 %v1402
        %v3978 = vunpack.c.l.b16 %v1403
        %v3979 = vunpack.c.h.b16 %v1403
        %v3980 = vunpack.c.l.b16 %v1404
        %v3981 = vunpack.c.h.b16 %v1404
        %v3982 = vunpack.c.l.b16 %v1405
        %v3983 = vunpack.c.h.b16 %v1405
        %v3984 = vunpack.c.l.b16 %v1406
        %v3985 = vunpack.c.h.b16 %v1406
        %v3986 = vunpack.c.l.b16 %v1407
        %v3987 = vunpack.c.h.b16 %v1407
        %v3988 = vunpack.c.l.b16 %v1408
        %v3989 = vunpack.c.h.b16 %v1408
        %v3990 = vunpack.c.l.b16 %v1409
        %v3991 = vunpack.c.h.b16 %v1409
        %v3992 = vunpack.c.l.b16 %v1410
        %v3993 = vunpack.c.h.b16 %v1410
        %v3994 = vunpack.c.l.b16 %v1411
        %v3995 = vunpack.c.h.b16 %v1411
        %v3996 = vunpack.c.l.b16 %v1412
        %v3997 = vunpack.c.h.b16 %v1412
        %v3998 = vunpack.c.l.b16 %v1413
        %v3999 = vunpack.c.h.b16 %v1413
        %v4000 = vunpack.c.l.b16 %v1414
        %v4001 = vunpack.c.h.b16 %v1414
        %v4002 = vunpack.c.l.b16 %v1415
        %v4003 = vunpack.c.h.b16 %v1415
        %v4004 = vunpack.c.l.b16 %v1416
        %v4005 = vunpack.c.h.b16 %v1416
        %v4006 = vunpack.c.l.b16 %v1417
        %v4007 = vunpack.c.h.b16 %v1417
        %v4008 = vunpack.c.l.b16 %v1418
        %v4009 = vunpack.c.h.b16 %v1418
        %v4010 = vunpack.c.l.b16 %v1419
        %v4011 = vunpack.c.h.b16 %v1419
        %v4012 = vunpack.c.l.b16 %v1420
        %v4013 = vunpack.c.h.b16 %v1420
        %v4014 = vunpack.c.l.b16 %v1421
        %v4015 = vunpack.c.h.b16 %v1421
        %v4016 = vunpack.c.l.b16 %v1422
        %v4017 = vunpack.c.h.b16 %v1422
        %v4018 = vunpack.c.l.b16 %v1423
        %v4019 = vunpack.c.h.b16 %v1423
        %v4020 = vunpack.c.l.b16 %v1424
        %v4021 = vunpack.c.h.b16 %v1424
        %v4022 = vunpack.c.l.b16 %v1425
        %v4023 = vunpack.c.h.b16 %v1425
        %v4024 = vunpack.c.l.b16 %v1426
        %v4025 = vunpack.c.h.b16 %v1426
        %v4026 = vunpack.c.l.b16 %v1427
        %v4027 = vunpack.c.h.b16 %v1427
        %v4028 = vunpack.c.l.b16 %v1428
        %v4029 = vunpack.c.h.b16 %v1428
        %v4030 = vunpack.c.l.b16 %v1429
        %v4031 = vunpack.c.h.b16 %v1429
        %v4032 = vunpack.c.l.b16 %v1430
        %v4033 = vunpack.c.h.b16 %v1430
        %v4034 = vunpack.c.l.b16 %v1431
        %v4035 = vunpack.c.h.b16 %v1431
        %v4036 = vunpack.c.l.b16 %v1432
        %v4037 = vunpack.c.h.b16 %v1432
        %v4038 = vunpack.c.l.b16 %v1433
        %v4039 = vunpack.c.h.b16 %v1433
        %v4040 = vunpack.c.l.b16 %v1434
        %v4041 = vunpack.c.h.b16 %v1434
        %v4042 = vunpack.c.l.b16 %v1435
        %v4043 = vunpack.c.h.b16 %v1435
        %v4044 = vunpack.c.l.b16 %v1436
        %v4045 = vunpack.c.h.b16 %v1436
        %v4046 = vunpack.c.l.b16 %v1437
        %v4047 = vunpack.c.h.b16 %v1437
        %v4048 = vunpack.c.l.b16 %v1438
        %v4049 = vunpack.c.h.b16 %v1438
        %v4050 = vunpack.c.l.b16 %v1439
        %v4051 = vunpack.c.h.b16 %v1439
        %v4052 = vunpack.c.l.b16 %v1440
        %v4053 = vunpack.c.h.b16 %v1440
        %v4054 = vunpack.c.l.b16 %v1441
        %v4055 = vunpack.c.h.b16 %v1441
        %v4056 = vunpack.c.l.b16 %v1442
        %v4057 = vunpack.c.h.b16 %v1442
        %v4058 = vunpack.c.l.b16 %v1443
        %v4059 = vunpack.c.h.b16 %v1443
        %v4060 = vunpack.c.l.b16 %v1444
        %v4061 = vunpack.c.h.b16 %v1444
        %v4062 = vunpack.c.l.b16 %v1445
        %v4063 = vunpack.c.h.b16 %v1445
        %v4064 = vunpack.c.l.b16 %v1446
        %v4065 = vunpack.c.h.b16 %v1446
        %v4066 = vunpack.c.l.b16 %v1447
        %v4067 = vunpack.c.h.b16 %v1447
        %v4068 = vunpack.c.l.b16 %v1448
        %v4069 = vunpack.c.h.b16 %v1448
        %v4070 = vunpack.c.l.b16 %v1449
        %v4071 = vunpack.c.h.b16 %v1449
        %v4072 = vunpack.c.l.b16 %v1450
        %v4073 = vunpack.c.h.b16 %v1450
        %v4074 = vunpack.c.l.b16 %v1451
        %v4075 = vunpack.c.h.b16 %v1451
        %v4076 = vunpack.c.l.b16 %v1452
        %v4077 = vunpack.c.h.b16 %v1452
        %v4078 = vunpack.c.l.b16 %v1453
        %v4079 = vunpack.c.h.b16 %v1453
        %v4080 = vunpack.c.l.b16 %v1454
        %v4081 = vunpack.c.h.b16 %v1454
        %v4082 = vunpack.c.l.b16 %v1455
        %v4083 = vunpack.c.h.b16 %v1455
        %v4084 = vunpack.c.l.b16 %v1456
        %v4085 = vunpack.c.h.b16 %v1456
        %v4086 = vunpack.c.l.b16 %v1457
        %v4087 = vunpack.c.h.b16 %v1457
        %v4088 = vunpack.c.l.b16 %v1458
        %v4089 = vunpack.c.h.b16 %v1458
        %v4090 = vunpack.c.l.b16 %v1459
        %v4091 = vunpack.c.h.b16 %v1459
        %v4092 = vunpack.c.l.b16 %v1460
        %v4093 = vunpack.c.h.b16 %v1460
        %v4094 = vunpack.c.l.b16 %v1461
        %v4095 = vunpack.c.h.b16 %v1461
        %v4096 = vunpack.c.l.b16 %v1462
        %v4097 = vunpack.c.h.b16 %v1462
        %v4098 = vunpack.c.l.b16 %v1463
        %v4099 = vunpack.c.h.b16 %v1463
        %v4100 = vunpack.c.l.b16 %v1464
        %v4101 = vunpack.c.h.b16 %v1464
        %v4102 = vunpack.c.l.b16 %v1465
        %v4103 = vunpack.c.h.b16 %v1465
        %v4104 = vunpack.c.l.b16 %v1466
        %v4105 = vunpack.c.h.b16 %v1466
        %v4106 = vunpack.c.l.b16 %v1467
        %v4107 = vunpack.c.h.b16 %v1467
        %v4108 = vunpack.c.l.b16 %v1468
        %v4109 = vunpack.c.h.b16 %v1468
        %v4110 = vunpack.c.l.b16 %v1469
        %v4111 = vunpack.c.h.b16 %v1469
        %v4112 = vunpack.c.l.b16 %v1470
        %v4113 = vunpack.c.h.b16 %v1470
        %v4114 = vunpack.c.l.b16 %v1471
        %v4115 = vunpack.c.h.b16 %v1471
        %v4116 = vunpack.c.l.b16 %v1472
        %v4117 = vunpack.c.h.b16 %v1472
        %v4118 = vunpack.c.l.b16 %v1473
        %v4119 = vunpack.c.h.b16 %v1473
        %v4120 = vunpack.c.l.b16 %v1474
        %v4121 = vunpack.c.h.b16 %v1474
        %v4122 = vunpack.c.l.b16 %v1475
        %v4123 = vunpack.c.h.b16 %v1475
        %v4124 = vunpack.c.l.b16 %v1476
        %v4125 = vunpack.c.h.b16 %v1476
        %v4126 = vunpack.c.l.b16 %v1477
        %v4127 = vunpack.c.h.b16 %v1477
        %v4128 = vunpack.c.l.b16 %v1478
        %v4129 = vunpack.c.h.b16 %v1478
        %v4130 = vunpack.c.l.b16 %v1479
        %v4131 = vunpack.c.h.b16 %v1479
        %v4132 = vunpack.c.l.b16 %v1480
        %v4133 = vunpack.c.h.b16 %v1480
        %v4134 = vunpack.c.l.b16 %v1481
        %v4135 = vunpack.c.h.b16 %v1481
        %v4136 = vunpack.c.l.b16 %v1482
        %v4137 = vunpack.c.h.b16 %v1482
        %v4138 = vunpack.c.l.b16 %v1483
        %v4139 = vunpack.c.h.b16 %v1483
        %v4140 = vunpack.c.l.b16 %v1484
        %v4141 = vunpack.c.h.b16 %v1484
        %v4142 = vunpack.c.l.b16 %v1485
        %v4143 = vunpack.c.h.b16 %v1485
        %v4144 = vunpack.c.l.b16 %v1486
        %v4145 = vunpack.c.h.b16 %v1486
        %v4146 = vunpack.c.l.b16 %v1487
        %v4147 = vunpack.c.h.b16 %v1487
        %v4148 = vunpack.c.l.b16 %v1488
        %v4149 = vunpack.c.h.b16 %v1488
        %v4150 = vunpack.c.l.b16 %v1489
        %v4151 = vunpack.c.h.b16 %v1489
        %v4152 = vunpack.c.l.b16 %v1490
        %v4153 = vunpack.c.h.b16 %v1490
        %v4154 = vunpack.c.l.b16 %v1491
        %v4155 = vunpack.c.h.b16 %v1491
        %v4156 = vunpack.c.l.b16 %v1492
        %v4157 = vunpack.c.h.b16 %v1492
        %v4158 = vunpack.c.l.b16 %v1493
        %v4159 = vunpack.c.h.b16 %v1493
        %v4160 = vunpack.c.l.b16 %v1494
        %v4161 = vunpack.c.h.b16 %v1494
        %v4162 = vunpack.c.l.b16 %v1495
        %v4163 = vunpack.c.h.b16 %v1495
        %v4164 = vunpack.c.l.b16 %v1496
        %v4165 = vunpack.c.h.b16 %v1496
        %v4166 = vunpack.c.l.b16 %v1497
        %v4167 = vunpack.c.h.b16 %v1497
        %v4168 = vunpack.c.l.b16 %v1498
        %v4169 = vunpack.c.h.b16 %v1498
        %v4170 = vunpack.c.l.b16 %v1499
        %v4171 = vunpack.c.h.b16 %v1499
        %v4172 = vunpack.c.l.b16 %v1500
        %v4173 = vunpack.c.h.b16 %v1500
        %v4174 = vunpack.c.l.b16 %v1501
        %v4175 = vunpack.c.h.b16 %v1501
        %v4176 = vunpack.c.l.b16 %v1502
        %v4177 = vunpack.c.h.b16 %v1502
        %v4178 = vunpack.c.l.b16 %v1503
        %v4179 = vunpack.c.h.b16 %v1503
        %v4180 = vunpack.c.l.b16 %v1504
        %v4181 = vunpack.c.h.b16 %v1504
        %v4182 = vunpack.c.l.b16 %v1505
        %v4183 = vunpack.c.h.b16 %v1505
        %v4184 = vunpack.c.l.b16 %v1506
        %v4185 = vunpack.c.h.b16 %v1506
        %v4186 = vunpack.c.l.b16 %v1507
        %v4187 = vunpack.c.h.b16 %v1507
        %v4188 = vunpack.c.l.b16 %v1508
        %v4189 = vunpack.c.h.b16 %v1508
        %v4190 = vunpack.c.l.b16 %v1509
        %v4191 = vunpack.c.h.b16 %v1509
        %v4192 = vunpack.c.l.b16 %v1510
        %v4193 = vunpack.c.h.b16 %v1510
        %v4194 = vunpack.c.l.b16 %v1511
        %v4195 = vunpack.c.h.b16 %v1511
        %v4196 = vunpack.c.l.b16 %v1512
        %v4197 = vunpack.c.h.b16 %v1512
        %v4198 = vunpack.c.l.b16 %v1513
        %v4199 = vunpack.c.h.b16 %v1513
        %v4200 = vunpack.c.l.b16 %v1514
        %v4201 = vunpack.c.h.b16 %v1514
        %v4202 = vunpack.c.l.b16 %v1515
        %v4203 = vunpack.c.h.b16 %v1515
        %v4204 = vunpack.c.l.b16 %v1516
        %v4205 = vunpack.c.h.b16 %v1516
        %v4206 = vunpack.c.l.b16 %v1517
        %v4207 = vunpack.c.h.b16 %v1517
        %v4208 = vunpack.c.l.b16 %v1518
        %v4209 = vunpack.c.h.b16 %v1518
        %v4210 = vunpack.c.l.b16 %v1519
        %v4211 = vunpack.c.h.b16 %v1519
        %v4212 = vunpack.c.l.b16 %v1520
        %v4213 = vunpack.c.h.b16 %v1520
        %v4214 = vunpack.c.l.b16 %v1521
        %v4215 = vunpack.c.h.b16 %v1521
        %v4216 = vunpack.c.l.b16 %v1522
        %v4217 = vunpack.c.h.b16 %v1522
        %v4218 = vunpack.c.l.b16 %v1523
        %v4219 = vunpack.c.h.b16 %v1523
        %v4220 = vunpack.c.l.b16 %v1524
        %v4221 = vunpack.c.h.b16 %v1524
        %v4222 = vunpack.c.l.b16 %v1525
        %v4223 = vunpack.c.h.b16 %v1525
        %v4224 = vunpack.c.l.b16 %v1526
        %v4225 = vunpack.c.h.b16 %v1526
        %v4226 = vunpack.c.l.b16 %v1527
        %v4227 = vunpack.c.h.b16 %v1527
        %v4228 = vunpack.c.l.b16 %v1528
        %v4229 = vunpack.c.h.b16 %v1528
        %v4230 = vunpack.c.l.b16 %v1529
        %v4231 = vunpack.c.h.b16 %v1529
        %v4232 = vunpack.c.l.b16 %v1530
        %v4233 = vunpack.c.h.b16 %v1530
        %v4234 = vunpack.c.l.b16 %v1531
        %v4235 = vunpack.c.h.b16 %v1531
        %v4236 = vunpack.c.l.b16 %v1532
        %v4237 = vunpack.c.h.b16 %v1532
        %v4238 = vunpack.c.l.b16 %v1533
        %v4239 = vunpack.c.h.b16 %v1533
        %v4240 = vunpack.c.l.b16 %v1534
        %v4241 = vunpack.c.h.b16 %v1534
        %v4242 = vunpack.c.l.b16 %v1535
        %v4243 = vunpack.c.h.b16 %v1535
        %v4244 = vunpack.c.l.b16 %v1536
        %v4245 = vunpack.c.h.b16 %v1536
        %v4246 = vunpack.c.l.b16 %v1537
        %v4247 = vunpack.c.h.b16 %v1537
        %v4248 = vunpack.c.l.b16 %v1538
        %v4249 = vunpack.c.h.b16 %v1538
        %v4250 = vunpack.c.l.b16 %v1539
        %v4251 = vunpack.c.h.b16 %v1539
        %v4252 = vunpack.c.l.b16 %v1540
        %v4253 = vunpack.c.h.b16 %v1540
        %v4254 = vunpack.c.l.b16 %v1541
        %v4255 = vunpack.c.h.b16 %v1541
        %v4256 = vunpack.c.l.b16 %v1542
        %v4257 = vunpack.c.h.b16 %v1542
        %v4258 = vunpack.c.l.b16 %v1543
        %v4259 = vunpack.c.h.b16 %v1543
        %v4260 = vunpack.c.l.b16 %v1544
        %v4261 = vunpack.c.h.b16 %v1544
        %v4262 = vunpack.c.l.b16 %v1545
        %v4263 = vunpack.c.h.b16 %v1545
        %v4264 = vunpack.c.l.b16 %v1546
        %v4265 = vunpack.c.h.b16 %v1546
        %v4266 = vunpack.c.l.b16 %v1547
        %v4267 = vunpack.c.h.b16 %v1547
        %v4268 = vunpack.c.l.b16 %v1548
        %v4269 = vunpack.c.h.b16 %v1548
        %v4270 = vunpack.c.l.b16 %v1549
        %v4271 = vunpack.c.h.b16 %v1549
        %v4272 = vunpack.c.l.b16 %v1550
        %v4273 = vunpack.c.h.b16 %v1550
        %v4274 = vunpack.c.l.b16 %v1551
        %v4275 = vunpack.c.h.b16 %v1551
        %v4276 = vunpack.c.l.b16 %v1552
        %v4277 = vunpack.c.h.b16 %v1552
        %v4278 = vunpack.c.l.b16 %v1553
        %v4279 = vunpack.c.h.b16 %v1553
        %v4280 = vunpack.c.l.b16 %v1554
        %v4281 = vunpack.c.h.b16 %v1554
        %v4282 = vunpack.c.l.b16 %v1555
        %v4283 = vunpack.c.h.b16 %v1555
        %v4284 = vunpack.c.l.b16 %v1556
        %v4285 = vunpack.c.h.b16 %v1556
        %v4286 = vunpack.c.l.b16 %v1557
        %v4287 = vunpack.c.h.b16 %v1557
        %v4288 = vunpack.c.l.b16 %v1558
        %v4289 = vunpack.c.h.b16 %v1558
        %v4290 = vunpack.c.l.b16 %v1559
        %v4291 = vunpack.c.h.b16 %v1559
        %v4292 = vunpack.c.l.b16 %v1560
        %v4293 = vunpack.c.h.b16 %v1560
        %v4294 = vunpack.c.l.b16 %v1561
        %v4295 = vunpack.c.h.b16 %v1561
        %v4296 = vunpack.c.l.b16 %v1562
        %v4297 = vunpack.c.h.b16 %v1562
        %v4298 = vunpack.c.l.b16 %v1563
        %v4299 = vunpack.c.h.b16 %v1563
        %v4300 = vunpack.c.l.b16 %v1564
        %v4301 = vunpack.c.h.b16 %v1564
        %v4302 = vunpack.c.l.b16 %v1565
        %v4303 = vunpack.c.h.b16 %v1565
        %v4304 = vunpack.c.l.b16 %v1566
        %v4305 = vunpack.c.h.b16 %v1566
        %v4306 = vunpack.c.l.b16 %v1567
        %v4307 = vunpack.c.h.b16 %v1567
        %v4308 = vunpack.c.l.b16 %v1568
        %v4309 = vunpack.c.h.b16 %v1568
        %v4310 = vunpack.c.l.b16 %v1569
        %v4311 = vunpack.c.h.b16 %v1569
        %v4312 = vunpack.c.l.b16 %v1570
        %v4313 = vunpack.c.h.b16 %v1570
        %v4314 = vunpack.c.l.b16 %v1571
        %v4315 = vunpack.c.h.b16 %v1571
        %v4316 = vunpack.c.l.b16 %v1572
        %v4317 = vunpack.c.h.b16 %v1572
        %v4318 = vunpack.c.l.b16 %v1573
        %v4319 = vunpack.c.h.b16 %v1573
        %v4320 = vunpack.c.l.b16 %v1574
        %v4321 = vunpack.c.h.b16 %v1574
        %v4322 = vunpack.c.l.b16 %v1575
        %v4323 = vunpack.c.h.b16 %v1575
        %v4324 = vunpack.c.l.b16 %v1576
        %v4325 = vunpack.c.h.b16 %v1576
        %v4326 = vunpack.c.l.b16 %v1577
        %v4327 = vunpack.c.h.b16 %v1577
        %v4328 = vunpack.c.l.b16 %v1578
        %v4329 = vunpack.c.h.b16 %v1578
        %v4330 = vunpack.c.l.b16 %v1579
        %v4331 = vunpack.c.h.b16 %v1579
        %v4332 = vunpack.c.l.b16 %v1580
        %v4333 = vunpack.c.h.b16 %v1580
        %v4334 = vunpack.c.l.b16 %v1581
        %v4335 = vunpack.c.h.b16 %v1581
        %v4336 = vunpack.c.l.b16 %v1582
        %v4337 = vunpack.c.h.b16 %v1582
        %v4338 = vunpack.c.l.b16 %v1583
        %v4339 = vunpack.c.h.b16 %v1583
        %v4340 = vunpack.c.l.b16 %v1584
        %v4341 = vunpack.c.h.b16 %v1584
        %v4342 = vunpack.c.l.b16 %v1585
        %v4343 = vunpack.c.h.b16 %v1585
        %v4344 = vunpack.c.l.b16 %v1586
        %v4345 = vunpack.c.h.b16 %v1586
        %v4346 = vunpack.c.l.b16 %v1587
        %v4347 = vunpack.c.h.b16 %v1587
        %v4348 = vunpack.c.l.b16 %v1588
        %v4349 = vunpack.c.h.b16 %v1588
        %v4350 = vunpack.c.l.b16 %v1589
        %v4351 = vunpack.c.h.b16 %v1589
        %v4352 = vunpack.c.l.b16 %v1590
        %v4353 = vunpack.c.h.b16 %v1590
        %v4354 = vunpack.c.l.b16 %v1591
        %v4355 = vunpack.c.h.b16 %v1591
        %v4356 = vunpack.c.l.b16 %v1592
        %v4357 = vunpack.c.h.b16 %v1592
        %v4358 = vunpack.c.l.b16 %v1593
        %v4359 = vunpack.c.h.b16 %v1593
        %v4360 = vunpack.c.l.b16 %v1594
        %v4361 = vunpack.c.h.b16 %v1594
        %v4362 = vunpack.c.l.b16 %v1595
        %v4363 = vunpack.c.h.b16 %v1595
        %v4364 = vunpack.c.l.b16 %v1596
        %v4365 = vunpack.c.h.b16 %v1596
        %v4366 = vunpack.c.l.b16 %v1597
        %v4367 = vunpack.c.h.b16 %v1597
        %v4368 = vunpack.c.l.b16 %v1598
        %v4369 = vunpack.c.h.b16 %v1598
        %v4370 = vunpack.c.l.b16 %v1599
        %v4371 = vunpack.c.h.b16 %v1599
        %v4372 = vunpack.c.l.b16 %v1600
        %v4373 = vunpack.c.h.b16 %v1600
        %v4374 = vunpack.c.l.b16 %v1601
        %v4375 = vunpack.c.h.b16 %v1601
        %v4376 = vunpack.c.l.b16 %v1602
        %v4377 = vunpack.c.h.b16 %v1602
        %v4378 = vunpack.c.l.b16 %v1603
        %v4379 = vunpack.c.h.b16 %v1603
        %v4380 = vunpack.c.l.b16 %v1604
        %v4381 = vunpack.c.h.b16 %v1604
        %v4382 = vunpack.c.l.b16 %v1605
        %v4383 = vunpack.c.h.b16 %v1605
        %v4384 = vunpack.c.l.b16 %v1606
        %v4385 = vunpack.c.h.b16 %v1606
        %v4386 = vunpack.c.l.b16 %v1607
        %v4387 = vunpack.c.h.b16 %v1607
        %v4388 = vunpack.c.l.b16 %v1608
        %v4389 = vunpack.c.h.b16 %v1608
        %v4390 = vunpack.c.l.b16 %v1609
        %v4391 = vunpack.c.h.b16 %v1609
        %v4392 = vunpack.c.l.b16 %v1610
        %v4393 = vunpack.c.h.b16 %v1610
        %v4394 = vunpack.c.l.b16 %v1611
        %v4395 = vunpack.c.h.b16 %v1611
        %v4396 = vunpack.c.l.b16 %v1612
        %v4397 = vunpack.c.h.b16 %v1612
        %v4398 = vunpack.c.l.b16 %v1613
        %v4399 = vunpack.c.h.b16 %v1613
        %v4400 = vunpack.c.l.b16 %v1614
        %v4401 = vunpack.c.h.b16 %v1614
        %v4402 = vunpack.c.l.b16 %v1615
        %v4403 = vunpack.c.h.b16 %v1615
        %v4404 = vunpack.c.l.b16 %v1616
        %v4405 = vunpack.c.h.b16 %v1616
        %v4406 = vunpack.c.l.b16 %v1617
        %v4407 = vunpack.c.h.b16 %v1617
        %v4408 = vunpack.c.l.b16 %v1618
        %v4409 = vunpack.c.h.b16 %v1618
        %v4410 = vunpack.c.l.b16 %v1619
        %v4411 = vunpack.c.h.b16 %v1619
        %v4412 = vunpack.c.l.b16 %v1620
        %v4413 = vunpack.c.h.b16 %v1620
        %v4414 = vunpack.c.l.b16 %v1621
        %v4415 = vunpack.c.h.b16 %v1621
        %v4416 = vunpack.c.l.b16 %v1622
        %v4417 = vunpack.c.h.b16 %v1622
        %v4418 = vunpack.c.l.b16 %v1623
        %v4419 = vunpack.c.h.b16 %v1623
        %v4420 = vunpack.c.l.b16 %v1624
        %v4421 = vunpack.c.h.b16 %v1624
        %v4422 = vunpack.c.l.b16 %v1625
        %v4423 = vunpack.c.h.b16 %v1625
        %v4424 = vunpack.c.l.b16 %v1626
        %v4425 = vunpack.c.h.b16 %v1626
        %v4426 = vunpack.c.l.b16 %v1627
        %v4427 = vunpack.c.h.b16 %v1627
        %v4428 = vunpack.c.l.b16 %v1628
        %v4429 = vunpack.c.h.b16 %v1628
        %v4430 = vunpack.c.l.b16 %v1629
        %v4431 = vunpack.c.h.b16 %v1629
        %v4432 = vunpack.c.l.b16 %v1630
        %v4433 = vunpack.c.h.b16 %v1630
        %v4434 = vunpack.c.l.b16 %v1631
        %v4435 = vunpack.c.h.b16 %v1631
        %v4436 = vunpack.c.l.b16 %v1632
        %v4437 = vunpack.c.h.b16 %v1632
        %v4438 = vunpack.c.l.b16 %v1633
        %v4439 = vunpack.c.h.b16 %v1633
        %v4440 = vunpack.c.l.b16 %v1634
        %v4441 = vunpack.c.h.b16 %v1634
        %v4442 = vunpack.c.l.b16 %v1635
        %v4443 = vunpack.c.h.b16 %v1635
        %v4444 = vunpack.c.l.b16 %v1636
        %v4445 = vunpack.c.h.b16 %v1636
        %v4446 = vunpack.c.l.b16 %v1637
        %v4447 = vunpack.c.h.b16 %v1637
        %v4448 = vunpack.c.l.b16 %v1638
        %v4449 = vunpack.c.h.b16 %v1638
        %v4450 = vunpack.c.l.b16 %v1639
        %v4451 = vunpack.c.h.b16 %v1639
        %v4452 = vunpack.c.l.b16 %v1640
        %v4453 = vunpack.c.h.b16 %v1640
        %v4454 = vunpack.c.l.b16 %v1641
        %v4455 = vunpack.c.h.b16 %v1641
        %v4456 = vunpack.c.l.b16 %v1642
        %v4457 = vunpack.c.h.b16 %v1642
        %v4458 = vunpack.c.l.b16 %v1643
        %v4459 = vunpack.c.h.b16 %v1643
        %v4460 = vunpack.c.l.b16 %v1644
        %v4461 = vunpack.c.h.b16 %v1644
        %v4462 = vunpack.c.l.b16 %v1645
        %v4463 = vunpack.c.h.b16 %v1645
        %v4464 = vunpack.c.l.b16 %v1646
        %v4465 = vunpack.c.h.b16 %v1646
        %v4466 = vunpack.c.l.b16 %v1647
        %v4467 = vunpack.c.h.b16 %v1647
        %v4468 = vunpack.c.l.b16 %v1648
        %v4469 = vunpack.c.h.b16 %v1648
        %v4470 = vunpack.c.l.b16 %v1649
        %v4471 = vunpack.c.h.b16 %v1649
        %v4472 = vunpack.c.l.b16 %v1650
        %v4473 = vunpack.c.h.b16 %v1650
        %v4474 = vunpack.c.l.b16 %v1651
        %v4475 = vunpack.c.h.b16 %v1651
        %v4476 = vunpack.c.l.b16 %v1652
        %v4477 = vunpack.c.h.b16 %v1652
        %v4478 = vunpack.c.l.b16 %v1653
        %v4479 = vunpack.c.h.b16 %v1653
        %v4480 = vunpack.c.l.b16 %v1654
        %v4481 = vunpack.c.h.b16 %v1654
        %v4482 = vunpack.c.l.b16 %v1655
        %v4483 = vunpack.c.h.b16 %v1655
        %v4484 = vunpack.c.l.b16 %v1656
        %v4485 = vunpack.c.h.b16 %v1656
        %v4486 = vunpack.c.l.b16 %v1657
        %v4487 = vunpack.c.h.b16 %v1657
        %v4488 = vunpack.c.l.b16 %v1658
        %v4489 = vunpack.c.h.b16 %v1658
        %v4490 = vunpack.c.l.b16 %v1659
        %v4491 = vunpack.c.h.b16 %v1659
        %v4492 = vunpack.c.l.b16 %v1660
        %v4493 = vunpack.c.h.b16 %v1660
        %v4494 = vunpack.c.l.b16 %v1661
        %v4495 = vunpack.c.h.b16 %v1661
        %v4496 = vunpack.c.l.b16 %v1662
        %v4497 = vunpack.c.h.b16 %v1662
        %v4498 = vunpack.c.l.b16 %v1663
        %v4499 = vunpack.c.h.b16 %v1663
        %v4500 = vunpack.c.l.b16 %v1664
        %v4501 = vunpack.c.h.b16 %v1664
        %v4502 = vunpack.c.l.b16 %v1665
        %v4503 = vunpack.c.h.b16 %v1665
        %v4504 = vunpack.c.l.b16 %v1666
        %v4505 = vunpack.c.h.b16 %v1666
        %v4506 = vunpack.c.l.b16 %v1667
        %v4507 = vunpack.c.h.b16 %v1667
        %v4508 = vunpack.c.l.b16 %v1668
        %v4509 = vunpack.c.h.b16 %v1668
        %v4510 = vunpack.c.l.b16 %v1669
        %v4511 = vunpack.c.h.b16 %v1669
        %v4512 = vunpack.c.l.b16 %v1670
        %v4513 = vunpack.c.h.b16 %v1670
        %v4514 = vunpack.c.l.b16 %v1671
        %v4515 = vunpack.c.h.b16 %v1671
        %v4516 = vunpack.c.l.b16 %v1672
        %v4517 = vunpack.c.h.b16 %v1672
        %v4518 = vunpack.c.l.b16 %v1673
        %v4519 = vunpack.c.h.b16 %v1673
        %v4520 = vunpack.c.l.b16 %v1674
        %v4521 = vunpack.c.h.b16 %v1674
        %v4522 = vunpack.c.l.b16 %v1675
        %v4523 = vunpack.c.h.b16 %v1675
        %v4524 = vunpack.c.l.b16 %v1676
        %v4525 = vunpack.c.h.b16 %v1676
        %v4526 = vunpack.c.l.b16 %v1677
        %v4527 = vunpack.c.h.b16 %v1677
        %v4528 = vunpack.c.l.b16 %v1678
        %v4529 = vunpack.c.h.b16 %v1678
        %v4530 = vunpack.c.l.b16 %v1679
        %v4531 = vunpack.c.h.b16 %v1679
        %v4532 = vunpack.c.l.b16 %v1680
        %v4533 = vunpack.c.h.b16 %v1680
        %v4534 = vunpack.c.l.b16 %v1681
        %v4535 = vunpack.c.h.b16 %v1681
        %v4536 = vunpack.c.l.b16 %v1682
        %v4537 = vunpack.c.h.b16 %v1682
        %v4538 = vunpack.c.l.b16 %v1683
        %v4539 = vunpack.c.h.b16 %v1683
        %v4540 = vunpack.c.l.b16 %v1684
        %v4541 = vunpack.c.h.b16 %v1684
        %v4542 = vunpack.c.l.b16 %v1685
        %v4543 = vunpack.c.h.b16 %v1685
        %v4544 = vunpack.c.l.b16 %v1686
        %v4545 = vunpack.c.h.b16 %v1686
        %v4546 = vunpack.c.l.b16 %v1687
        %v4547 = vunpack.c.h.b16 %v1687
        %v4548 = vunpack.c.l.b16 %v1688
        %v4549 = vunpack.c.h.b16 %v1688
        %v4550 = vunpack.c.l.b16 %v1689
        %v4551 = vunpack.c.h.b16 %v1689
        %v4552 = vunpack.c.l.b16 %v1690
        %v4553 = vunpack.c.h.b16 %v1690
        %v4554 = vunpack.c.l.b16 %v1691
        %v4555 = vunpack.c.h.b16 %v1691
        %v4556 = vunpack.c.l.b16 %v1692
        %v4557 = vunpack.c.h.b16 %v1692
        %v4558 = vunpack.c.l.b16 %v1693
        %v4559 = vunpack.c.h.b16 %v1693
        %v4560 = vunpack.c.l.b16 %v1694
        %v4561 = vunpack.c.h.b16 %v1694
        %v4562 = vunpack.c.l.b16 %v1695
        %v4563 = vunpack.c.h.b16 %v1695
        %v4564 = vunpack.c.l.b16 %v1696
        %v4565 = vunpack.c.h.b16 %v1696
        %v4566 = vunpack.c.l.b16 %v1697
        %v4567 = vunpack.c.h.b16 %v1697
        %v4568 = vunpack.c.l.b16 %v1698
        %v4569 = vunpack.c.h.b16 %v1698
        %v4570 = vunpack.c.l.b16 %v1699
        %v4571 = vunpack.c.h.b16 %v1699
        %v4572 = vunpack.c.l.b16 %v1700
        %v4573 = vunpack.c.h.b16 %v1700
        %v4574 = vunpack.c.l.b16 %v1701
        %v4575 = vunpack.c.h.b16 %v1701
        %v4576 = vunpack.c.l.b16 %v1702
        %v4577 = vunpack.c.h.b16 %v1702
        %v4578 = vunpack.c.l.b16 %v1703
        %v4579 = vunpack.c.h.b16 %v1703
        %v4580 = vunpack.c.l.b16 %v1704
        %v4581 = vunpack.c.h.b16 %v1704
        %v4582 = vunpack.c.l.b16 %v1705
        %v4583 = vunpack.c.h.b16 %v1705
        %v4584 = vunpack.c.l.b16 %v1706
        %v4585 = vunpack.c.h.b16 %v1706
        %v4586 = vunpack.c.l.b16 %v1707
        %v4587 = vunpack.c.h.b16 %v1707
        %v4588 = vunpack.c.l.b16 %v1708
        %v4589 = vunpack.c.h.b16 %v1708
        %v4590 = vunpack.c.l.b16 %v1709
        %v4591 = vunpack.c.h.b16 %v1709
        %v4592 = vunpack.c.l.b16 %v1710
        %v4593 = vunpack.c.h.b16 %v1710
        %v4594 = vunpack.c.l.b16 %v1711
        %v4595 = vunpack.c.h.b16 %v1711
        %v4596 = vunpack.c.l.b16 %v1712
        %v4597 = vunpack.c.h.b16 %v1712
        %v4598 = vunpack.c.l.b16 %v1713
        %v4599 = vunpack.c.h.b16 %v1713
        %v4600 = vunpack.c.l.b16 %v1714
        %v4601 = vunpack.c.h.b16 %v1714
        %v4602 = vunpack.c.l.b16 %v1715
        %v4603 = vunpack.c.h.b16 %v1715
        %v4604 = vunpack.c.l.b16 %v1716
        %v4605 = vunpack.c.h.b16 %v1716
        %v4606 = vunpack.c.l.b16 %v1717
        %v4607 = vunpack.c.h.b16 %v1717
        %v4608 = vunpack.c.l.b16 %v1718
        %v4609 = vunpack.c.h.b16 %v1718
        %v4610 = vunpack.c.l.b16 %v1719
        %v4611 = vunpack.c.h.b16 %v1719
        %v4612 = vunpack.c.l.b16 %v1720
        %v4613 = vunpack.c.h.b16 %v1720
        %v4614 = vunpack.c.l.b16 %v1721
        %v4615 = vunpack.c.h.b16 %v1721
        %v4616 = vunpack.c.l.b16 %v1722
        %v4617 = vunpack.c.h.b16 %v1722
        %v4618 = vunpack.c.l.b16 %v1723
        %v4619 = vunpack.c.h.b16 %v1723
        %v4620 = vunpack.c.l.b16 %v1724
        %v4621 = vunpack.c.h.b16 %v1724
        %v4622 = vunpack.c.l.b16 %v1725
        %v4623 = vunpack.c.h.b16 %v1725
        %v4624 = vunpack.c.l.b16 %v1726
        %v4625 = vunpack.c.h.b16 %v1726
        %v4626 = vunpack.c.l.b16 %v1727
        %v4627 = vunpack.c.h.b16 %v1727
        %v4628 = vunpack.c.l.b16 %v1728
        %v4629 = vunpack.c.h.b16 %v1728
        %v4630 = vunpack.c.l.b16 %v1729
        %v4631 = vunpack.c.h.b16 %v1729
        %v4632 = vunpack.c.l.b16 %v1730
        %v4633 = vunpack.c.h.b16 %v1730
        %v4634 = vunpack.c.l.b16 %v1731
        %v4635 = vunpack.c.h.b16 %v1731
        %v4636 = vunpack.c.l.b16 %v1732
        %v4637 = vunpack.c.h.b16 %v1732
        %v4638 = vunpack.c.l.b16 %v1733
        %v4639 = vunpack.c.h.b16 %v1733
        %v4640 = vunpack.c.l.b16 %v1734
        %v4641 = vunpack.c.h.b16 %v1734
        %v4642 = vunpack.c.l.b16 %v1735
        %v4643 = vunpack.c.h.b16 %v1735
        %v4644 = vunpack.c.l.b16 %v1736
        %v4645 = vunpack.c.h.b16 %v1736
        %v4646 = vunpack.c.l.b16 %v1737
        %v4647 = vunpack.c.h.b16 %v1737
        %v4648 = vunpack.c.l.b16 %v1738
        %v4649 = vunpack.c.h.b16 %v1738
        %v4650 = vunpack.c.l.b16 %v1739
        %v4651 = vunpack.c.h.b16 %v1739
        %v4652 = vunpack.c.l.b16 %v1740
        %v4653 = vunpack.c.h.b16 %v1740
        %v4654 = vunpack.c.l.b16 %v1741
        %v4655 = vunpack.c.h.b16 %v1741
        %v4656 = vunpack.c.l.b16 %v1742
        %v4657 = vunpack.c.h.b16 %v1742
        %v4658 = vunpack.c.l.b16 %v1743
        %v4659 = vunpack.c.h.b16 %v1743
        %v4660 = vunpack.c.l.b16 %v1744
        %v4661 = vunpack.c.h.b16 %v1744
        %v4662 = vunpack.c.l.b16 %v1745
        %v4663 = vunpack.c.h.b16 %v1745
        %v4664 = vunpack.c.l.b16 %v1746
        %v4665 = vunpack.c.h.b16 %v1746
        %v4666 = vunpack.c.l.b16 %v1747
        %v4667 = vunpack.c.h.b16 %v1747
        %v4668 = vunpack.c.l.b16 %v1748
        %v4669 = vunpack.c.h.b16 %v1748
        %v4670 = vunpack.c.l.b16 %v1749
        %v4671 = vunpack.c.h.b16 %v1749
        %v4672 = vunpack.c.l.b16 %v1750
        %v4673 = vunpack.c.h.b16 %v1750
        %v4674 = vunpack.c.l.b16 %v1751
        %v4675 = vunpack.c.h.b16 %v1751
        %v4676 = vunpack.c.l.b16 %v1752
        %v4677 = vunpack.c.h.b16 %v1752
        %v4678 = vunpack.c.l.b16 %v1753
        %v4679 = vunpack.c.h.b16 %v1753
        %v4680 = vunpack.c.l.b16 %v1754
        %v4681 = vunpack.c.h.b16 %v1754
        %v4682 = vunpack.c.l.b16 %v1755
        %v4683 = vunpack.c.h.b16 %v1755
        %v4684 = vunpack.c.l.b16 %v1756
        %v4685 = vunpack.c.h.b16 %v1756
        %v4686 = vunpack.c.l.b16 %v1757
        %v4687 = vunpack.c.h.b16 %v1757
        %v4688 = vunpack.c.l.b16 %v1758
        %v4689 = vunpack.c.h.b16 %v1758
        %v4690 = vunpack.c.l.b16 %v1759
        %v4691 = vunpack.c.h.b16 %v1759
        %v4692 = vunpack.c.l.b16 %v1760
        %v4693 = vunpack.c.h.b16 %v1760
        %v4694 = vunpack.c.l.b16 %v1761
        %v4695 = vunpack.c.h.b16 %v1761
        %v4696 = vunpack.c.l.b16 %v1762
        %v4697 = vunpack.c.h.b16 %v1762
        %v4698 = vunpack.c.l.b16 %v1763
        %v4699 = vunpack.c.h.b16 %v1763
        %v4700 = vunpack.c.l.b16 %v1764
        %v4701 = vunpack.c.h.b16 %v1764
        %v4702 = vunpack.c.l.b16 %v1765
        %v4703 = vunpack.c.h.b16 %v1765
        %v4704 = vunpack.c.l.b16 %v1766
        %v4705 = vunpack.c.h.b16 %v1766
        %v4706 = vunpack.c.l.b16 %v1767
        %v4707 = vunpack.c.h.b16 %v1767
        %v4708 = vunpack.c.l.b16 %v1768
        %v4709 = vunpack.c.h.b16 %v1768
        %v4710 = vunpack.c.l.b16 %v1769
        %v4711 = vunpack.c.h.b16 %v1769
        %v4712 = vunpack.c.l.b16 %v1770
        %v4713 = vunpack.c.h.b16 %v1770
        %v4714 = vunpack.c.l.b16 %v1771
        %v4715 = vunpack.c.h.b16 %v1771
        %v4716 = vunpack.c.l.b16 %v1772
        %v4717 = vunpack.c.h.b16 %v1772
        %v4718 = vunpack.c.l.b16 %v1773
        %v4719 = vunpack.c.h.b16 %v1773
        %v4720 = vunpack.c.l.b16 %v1774
        %v4721 = vunpack.c.h.b16 %v1774
        %v4722 = vunpack.c.l.b16 %v1775
        %v4723 = vunpack.c.h.b16 %v1775
        %v4724 = vunpack.c.l.b16 %v1776
        %v4725 = vunpack.c.h.b16 %v1776
        %v4726 = vunpack.c.l.b16 %v1777
        %v4727 = vunpack.c.h.b16 %v1777
        %v4728 = vunpack.c.l.b16 %v1778
        %v4729 = vunpack.c.h.b16 %v1778
        %v4730 = vunpack.c.l.b16 %v1779
        %v4731 = vunpack.c.h.b16 %v1779
        %v4732 = vunpack.c.l.b16 %v1780
        %v4733 = vunpack.c.h.b16 %v1780
        %v4734 = vunpack.c.l.b16 %v1781
        %v4735 = vunpack.c.h.b16 %v1781
        %v4736 = vunpack.c.l.b16 %v1782
        %v4737 = vunpack.c.h.b16 %v1782
        %v4738 = vunpack.c.l.b16 %v1783
        %v4739 = vunpack.c.h.b16 %v1783
        %v4740 = vunpack.c.l.b16 %v1784
        %v4741 = vunpack.c.h.b16 %v1784
        %v4742 = vunpack.c.l.b16 %v1785
        %v4743 = vunpack.c.h.b16 %v1785
        %v4744 = vunpack.c.l.b16 %v1786
        %v4745 = vunpack.c.h.b16 %v1786
        %v4746 = vunpack.c.l.b16 %v1787
        %v4747 = vunpack.c.h.b16 %v1787
        %v4748 = vunpack.c.l.b16 %v1788
        %v4749 = vunpack.c.h.b16 %v1788
        %v4750 = vunpack.c.l.b16 %v1789
        %v4751 = vunpack.c.h.b16 %v1789
        %v4752 = vunpack.c.l.b16 %v1790
        %v4753 = vunpack.c.h.b16 %v1790
        %v4754 = vunpack.c.l.b16 %v1791
        %v4755 = vunpack.c.h.b16 %v1791
        %v4756 = vunpack.c.l.b16 %v1792
        %v4757 = vunpack.c.h.b16 %v1792
        %v4758 = vunpack.c.l.b16 %v1793
        %v4759 = vunpack.c.h.b16 %v1793
        %v4760 = vunpack.c.l.b16 %v1794
        %v4761 = vunpack.c.h.b16 %v1794
        %v4762 = vunpack.c.l.b16 %v1795
        %v4763 = vunpack.c.h.b16 %v1795
        %v4764 = vunpack.c.l.b16 %v1796
        %v4765 = vunpack.c.h.b16 %v1796
        %v4766 = vunpack.c.l.b16 %v1797
        %v4767 = vunpack.c.h.b16 %v1797
        %v4768 = vunpack.c.l.b16 %v1798
        %v4769 = vunpack.c.h.b16 %v1798
        %v4770 = vunpack.c.l.b16 %v1799
        %v4771 = vunpack.c.h.b16 %v1799
        %v4772 = vunpack.c.l.b16 %v1800
        %v4773 = vunpack.c.h.b16 %v1800
        %v4774 = vunpack.c.l.b16 %v1801
        %v4775 = vunpack.c.h.b16 %v1801
        %v4776 = vunpack.c.l.b16 %v1802
        %v4777 = vunpack.c.h.b16 %v1802
        %v4778 = vunpack.c.l.b16 %v1803
        %v4779 = vunpack.c.h.b16 %v1803
        %v4780 = vunpack.c.l.b16 %v1804
        %v4781 = vunpack.c.h.b16 %v1804
        %v4782 = vunpack.c.l.b16 %v1805
        %v4783 = vunpack.c.h.b16 %v1805
        %v4784 = vunpack.c.l.b16 %v1806
        %v4785 = vunpack.c.h.b16 %v1806
        %v4786 = vunpack.c.l.b16 %v1807
        %v4787 = vunpack.c.h.b16 %v1807
        %v4788 = vunpack.c.l.b16 %v1808
        %v4789 = vunpack.c.h.b16 %v1808
        %v4790 = vunpack.c.l.b16 %v1809
        %v4791 = vunpack.c.h.b16 %v1809
        %v4792 = vunpack.c.l.b16 %v1810
        %v4793 = vunpack.c.h.b16 %v1810
        %v4794 = vunpack.c.l.b16 %v1811
        %v4795 = vunpack.c.h.b16 %v1811
        %v4796 = vunpack.c.l.b16 %v1812
        %v4797 = vunpack.c.h.b16 %v1812
        %v4798 = vunpack.c.l.b16 %v1813
        %v4799 = vunpack.c.h.b16 %v1813
        %v4800 = vunpack.c.l.b16 %v1814
        %v4801 = vunpack.c.h.b16 %v1814
        %v4802 = vunpack.c.l.b16 %v1815
        %v4803 = vunpack.c.h.b16 %v1815
        %v4804 = vunpack.c.l.b16 %v1816
        %v4805 = vunpack.c.h.b16 %v1816
        %v4806 = vunpack.c.l.b16 %v1817
        %v4807 = vunpack.c.h.b16 %v1817
        %v4808 = vunpack.c.l.b16 %v1818
        %v4809 = vunpack.c.h.b16 %v1818
        %v4810 = vunpack.c.l.b16 %v1819
        %v4811 = vunpack.c.h.b16 %v1819
        %v4812 = vunpack.c.l.b16 %v1820
        %v4813 = vunpack.c.h.b16 %v1820
        %v4814 = vunpack.c.l.b16 %v1821
        %v4815 = vunpack.c.h.b16 %v1821
        %v4816 = vunpack.c.l.b16 %v1822
        %v4817 = vunpack.c.h.b16 %v1822
        %v4818 = vunpack.c.l.b16 %v1823
        %v4819 = vunpack.c.h.b16 %v1823
        %v4820 = vunpack.c.l.b16 %v1824
        %v4821 = vunpack.c.h.b16 %v1824
        %v4822 = vunpack.c.l.b16 %v1825
        %v4823 = vunpack.c.h.b16 %v1825
        %v4824 = vunpack.c.l.b16 %v1826
        %v4825 = vunpack.c.h.b16 %v1826
        %v4826 = vunpack.c.l.b16 %v1827
        %v4827 = vunpack.c.h.b16 %v1827
        %v4828 = vunpack.c.l.b16 %v1828
        %v4829 = vunpack.c.h.b16 %v1828
        %v4830 = vunpack.c.l.b16 %v1829
        %v4831 = vunpack.c.h.b16 %v1829
        %v4832 = vunpack.c.l.b16 %v1830
        %v4833 = vunpack.c.h.b16 %v1830
        %v4834 = vunpack.c.l.b16 %v1831
        %v4835 = vunpack.c.h.b16 %v1831
        %v4836 = vunpack.c.l.b16 %v1832
        %v4837 = vunpack.c.h.b16 %v1832
        %v4838 = vunpack.c.l.b16 %v1833
        %v4839 = vunpack.c.h.b16 %v1833
        %v4840 = vunpack.c.l.b16 %v1834
        %v4841 = vunpack.c.h.b16 %v1834
        %v4842 = vunpack.c.l.b16 %v1835
        %v4843 = vunpack.c.h.b16 %v1835
        %v4844 = vunpack.c.l.b16 %v1836
        %v4845 = vunpack.c.h.b16 %v1836
        %v4846 = vunpack.c.l.b16 %v1837
        %v4847 = vunpack.c.h.b16 %v1837
        %v4848 = vunpack.c.l.b16 %v1838
        %v4849 = vunpack.c.h.b16 %v1838
        %v4850 = vunpack.c.l.b16 %v1839
        %v4851 = vunpack.c.h.b16 %v1839
        %v4852 = vunpack.c.l.b16 %v1840
        %v4853 = vunpack.c.h.b16 %v1840
        %v4854 = vunpack.c.l.b16 %v1841
        %v4855 = vunpack.c.h.b16 %v1841
        %v4856 = vunpack.c.l.b16 %v1842
        %v4857 = vunpack.c.h.b16 %v1842
        %v4858 = vunpack.c.l.b16 %v1843
        %v4859 = vunpack.c.h.b16 %v1843
        %v4860 = vunpack.c.l.b16 %v1844
        %v4861 = vunpack.c.h.b16 %v1844
        %v4862 = vunpack.c.l.b16 %v1845
        %v4863 = vunpack.c.h.b16 %v1845
        %v4864 = vunpack.c.l.b16 %v1846
        %v4865 = vunpack.c.h.b16 %v1846
        %v4866 = vunpack.c.l.b16 %v1847
        %v4867 = vunpack.c.h.b16 %v1847
        %v4868 = vunpack.c.l.b16 %v1848
        %v4869 = vunpack.c.h.b16 %v1848
        %v4870 = vunpack.c.l.b16 %v1849
        %v4871 = vunpack.c.h.b16 %v1849
        %v4872 = vunpack.c.l.b16 %v1850
        %v4873 = vunpack.c.h.b16 %v1850
        %v4874 = vunpack.c.l.b16 %v1851
        %v4875 = vunpack.c.h.b16 %v1851
        %v4876 = vunpack.c.l.b16 %v1852
        %v4877 = vunpack.c.h.b16 %v1852
        %v4878 = vunpack.c.l.b16 %v1853
        %v4879 = vunpack.c.h.b16 %v1853
        %v4880 = vunpack.c.l.b16 %v1854
        %v4881 = vunpack.c.h.b16 %v1854
        %v4882 = vunpack.c.l.b16 %v1855
        %v4883 = vunpack.c.h.b16 %v1855
        %v4884 = vunpack.c.l.b16 %v1856
        %v4885 = vunpack.c.h.b16 %v1856
        %v4886 = vunpack.c.l.b16 %v1857
        %v4887 = vunpack.c.h.b16 %v1857
        %v4888 = vunpack.c.l.b16 %v1858
        %v4889 = vunpack.c.h.b16 %v1858
        %v4890 = vunpack.c.l.b16 %v1859
        %v4891 = vunpack.c.h.b16 %v1859
        %v4892 = vunpack.c.l.b16 %v1860
        %v4893 = vunpack.c.h.b16 %v1860
        %v4894 = vunpack.c.l.b16 %v1861
        %v4895 = vunpack.c.h.b16 %v1861
        %v4896 = vunpack.c.l.b16 %v1862
        %v4897 = vunpack.c.h.b16 %v1862
        %v4898 = vunpack.c.l.b16 %v1863
        %v4899 = vunpack.c.h.b16 %v1863
        %v4900 = vunpack.c.l.b16 %v1864
        %v4901 = vunpack.c.h.b16 %v1864
        %v4902 = vunpack.c.l.b16 %v1865
        %v4903 = vunpack.c.h.b16 %v1865
        %v4904 = vunpack.c.l.b16 %v1866
        %v4905 = vunpack.c.h.b16 %v1866
        %v4906 = vunpack.c.l.b16 %v1867
        %v4907 = vunpack.c.h.b16 %v1867
        %v4908 = vunpack.c.l.b16 %v1868
        %v4909 = vunpack.c.h.b16 %v1868
        %v4910 = vunpack.c.l.b16 %v1869
        %v4911 = vunpack.c.h.b16 %v1869
        %v4912 = vunpack.c.l.b16 %v1870
        %v4913 = vunpack.c.h.b16 %v1870
        %v4914 = vunpack.c.l.b16 %v1871
        %v4915 = vunpack.c.h.b16 %v1871
        %v4916 = vunpack.c.l.b16 %v1872
        %v4917 = vunpack.c.h.b16 %v1872
        %v4918 = vunpack.c.l.b16 %v1873
        %v4919 = vunpack.c.h.b16 %v1873
        %v4920 = vunpack.c.l.b16 %v1874
        %v4921 = vunpack.c.h.b16 %v1874
        %v4922 = vunpack.c.l.b16 %v1875
        %v4923 = vunpack.c.h.b16 %v1875
        %v4924 = vunpack.c.l.b16 %v1876
        %v4925 = vunpack.c.h.b16 %v1876
        %v4926 = vunpack.c.l.b16 %v1877
        %v4927 = vunpack.c.h.b16 %v1877
        %v4928 = vunpack.c.l.b16 %v1878
        %v4929 = vunpack.c.h.b16 %v1878
        %v4930 = vunpack.c.l.b16 %v1879
        %v4931 = vunpack.c.h.b16 %v1879
        %v4932 = vunpack.c.l.b16 %v1880
        %v4933 = vunpack.c.h.b16 %v1880
        %v4934 = vunpack.c.l.b16 %v1881
        %v4935 = vunpack.c.h.b16 %v1881
        %v4936 = vunpack.c.l.b16 %v1882
        %v4937 = vunpack.c.h.b16 %v1882
        %v4938 = vunpack.c.l.b16 %v1883
        %v4939 = vunpack.c.h.b16 %v1883
        %v4940 = vunpack.c.l.b16 %v1884
        %v4941 = vunpack.c.h.b16 %v1884
        %v4942 = vunpack.c.l.b16 %v1885
        %v4943 = vunpack.c.h.b16 %v1885
        %v4944 = vunpack.c.l.b16 %v1886
        %v4945 = vunpack.c.h.b16 %v1886
        %v4946 = vunpack.c.l.b16 %v1887
        %v4947 = vunpack.c.h.b16 %v1887
        %v4948 = vunpack.c.l.b16 %v1888
        %v4949 = vunpack.c.h.b16 %v1888
        %v4950 = vunpack.c.l.b16 %v1889
        %v4951 = vunpack.c.h.b16 %v1889
        %v4952 = vunpack.c.l.b16 %v1890
        %v4953 = vunpack.c.h.b16 %v1890
        %v4954 = vunpack.c.l.b16 %v1891
        %v4955 = vunpack.c.h.b16 %v1891
        %v4956 = vunpack.c.l.b16 %v1892
        %v4957 = vunpack.c.h.b16 %v1892
        %v4958 = vunpack.c.l.b16 %v1893
        %v4959 = vunpack.c.h.b16 %v1893
        %v4960 = vunpack.c.l.b16 %v1894
        %v4961 = vunpack.c.h.b16 %v1894
        %v4962 = vunpack.c.l.b16 %v1895
        %v4963 = vunpack.c.h.b16 %v1895
        %v4964 = vunpack.c.l.b16 %v1896
        %v4965 = vunpack.c.h.b16 %v1896
        %v4966 = vunpack.c.l.b16 %v1897
        %v4967 = vunpack.c.h.b16 %v1897
        %v4968 = vunpack.c.l.b16 %v1898
        %v4969 = vunpack.c.h.b16 %v1898
        %v4970 = vunpack.c.l.b16 %v1899
        %v4971 = vunpack.c.h.b16 %v1899
        %v4972 = vunpack.c.l.b16 %v1900
        %v4973 = vunpack.c.h.b16 %v1900
        %v4974 = vunpack.c.l.b16 %v1901
        %v4975 = vunpack.c.h.b16 %v1901
        %v4976 = vunpack.c.l.b16 %v1902
        %v4977 = vunpack.c.h.b16 %v1902
        %v4978 = vunpack.c.l.b16 %v1903
        %v4979 = vunpack.c.h.b16 %v1903
        %v4980 = vunpack.c.l.b16 %v1904
        %v4981 = vunpack.c.h.b16 %v1904
        %v4982 = vunpack.c.l.b16 %v1905
        %v4983 = vunpack.c.h.b16 %v1905
        %v4984 = vunpack.c.l.b16 %v1906
        %v4985 = vunpack.c.h.b16 %v1906
        %v4986 = vunpack.c.l.b16 %v1907
        %v4987 = vunpack.c.h.b16 %v1907
        %v4988 = vunpack.c.l.b16 %v1908
        %v4989 = vunpack.c.h.b16 %v1908
        %v4990 = vunpack.c.l.b16 %v1909
        %v4991 = vunpack.c.h.b16 %v1909
        %v4992 = vunpack.c.l.b16 %v1910
        %v4993 = vunpack.c.h.b16 %v1910
        %v4994 = vunpack.c.l.b16 %v1911
        %v4995 = vunpack.c.h.b16 %v1911
        %v4996 = vunpack.c.l.b16 %v1912
        %v4997 = vunpack.c.h.b16 %v1912
        %v4998 = vunpack.c.l.b16 %v1913
        %v4999 = vunpack.c.h.b16 %v1913
        %v5000 = vunpack.c.l.b16 %v1914
        %v5001 = vunpack.c.h.b16 %v1914
        %v5002 = vunpack.c.l.b16 %v1915
        %v5003 = vunpack.c.h.b16 %v1915
        %v5004 = vunpack.c.l.b16 %v1916
        %v5005 = vunpack.c.h.b16 %v1916
        %v5006 = vunpack.c.l.b16 %v1917
        %v5007 = vunpack.c.h.b16 %v1917
        %v5008 = vunpack.c.l.b16 %v1918
        %v5009 = vunpack.c.h.b16 %v1918
        %v5010 = vunpack.c.l.b16 %v1919
        %v5011 = vunpack.c.h.b16 %v1919
        %v5012 = vunpack.c.l.b16 %v1920
        %v5013 = vunpack.c.h.b16 %v1920
        %v5014 = vunpack.c.l.b16 %v1921
        %v5015 = vunpack.c.h.b16 %v1921
        %v5016 = vunpack.c.l.b16 %v1922
        %v5017 = vunpack.c.h.b16 %v1922
        %v5018 = vunpack.c.l.b16 %v1923
        %v5019 = vunpack.c.h.b16 %v1923
        %v5020 = vunpack.c.l.b16 %v1924
        %v5021 = vunpack.c.h.b16 %v1924
        %v5022 = vunpack.c.l.b16 %v1925
        %v5023 = vunpack.c.h.b16 %v1925
        %v5024 = vunpack.c.l.b16 %v1926
        %v5025 = vunpack.c.h.b16 %v1926
        %v5026 = vunpack.c.l.b16 %v1927
        %v5027 = vunpack.c.h.b16 %v1927
        %v5028 = vunpack.c.l.b16 %v1928
        %v5029 = vunpack.c.h.b16 %v1928
        %v5030 = vunpack.c.l.b16 %v1929
        %v5031 = vunpack.c.h.b16 %v1929
        %v5032 = vunpack.c.l.b16 %v1930
        %v5033 = vunpack.c.h.b16 %v1930
        %v5034 = vunpack.c.l.b16 %v1931
        %v5035 = vunpack.c.h.b16 %v1931
        %v5036 = vunpack.c.l.b16 %v1932
        %v5037 = vunpack.c.h.b16 %v1932
        %v5038 = vunpack.c.l.b16 %v1933
        %v5039 = vunpack.c.h.b16 %v1933
        %v5040 = vunpack.c.l.b16 %v1934
        %v5041 = vunpack.c.h.b16 %v1934
        %v5042 = vunpack.c.l.b16 %v1935
        %v5043 = vunpack.c.h.b16 %v1935
        %v5044 = vunpack.c.l.b16 %v1936
        %v5045 = vunpack.c.h.b16 %v1936
        %v5046 = vunpack.c.l.b16 %v1937
        %v5047 = vunpack.c.h.b16 %v1937
        %v5048 = vunpack.c.l.b16 %v1938
        %v5049 = vunpack.c.h.b16 %v1938
        %v5050 = vunpack.c.l.b16 %v1939
        %v5051 = vunpack.c.h.b16 %v1939
        %v5052 = vunpack.c.l.b16 %v1940
        %v5053 = vunpack.c.h.b16 %v1940
        %v5054 = vunpack.c.l.b16 %v1941
        %v5055 = vunpack.c.h.b16 %v1941
        %v5056 = vunpack.c.l.b16 %v1942
        %v5057 = vunpack.c.h.b16 %v1942
        %v5058 = vunpack.c.l.b16 %v1943
        %v5059 = vunpack.c.h.b16 %v1943
        %v5060 = vunpack.c.l.b16 %v1944
        %v5061 = vunpack.c.h.b16 %v1944
        %v5062 = vunpack.c.l.b16 %v1945
        %v5063 = vunpack.c.h.b16 %v1945
        %v5064 = vunpack.c.l.b16 %v1946
        %v5065 = vunpack.c.h.b16 %v1946
        %v5066 = vunpack.c.l.b16 %v1947
        %v5067 = vunpack.c.h.b16 %v1947
        %v5068 = vunpack.c.l.b16 %v1948
        %v5069 = vunpack.c.h.b16 %v1948
        %v5070 = vunpack.c.l.b16 %v1949
        %v5071 = vunpack.c.h.b16 %v1949
        %v5072 = vunpack.c.l.b16 %v1950
        %v5073 = vunpack.c.h.b16 %v1950
        %v5074 = vunpack.c.l.b16 %v1951
        %v5075 = vunpack.c.h.b16 %v1951
        %v5076 = vunpack.c.l.b16 %v1952
        %v5077 = vunpack.c.h.b16 %v1952
        %v5078 = vunpack.c.l.b16 %v1953
        %v5079 = vunpack.c.h.b16 %v1953
        %v5080 = vunpack.c.l.b16 %v1954
        %v5081 = vunpack.c.h.b16 %v1954
        %v5082 = vunpack.c.l.b16 %v1955
        %v5083 = vunpack.c.h.b16 %v1955
        %v5084 = vunpack.c.l.b16 %v1956
        %v5085 = vunpack.c.h.b16 %v1956
        %v5086 = vunpack.c.l.b16 %v1957
        %v5087 = vunpack.c.h.b16 %v1957
        %v5088 = vunpack.c.l.b16 %v1958
        %v5089 = vunpack.c.h.b16 %v1958
        %v5090 = vunpack.c.l.b16 %v1959
        %v5091 = vunpack.c.h.b16 %v1959
        %v5092 = vunpack.c.l.b16 %v1960
        %v5093 = vunpack.c.h.b16 %v1960
        %v5094 = vunpack.c.l.b16 %v1961
        %v5095 = vunpack.c.h.b16 %v1961
        %v5096 = vunpack.c.l.b16 %v1962
        %v5097 = vunpack.c.h.b16 %v1962
        %v5098 = vunpack.c.l.b16 %v1963
        %v5099 = vunpack.c.h.b16 %v1963
        %v5100 = vunpack.c.l.b16 %v1964
        %v5101 = vunpack.c.h.b16 %v1964
        %v5102 = vunpack.c.l.b16 %v1965
        %v5103 = vunpack.c.h.b16 %v1965
        %v5104 = vunpack.c.l.b16 %v1966
        %v5105 = vunpack.c.h.b16 %v1966
        %v5106 = vunpack.c.l.b16 %v1967
        %v5107 = vunpack.c.h.b16 %v1967
        %v5108 = vunpack.c.l.b16 %v1968
        %v5109 = vunpack.c.h.b16 %v1968
        %v5110 = vunpack.c.l.b16 %v1969
        %v5111 = vunpack.c.h.b16 %v1969
        %v5112 = vunpack.c.l.b16 %v1970
        %v5113 = vunpack.c.h.b16 %v1970
        %v5114 = vunpack.c.l.b16 %v1971
        %v5115 = vunpack.c.h.b16 %v1971
        %v5116 = vunpack.c.l.b16 %v1972
        %v5117 = vunpack.c.h.b16 %v1972
        %v5118 = vunpack.c.l.b16 %v1973
        %v5119 = vunpack.c.h.b16 %v1973
        %v5120 = vunpack.c.l.b16 %v1974
        %v5121 = vunpack.c.h.b16 %v1974
        %v5122 = vunpack.c.l.b16 %v1975
        %v5123 = vunpack.c.h.b16 %v1975
        %v5124 = vunpack.c.l.b16 %v1976
        %v5125 = vunpack.c.h.b16 %v1976
        %v5126 = vunpack.c.l.b16 %v1977
        %v5127 = vunpack.c.h.b16 %v1977
        %v5128 = vunpack.c.l.b16 %v1978
        %v5129 = vunpack.c.h.b16 %v1978
        %v5130 = vunpack.c.l.b16 %v1979
        %v5131 = vunpack.c.h.b16 %v1979
        %v5132 = vunpack.c.l.b16 %v1980
        %v5133 = vunpack.c.h.b16 %v1980
        %v5134 = vunpack.c.l.b16 %v1981
        %v5135 = vunpack.c.h.b16 %v1981
        %v5136 = vunpack.c.l.b16 %v1982
        %v5137 = vunpack.c.h.b16 %v1982
        %v5138 = vunpack.c.l.b16 %v1983
        %v5139 = vunpack.c.h.b16 %v1983
        %v5140 = vunpack.c.l.b16 %v1984
        %v5141 = vunpack.c.h.b16 %v1984
        %v5142 = vunpack.c.l.b16 %v1985
        %v5143 = vunpack.c.h.b16 %v1985
        %v5144 = vunpack.c.l.b16 %v1986
        %v5145 = vunpack.c.h.b16 %v1986
        %v5146 = vunpack.c.l.b16 %v1987
        %v5147 = vunpack.c.h.b16 %v1987
        %v5148 = vunpack.c.l.b16 %v1988
        %v5149 = vunpack.c.h.b16 %v1988
        %v5150 = vunpack.c.l.b16 %v1989
        %v5151 = vunpack.c.h.b16 %v1989
        %v5152 = vunpack.c.l.b16 %v1990
        %v5153 = vunpack.c.h.b16 %v1990
        %v5154 = vunpack.c.l.b16 %v1991
        %v5155 = vunpack.c.h.b16 %v1991
        %v5156 = vunpack.c.l.b16 %v1992
        %v5157 = vunpack.c.h.b16 %v1992
        %v5158 = vunpack.c.l.b16 %v1993
        %v5159 = vunpack.c.h.b16 %v1993
        %v5160 = vunpack.c.l.b16 %v1994
        %v5161 = vunpack.c.h.b16 %v1994
        %v5162 = vunpack.c.l.b16 %v1995
        %v5163 = vunpack.c.h.b16 %v1995
        %v5164 = vunpack.c.l.b16 %v1996
        %v5165 = vunpack.c.h.b16 %v1996
        %v5166 = vunpack.c.l.b16 %v1997
        %v5167 = vunpack.c.h.b16 %v1997
        %v5168 = vunpack.c.l.b16 %v1998
        %v5169 = vunpack.c.h.b16 %v1998
        %v5170 = vunpack.c.l.b16 %v1999
        %v5171 = vunpack.c.h.b16 %v1999
        %v5172 = vunpack.c.l.b16 %v2000
        %v5173 = vunpack.c.h.b16 %v2000
        %v5174 = vunpack.c.l.b16 %v2001
        %v5175 = vunpack.c.h.b16 %v2001
        %v5176 = vunpack.c.l.b16 %v2002
        %v5177 = vunpack.c.h.b16 %v2002
        %v5178 = vunpack.c.l.b16 %v2003
        %v5179 = vunpack.c.h.b16 %v2003
        %v5180 = vunpack.c.l.b16 %v2004
        %v5181 = vunpack.c.h.b16 %v2004
        %v5182 = vunpack.c.l.b16 %v2005
        %v5183 = vunpack.c.h.b16 %v2005
        %v5184 = vunpack.c.l.b16 %v2006
        %v5185 = vunpack.c.h.b16 %v2006
        %v5186 = vunpack.c.l.b16 %v2007
        %v5187 = vunpack.c.h.b16 %v2007
        %v5188 = vunpack.c.l.b16 %v2008
        %v5189 = vunpack.c.h.b16 %v2008
        %v5190 = vunpack.c.l.b16 %v2009
        %v5191 = vunpack.c.h.b16 %v2009
        %v5192 = vunpack.c.l.b16 %v2010
        %v5193 = vunpack.c.h.b16 %v2010
        %v5194 = vunpack.c.l.b16 %v2011
        %v5195 = vunpack.c.h.b16 %v2011
        %v5196 = vunpack.c.l.b16 %v2012
        %v5197 = vunpack.c.h.b16 %v2012
        %v5198 = vunpack.c.l.b16 %v2013
        %v5199 = vunpack.c.h.b16 %v2013
        %v5200 = vunpack.c.l.b16 %v2014
        %v5201 = vunpack.c.h.b16 %v2014
        %v5202 = vunpack.c.l.b16 %v2015
        %v5203 = vunpack.c.h.b16 %v2015
        %v5204 = vunpack.c.l.b16 %v2016
        %v5205 = vunpack.c.h.b16 %v2016
        %v5206 = vunpack.c.l.b16 %v2017
        %v5207 = vunpack.c.h.b16 %v2017
        %v5208 = vunpack.c.l.b16 %v2018
        %v5209 = vunpack.c.h.b16 %v2018
        %v5210 = vunpack.c.l.b16 %v2019
        %v5211 = vunpack.c.h.b16 %v2019
        %v5212 = vunpack.c.l.b16 %v2020
        %v5213 = vunpack.c.h.b16 %v2020
        %v5214 = vunpack.c.l.b16 %v2021
        %v5215 = vunpack.c.h.b16 %v2021
        %v5216 = vunpack.c.l.b16 %v2022
        %v5217 = vunpack.c.h.b16 %v2022
        %v5218 = vunpack.c.l.b16 %v2023
        %v5219 = vunpack.c.h.b16 %v2023
        %v5220 = vunpack.c.l.b16 %v2024
        %v5221 = vunpack.c.h.b16 %v2024
        %v5222 = vunpack.c.l.b16 %v2025
        %v5223 = vunpack.c.h.b16 %v2025
        %v5224 = vunpack.c.l.b16 %v2026
        %v5225 = vunpack.c.h.b16 %v2026
        %v5226 = vunpack.c.l.b16 %v2027
        %v5227 = vunpack.c.h.b16 %v2027
        %v5228 = vunpack.c.l.b16 %v2028
        %v5229 = vunpack.c.h.b16 %v2028
        %v5230 = vunpack.c.l.b16 %v2029
        %v5231 = vunpack.c.h.b16 %v2029
        %v5232 = vunpack.c.l.b16 %v2030
        %v5233 = vunpack.c.h.b16 %v2030
        %v5234 = vunpack.c.l.b16 %v2031
        %v5235 = vunpack.c.h.b16 %v2031
        %v5236 = vunpack.c.l.b16 %v2032
        %v5237 = vunpack.c.h.b16 %v2032
        %v5238 = vunpack.c.l.b16 %v2033
        %v5239 = vunpack.c.h.b16 %v2033
        %v5240 = vunpack.c.l.b16 %v2034
        %v5241 = vunpack.c.h.b16 %v2034
        %v5242 = vunpack.c.l.b16 %v2035
        %v5243 = vunpack.c.h.b16 %v2035
        %v5244 = vunpack.c.l.b16 %v2036
        %v5245 = vunpack.c.h.b16 %v2036
        %v5246 = vunpack.c.l.b16 %v2037
        %v5247 = vunpack.c.h.b16 %v2037
        %v5248 = vunpack.c.l.b16 %v2038
        %v5249 = vunpack.c.h.b16 %v2038
        %v5250 = vunpack.c.l.b16 %v2039
        %v5251 = vunpack.c.h.b16 %v2039
        %v5252 = vunpack.c.l.b16 %v2040
        %v5253 = vunpack.c.h.b16 %v2040
        %v5254 = vunpack.c.l.b16 %v2041
        %v5255 = vunpack.c.h.b16 %v2041
        %v5256 = vunpack.c.l.b16 %v2042
        %v5257 = vunpack.c.h.b16 %v2042
        %v5258 = vunpack.c.l.b16 %v2043
        %v5259 = vunpack.c.h.b16 %v2043
        %v5260 = vunpack.c.l.b16 %v2044
        %v5261 = vunpack.c.h.b16 %v2044
        %v5262 = vunpack.c.l.b16 %v2045
        %v5263 = vunpack.c.h.b16 %v2045
        %v5264 = vunpack.c.l.b16 %v2046
        %v5265 = vunpack.c.h.b16 %v2046
        %v5266 = vunpack.c.l.b16 %v2047
        %v5267 = vunpack.c.h.b16 %v2047
        %v5268 = vunpack.c.l.b16 %v2048
        %v5269 = vunpack.c.h.b16 %v2048
        %v5270 = vunpack.c.l.b16 %v2049
        %v5271 = vunpack.c.h.b16 %v2049
        %v5272 = vunpack.c.l.b16 %v2050
        %v5273 = vunpack.c.h.b16 %v2050
        %v5274 = vunpack.c.l.b16 %v2051
        %v5275 = vunpack.c.h.b16 %v2051
        %v5276 = vunpack.c.l.b16 %v2052
        %v5277 = vunpack.c.h.b16 %v2052
        %v5278 = vunpack.c.l.b16 %v2053
        %v5279 = vunpack.c.h.b16 %v2053
        %v5280 = vunpack.c.l.b16 %v2054
        %v5281 = vunpack.c.h.b16 %v2054
        %v5282 = vunpack.c.l.b16 %v2055
        %v5283 = vunpack.c.h.b16 %v2055
        %v5284 = vunpack.c.l.b16 %v2056
        %v5285 = vunpack.c.h.b16 %v2056
        %v5286 = vunpack.c.l.b16 %v2057
        %v5287 = vunpack.c.h.b16 %v2057
        %v5288 = vunpack.c.l.b16 %v2058
        %v5289 = vunpack.c.h.b16 %v2058
        %v5290 = vunpack.c.l.b16 %v2059
        %v5291 = vunpack.c.h.b16 %v2059
        %v5292 = vunpack.c.l.b16 %v2060
        %v5293 = vunpack.c.h.b16 %v2060
        %v5294 = vunpack.c.l.b16 %v2061
        %v5295 = vunpack.c.h.b16 %v2061
        %v5296 = vunpack.c.l.b16 %v2062
        %v5297 = vunpack.c.h.b16 %v2062
        %v5298 = vunpack.c.l.b16 %v2063
        %v5299 = vunpack.c.h.b16 %v2063
        %v5300 = vunpack.c.l.b16 %v2064
        %v5301 = vunpack.c.h.b16 %v2064
        %v5302 = vunpack.c.l.b16 %v2065
        %v5303 = vunpack.c.h.b16 %v2065
        %v5304 = vunpack.c.l.b16 %v2066
        %v5305 = vunpack.c.h.b16 %v2066
        %v5306 = vunpack.c.l.b16 %v2067
        %v5307 = vunpack.c.h.b16 %v2067
        %v5308 = vunpack.c.l.b16 %v2068
        %v5309 = vunpack.c.h.b16 %v2068
        %v5310 = vunpack.c.l.b16 %v2069
        %v5311 = vunpack.c.h.b16 %v2069
        %v5312 = vunpack.c.l.b16 %v2070
        %v5313 = vunpack.c.h.b16 %v2070
        %v5314 = vunpack.c.l.b16 %v2071
        %v5315 = vunpack.c.h.b16 %v2071
        %v5316 = vunpack.c.l.b16 %v2072
        %v5317 = vunpack.c.h.b16 %v2072
        %v5318 = vunpack.c.l.b16 %v2073
        %v5319 = vunpack.c.h.b16 %v2073
        %v5320 = vunpack.c.l.b16 %v2074
        %v5321 = vunpack.c.h.b16 %v2074
        %v5322 = vunpack.c.l.b16 %v2075
        %v5323 = vunpack.c.h.b16 %v2075
        %v5324 = vunpack.c.l.b16 %v2076
        %v5325 = vunpack.c.h.b16 %v2076
        %v5326 = vunpack.c.l.b16 %v2077
        %v5327 = vunpack.c.h.b16 %v2077
        %v5328 = vunpack.c.l.b16 %v2078
        %v5329 = vunpack.c.h.b16 %v2078
        %v5330 = vunpack.c.l.b16 %v2079
        %v5331 = vunpack.c.h.b16 %v2079
        %v5332 = vunpack.c.l.b16 %v2080
        %v5333 = vunpack.c.h.b16 %v2080
        %v5334 = vunpack.c.l.b16 %v2081
        %v5335 = vunpack.c.h.b16 %v2081
        %v5336 = vunpack.c.l.b16 %v2082
        %v5337 = vunpack.c.h.b16 %v2082
        %v5338 = vunpack.c.l.b16 %v2083
        %v5339 = vunpack.c.h.b16 %v2083
        %v5340 = vunpack.c.l.b16 %v2084
        %v5341 = vunpack.c.h.b16 %v2084
        %v5342 = vunpack.c.l.b16 %v2085
        %v5343 = vunpack.c.h.b16 %v2085
        %v5344 = vunpack.c.l.b16 %v2086
        %v5345 = vunpack.c.h.b16 %v2086
        %v5346 = vunpack.c.l.b16 %v2087
        %v5347 = vunpack.c.h.b16 %v2087
        %v5348 = vunpack.c.l.b16 %v2088
        %v5349 = vunpack.c.h.b16 %v2088
        %v5350 = vunpack.c.l.b16 %v2089
        %v5351 = vunpack.c.h.b16 %v2089
        %v5352 = vunpack.c.l.b16 %v2090
        %v5353 = vunpack.c.h.b16 %v2090
        %v5354 = vunpack.c.l.b16 %v2091
        %v5355 = vunpack.c.h.b16 %v2091
        %v5356 = vunpack.c.l.b16 %v2092
        %v5357 = vunpack.c.h.b16 %v2092
        %v5358 = vunpack.c.l.b16 %v2093
        %v5359 = vunpack.c.h.b16 %v2093
        %v5360 = vunpack.c.l.b16 %v2094
        %v5361 = vunpack.c.h.b16 %v2094
        %v5362 = vunpack.c.l.b16 %v2095
        %v5363 = vunpack.c.h.b16 %v2095
        %v5364 = vunpack.c.l.b16 %v2096
        %v5365 = vunpack.c.h.b16 %v2096
        %v5366 = vunpack.c.l.b16 %v2097
        %v5367 = vunpack.c.h.b16 %v2097
        %v5368 = vunpack.c.l.b16 %v2098
        %v5369 = vunpack.c.h.b16 %v2098
        %v5370 = vunpack.c.l.b16 %v2099
        %v5371 = vunpack.c.h.b16 %v2099
        %v5372 = vunpack.c.l.b16 %v2100
        %v5373 = vunpack.c.h.b16 %v2100
        %v5374 = vunpack.c.l.b16 %v2101
        %v5375 = vunpack.c.h.b16 %v2101
        %v5376 = vunpack.c.l.b16 %v2102
        %v5377 = vunpack.c.h.b16 %v2102
        %v5378 = vunpack.c.l.b16 %v2103
        %v5379 = vunpack.c.h.b16 %v2103
        %v5380 = vunpack.c.l.b16 %v2104
        %v5381 = vunpack.c.h.b16 %v2104
        %v5382 = vunpack.c.l.b16 %v2105
        %v5383 = vunpack.c.h.b16 %v2105
        %v5384 = vunpack.c.l.b16 %v2106
        %v5385 = vunpack.c.h.b16 %v2106
        %v5386 = vunpack.c.l.b16 %v2107
        %v5387 = vunpack.c.h.b16 %v2107
        %v5388 = vunpack.c.l.b16 %v2108
        %v5389 = vunpack.c.h.b16 %v2108
        %v5390 = vunpack.c.l.b16 %v2109
        %v5391 = vunpack.c.h.b16 %v2109
        %v5392 = vunpack.c.l.b16 %v2110
        %v5393 = vunpack.c.h.b16 %v2110
        %v5394 = vunpack.c.l.b16 %v2111
        %v5395 = vunpack.c.h.b16 %v2111
        %v5396 = vunpack.c.l.b16 %v2112
        %v5397 = vunpack.c.h.b16 %v2112
        %v5398 = vunpack.c.l.b16 %v2113
        %v5399 = vunpack.c.h.b16 %v2113
        %v5400 = vunpack.c.l.b16 %v2114
        %v5401 = vunpack.c.h.b16 %v2114
        %v5402 = vunpack.c.l.b16 %v2115
        %v5403 = vunpack.c.h.b16 %v2115
        %v5404 = vunpack.c.l.b16 %v2116
        %v5405 = vunpack.c.h.b16 %v2116
        %v5406 = vunpack.c.l.b16 %v2117
        %v5407 = vunpack.c.h.b16 %v2117
        %v5408 = vunpack.c.l.b16 %v2118
        %v5409 = vunpack.c.h.b16 %v2118
        %v5410 = vunpack.c.l.b16 %v2119
        %v5411 = vunpack.c.h.b16 %v2119
        %v5412 = vunpack.c.l.b16 %v2120
        %v5413 = vunpack.c.h.b16 %v2120
        %v5414 = vunpack.c.l.b16 %v2121
        %v5415 = vunpack.c.h.b16 %v2121
        %v5416 = vunpack.c.l.b16 %v2122
        %v5417 = vunpack.c.h.b16 %v2122
        %v5418 = vunpack.c.l.b16 %v2123
        %v5419 = vunpack.c.h.b16 %v2123
        %v5420 = vunpack.c.l.b16 %v2124
        %v5421 = vunpack.c.h.b16 %v2124
        %v5422 = vunpack.c.l.b16 %v2125
        %v5423 = vunpack.c.h.b16 %v2125
        %v5424 = vunpack.c.l.b16 %v2126
        %v5425 = vunpack.c.h.b16 %v2126
        %v5426 = vunpack.c.l.b16 %v2127
        %v5427 = vunpack.c.h.b16 %v2127
        %v5428 = vunpack.c.l.b16 %v2128
        %v5429 = vunpack.c.h.b16 %v2128
        %v5430 = vunpack.c.l.b16 %v2129
        %v5431 = vunpack.c.h.b16 %v2129
        %v5432 = vunpack.c.l.b16 %v2130
        %v5433 = vunpack.c.h.b16 %v2130
        %v5434 = vunpack.c.l.b16 %v2131
        %v5435 = vunpack.c.h.b16 %v2131
        %v5436 = vunpack.c.l.b16 %v2132
        %v5437 = vunpack.c.h.b16 %v2132
        %v5438 = vunpack.c.l.b16 %v2133
        %v5439 = vunpack.c.h.b16 %v2133
        %v5440 = vunpack.c.l.b16 %v2134
        %v5441 = vunpack.c.h.b16 %v2134
        %v5442 = vunpack.c.l.b16 %v2135
        %v5443 = vunpack.c.h.b16 %v2135
        %v5444 = vunpack.c.l.b16 %v2136
        %v5445 = vunpack.c.h.b16 %v2136
        %v5446 = vunpack.c.l.b16 %v2137
        %v5447 = vunpack.c.h.b16 %v2137
        %v5448 = vunpack.c.l.b16 %v2138
        %v5449 = vunpack.c.h.b16 %v2138
        %v5450 = vunpack.c.l.b16 %v2139
        %v5451 = vunpack.c.h.b16 %v2139
        %v5452 = vunpack.c.l.b16 %v2140
        %v5453 = vunpack.c.h.b16 %v2140
        %v5454 = vunpack.c.l.b16 %v2141
        %v5455 = vunpack.c.h.b16 %v2141
        %v5456 = vunpack.c.l.b16 %v2142
        %v5457 = vunpack.c.h.b16 %v2142
        %v5458 = vunpack.c.l.b16 %v2143
        %v5459 = vunpack.c.h.b16 %v2143
        %v5460 = vunpack.c.l.b16 %v2144
        %v5461 = vunpack.c.h.b16 %v2144
        %v5462 = vunpack.c.l.b16 %v2145
        %v5463 = vunpack.c.h.b16 %v2145
        %v5464 = vunpack.c.l.b16 %v2146
        %v5465 = vunpack.c.h.b16 %v2146
        %v5466 = vunpack.c.l.b16 %v2147
        %v5467 = vunpack.c.h.b16 %v2147
        %v5468 = vunpack.c.l.b16 %v2148
        %v5469 = vunpack.c.h.b16 %v2148
        %v5470 = vunpack.c.l.b16 %v2149
        %v5471 = vunpack.c.h.b16 %v2149
        %v5472 = vunpack.c.l.b16 %v2150
        %v5473 = vunpack.c.h.b16 %v2150
        %v5474 = vunpack.c.l.b16 %v2151
        %v5475 = vunpack.c.h.b16 %v2151
        %v5476 = vunpack.c.l.b16 %v2152
        %v5477 = vunpack.c.h.b16 %v2152
        %v5478 = vunpack.c.l.b16 %v2153
        %v5479 = vunpack.c.h.b16 %v2153
        %v5480 = vunpack.c.l.b16 %v2154
        %v5481 = vunpack.c.h.b16 %v2154
        %v5482 = vunpack.c.l.b16 %v2155
        %v5483 = vunpack.c.h.b16 %v2155
        %v5484 = vunpack.c.l.b16 %v2156
        %v5485 = vunpack.c.h.b16 %v2156
        %v5486 = vunpack.c.l.b16 %v2157
        %v5487 = vunpack.c.h.b16 %v2157
        %v5488 = vunpack.c.l.b16 %v2158
        %v5489 = vunpack.c.h.b16 %v2158
        %v5490 = vunpack.c.l.b16 %v2159
        %v5491 = vunpack.c.h.b16 %v2159
        %v5492 = vunpack.c.l.b16 %v2160
        %v5493 = vunpack.c.h.b16 %v2160
        %v5494 = vunpack.c.l.b16 %v2161
        %v5495 = vunpack.c.h.b16 %v2161
        %v5496 = vunpack.c.l.b16 %v2162
        %v5497 = vunpack.c.h.b16 %v2162
        %v5498 = vunpack.c.l.b16 %v2163
        %v5499 = vunpack.c.h.b16 %v2163
        %v5500 = vunpack.c.l.b16 %v2164
        %v5501 = vunpack.c.h.b16 %v2164
        %v5502 = vunpack.c.l.b16 %v2165
        %v5503 = vunpack.c.h.b16 %v2165
        %v5504 = vunpack.c.l.b16 %v2166
        %v5505 = vunpack.c.h.b16 %v2166
        %v5506 = vunpack.c.l.b16 %v2167
        %v5507 = vunpack.c.h.b16 %v2167
        %v5508 = vunpack.c.l.b16 %v2168
        %v5509 = vunpack.c.h.b16 %v2168
        %v5510 = vunpack.c.l.b16 %v2169
        %v5511 = vunpack.c.h.b16 %v2169
        %v5512 = vunpack.c.l.b16 %v2170
        %v5513 = vunpack.c.h.b16 %v2170
        %v5514 = vunpack.c.l.b16 %v2171
        %v5515 = vunpack.c.h.b16 %v2171
        %v5516 = vunpack.c.l.b16 %v2172
        %v5517 = vunpack.c.h.b16 %v2172
        %v5518 = vunpack.c.l.b16 %v2173
        %v5519 = vunpack.c.h.b16 %v2173
        %v5520 = vunpack.c.l.b16 %v2174
        %v5521 = vunpack.c.h.b16 %v2174
        %v5522 = vunpack.c.l.b16 %v2175
        %v5523 = vunpack.c.h.b16 %v2175
        %v5524 = vunpack.c.l.b16 %v2176
        %v5525 = vunpack.c.h.b16 %v2176
        %v5526 = vunpack.c.l.b16 %v2177
        %v5527 = vunpack.c.h.b16 %v2177
        %v5528 = vunpack.c.l.b16 %v2178
        %v5529 = vunpack.c.h.b16 %v2178
        %v5530 = vunpack.c.l.b16 %v2179
        %v5531 = vunpack.c.h.b16 %v2179
        %v5532 = vunpack.c.l.b16 %v2180
        %v5533 = vunpack.c.h.b16 %v2180
        %v5534 = vunpack.c.l.b16 %v2181
        %v5535 = vunpack.c.h.b16 %v2181
        %v5536 = vunpack.c.l.b16 %v2182
        %v5537 = vunpack.c.h.b16 %v2182
        %v5538 = vunpack.c.l.b16 %v2183
        %v5539 = vunpack.c.h.b16 %v2183
        %v5540 = vunpack.c.l.b16 %v2184
        %v5541 = vunpack.c.h.b16 %v2184
        %v5542 = vunpack.c.l.b16 %v2185
        %v5543 = vunpack.c.h.b16 %v2185
        %v5544 = vunpack.c.l.b16 %v2186
        %v5545 = vunpack.c.h.b16 %v2186
        %v5546 = vunpack.c.l.b16 %v2187
        %v5547 = vunpack.c.h.b16 %v2187
        %v5548 = vunpack.c.l.b16 %v2188
        %v5549 = vunpack.c.h.b16 %v2188
        %v5550 = vunpack.c.l.b16 %v2189
        %v5551 = vunpack.c.h.b16 %v2189
        %v5552 = vunpack.c.l.b16 %v2190
        %v5553 = vunpack.c.h.b16 %v2190
        %v5554 = vunpack.c.l.b16 %v2191
        %v5555 = vunpack.c.h.b16 %v2191
        %v5556 = vunpack.c.l.b16 %v2192
        %v5557 = vunpack.c.h.b16 %v2192
        %v5558 = vunpack.c.l.b16 %v2193
        %v5559 = vunpack.c.h.b16 %v2193
        %v5560 = vunpack.c.l.b16 %v2194
        %v5561 = vunpack.c.h.b16 %v2194
        %v5562 = vunpack.c.l.b16 %v2195
        %v5563 = vunpack.c.h.b16 %v2195
        %v5564 = vunpack.c.l.b16 %v2196
        %v5565 = vunpack.c.h.b16 %v2196
        %v5566 = vunpack.c.l.b16 %v2197
        %v5567 = vunpack.c.h.b16 %v2197
        %v5568 = vunpack.c.l.b16 %v2198
        %v5569 = vunpack.c.h.b16 %v2198
        %v5570 = vunpack.c.l.b16 %v2199
        %v5571 = vunpack.c.h.b16 %v2199
        %v5572 = vunpack.c.l.b16 %v2200
        %v5573 = vunpack.c.h.b16 %v2200
        %v5574 = vunpack.c.l.b16 %v2201
        %v5575 = vunpack.c.h.b16 %v2201
        %v5576 = vunpack.c.l.b16 %v2202
        %v5577 = vunpack.c.h.b16 %v2202
        %v5578 = vunpack.c.l.b16 %v2203
        %v5579 = vunpack.c.h.b16 %v2203
        %v5580 = vunpack.c.l.b16 %v2204
        %v5581 = vunpack.c.h.b16 %v2204
        %v5582 = vunpack.c.l.b16 %v2205
        %v5583 = vunpack.c.h.b16 %v2205
        %v5584 = vunpack.c.l.b16 %v2206
        %v5585 = vunpack.c.h.b16 %v2206
        %v5586 = vunpack.c.l.b16 %v2207
        %v5587 = vunpack.c.h.b16 %v2207
        %v5588 = vunpack.c.l.b16 %v2208
        %v5589 = vunpack.c.h.b16 %v2208
        %v5590 = vunpack.c.l.b16 %v2209
        %v5591 = vunpack.c.h.b16 %v2209
        %v5592 = vunpack.c.l.b16 %v2210
        %v5593 = vunpack.c.h.b16 %v2210
        %v5594 = vunpack.c.l.b16 %v2211
        %v5595 = vunpack.c.h.b16 %v2211
        %v5596 = vunpack.c.l.b16 %v2212
        %v5597 = vunpack.c.h.b16 %v2212
        %v5598 = vunpack.c.l.b16 %v2213
        %v5599 = vunpack.c.h.b16 %v2213
        %v5600 = vunpack.c.l.b16 %v2214
        %v5601 = vunpack.c.h.b16 %v2214
        %v5602 = vunpack.c.l.b16 %v2215
        %v5603 = vunpack.c.h.b16 %v2215
        %v5604 = vunpack.c.l.b16 %v2216
        %v5605 = vunpack.c.h.b16 %v2216
        %v5606 = vunpack.c.l.b16 %v2217
        %v5607 = vunpack.c.h.b16 %v2217
        %v5608 = vunpack.c.l.b16 %v2218
        %v5609 = vunpack.c.h.b16 %v2218
        %v5610 = vunpack.c.l.b16 %v2219
        %v5611 = vunpack.c.h.b16 %v2219
        %v5612 = vunpack.c.l.b16 %v2220
        %v5613 = vunpack.c.h.b16 %v2220
        %v5614 = vunpack.c.l.b16 %v2221
        %v5615 = vunpack.c.h.b16 %v2221
        %v5616 = vunpack.c.l.b16 %v2222
        %v5617 = vunpack.c.h.b16 %v2222
        %v5618 = vunpack.c.l.b16 %v2223
        %v5619 = vunpack.c.h.b16 %v2223
        %v5620 = vunpack.c.l.b16 %v2224
        %v5621 = vunpack.c.h.b16 %v2224
        %v5622 = vunpack.c.l.b16 %v2225
        %v5623 = vunpack.c.h.b16 %v2225
        %v5624 = vunpack.c.l.b16 %v2226
        %v5625 = vunpack.c.h.b16 %v2226
        %v5626 = vunpack.c.l.b16 %v2227
        %v5627 = vunpack.c.h.b16 %v2227
        %v5628 = vunpack.c.l.b16 %v2228
        %v5629 = vunpack.c.h.b16 %v2228
        %v5630 = vunpack.c.l.b16 %v2229
        %v5631 = vunpack.c.h.b16 %v2229
        %v5632 = vunpack.c.l.b16 %v2230
        %v5633 = vunpack.c.h.b16 %v2230
        %v5634 = vunpack.c.l.b16 %v2231
        %v5635 = vunpack.c.h.b16 %v2231
        %v5636 = vunpack.c.l.b16 %v2232
        %v5637 = vunpack.c.h.b16 %v2232
        %v5638 = vunpack.c.l.b16 %v2233
        %v5639 = vunpack.c.h.b16 %v2233
        %v5640 = vunpack.c.l.b16 %v2234
        %v5641 = vunpack.c.h.b16 %v2234
        %v5642 = vunpack.c.l.b16 %v2235
        %v5643 = vunpack.c.h.b16 %v2235
        %v5644 = vunpack.c.l.b16 %v2236
        %v5645 = vunpack.c.h.b16 %v2236
        %v5646 = vunpack.c.l.b16 %v2237
        %v5647 = vunpack.c.h.b16 %v2237
        %v5648 = vunpack.c.l.b16 %v2238
        %v5649 = vunpack.c.h.b16 %v2238
        %v5650 = vunpack.c.l.b16 %v2239
        %v5651 = vunpack.c.h.b16 %v2239
        %v5652 = vunpack.c.l.b16 %v2240
        %v5653 = vunpack.c.h.b16 %v2240
        %v5654 = vunpack.c.l.b16 %v2241
        %v5655 = vunpack.c.h.b16 %v2241
        %v5656 = vunpack.c.l.b16 %v2242
        %v5657 = vunpack.c.h.b16 %v2242
        %v5658 = vunpack.c.l.b16 %v2243
        %v5659 = vunpack.c.h.b16 %v2243
        %v5660 = vunpack.c.l.b16 %v2244
        %v5661 = vunpack.c.h.b16 %v2244
        %v5662 = vunpack.c.l.b16 %v2245
        %v5663 = vunpack.c.h.b16 %v2245
        %v5664 = vunpack.c.l.b16 %v2246
        %v5665 = vunpack.c.h.b16 %v2246
        %v5666 = vunpack.c.l.b16 %v2247
        %v5667 = vunpack.c.h.b16 %v2247
        %v5668 = vunpack.c.l.b16 %v2248
        %v5669 = vunpack.c.h.b16 %v2248
        %v5670 = vunpack.c.l.b16 %v2249
        %v5671 = vunpack.c.h.b16 %v2249
        %v5672 = vunpack.c.l.b16 %v2250
        %v5673 = vunpack.c.h.b16 %v2250
        %v5674 = vunpack.c.l.b16 %v2251
        %v5675 = vunpack.c.h.b16 %v2251
        %v5676 = vunpack.c.l.b16 %v2252
        %v5677 = vunpack.c.h.b16 %v2252
        %v5678 = vunpack.c.l.b16 %v2253
        %v5679 = vunpack.c.h.b16 %v2253
        %v5680 = vunpack.c.l.b16 %v2254
        %v5681 = vunpack.c.h.b16 %v2254
        %v5682 = vunpack.c.l.b16 %v2255
        %v5683 = vunpack.c.h.b16 %v2255
        %v5684 = vunpack.c.l.b16 %v2256
        %v5685 = vunpack.c.h.b16 %v2256
        %v5686 = vunpack.c.l.b16 %v2257
        %v5687 = vunpack.c.h.b16 %v2257
        %v5688 = vunpack.c.l.b16 %v2258
        %v5689 = vunpack.c.h.b16 %v2258
        %v5690 = vunpack.c.l.b16 %v2259
        %v5691 = vunpack.c.h.b16 %v2259
        %v5692 = vunpack.c.l.b16 %v2260
        %v5693 = vunpack.c.h.b16 %v2260
        %v5694 = vunpack.c.l.b16 %v2261
        %v5695 = vunpack.c.h.b16 %v2261
        %v5696 = vunpack.c.l.b16 %v2262
        %v5697 = vunpack.c.h.b16 %v2262
        %v5698 = vunpack.c.l.b16 %v2263
        %v5699 = vunpack.c.h.b16 %v2263
        %v5700 = vunpack.c.l.b16 %v2264
        %v5701 = vunpack.c.h.b16 %v2264
        %v5702 = vunpack.c.l.b16 %v2265
        %v5703 = vunpack.c.h.b16 %v2265
        %v5704 = vunpack.c.l.b16 %v2266
        %v5705 = vunpack.c.h.b16 %v2266
        %v5706 = vunpack.c.l.b16 %v2267
        %v5707 = vunpack.c.h.b16 %v2267
        %v5708 = vunpack.c.l.b16 %v2268
        %v5709 = vunpack.c.h.b16 %v2268
        %v5710 = vunpack.c.l.b16 %v2269
        %v5711 = vunpack.c.h.b16 %v2269
        %v5712 = vunpack.c.l.b16 %v2270
        %v5713 = vunpack.c.h.b16 %v2270
        %v5714 = vunpack.c.l.b16 %v2271
        %v5715 = vunpack.c.h.b16 %v2271
        %v5716 = vunpack.c.l.b16 %v2272
        %v5717 = vunpack.c.h.b16 %v2272
        %v5718 = vunpack.c.l.b16 %v2273
        %v5719 = vunpack.c.h.b16 %v2273
        %v5720 = vunpack.c.l.b16 %v2274
        %v5721 = vunpack.c.h.b16 %v2274
        %v5722 = vunpack.c.l.b16 %v2275
        %v5723 = vunpack.c.h.b16 %v2275
        %v5724 = vunpack.c.l.b16 %v2276
        %v5725 = vunpack.c.h.b16 %v2276
        %v5726 = vunpack.c.l.b16 %v2277
        %v5727 = vunpack.c.h.b16 %v2277
        %v5728 = vunpack.c.l.b16 %v2278
        %v5729 = vunpack.c.h.b16 %v2278
        %v5730 = vunpack.c.l.b16 %v2279
        %v5731 = vunpack.c.h.b16 %v2279
        %v5732 = vunpack.c.l.b16 %v2280
        %v5733 = vunpack.c.h.b16 %v2280
        %v5734 = vunpack.c.l.b16 %v2281
        %v5735 = vunpack.c.h.b16 %v2281
        %v5736 = vunpack.c.l.b16 %v2282
        %v5737 = vunpack.c.h.b16 %v2282
        %v5738 = vunpack.c.l.b16 %v2283
        %v5739 = vunpack.c.h.b16 %v2283
        %v5740 = vunpack.c.l.b16 %v2284
        %v5741 = vunpack.c.h.b16 %v2284
        %v5742 = vunpack.c.l.b16 %v2285
        %v5743 = vunpack.c.h.b16 %v2285
        %v5744 = vunpack.c.l.b16 %v2286
        %v5745 = vunpack.c.h.b16 %v2286
        %v5746 = vunpack.c.l.b16 %v2287
        %v5747 = vunpack.c.h.b16 %v2287
        %v5748 = vunpack.c.l.b16 %v2288
        %v5749 = vunpack.c.h.b16 %v2288
        %v5750 = vunpack.c.l.b16 %v2289
        %v5751 = vunpack.c.h.b16 %v2289
        %v5752 = vunpack.c.l.b16 %v2290
        %v5753 = vunpack.c.h.b16 %v2290
        %v5754 = vunpack.c.l.b16 %v2291
        %v5755 = vunpack.c.h.b16 %v2291
        %v5756 = vunpack.c.l.b16 %v2292
        %v5757 = vunpack.c.h.b16 %v2292
        %v5758 = vunpack.c.l.b16 %v2293
        %v5759 = vunpack.c.h.b16 %v2293
        %v5760 = vunpack.c.l.b16 %v2294
        %v5761 = vunpack.c.h.b16 %v2294
        %v5762 = vunpack.c.l.b16 %v2295
        %v5763 = vunpack.c.h.b16 %v2295
        %v5764 = vunpack.c.l.b16 %v2296
        %v5765 = vunpack.c.h.b16 %v2296
        %v5766 = vunpack.c.l.b16 %v2297
        %v5767 = vunpack.c.h.b16 %v2297
        %v5768 = vunpack.c.l.b16 %v2298
        %v5769 = vunpack.c.h.b16 %v2298
        %v5770 = vunpack.c.l.b16 %v2299
        %v5771 = vunpack.c.h.b16 %v2299
        %v5772 = vunpack.c.l.b16 %v2300
        %v5773 = vunpack.c.h.b16 %v2300
        %v5774 = vunpack.c.l.b16 %v2301
        %v5775 = vunpack.c.h.b16 %v2301
        %v5776 = vunpack.c.l.b16 %v2302
        %v5777 = vunpack.c.h.b16 %v2302
        %v5778 = vunpack.c.l.b16 %v2303
        %v5779 = vunpack.c.h.b16 %v2303
        %v5780 = vunpack.c.l.b16 %v2304
        %v5781 = vunpack.c.h.b16 %v2304
        %v5782 = vunpack.c.l.b16 %v2305
        %v5783 = vunpack.c.h.b16 %v2305
        %v5784 = vunpack.c.l.b16 %v2306
        %v5785 = vunpack.c.h.b16 %v2306
        %v5786 = vunpack.c.l.b16 %v2307
        %v5787 = vunpack.c.h.b16 %v2307
        %v5788 = vunpack.c.l.b16 %v2308
        %v5789 = vunpack.c.h.b16 %v2308
        %v5790 = vunpack.c.l.b16 %v2309
        %v5791 = vunpack.c.h.b16 %v2309
        %v5792 = vunpack.c.l.b16 %v2310
        %v5793 = vunpack.c.h.b16 %v2310
        %v5794 = vunpack.c.l.b16 %v2311
        %v5795 = vunpack.c.h.b16 %v2311
        %v5796 = vunpack.c.l.b16 %v2312
        %v5797 = vunpack.c.h.b16 %v2312
        %v5798 = vunpack.c.l.b16 %v2313
        %v5799 = vunpack.c.h.b16 %v2313
        %v5800 = vunpack.c.l.b16 %v2314
        %v5801 = vunpack.c.h.b16 %v2314
        %v5802 = vunpack.c.l.b16 %v2315
        %v5803 = vunpack.c.h.b16 %v2315
        %v5804 = vunpack.c.l.b16 %v2316
        %v5805 = vunpack.c.h.b16 %v2316
        %v5806 = vunpack.c.l.b16 %v2317
        %v5807 = vunpack.c.h.b16 %v2317
        %v5808 = vunpack.c.l.b16 %v2318
        %v5809 = vunpack.c.h.b16 %v2318
        %v5810 = vunpack.c.l.b16 %v2319
        %v5811 = vunpack.c.h.b16 %v2319
        %v5812 = vunpack.c.l.b16 %v2320
        %v5813 = vunpack.c.h.b16 %v2320
        %v5814 = vunpack.c.l.b16 %v2321
        %v5815 = vunpack.c.h.b16 %v2321
        %v5816 = vunpack.c.l.b16 %v2322
        %v5817 = vunpack.c.h.b16 %v2322
        %v5818 = vunpack.c.l.b16 %v2323
        %v5819 = vunpack.c.h.b16 %v2323
        %v5820 = vunpack.c.l.b16 %v2324
        %v5821 = vunpack.c.h.b16 %v2324
        %v5822 = vunpack.c.l.b16 %v2325
        %v5823 = vunpack.c.h.b16 %v2325
        %v5824 = vunpack.c.l.b16 %v2326
        %v5825 = vunpack.c.h.b16 %v2326
        %v5826 = vunpack.c.l.b16 %v2327
        %v5827 = vunpack.c.h.b16 %v2327
        %v5828 = vunpack.c.l.b16 %v2328
        %v5829 = vunpack.c.h.b16 %v2328
        %v5830 = vunpack.c.l.b16 %v2329
        %v5831 = vunpack.c.h.b16 %v2329
        %v5832 = vunpack.c.l.b16 %v2330
        %v5833 = vunpack.c.h.b16 %v2330
        %v5834 = vunpack.c.l.b16 %v2331
        %v5835 = vunpack.c.h.b16 %v2331
        %v5836 = vunpack.c.l.b16 %v2332
        %v5837 = vunpack.c.h.b16 %v2332
        %v5838 = vunpack.c.l.b16 %v2333
        %v5839 = vunpack.c.h.b16 %v2333
        %v5840 = vunpack.c.l.b16 %v2334
        %v5841 = vunpack.c.h.b16 %v2334
        %v5842 = vunpack.c.l.b16 %v2335
        %v5843 = vunpack.c.h.b16 %v2335
        %v5844 = vunpack.c.l.b16 %v2336
        %v5845 = vunpack.c.h.b16 %v2336
        %v5846 = vunpack.c.l.b16 %v2337
        %v5847 = vunpack.c.h.b16 %v2337
        %v5848 = vunpack.c.l.b16 %v2338
        %v5849 = vunpack.c.h.b16 %v2338
        %v5850 = vunpack.c.l.b16 %v2339
        %v5851 = vunpack.c.h.b16 %v2339
        %v5852 = vunpack.c.l.b16 %v2340
        %v5853 = vunpack.c.h.b16 %v2340
        %v5854 = vunpack.c.l.b16 %v2341
        %v5855 = vunpack.c.h.b16 %v2341
        %v5856 = vunpack.c.l.b16 %v2342
        %v5857 = vunpack.c.h.b16 %v2342
        %v5858 = vunpack.c.l.b16 %v2343
        %v5859 = vunpack.c.h.b16 %v2343
        %v5860 = vunpack.c.l.b16 %v2344
        %v5861 = vunpack.c.h.b16 %v2344
        %v5862 = vunpack.c.l.b16 %v2345
        %v5863 = vunpack.c.h.b16 %v2345
        %v5864 = vunpack.c.l.b16 %v2346
        %v5865 = vunpack.c.h.b16 %v2346
        %v5866 = vunpack.c.l.b16 %v2347
        %v5867 = vunpack.c.h.b16 %v2347
        %v5868 = vpack.c.b16 %v3576, %v3564
        %v5869 = vpack.c.b16 %v3577, %v3565
        %v5870 = vpack.c.b16 %v3578, %v3566
        %v5871 = vpack.c.b16 %v3579, %v3567
        %v5872 = vpack.c.b16 %v3580, %v3568
        %v5873 = vpack.c.b16 %v3581, %v3569
        %v5874 = vpack.c.b16 %v3582, %v3570
        %v5875 = vpack.c.b16 %v3583, %v3571
        %v5876 = vpack.c.b16 %v3584, %v3572
        %v5877 = vpack.c.b16 %v3585, %v3573
        %v5878 = vpack.c.b16 %v3586, %v3574
        %v5879 = vpack.c.b16 %v3587, %v3575
        %v5880 = vpack.c.b16 %v3600, %v3588
        %v5881 = vpack.c.b16 %v3601, %v3589
        %v5882 = vpack.c.b16 %v3602, %v3590
        %v5883 = vpack.c.b16 %v3603, %v3591
        %v5884 = vpack.c.b16 %v3604, %v3592
        %v5885 = vpack.c.b16 %v3605, %v3593
        %v5886 = vpack.c.b16 %v3606, %v3594
        %v5887 = vpack.c.b16 %v3607, %v3595
        %v5888 = vpack.c.b16 %v3608, %v3596
        %v5889 = vpack.c.b16 %v3609, %v3597
        %v5890 = vpack.c.b16 %v3610, %v3598
        %v5891 = vpack.c.b16 %v3611, %v3599
        %v5892 = vpack.c.b16 %v3624, %v3612
        %v5893 = vpack.c.b16 %v3625, %v3613
        %v5894 = vpack.c.b16 %v3626, %v3614
        %v5895 = vpack.c.b16 %v3627, %v3615
        %v5896 = vpack.c.b16 %v3628, %v3616
        %v5897 = vpack.c.b16 %v3629, %v3617
        %v5898 = vpack.c.b16 %v3630, %v3618
        %v5899 = vpack.c.b16 %v3631, %v3619
        %v5900 = vpack.c.b16 %v3632, %v3620
        %v5901 = vpack.c.b16 %v3633, %v3621
        %v5902 = vpack.c.b16 %v3634, %v3622
        %v5903 = vpack.c.b16 %v3635, %v3623
        %v5904 = vpack.c.b16 %v3648, %v3636
        %v5905 = vpack.c.b16 %v3649, %v3637
        %v5906 = vpack.c.b16 %v3650, %v3638
        %v5907 = vpack.c.b16 %v3651, %v3639
        %v5908 = vpack.c.b16 %v3652, %v3640
        %v5909 = vpack.c.b16 %v3653, %v3641
        %v5910 = vpack.c.b16 %v3654, %v3642
        %v5911 = vpack.c.b16 %v3655, %v3643
        %v5912 = vpack.c.b16 %v3656, %v3644
        %v5913 = vpack.c.b16 %v3657, %v3645
        %v5914 = vpack.c.b16 %v3658, %v3646
        %v5915 = vpack.c.b16 %v3659, %v3647
        %v5916 = vpack.c.b16 %v3672, %v3660
        %v5917 = vpack.c.b16 %v3673, %v3661
        %v5918 = vpack.c.b16 %v3674, %v3662
        %v5919 = vpack.c.b16 %v3675, %v3663
        %v5920 = vpack.c.b16 %v3676, %v3664
        %v5921 = vpack.c.b16 %v3677, %v3665
        %v5922 = vpack.c.b16 %v3678, %v3666
        %v5923 = vpack.c.b16 %v3679, %v3667
        %v5924 = vpack.c.b16 %v3680, %v3668
        %v5925 = vpack.c.b16 %v3681, %v3669
        %v5926 = vpack.c.b16 %v3682, %v3670
        %v5927 = vpack.c.b16 %v3683, %v3671
        %v5928 = vpack.c.b16 %v3696, %v3684
        %v5929 = vpack.c.b16 %v3697, %v3685
        %v5930 = vpack.c.b16 %v3698, %v3686
        %v5931 = vpack.c.b16 %v3699, %v3687
        %v5932 = vpack.c.b16 %v3700, %v3688
        %v5933 = vpack.c.b16 %v3701, %v3689
        %v5934 = vpack.c.b16 %v3702, %v3690
        %v5935 = vpack.c.b16 %v3703, %v3691
        %v5936 = vpack.c.b16 %v3704, %v3692
        %v5937 = vpack.c.b16 %v3705, %v3693
        %v5938 = vpack.c.b16 %v3706, %v3694
        %v5939 = vpack.c.b16 %v3707, %v3695
        %v5940 = vpack.c.b16 %v3720, %v3708
        %v5941 = vpack.c.b16 %v3721, %v3709
        %v5942 = vpack.c.b16 %v3722, %v3710
        %v5943 = vpack.c.b16 %v3723, %v3711
        %v5944 = vpack.c.b16 %v3724, %v3712
        %v5945 = vpack.c.b16 %v3725, %v3713
        %v5946 = vpack.c.b16 %v3726, %v3714
        %v5947 = vpack.c.b16 %v3727, %v3715
        %v5948 = vpack.c.b16 %v3728, %v3716
        %v5949 = vpack.c.b16 %v3729, %v3717
        %v5950 = vpack.c.b16 %v3730, %v3718
        %v5951 = vpack.c.b16 %v3731, %v3719
        %v5952 = vpack.c.b16 %v3744, %v3732
        %v5953 = vpack.c.b16 %v3745, %v3733
        %v5954 = vpack.c.b16 %v3746, %v3734
        %v5955 = vpack.c.b16 %v3747, %v3735
        %v5956 = vpack.c.b16 %v3748, %v3736
        %v5957 = vpack.c.b16 %v3749, %v3737
        %v5958 = vpack.c.b16 %v3750, %v3738
        %v5959 = vpack.c.b16 %v3751, %v3739
        %v5960 = vpack.c.b16 %v3752, %v3740
        %v5961 = vpack.c.b16 %v3753, %v3741
        %v5962 = vpack.c.b16 %v3754, %v3742
        %v5963 = vpack.c.b16 %v3755, %v3743
        %v5964 = vpack.c.b16 %v3768, %v3756
        %v5965 = vpack.c.b16 %v3769, %v3757
        %v5966 = vpack.c.b16 %v3770, %v3758
        %v5967 = vpack.c.b16 %v3771, %v3759
        %v5968 = vpack.c.b16 %v3772, %v3760
        %v5969 = vpack.c.b16 %v3773, %v3761
        %v5970 = vpack.c.b16 %v3774, %v3762
        %v5971 = vpack.c.b16 %v3775, %v3763
        %v5972 = vpack.c.b16 %v3776, %v3764
        %v5973 = vpack.c.b16 %v3777, %v3765
        %v5974 = vpack.c.b16 %v3778, %v3766
        %v5975 = vpack.c.b16 %v3779, %v3767
        %v5976 = vpack.c.b16 %v3792, %v3780
        %v5977 = vpack.c.b16 %v3793, %v3781
        %v5978 = vpack.c.b16 %v3794, %v3782
        %v5979 = vpack.c.b16 %v3795, %v3783
        %v5980 = vpack.c.b16 %v3796, %v3784
        %v5981 = vpack.c.b16 %v3797, %v3785
        %v5982 = vpack.c.b16 %v3798, %v3786
        %v5983 = vpack.c.b16 %v3799, %v3787
        %v5984 = vpack.c.b16 %v3800, %v3788
        %v5985 = vpack.c.b16 %v3801, %v3789
        %v5986 = vpack.c.b16 %v3802, %v3790
        %v5987 = vpack.c.b16 %v3803, %v3791
        %v5988 = vpack.c.b16 %v3816, %v3804
        %v5989 = vpack.c.b16 %v3817, %v3805
        %v5990 = vpack.c.b16 %v3818, %v3806
        %v5991 = vpack.c.b16 %v3819, %v3807
        %v5992 = vpack.c.b16 %v3820, %v3808
        %v5993 = vpack.c.b16 %v3821, %v3809
        %v5994 = vpack.c.b16 %v3822, %v3810
        %v5995 = vpack.c.b16 %v3823, %v3811
        %v5996 = vpack.c.b16 %v3824, %v3812
        %v5997 = vpack.c.b16 %v3825, %v3813
        %v5998 = vpack.c.b16 %v3826, %v3814
        %v5999 = vpack.c.b16 %v3827, %v3815
        %v6000 = vpack.c.b16 %v3840, %v3828
        %v6001 = vpack.c.b16 %v3841, %v3829
        %v6002 = vpack.c.b16 %v3842, %v3830
        %v6003 = vpack.c.b16 %v3843, %v3831
        %v6004 = vpack.c.b16 %v3844, %v3832
        %v6005 = vpack.c.b16 %v3845, %v3833
        %v6006 = vpack.c.b16 %v3846, %v3834
        %v6007 = vpack.c.b16 %v3847, %v3835
        %v6008 = vpack.c.b16 %v3848, %v3836
        %v6009 = vpack.c.b16 %v3849, %v3837
        %v6010 = vpack.c.b16 %v3850, %v3838
        %v6011 = vpack.c.b16 %v3851, %v3839
        %v6012 = vpack.c.b16 %v3864, %v3852
        %v6013 = vpack.c.b16 %v3865, %v3853
        %v6014 = vpack.c.b16 %v3866, %v3854
        %v6015 = vpack.c.b16 %v3867, %v3855
        %v6016 = vpack.c.b16 %v3868, %v3856
        %v6017 = vpack.c.b16 %v3869, %v3857
        %v6018 = vpack.c.b16 %v3870, %v3858
        %v6019 = vpack.c.b16 %v3871, %v3859
        %v6020 = vpack.c.b16 %v3872, %v3860
        %v6021 = vpack.c.b16 %v3873, %v3861
        %v6022 = vpack.c.b16 %v3874, %v3862
        %v6023 = vpack.c.b16 %v3875, %v3863
        %v6024 = vpack.c.b16 %v3888, %v3876
        %v6025 = vpack.c.b16 %v3889, %v3877
        %v6026 = vpack.c.b16 %v3890, %v3878
        %v6027 = vpack.c.b16 %v3891, %v3879
        %v6028 = vpack.c.b16 %v3892, %v3880
        %v6029 = vpack.c.b16 %v3893, %v3881
        %v6030 = vpack.c.b16 %v3894, %v3882
        %v6031 = vpack.c.b16 %v3895, %v3883
        %v6032 = vpack.c.b16 %v3896, %v3884
        %v6033 = vpack.c.b16 %v3897, %v3885
        %v6034 = vpack.c.b16 %v3898, %v3886
        %v6035 = vpack.c.b16 %v3899, %v3887
        %v6036 = vpack.c.b16 %v3912, %v3900
        %v6037 = vpack.c.b16 %v3913, %v3901
        %v6038 = vpack.c.b16 %v3914, %v3902
        %v6039 = vpack.c.b16 %v3915, %v3903
        %v6040 = vpack.c.b16 %v3916, %v3904
        %v6041 = vpack.c.b16 %v3917, %v3905
        %v6042 = vpack.c.b16 %v3918, %v3906
        %v6043 = vpack.c.b16 %v3919, %v3907
        %v6044 = vpack.c.b16 %v3920, %v3908
        %v6045 = vpack.c.b16 %v3921, %v3909
        %v6046 = vpack.c.b16 %v3922, %v3910
        %v6047 = vpack.c.b16 %v3923, %v3911
        %v6048 = vpack.c.b16 %v3936, %v3924
        %v6049 = vpack.c.b16 %v3937, %v3925
        %v6050 = vpack.c.b16 %v3938, %v3926
        %v6051 = vpack.c.b16 %v3939, %v3927
        %v6052 = vpack.c.b16 %v3940, %v3928
        %v6053 = vpack.c.b16 %v3941, %v3929
        %v6054 = vpack.c.b16 %v3942, %v3930
        %v6055 = vpack.c.b16 %v3943, %v3931
        %v6056 = vpack.c.b16 %v3944, %v3932
        %v6057 = vpack.c.b16 %v3945, %v3933
        %v6058 = vpack.c.b16 %v3946, %v3934
        %v6059 = vpack.c.b16 %v3947, %v3935
        %v6060 = vpack.c.b16 %v3960, %v3948
        %v6061 = vpack.c.b16 %v3961, %v3949
        %v6062 = vpack.c.b16 %v3962, %v3950
        %v6063 = vpack.c.b16 %v3963, %v3951
        %v6064 = vpack.c.b16 %v3964, %v3952
        %v6065 = vpack.c.b16 %v3965, %v3953
        %v6066 = vpack.c.b16 %v3966, %v3954
        %v6067 = vpack.c.b16 %v3967, %v3955
        %v6068 = vpack.c.b16 %v3968, %v3956
        %v6069 = vpack.c.b16 %v3969, %v3957
        %v6070 = vpack.c.b16 %v3970, %v3958
        %v6071 = vpack.c.b16 %v3971, %v3959
        %v6072 = vpack.c.b16 %v3984, %v3972
        %v6073 = vpack.c.b16 %v3985, %v3973
        %v6074 = vpack.c.b16 %v3986, %v3974
        %v6075 = vpack.c.b16 %v3987, %v3975
        %v6076 = vpack.c.b16 %v3988, %v3976
        %v6077 = vpack.c.b16 %v3989, %v3977
        %v6078 = vpack.c.b16 %v3990, %v3978
        %v6079 = vpack.c.b16 %v3991, %v3979
        %v6080 = vpack.c.b16 %v3992, %v3980
        %v6081 = vpack.c.b16 %v3993, %v3981
        %v6082 = vpack.c.b16 %v3994, %v3982
        %v6083 = vpack.c.b16 %v3995, %v3983
        %v6084 = vpack.c.b16 %v4008, %v3996
        %v6085 = vpack.c.b16 %v4009, %v3997
        %v6086 = vpack.c.b16 %v4010, %v3998
        %v6087 = vpack.c.b16 %v4011, %v3999
        %v6088 = vpack.c.b16 %v4012, %v4000
        %v6089 = vpack.c.b16 %v4013, %v4001
        %v6090 = vpack.c.b16 %v4014, %v4002
        %v6091 = vpack.c.b16 %v4015, %v4003
        %v6092 = vpack.c.b16 %v4016, %v4004
        %v6093 = vpack.c.b16 %v4017, %v4005
        %v6094 = vpack.c.b16 %v4018, %v4006
        %v6095 = vpack.c.b16 %v4019, %v4007
        %v6096 = vpack.c.b16 %v4032, %v4020
        %v6097 = vpack.c.b16 %v4033, %v4021
        %v6098 = vpack.c.b16 %v4034, %v4022
        %v6099 = vpack.c.b16 %v4035, %v4023
        %v6100 = vpack.c.b16 %v4036, %v4024
        %v6101 = vpack.c.b16 %v4037, %v4025
        %v6102 = vpack.c.b16 %v4038, %v4026
        %v6103 = vpack.c.b16 %v4039, %v4027
        %v6104 = vpack.c.b16 %v4040, %v4028
        %v6105 = vpack.c.b16 %v4041, %v4029
        %v6106 = vpack.c.b16 %v4042, %v4030
        %v6107 = vpack.c.b16 %v4043, %v4031
        %v6108 = vpack.c.b16 %v4056, %v4044
        %v6109 = vpack.c.b16 %v4057, %v4045
        %v6110 = vpack.c.b16 %v4058, %v4046
        %v6111 = vpack.c.b16 %v4059, %v4047
        %v6112 = vpack.c.b16 %v4060, %v4048
        %v6113 = vpack.c.b16 %v4061, %v4049
        %v6114 = vpack.c.b16 %v4062, %v4050
        %v6115 = vpack.c.b16 %v4063, %v4051
        %v6116 = vpack.c.b16 %v4064, %v4052
        %v6117 = vpack.c.b16 %v4065, %v4053
        %v6118 = vpack.c.b16 %v4066, %v4054
        %v6119 = vpack.c.b16 %v4067, %v4055
        %v6120 = vpack.c.b16 %v4080, %v4068
        %v6121 = vpack.c.b16 %v4081, %v4069
        %v6122 = vpack.c.b16 %v4082, %v4070
        %v6123 = vpack.c.b16 %v4083, %v4071
        %v6124 = vpack.c.b16 %v4084, %v4072
        %v6125 = vpack.c.b16 %v4085, %v4073
        %v6126 = vpack.c.b16 %v4086, %v4074
        %v6127 = vpack.c.b16 %v4087, %v4075
        %v6128 = vpack.c.b16 %v4088, %v4076
        %v6129 = vpack.c.b16 %v4089, %v4077
        %v6130 = vpack.c.b16 %v4090, %v4078
        %v6131 = vpack.c.b16 %v4091, %v4079
        %v6132 = vpack.c.b16 %v4104, %v4092
        %v6133 = vpack.c.b16 %v4105, %v4093
        %v6134 = vpack.c.b16 %v4106, %v4094
        %v6135 = vpack.c.b16 %v4107, %v4095
        %v6136 = vpack.c.b16 %v4108, %v4096
        %v6137 = vpack.c.b16 %v4109, %v4097
        %v6138 = vpack.c.b16 %v4110, %v4098
        %v6139 = vpack.c.b16 %v4111, %v4099
        %v6140 = vpack.c.b16 %v4112, %v4100
        %v6141 = vpack.c.b16 %v4113, %v4101
        %v6142 = vpack.c.b16 %v4114, %v4102
        %v6143 = vpack.c.b16 %v4115, %v4103
        %v6144 = vpack.c.b16 %v4128, %v4116
        %v6145 = vpack.c.b16 %v4129, %v4117
        %v6146 = vpack.c.b16 %v4130, %v4118
        %v6147 = vpack.c.b16 %v4131, %v4119
        %v6148 = vpack.c.b16 %v4132, %v4120
        %v6149 = vpack.c.b16 %v4133, %v4121
        %v6150 = vpack.c.b16 %v4134, %v4122
        %v6151 = vpack.c.b16 %v4135, %v4123
        %v6152 = vpack.c.b16 %v4136, %v4124
        %v6153 = vpack.c.b16 %v4137, %v4125
        %v6154 = vpack.c.b16 %v4138, %v4126
        %v6155 = vpack.c.b16 %v4139, %v4127
        %v6156 = vpack.c.b16 %v4152, %v4140
        %v6157 = vpack.c.b16 %v4153, %v4141
        %v6158 = vpack.c.b16 %v4154, %v4142
        %v6159 = vpack.c.b16 %v4155, %v4143
        %v6160 = vpack.c.b16 %v4156, %v4144
        %v6161 = vpack.c.b16 %v4157, %v4145
        %v6162 = vpack.c.b16 %v4158, %v4146
        %v6163 = vpack.c.b16 %v4159, %v4147
        %v6164 = vpack.c.b16 %v4160, %v4148
        %v6165 = vpack.c.b16 %v4161, %v4149
        %v6166 = vpack.c.b16 %v4162, %v4150
        %v6167 = vpack.c.b16 %v4163, %v4151
        %v6168 = vpack.c.b16 %v4176, %v4164
        %v6169 = vpack.c.b16 %v4177, %v4165
        %v6170 = vpack.c.b16 %v4178, %v4166
        %v6171 = vpack.c.b16 %v4179, %v4167
        %v6172 = vpack.c.b16 %v4180, %v4168
        %v6173 = vpack.c.b16 %v4181, %v4169
        %v6174 = vpack.c.b16 %v4182, %v4170
        %v6175 = vpack.c.b16 %v4183, %v4171
        %v6176 = vpack.c.b16 %v4184, %v4172
        %v6177 = vpack.c.b16 %v4185, %v4173
        %v6178 = vpack.c.b16 %v4186, %v4174
        %v6179 = vpack.c.b16 %v4187, %v4175
        %v6180 = vpack.c.b16 %v4200, %v4188
        %v6181 = vpack.c.b16 %v4201, %v4189
        %v6182 = vpack.c.b16 %v4202, %v4190
        %v6183 = vpack.c.b16 %v4203, %v4191
        %v6184 = vpack.c.b16 %v4204, %v4192
        %v6185 = vpack.c.b16 %v4205, %v4193
        %v6186 = vpack.c.b16 %v4206, %v4194
        %v6187 = vpack.c.b16 %v4207, %v4195
        %v6188 = vpack.c.b16 %v4208, %v4196
        %v6189 = vpack.c.b16 %v4209, %v4197
        %v6190 = vpack.c.b16 %v4210, %v4198
        %v6191 = vpack.c.b16 %v4211, %v4199
        %v6192 = vpack.c.b16 %v4224, %v4212
        %v6193 = vpack.c.b16 %v4225, %v4213
        %v6194 = vpack.c.b16 %v4226, %v4214
        %v6195 = vpack.c.b16 %v4227, %v4215
        %v6196 = vpack.c.b16 %v4228, %v4216
        %v6197 = vpack.c.b16 %v4229, %v4217
        %v6198 = vpack.c.b16 %v4230, %v4218
        %v6199 = vpack.c.b16 %v4231, %v4219
        %v6200 = vpack.c.b16 %v4232, %v4220
        %v6201 = vpack.c.b16 %v4233, %v4221
        %v6202 = vpack.c.b16 %v4234, %v4222
        %v6203 = vpack.c.b16 %v4235, %v4223
        %v6204 = vpack.c.b16 %v4248, %v4236
        %v6205 = vpack.c.b16 %v4249, %v4237
        %v6206 = vpack.c.b16 %v4250, %v4238
        %v6207 = vpack.c.b16 %v4251, %v4239
        %v6208 = vpack.c.b16 %v4252, %v4240
        %v6209 = vpack.c.b16 %v4253, %v4241
        %v6210 = vpack.c.b16 %v4254, %v4242
        %v6211 = vpack.c.b16 %v4255, %v4243
        %v6212 = vpack.c.b16 %v4256, %v4244
        %v6213 = vpack.c.b16 %v4257, %v4245
        %v6214 = vpack.c.b16 %v4258, %v4246
        %v6215 = vpack.c.b16 %v4259, %v4247
        %v6216 = vpack.c.b16 %v4272, %v4260
        %v6217 = vpack.c.b16 %v4273, %v4261
        %v6218 = vpack.c.b16 %v4274, %v4262
        %v6219 = vpack.c.b16 %v4275, %v4263
        %v6220 = vpack.c.b16 %v4276, %v4264
        %v6221 = vpack.c.b16 %v4277, %v4265
        %v6222 = vpack.c.b16 %v4278, %v4266
        %v6223 = vpack.c.b16 %v4279, %v4267
        %v6224 = vpack.c.b16 %v4280, %v4268
        %v6225 = vpack.c.b16 %v4281, %v4269
        %v6226 = vpack.c.b16 %v4282, %v4270
        %v6227 = vpack.c.b16 %v4283, %v4271
        %v6228 = vpack.c.b16 %v4296, %v4284
        %v6229 = vpack.c.b16 %v4297, %v4285
        %v6230 = vpack.c.b16 %v4298, %v4286
        %v6231 = vpack.c.b16 %v4299, %v4287
        %v6232 = vpack.c.b16 %v4300, %v4288
        %v6233 = vpack.c.b16 %v4301, %v4289
        %v6234 = vpack.c.b16 %v4302, %v4290
        %v6235 = vpack.c.b16 %v4303, %v4291
        %v6236 = vpack.c.b16 %v4304, %v4292
        %v6237 = vpack.c.b16 %v4305, %v4293
        %v6238 = vpack.c.b16 %v4306, %v4294
        %v6239 = vpack.c.b16 %v4307, %v4295
        %v6240 = vpack.c.b16 %v4320, %v4308
        %v6241 = vpack.c.b16 %v4321, %v4309
        %v6242 = vpack.c.b16 %v4322, %v4310
        %v6243 = vpack.c.b16 %v4323, %v4311
        %v6244 = vpack.c.b16 %v4324, %v4312
        %v6245 = vpack.c.b16 %v4325, %v4313
        %v6246 = vpack.c.b16 %v4326, %v4314
        %v6247 = vpack.c.b16 %v4327, %v4315
        %v6248 = vpack.c.b16 %v4328, %v4316
        %v6249 = vpack.c.b16 %v4329, %v4317
        %v6250 = vpack.c.b16 %v4330, %v4318
        %v6251 = vpack.c.b16 %v4331, %v4319
        %v6252 = vpack.c.b16 %v4344, %v4332
        %v6253 = vpack.c.b16 %v4345, %v4333
        %v6254 = vpack.c.b16 %v4346, %v4334
        %v6255 = vpack.c.b16 %v4347, %v4335
        %v6256 = vpack.c.b16 %v4348, %v4336
        %v6257 = vpack.c.b16 %v4349, %v4337
        %v6258 = vpack.c.b16 %v4350, %v4338
        %v6259 = vpack.c.b16 %v4351, %v4339
        %v6260 = vpack.c.b16 %v4352, %v4340
        %v6261 = vpack.c.b16 %v4353, %v4341
        %v6262 = vpack.c.b16 %v4354, %v4342
        %v6263 = vpack.c.b16 %v4355, %v4343
        %v6264 = vpack.c.b16 %v4368, %v4356
        %v6265 = vpack.c.b16 %v4369, %v4357
        %v6266 = vpack.c.b16 %v4370, %v4358
        %v6267 = vpack.c.b16 %v4371, %v4359
        %v6268 = vpack.c.b16 %v4372, %v4360
        %v6269 = vpack.c.b16 %v4373, %v4361
        %v6270 = vpack.c.b16 %v4374, %v4362
        %v6271 = vpack.c.b16 %v4375, %v4363
        %v6272 = vpack.c.b16 %v4376, %v4364
        %v6273 = vpack.c.b16 %v4377, %v4365
        %v6274 = vpack.c.b16 %v4378, %v4366
        %v6275 = vpack.c.b16 %v4379, %v4367
        %v6276 = vpack.c.b16 %v4392, %v4380
        %v6277 = vpack.c.b16 %v4393, %v4381
        %v6278 = vpack.c.b16 %v4394, %v4382
        %v6279 = vpack.c.b16 %v4395, %v4383
        %v6280 = vpack.c.b16 %v4396, %v4384
        %v6281 = vpack.c.b16 %v4397, %v4385
        %v6282 = vpack.c.b16 %v4398, %v4386
        %v6283 = vpack.c.b16 %v4399, %v4387
        %v6284 = vpack.c.b16 %v4400, %v4388
        %v6285 = vpack.c.b16 %v4401, %v4389
        %v6286 = vpack.c.b16 %v4402, %v4390
        %v6287 = vpack.c.b16 %v4403, %v4391
        %v6288 = vpack.c.b16 %v4416, %v4404
        %v6289 = vpack.c.b16 %v4417, %v4405
        %v6290 = vpack.c.b16 %v4418, %v4406
        %v6291 = vpack.c.b16 %v4419, %v4407
        %v6292 = vpack.c.b16 %v4420, %v4408
        %v6293 = vpack.c.b16 %v4421, %v4409
        %v6294 = vpack.c.b16 %v4422, %v4410
        %v6295 = vpack.c.b16 %v4423, %v4411
        %v6296 = vpack.c.b16 %v4424, %v4412
        %v6297 = vpack.c.b16 %v4425, %v4413
        %v6298 = vpack.c.b16 %v4426, %v4414
        %v6299 = vpack.c.b16 %v4427, %v4415
        %v6300 = vpack.c.b16 %v4440, %v4428
        %v6301 = vpack.c.b16 %v4441, %v4429
        %v6302 = vpack.c.b16 %v4442, %v4430
        %v6303 = vpack.c.b16 %v4443, %v4431
        %v6304 = vpack.c.b16 %v4444, %v4432
        %v6305 = vpack.c.b16 %v4445, %v4433
        %v6306 = vpack.c.b16 %v4446, %v4434
        %v6307 = vpack.c.b16 %v4447, %v4435
        %v6308 = vpack.c.b16 %v4448, %v4436
        %v6309 = vpack.c.b16 %v4449, %v4437
        %v6310 = vpack.c.b16 %v4450, %v4438
        %v6311 = vpack.c.b16 %v4451, %v4439
        %v6312 = vpack.c.b16 %v4464, %v4452
        %v6313 = vpack.c.b16 %v4465, %v4453
        %v6314 = vpack.c.b16 %v4466, %v4454
        %v6315 = vpack.c.b16 %v4467, %v4455
        %v6316 = vpack.c.b16 %v4468, %v4456
        %v6317 = vpack.c.b16 %v4469, %v4457
        %v6318 = vpack.c.b16 %v4470, %v4458
        %v6319 = vpack.c.b16 %v4471, %v4459
        %v6320 = vpack.c.b16 %v4472, %v4460
        %v6321 = vpack.c.b16 %v4473, %v4461
        %v6322 = vpack.c.b16 %v4474, %v4462
        %v6323 = vpack.c.b16 %v4475, %v4463
        %v6324 = vpack.c.b16 %v4488, %v4476
        %v6325 = vpack.c.b16 %v4489, %v4477
        %v6326 = vpack.c.b16 %v4490, %v4478
        %v6327 = vpack.c.b16 %v4491, %v4479
        %v6328 = vpack.c.b16 %v4492, %v4480
        %v6329 = vpack.c.b16 %v4493, %v4481
        %v6330 = vpack.c.b16 %v4494, %v4482
        %v6331 = vpack.c.b16 %v4495, %v4483
        %v6332 = vpack.c.b16 %v4496, %v4484
        %v6333 = vpack.c.b16 %v4497, %v4485
        %v6334 = vpack.c.b16 %v4498, %v4486
        %v6335 = vpack.c.b16 %v4499, %v4487
        %v6336 = vpack.c.b16 %v4512, %v4500
        %v6337 = vpack.c.b16 %v4513, %v4501
        %v6338 = vpack.c.b16 %v4514, %v4502
        %v6339 = vpack.c.b16 %v4515, %v4503
        %v6340 = vpack.c.b16 %v4516, %v4504
        %v6341 = vpack.c.b16 %v4517, %v4505
        %v6342 = vpack.c.b16 %v4518, %v4506
        %v6343 = vpack.c.b16 %v4519, %v4507
        %v6344 = vpack.c.b16 %v4520, %v4508
        %v6345 = vpack.c.b16 %v4521, %v4509
        %v6346 = vpack.c.b16 %v4522, %v4510
        %v6347 = vpack.c.b16 %v4523, %v4511
        %v6348 = vpack.c.b16 %v4536, %v4524
        %v6349 = vpack.c.b16 %v4537, %v4525
        %v6350 = vpack.c.b16 %v4538, %v4526
        %v6351 = vpack.c.b16 %v4539, %v4527
        %v6352 = vpack.c.b16 %v4540, %v4528
        %v6353 = vpack.c.b16 %v4541, %v4529
        %v6354 = vpack.c.b16 %v4542, %v4530
        %v6355 = vpack.c.b16 %v4543, %v4531
        %v6356 = vpack.c.b16 %v4544, %v4532
        %v6357 = vpack.c.b16 %v4545, %v4533
        %v6358 = vpack.c.b16 %v4546, %v4534
        %v6359 = vpack.c.b16 %v4547, %v4535
        %v6360 = vpack.c.b16 %v4560, %v4548
        %v6361 = vpack.c.b16 %v4561, %v4549
        %v6362 = vpack.c.b16 %v4562, %v4550
        %v6363 = vpack.c.b16 %v4563, %v4551
        %v6364 = vpack.c.b16 %v4564, %v4552
        %v6365 = vpack.c.b16 %v4565, %v4553
        %v6366 = vpack.c.b16 %v4566, %v4554
        %v6367 = vpack.c.b16 %v4567, %v4555
        %v6368 = vpack.c.b16 %v4568, %v4556
        %v6369 = vpack.c.b16 %v4569, %v4557
        %v6370 = vpack.c.b16 %v4570, %v4558
        %v6371 = vpack.c.b16 %v4571, %v4559
        %v6372 = vpack.c.b16 %v4584, %v4572
        %v6373 = vpack.c.b16 %v4585, %v4573
        %v6374 = vpack.c.b16 %v4586, %v4574
        %v6375 = vpack.c.b16 %v4587, %v4575
        %v6376 = vpack.c.b16 %v4588, %v4576
        %v6377 = vpack.c.b16 %v4589, %v4577
        %v6378 = vpack.c.b16 %v4590, %v4578
        %v6379 = vpack.c.b16 %v4591, %v4579
        %v6380 = vpack.c.b16 %v4592, %v4580
        %v6381 = vpack.c.b16 %v4593, %v4581
        %v6382 = vpack.c.b16 %v4594, %v4582
        %v6383 = vpack.c.b16 %v4595, %v4583
        %v6384 = vpack.c.b16 %v4608, %v4596
        %v6385 = vpack.c.b16 %v4609, %v4597
        %v6386 = vpack.c.b16 %v4610, %v4598
        %v6387 = vpack.c.b16 %v4611, %v4599
        %v6388 = vpack.c.b16 %v4612, %v4600
        %v6389 = vpack.c.b16 %v4613, %v4601
        %v6390 = vpack.c.b16 %v4614, %v4602
        %v6391 = vpack.c.b16 %v4615, %v4603
        %v6392 = vpack.c.b16 %v4616, %v4604
        %v6393 = vpack.c.b16 %v4617, %v4605
        %v6394 = vpack.c.b16 %v4618, %v4606
        %v6395 = vpack.c.b16 %v4619, %v4607
        %v6396 = vpack.c.b16 %v4632, %v4620
        %v6397 = vpack.c.b16 %v4633, %v4621
        %v6398 = vpack.c.b16 %v4634, %v4622
        %v6399 = vpack.c.b16 %v4635, %v4623
        %v6400 = vpack.c.b16 %v4636, %v4624
        %v6401 = vpack.c.b16 %v4637, %v4625
        %v6402 = vpack.c.b16 %v4638, %v4626
        %v6403 = vpack.c.b16 %v4639, %v4627
        %v6404 = vpack.c.b16 %v4640, %v4628
        %v6405 = vpack.c.b16 %v4641, %v4629
        %v6406 = vpack.c.b16 %v4642, %v4630
        %v6407 = vpack.c.b16 %v4643, %v4631
        %v6408 = vpack.c.b16 %v4656, %v4644
        %v6409 = vpack.c.b16 %v4657, %v4645
        %v6410 = vpack.c.b16 %v4658, %v4646
        %v6411 = vpack.c.b16 %v4659, %v4647
        %v6412 = vpack.c.b16 %v4660, %v4648
        %v6413 = vpack.c.b16 %v4661, %v4649
        %v6414 = vpack.c.b16 %v4662, %v4650
        %v6415 = vpack.c.b16 %v4663, %v4651
        %v6416 = vpack.c.b16 %v4664, %v4652
        %v6417 = vpack.c.b16 %v4665, %v4653
        %v6418 = vpack.c.b16 %v4666, %v4654
        %v6419 = vpack.c.b16 %v4667, %v4655
        %v6420 = vpack.c.b16 %v4680, %v4668
        %v6421 = vpack.c.b16 %v4681, %v4669
        %v6422 = vpack.c.b16 %v4682, %v4670
        %v6423 = vpack.c.b16 %v4683, %v4671
        %v6424 = vpack.c.b16 %v4684, %v4672
        %v6425 = vpack.c.b16 %v4685, %v4673
        %v6426 = vpack.c.b16 %v4686, %v4674
        %v6427 = vpack.c.b16 %v4687, %v4675
        %v6428 = vpack.c.b16 %v4688, %v4676
        %v6429 = vpack.c.b16 %v4689, %v4677
        %v6430 = vpack.c.b16 %v4690, %v4678
        %v6431 = vpack.c.b16 %v4691, %v4679
        %v6432 = vpack.c.b16 %v4704, %v4692
        %v6433 = vpack.c.b16 %v4705, %v4693
        %v6434 = vpack.c.b16 %v4706, %v4694
        %v6435 = vpack.c.b16 %v4707, %v4695
        %v6436 = vpack.c.b16 %v4708, %v4696
        %v6437 = vpack.c.b16 %v4709, %v4697
        %v6438 = vpack.c.b16 %v4710, %v4698
        %v6439 = vpack.c.b16 %v4711, %v4699
        %v6440 = vpack.c.b16 %v4712, %v4700
        %v6441 = vpack.c.b16 %v4713, %v4701
        %v6442 = vpack.c.b16 %v4714, %v4702
        %v6443 = vpack.c.b16 %v4715, %v4703
        %v6444 = vpack.c.b16 %v4728, %v4716
        %v6445 = vpack.c.b16 %v4729, %v4717
        %v6446 = vpack.c.b16 %v4730, %v4718
        %v6447 = vpack.c.b16 %v4731, %v4719
        %v6448 = vpack.c.b16 %v4732, %v4720
        %v6449 = vpack.c.b16 %v4733, %v4721
        %v6450 = vpack.c.b16 %v4734, %v4722
        %v6451 = vpack.c.b16 %v4735, %v4723
        %v6452 = vpack.c.b16 %v4736, %v4724
        %v6453 = vpack.c.b16 %v4737, %v4725
        %v6454 = vpack.c.b16 %v4738, %v4726
        %v6455 = vpack.c.b16 %v4739, %v4727
        %v6456 = vpack.c.b16 %v4752, %v4740
        %v6457 = vpack.c.b16 %v4753, %v4741
        %v6458 = vpack.c.b16 %v4754, %v4742
        %v6459 = vpack.c.b16 %v4755, %v4743
        %v6460 = vpack.c.b16 %v4756, %v4744
        %v6461 = vpack.c.b16 %v4757, %v4745
        %v6462 = vpack.c.b16 %v4758, %v4746
        %v6463 = vpack.c.b16 %v4759, %v4747
        %v6464 = vpack.c.b16 %v4760, %v4748
        %v6465 = vpack.c.b16 %v4761, %v4749
        %v6466 = vpack.c.b16 %v4762, %v4750
        %v6467 = vpack.c.b16 %v4763, %v4751
        %v6468 = vpack.c.b16 %v4776, %v4764
        %v6469 = vpack.c.b16 %v4777, %v4765
        %v6470 = vpack.c.b16 %v4778, %v4766
        %v6471 = vpack.c.b16 %v4779, %v4767
        %v6472 = vpack.c.b16 %v4780, %v4768
        %v6473 = vpack.c.b16 %v4781, %v4769
        %v6474 = vpack.c.b16 %v4782, %v4770
        %v6475 = vpack.c.b16 %v4783, %v4771
        %v6476 = vpack.c.b16 %v4784, %v4772
        %v6477 = vpack.c.b16 %v4785, %v4773
        %v6478 = vpack.c.b16 %v4786, %v4774
        %v6479 = vpack.c.b16 %v4787, %v4775
        %v6480 = vpack.c.b16 %v4800, %v4788
        %v6481 = vpack.c.b16 %v4801, %v4789
        %v6482 = vpack.c.b16 %v4802, %v4790
        %v6483 = vpack.c.b16 %v4803, %v4791
        %v6484 = vpack.c.b16 %v4804, %v4792
        %v6485 = vpack.c.b16 %v4805, %v4793
        %v6486 = vpack.c.b16 %v4806, %v4794
        %v6487 = vpack.c.b16 %v4807, %v4795
        %v6488 = vpack.c.b16 %v4808, %v4796
        %v6489 = vpack.c.b16 %v4809, %v4797
        %v6490 = vpack.c.b16 %v4810, %v4798
        %v6491 = vpack.c.b16 %v4811, %v4799
        %v6492 = vpack.c.b16 %v4824, %v4812
        %v6493 = vpack.c.b16 %v4825, %v4813
        %v6494 = vpack.c.b16 %v4826, %v4814
        %v6495 = vpack.c.b16 %v4827, %v4815
        %v6496 = vpack.c.b16 %v4828, %v4816
        %v6497 = vpack.c.b16 %v4829, %v4817
        %v6498 = vpack.c.b16 %v4830, %v4818
        %v6499 = vpack.c.b16 %v4831, %v4819
        %v6500 = vpack.c.b16 %v4832, %v4820
        %v6501 = vpack.c.b16 %v4833, %v4821
        %v6502 = vpack.c.b16 %v4834, %v4822
        %v6503 = vpack.c.b16 %v4835, %v4823
        %v6504 = vpack.c.b16 %v4848, %v4836
        %v6505 = vpack.c.b16 %v4849, %v4837
        %v6506 = vpack.c.b16 %v4850, %v4838
        %v6507 = vpack.c.b16 %v4851, %v4839
        %v6508 = vpack.c.b16 %v4852, %v4840
        %v6509 = vpack.c.b16 %v4853, %v4841
        %v6510 = vpack.c.b16 %v4854, %v4842
        %v6511 = vpack.c.b16 %v4855, %v4843
        %v6512 = vpack.c.b16 %v4856, %v4844
        %v6513 = vpack.c.b16 %v4857, %v4845
        %v6514 = vpack.c.b16 %v4858, %v4846
        %v6515 = vpack.c.b16 %v4859, %v4847
        %v6516 = vpack.c.b16 %v4872, %v4860
        %v6517 = vpack.c.b16 %v4873, %v4861
        %v6518 = vpack.c.b16 %v4874, %v4862
        %v6519 = vpack.c.b16 %v4875, %v4863
        %v6520 = vpack.c.b16 %v4876, %v4864
        %v6521 = vpack.c.b16 %v4877, %v4865
        %v6522 = vpack.c.b16 %v4878, %v4866
        %v6523 = vpack.c.b16 %v4879, %v4867
        %v6524 = vpack.c.b16 %v4880, %v4868
        %v6525 = vpack.c.b16 %v4881, %v4869
        %v6526 = vpack.c.b16 %v4882, %v4870
        %v6527 = vpack.c.b16 %v4883, %v4871
        %v6528 = vpack.c.b16 %v4896, %v4884
        %v6529 = vpack.c.b16 %v4897, %v4885
        %v6530 = vpack.c.b16 %v4898, %v4886
        %v6531 = vpack.c.b16 %v4899, %v4887
        %v6532 = vpack.c.b16 %v4900, %v4888
        %v6533 = vpack.c.b16 %v4901, %v4889
        %v6534 = vpack.c.b16 %v4902, %v4890
        %v6535 = vpack.c.b16 %v4903, %v4891
        %v6536 = vpack.c.b16 %v4904, %v4892
        %v6537 = vpack.c.b16 %v4905, %v4893
        %v6538 = vpack.c.b16 %v4906, %v4894
        %v6539 = vpack.c.b16 %v4907, %v4895
        %v6540 = vpack.c.b16 %v4920, %v4908
        %v6541 = vpack.c.b16 %v4921, %v4909
        %v6542 = vpack.c.b16 %v4922, %v4910
        %v6543 = vpack.c.b16 %v4923, %v4911
        %v6544 = vpack.c.b16 %v4924, %v4912
        %v6545 = vpack.c.b16 %v4925, %v4913
        %v6546 = vpack.c.b16 %v4926, %v4914
        %v6547 = vpack.c.b16 %v4927, %v4915
        %v6548 = vpack.c.b16 %v4928, %v4916
        %v6549 = vpack.c.b16 %v4929, %v4917
        %v6550 = vpack.c.b16 %v4930, %v4918
        %v6551 = vpack.c.b16 %v4931, %v4919
        %v6552 = vpack.c.b16 %v4944, %v4932
        %v6553 = vpack.c.b16 %v4945, %v4933
        %v6554 = vpack.c.b16 %v4946, %v4934
        %v6555 = vpack.c.b16 %v4947, %v4935
        %v6556 = vpack.c.b16 %v4948, %v4936
        %v6557 = vpack.c.b16 %v4949, %v4937
        %v6558 = vpack.c.b16 %v4950, %v4938
        %v6559 = vpack.c.b16 %v4951, %v4939
        %v6560 = vpack.c.b16 %v4952, %v4940
        %v6561 = vpack.c.b16 %v4953, %v4941
        %v6562 = vpack.c.b16 %v4954, %v4942
        %v6563 = vpack.c.b16 %v4955, %v4943
        %v6564 = vpack.c.b16 %v4968, %v4956
        %v6565 = vpack.c.b16 %v4969, %v4957
        %v6566 = vpack.c.b16 %v4970, %v4958
        %v6567 = vpack.c.b16 %v4971, %v4959
        %v6568 = vpack.c.b16 %v4972, %v4960
        %v6569 = vpack.c.b16 %v4973, %v4961
        %v6570 = vpack.c.b16 %v4974, %v4962
        %v6571 = vpack.c.b16 %v4975, %v4963
        %v6572 = vpack.c.b16 %v4976, %v4964
        %v6573 = vpack.c.b16 %v4977, %v4965
        %v6574 = vpack.c.b16 %v4978, %v4966
        %v6575 = vpack.c.b16 %v4979, %v4967
        %v6576 = vpack.c.b16 %v4992, %v4980
        %v6577 = vpack.c.b16 %v4993, %v4981
        %v6578 = vpack.c.b16 %v4994, %v4982
        %v6579 = vpack.c.b16 %v4995, %v4983
        %v6580 = vpack.c.b16 %v4996, %v4984
        %v6581 = vpack.c.b16 %v4997, %v4985
        %v6582 = vpack.c.b16 %v4998, %v4986
        %v6583 = vpack.c.b16 %v4999, %v4987
        %v6584 = vpack.c.b16 %v5000, %v4988
        %v6585 = vpack.c.b16 %v5001, %v4989
        %v6586 = vpack.c.b16 %v5002, %v4990
        %v6587 = vpack.c.b16 %v5003, %v4991
        %v6588 = vpack.c.b16 %v5016, %v5004
        %v6589 = vpack.c.b16 %v5017, %v5005
        %v6590 = vpack.c.b16 %v5018, %v5006
        %v6591 = vpack.c.b16 %v5019, %v5007
        %v6592 = vpack.c.b16 %v5020, %v5008
        %v6593 = vpack.c.b16 %v5021, %v5009
        %v6594 = vpack.c.b16 %v5022, %v5010
        %v6595 = vpack.c.b16 %v5023, %v5011
        %v6596 = vpack.c.b16 %v5024, %v5012
        %v6597 = vpack.c.b16 %v5025, %v5013
        %v6598 = vpack.c.b16 %v5026, %v5014
        %v6599 = vpack.c.b16 %v5027, %v5015
        %v6600 = vpack.c.b16 %v5040, %v5028
        %v6601 = vpack.c.b16 %v5041, %v5029
        %v6602 = vpack.c.b16 %v5042, %v5030
        %v6603 = vpack.c.b16 %v5043, %v5031
        %v6604 = vpack.c.b16 %v5044, %v5032
        %v6605 = vpack.c.b16 %v5045, %v5033
        %v6606 = vpack.c.b16 %v5046, %v5034
        %v6607 = vpack.c.b16 %v5047, %v5035
        %v6608 = vpack.c.b16 %v5048, %v5036
        %v6609 = vpack.c.b16 %v5049, %v5037
        %v6610 = vpack.c.b16 %v5050, %v5038
        %v6611 = vpack.c.b16 %v5051, %v5039
        %v6612 = vpack.c.b16 %v5064, %v5052
        %v6613 = vpack.c.b16 %v5065, %v5053
        %v6614 = vpack.c.b16 %v5066, %v5054
        %v6615 = vpack.c.b16 %v5067, %v5055
        %v6616 = vpack.c.b16 %v5068, %v5056
        %v6617 = vpack.c.b16 %v5069, %v5057
        %v6618 = vpack.c.b16 %v5070, %v5058
        %v6619 = vpack.c.b16 %v5071, %v5059
        %v6620 = vpack.c.b16 %v5072, %v5060
        %v6621 = vpack.c.b16 %v5073, %v5061
        %v6622 = vpack.c.b16 %v5074, %v5062
        %v6623 = vpack.c.b16 %v5075, %v5063
        %v6624 = vpack.c.b16 %v5088, %v5076
        %v6625 = vpack.c.b16 %v5089, %v5077
        %v6626 = vpack.c.b16 %v5090, %v5078
        %v6627 = vpack.c.b16 %v5091, %v5079
        %v6628 = vpack.c.b16 %v5092, %v5080
        %v6629 = vpack.c.b16 %v5093, %v5081
        %v6630 = vpack.c.b16 %v5094, %v5082
        %v6631 = vpack.c.b16 %v5095, %v5083
        %v6632 = vpack.c.b16 %v5096, %v5084
        %v6633 = vpack.c.b16 %v5097, %v5085
        %v6634 = vpack.c.b16 %v5098, %v5086
        %v6635 = vpack.c.b16 %v5099, %v5087
        %v6636 = vpack.c.b16 %v5112, %v5100
        %v6637 = vpack.c.b16 %v5113, %v5101
        %v6638 = vpack.c.b16 %v5114, %v5102
        %v6639 = vpack.c.b16 %v5115, %v5103
        %v6640 = vpack.c.b16 %v5116, %v5104
        %v6641 = vpack.c.b16 %v5117, %v5105
        %v6642 = vpack.c.b16 %v5118, %v5106
        %v6643 = vpack.c.b16 %v5119, %v5107
        %v6644 = vpack.c.b16 %v5120, %v5108
        %v6645 = vpack.c.b16 %v5121, %v5109
        %v6646 = vpack.c.b16 %v5122, %v5110
        %v6647 = vpack.c.b16 %v5123, %v5111
        %v6648 = vpack.c.b16 %v5136, %v5124
        %v6649 = vpack.c.b16 %v5137, %v5125
        %v6650 = vpack.c.b16 %v5138, %v5126
        %v6651 = vpack.c.b16 %v5139, %v5127
        %v6652 = vpack.c.b16 %v5140, %v5128
        %v6653 = vpack.c.b16 %v5141, %v5129
        %v6654 = vpack.c.b16 %v5142, %v5130
        %v6655 = vpack.c.b16 %v5143, %v5131
        %v6656 = vpack.c.b16 %v5144, %v5132
        %v6657 = vpack.c.b16 %v5145, %v5133
        %v6658 = vpack.c.b16 %v5146, %v5134
        %v6659 = vpack.c.b16 %v5147, %v5135
        %v6660 = vpack.c.b16 %v5160, %v5148
        %v6661 = vpack.c.b16 %v5161, %v5149
        %v6662 = vpack.c.b16 %v5162, %v5150
        %v6663 = vpack.c.b16 %v5163, %v5151
        %v6664 = vpack.c.b16 %v5164, %v5152
        %v6665 = vpack.c.b16 %v5165, %v5153
        %v6666 = vpack.c.b16 %v5166, %v5154
        %v6667 = vpack.c.b16 %v5167, %v5155
        %v6668 = vpack.c.b16 %v5168, %v5156
        %v6669 = vpack.c.b16 %v5169, %v5157
        %v6670 = vpack.c.b16 %v5170, %v5158
        %v6671 = vpack.c.b16 %v5171, %v5159
        %v6672 = vpack.c.b16 %v5184, %v5172
        %v6673 = vpack.c.b16 %v5185, %v5173
        %v6674 = vpack.c.b16 %v5186, %v5174
        %v6675 = vpack.c.b16 %v5187, %v5175
        %v6676 = vpack.c.b16 %v5188, %v5176
        %v6677 = vpack.c.b16 %v5189, %v5177
        %v6678 = vpack.c.b16 %v5190, %v5178
        %v6679 = vpack.c.b16 %v5191, %v5179
        %v6680 = vpack.c.b16 %v5192, %v5180
        %v6681 = vpack.c.b16 %v5193, %v5181
        %v6682 = vpack.c.b16 %v5194, %v5182
        %v6683 = vpack.c.b16 %v5195, %v5183
        %v6684 = vpack.c.b16 %v5208, %v5196
        %v6685 = vpack.c.b16 %v5209, %v5197
        %v6686 = vpack.c.b16 %v5210, %v5198
        %v6687 = vpack.c.b16 %v5211, %v5199
        %v6688 = vpack.c.b16 %v5212, %v5200
        %v6689 = vpack.c.b16 %v5213, %v5201
        %v6690 = vpack.c.b16 %v5214, %v5202
        %v6691 = vpack.c.b16 %v5215, %v5203
        %v6692 = vpack.c.b16 %v5216, %v5204
        %v6693 = vpack.c.b16 %v5217, %v5205
        %v6694 = vpack.c.b16 %v5218, %v5206
        %v6695 = vpack.c.b16 %v5219, %v5207
        %v6696 = vpack.c.b16 %v5232, %v5220
        %v6697 = vpack.c.b16 %v5233, %v5221
        %v6698 = vpack.c.b16 %v5234, %v5222
        %v6699 = vpack.c.b16 %v5235, %v5223
        %v6700 = vpack.c.b16 %v5236, %v5224
        %v6701 = vpack.c.b16 %v5237, %v5225
        %v6702 = vpack.c.b16 %v5238, %v5226
        %v6703 = vpack.c.b16 %v5239, %v5227
        %v6704 = vpack.c.b16 %v5240, %v5228
        %v6705 = vpack.c.b16 %v5241, %v5229
        %v6706 = vpack.c.b16 %v5242, %v5230
        %v6707 = vpack.c.b16 %v5243, %v5231
        %v6708 = vpack.c.b16 %v5256, %v5244
        %v6709 = vpack.c.b16 %v5257, %v5245
        %v6710 = vpack.c.b16 %v5258, %v5246
        %v6711 = vpack.c.b16 %v5259, %v5247
        %v6712 = vpack.c.b16 %v5260, %v5248
        %v6713 = vpack.c.b16 %v5261, %v5249
        %v6714 = vpack.c.b16 %v5262, %v5250
        %v6715 = vpack.c.b16 %v5263, %v5251
        %v6716 = vpack.c.b16 %v5264, %v5252
        %v6717 = vpack.c.b16 %v5265, %v5253
        %v6718 = vpack.c.b16 %v5266, %v5254
        %v6719 = vpack.c.b16 %v5267, %v5255
        %v6720 = vpack.c.b16 %v5280, %v5268
        %v6721 = vpack.c.b16 %v5281, %v5269
        %v6722 = vpack.c.b16 %v5282, %v5270
        %v6723 = vpack.c.b16 %v5283, %v5271
        %v6724 = vpack.c.b16 %v5284, %v5272
        %v6725 = vpack.c.b16 %v5285, %v5273
        %v6726 = vpack.c.b16 %v5286, %v5274
        %v6727 = vpack.c.b16 %v5287, %v5275
        %v6728 = vpack.c.b16 %v5288, %v5276
        %v6729 = vpack.c.b16 %v5289, %v5277
        %v6730 = vpack.c.b16 %v5290, %v5278
        %v6731 = vpack.c.b16 %v5291, %v5279
        %v6732 = vpack.c.b16 %v5304, %v5292
        %v6733 = vpack.c.b16 %v5305, %v5293
        %v6734 = vpack.c.b16 %v5306, %v5294
        %v6735 = vpack.c.b16 %v5307, %v5295
        %v6736 = vpack.c.b16 %v5308, %v5296
        %v6737 = vpack.c.b16 %v5309, %v5297
        %v6738 = vpack.c.b16 %v5310, %v5298
        %v6739 = vpack.c.b16 %v5311, %v5299
        %v6740 = vpack.c.b16 %v5312, %v5300
        %v6741 = vpack.c.b16 %v5313, %v5301
        %v6742 = vpack.c.b16 %v5314, %v5302
        %v6743 = vpack.c.b16 %v5315, %v5303
        %v6744 = vpack.c.b16 %v5328, %v5316
        %v6745 = vpack.c.b16 %v5329, %v5317
        %v6746 = vpack.c.b16 %v5330, %v5318
        %v6747 = vpack.c.b16 %v5331, %v5319
        %v6748 = vpack.c.b16 %v5332, %v5320
        %v6749 = vpack.c.b16 %v5333, %v5321
        %v6750 = vpack.c.b16 %v5334, %v5322
        %v6751 = vpack.c.b16 %v5335, %v5323
        %v6752 = vpack.c.b16 %v5336, %v5324
        %v6753 = vpack.c.b16 %v5337, %v5325
        %v6754 = vpack.c.b16 %v5338, %v5326
        %v6755 = vpack.c.b16 %v5339, %v5327
        %v6756 = vpack.c.b16 %v5352, %v5340
        %v6757 = vpack.c.b16 %v5353, %v5341
        %v6758 = vpack.c.b16 %v5354, %v5342
        %v6759 = vpack.c.b16 %v5355, %v5343
        %v6760 = vpack.c.b16 %v5356, %v5344
        %v6761 = vpack.c.b16 %v5357, %v5345
        %v6762 = vpack.c.b16 %v5358, %v5346
        %v6763 = vpack.c.b16 %v5359, %v5347
        %v6764 = vpack.c.b16 %v5360, %v5348
        %v6765 = vpack.c.b16 %v5361, %v5349
        %v6766 = vpack.c.b16 %v5362, %v5350
        %v6767 = vpack.c.b16 %v5363, %v5351
        %v6768 = vpack.c.b16 %v5376, %v5364
        %v6769 = vpack.c.b16 %v5377, %v5365
        %v6770 = vpack.c.b16 %v5378, %v5366
        %v6771 = vpack.c.b16 %v5379, %v5367
        %v6772 = vpack.c.b16 %v5380, %v5368
        %v6773 = vpack.c.b16 %v5381, %v5369
        %v6774 = vpack.c.b16 %v5382, %v5370
        %v6775 = vpack.c.b16 %v5383, %v5371
        %v6776 = vpack.c.b16 %v5384, %v5372
        %v6777 = vpack.c.b16 %v5385, %v5373
        %v6778 = vpack.c.b16 %v5386, %v5374
        %v6779 = vpack.c.b16 %v5387, %v5375
        %v6780 = vpack.c.b16 %v5400, %v5388
        %v6781 = vpack.c.b16 %v5401, %v5389
        %v6782 = vpack.c.b16 %v5402, %v5390
        %v6783 = vpack.c.b16 %v5403, %v5391
        %v6784 = vpack.c.b16 %v5404, %v5392
        %v6785 = vpack.c.b16 %v5405, %v5393
        %v6786 = vpack.c.b16 %v5406, %v5394
        %v6787 = vpack.c.b16 %v5407, %v5395
        %v6788 = vpack.c.b16 %v5408, %v5396
        %v6789 = vpack.c.b16 %v5409, %v5397
        %v6790 = vpack.c.b16 %v5410, %v5398
        %v6791 = vpack.c.b16 %v5411, %v5399
        %v6792 = vpack.c.b16 %v5424, %v5412
        %v6793 = vpack.c.b16 %v5425, %v5413
        %v6794 = vpack.c.b16 %v5426, %v5414
        %v6795 = vpack.c.b16 %v5427, %v5415
        %v6796 = vpack.c.b16 %v5428, %v5416
        %v6797 = vpack.c.b16 %v5429, %v5417
        %v6798 = vpack.c.b16 %v5430, %v5418
        %v6799 = vpack.c.b16 %v5431, %v5419
        %v6800 = vpack.c.b16 %v5432, %v5420
        %v6801 = vpack.c.b16 %v5433, %v5421
        %v6802 = vpack.c.b16 %v5434, %v5422
        %v6803 = vpack.c.b16 %v5435, %v5423
        %v6804 = vpack.c.b16 %v5448, %v5436
        %v6805 = vpack.c.b16 %v5449, %v5437
        %v6806 = vpack.c.b16 %v5450, %v5438
        %v6807 = vpack.c.b16 %v5451, %v5439
        %v6808 = vpack.c.b16 %v5452, %v5440
        %v6809 = vpack.c.b16 %v5453, %v5441
        %v6810 = vpack.c.b16 %v5454, %v5442
        %v6811 = vpack.c.b16 %v5455, %v5443
        %v6812 = vpack.c.b16 %v5456, %v5444
        %v6813 = vpack.c.b16 %v5457, %v5445
        %v6814 = vpack.c.b16 %v5458, %v5446
        %v6815 = vpack.c.b16 %v5459, %v5447
        %v6816 = vpack.c.b16 %v5472, %v5460
        %v6817 = vpack.c.b16 %v5473, %v5461
        %v6818 = vpack.c.b16 %v5474, %v5462
        %v6819 = vpack.c.b16 %v5475, %v5463
        %v6820 = vpack.c.b16 %v5476, %v5464
        %v6821 = vpack.c.b16 %v5477, %v5465
        %v6822 = vpack.c.b16 %v5478, %v5466
        %v6823 = vpack.c.b16 %v5479, %v5467
        %v6824 = vpack.c.b16 %v5480, %v5468
        %v6825 = vpack.c.b16 %v5481, %v5469
        %v6826 = vpack.c.b16 %v5482, %v5470
        %v6827 = vpack.c.b16 %v5483, %v5471
        %v6828 = vpack.c.b16 %v5496, %v5484
        %v6829 = vpack.c.b16 %v5497, %v5485
        %v6830 = vpack.c.b16 %v5498, %v5486
        %v6831 = vpack.c.b16 %v5499, %v5487
        %v6832 = vpack.c.b16 %v5500, %v5488
        %v6833 = vpack.c.b16 %v5501, %v5489
        %v6834 = vpack.c.b16 %v5502, %v5490
        %v6835 = vpack.c.b16 %v5503, %v5491
        %v6836 = vpack.c.b16 %v5504, %v5492
        %v6837 = vpack.c.b16 %v5505, %v5493
        %v6838 = vpack.c.b16 %v5506, %v5494
        %v6839 = vpack.c.b16 %v5507, %v5495
        %v6840 = vpack.c.b16 %v5520, %v5508
        %v6841 = vpack.c.b16 %v5521, %v5509
        %v6842 = vpack.c.b16 %v5522, %v5510
        %v6843 = vpack.c.b16 %v5523, %v5511
        %v6844 = vpack.c.b16 %v5524, %v5512
        %v6845 = vpack.c.b16 %v5525, %v5513
        %v6846 = vpack.c.b16 %v5526, %v5514
        %v6847 = vpack.c.b16 %v5527, %v5515
        %v6848 = vpack.c.b16 %v5528, %v5516
        %v6849 = vpack.c.b16 %v5529, %v5517
        %v6850 = vpack.c.b16 %v5530, %v5518
        %v6851 = vpack.c.b16 %v5531, %v5519
        %v6852 = vpack.c.b16 %v5544, %v5532
        %v6853 = vpack.c.b16 %v5545, %v5533
        %v6854 = vpack.c.b16 %v5546, %v5534
        %v6855 = vpack.c.b16 %v5547, %v5535
        %v6856 = vpack.c.b16 %v5548, %v5536
        %v6857 = vpack.c.b16 %v5549, %v5537
        %v6858 = vpack.c.b16 %v5550, %v5538
        %v6859 = vpack.c.b16 %v5551, %v5539
        %v6860 = vpack.c.b16 %v5552, %v5540
        %v6861 = vpack.c.b16 %v5553, %v5541
        %v6862 = vpack.c.b16 %v5554, %v5542
        %v6863 = vpack.c.b16 %v5555, %v5543
        %v6864 = vpack.c.b16 %v5568, %v5556
        %v6865 = vpack.c.b16 %v5569, %v5557
        %v6866 = vpack.c.b16 %v5570, %v5558
        %v6867 = vpack.c.b16 %v5571, %v5559
        %v6868 = vpack.c.b16 %v5572, %v5560
        %v6869 = vpack.c.b16 %v5573, %v5561
        %v6870 = vpack.c.b16 %v5574, %v5562
        %v6871 = vpack.c.b16 %v5575, %v5563
        %v6872 = vpack.c.b16 %v5576, %v5564
        %v6873 = vpack.c.b16 %v5577, %v5565
        %v6874 = vpack.c.b16 %v5578, %v5566
        %v6875 = vpack.c.b16 %v5579, %v5567
        %v6876 = vpack.c.b16 %v5592, %v5580
        %v6877 = vpack.c.b16 %v5593, %v5581
        %v6878 = vpack.c.b16 %v5594, %v5582
        %v6879 = vpack.c.b16 %v5595, %v5583
        %v6880 = vpack.c.b16 %v5596, %v5584
        %v6881 = vpack.c.b16 %v5597, %v5585
        %v6882 = vpack.c.b16 %v5598, %v5586
        %v6883 = vpack.c.b16 %v5599, %v5587
        %v6884 = vpack.c.b16 %v5600, %v5588
        %v6885 = vpack.c.b16 %v5601, %v5589
        %v6886 = vpack.c.b16 %v5602, %v5590
        %v6887 = vpack.c.b16 %v5603, %v5591
        %v6888 = vpack.c.b16 %v5616, %v5604
        %v6889 = vpack.c.b16 %v5617, %v5605
        %v6890 = vpack.c.b16 %v5618, %v5606
        %v6891 = vpack.c.b16 %v5619, %v5607
        %v6892 = vpack.c.b16 %v5620, %v5608
        %v6893 = vpack.c.b16 %v5621, %v5609
        %v6894 = vpack.c.b16 %v5622, %v5610
        %v6895 = vpack.c.b16 %v5623, %v5611
        %v6896 = vpack.c.b16 %v5624, %v5612
        %v6897 = vpack.c.b16 %v5625, %v5613
        %v6898 = vpack.c.b16 %v5626, %v5614
        %v6899 = vpack.c.b16 %v5627, %v5615
        %v6900 = vpack.c.b16 %v5640, %v5628
        %v6901 = vpack.c.b16 %v5641, %v5629
        %v6902 = vpack.c.b16 %v5642, %v5630
        %v6903 = vpack.c.b16 %v5643, %v5631
        %v6904 = vpack.c.b16 %v5644, %v5632
        %v6905 = vpack.c.b16 %v5645, %v5633
        %v6906 = vpack.c.b16 %v5646, %v5634
        %v6907 = vpack.c.b16 %v5647, %v5635
        %v6908 = vpack.c.b16 %v5648, %v5636
        %v6909 = vpack.c.b16 %v5649, %v5637
        %v6910 = vpack.c.b16 %v5650, %v5638
        %v6911 = vpack.c.b16 %v5651, %v5639
        %v6912 = vpack.c.b16 %v5664, %v5652
        %v6913 = vpack.c.b16 %v5665, %v5653
        %v6914 = vpack.c.b16 %v5666, %v5654
        %v6915 = vpack.c.b16 %v5667, %v5655
        %v6916 = vpack.c.b16 %v5668, %v5656
        %v6917 = vpack.c.b16 %v5669, %v5657
        %v6918 = vpack.c.b16 %v5670, %v5658
        %v6919 = vpack.c.b16 %v5671, %v5659
        %v6920 = vpack.c.b16 %v5672, %v5660
        %v6921 = vpack.c.b16 %v5673, %v5661
        %v6922 = vpack.c.b16 %v5674, %v5662
        %v6923 = vpack.c.b16 %v5675, %v5663
        %v6924 = vpack.c.b16 %v5688, %v5676
        %v6925 = vpack.c.b16 %v5689, %v5677
        %v6926 = vpack.c.b16 %v5690, %v5678
        %v6927 = vpack.c.b16 %v5691, %v5679
        %v6928 = vpack.c.b16 %v5692, %v5680
        %v6929 = vpack.c.b16 %v5693, %v5681
        %v6930 = vpack.c.b16 %v5694, %v5682
        %v6931 = vpack.c.b16 %v5695, %v5683
        %v6932 = vpack.c.b16 %v5696, %v5684
        %v6933 = vpack.c.b16 %v5697, %v5685
        %v6934 = vpack.c.b16 %v5698, %v5686
        %v6935 = vpack.c.b16 %v5699, %v5687
        %v6936 = vpack.c.b16 %v5712, %v5700
        %v6937 = vpack.c.b16 %v5713, %v5701
        %v6938 = vpack.c.b16 %v5714, %v5702
        %v6939 = vpack.c.b16 %v5715, %v5703
        %v6940 = vpack.c.b16 %v5716, %v5704
        %v6941 = vpack.c.b16 %v5717, %v5705
        %v6942 = vpack.c.b16 %v5718, %v5706
        %v6943 = vpack.c.b16 %v5719, %v5707
        %v6944 = vpack.c.b16 %v5720, %v5708
        %v6945 = vpack.c.b16 %v5721, %v5709
        %v6946 = vpack.c.b16 %v5722, %v5710
        %v6947 = vpack.c.b16 %v5723, %v5711
        %v6948 = vpack.c.b16 %v5736, %v5724
        %v6949 = vpack.c.b16 %v5737, %v5725
        %v6950 = vpack.c.b16 %v5738, %v5726
        %v6951 = vpack.c.b16 %v5739, %v5727
        %v6952 = vpack.c.b16 %v5740, %v5728
        %v6953 = vpack.c.b16 %v5741, %v5729
        %v6954 = vpack.c.b16 %v5742, %v5730
        %v6955 = vpack.c.b16 %v5743, %v5731
        %v6956 = vpack.c.b16 %v5744, %v5732
        %v6957 = vpack.c.b16 %v5745, %v5733
        %v6958 = vpack.c.b16 %v5746, %v5734
        %v6959 = vpack.c.b16 %v5747, %v5735
        %v6960 = vpack.c.b16 %v5760, %v5748
        %v6961 = vpack.c.b16 %v5761, %v5749
        %v6962 = vpack.c.b16 %v5762, %v5750
        %v6963 = vpack.c.b16 %v5763, %v5751
        %v6964 = vpack.c.b16 %v5764, %v5752
        %v6965 = vpack.c.b16 %v5765, %v5753
        %v6966 = vpack.c.b16 %v5766, %v5754
        %v6967 = vpack.c.b16 %v5767, %v5755
        %v6968 = vpack.c.b16 %v5768, %v5756
        %v6969 = vpack.c.b16 %v5769, %v5757
        %v6970 = vpack.c.b16 %v5770, %v5758
        %v6971 = vpack.c.b16 %v5771, %v5759
        %v6972 = vpack.c.b16 %v5784, %v5772
        %v6973 = vpack.c.b16 %v5785, %v5773
        %v6974 = vpack.c.b16 %v5786, %v5774
        %v6975 = vpack.c.b16 %v5787, %v5775
        %v6976 = vpack.c.b16 %v5788, %v5776
        %v6977 = vpack.c.b16 %v5789, %v5777
        %v6978 = vpack.c.b16 %v5790, %v5778
        %v6979 = vpack.c.b16 %v5791, %v5779
        %v6980 = vpack.c.b16 %v5792, %v5780
        %v6981 = vpack.c.b16 %v5793, %v5781
        %v6982 = vpack.c.b16 %v5794, %v5782
        %v6983 = vpack.c.b16 %v5795, %v5783
        %v6984 = vpack.c.b16 %v5808, %v5796
        %v6985 = vpack.c.b16 %v5809, %v5797
        %v6986 = vpack.c.b16 %v5810, %v5798
        %v6987 = vpack.c.b16 %v5811, %v5799
        %v6988 = vpack.c.b16 %v5812, %v5800
        %v6989 = vpack.c.b16 %v5813, %v5801
        %v6990 = vpack.c.b16 %v5814, %v5802
        %v6991 = vpack.c.b16 %v5815, %v5803
        %v6992 = vpack.c.b16 %v5816, %v5804
        %v6993 = vpack.c.b16 %v5817, %v5805
        %v6994 = vpack.c.b16 %v5818, %v5806
        %v6995 = vpack.c.b16 %v5819, %v5807
        %v6996 = vpack.c.b16 %v5832, %v5820
        %v6997 = vpack.c.b16 %v5833, %v5821
        %v6998 = vpack.c.b16 %v5834, %v5822
        %v6999 = vpack.c.b16 %v5835, %v5823
        %v7000 = vpack.c.b16 %v5836, %v5824
        %v7001 = vpack.c.b16 %v5837, %v5825
        %v7002 = vpack.c.b16 %v5838, %v5826
        %v7003 = vpack.c.b16 %v5839, %v5827
        %v7004 = vpack.c.b16 %v5840, %v5828
        %v7005 = vpack.c.b16 %v5841, %v5829
        %v7006 = vpack.c.b16 %v5842, %v5830
        %v7007 = vpack.c.b16 %v5843, %v5831
        %v7008 = vpack.c.b16 %v5856, %v5844
        %v7009 = vpack.c.b16 %v5857, %v5845
        %v7010 = vpack.c.b16 %v5858, %v5846
        %v7011 = vpack.c.b16 %v5859, %v5847
        %v7012 = vpack.c.b16 %v5860, %v5848
        %v7013 = vpack.c.b16 %v5861, %v5849
        %v7014 = vpack.c.b16 %v5862, %v5850
        %v7015 = vpack.c.b16 %v5863, %v5851
        %v7016 = vpack.c.b16 %v5864, %v5852
        %v7017 = vpack.c.b16 %v5865, %v5853
        %v7018 = vpack.c.b16 %v5866, %v5854
        %v7019 = vpack.c.b16 %v5867, %v5855
        %8172 = vmatprep.subr.bf16.mxu0 %v5953
        %8173 = vmatpush1.bf16.msra.mxu0 %v5952
        %8174 = vmatprep.subr.bf16.mxu0 %v5941
        %8175 = vmatpush1.bf16.msra.mxu0 %v5940
        %8176 = vmatprep.subr.bf16.mxu0 %v5929
        %8177 = vmatpush1.bf16.msra.mxu0 %v5928
        %8178 = vmatprep.subr.bf16.mxu0 %v5917
        %8179 = vmatpush1.bf16.msra.mxu0 %v5916
        %8180 = vmatprep.subr.bf16.mxu0 %v5905
        %8181 = vmatpush1.bf16.msra.mxu0 %v5904
        %8182 = vmatprep.subr.bf16.mxu0 %v5893
        %8183 = vmatpush1.bf16.msra.mxu0 %v5892
        %8184 = vmatprep.subr.bf16.mxu0 %v5881
        %8185 = vmatpush1.bf16.msra.mxu0 %v5880
        %8186 = vmatprep.subr.bf16.mxu0 %v5869
        %8187 = vmatpush1.bf16.msra.mxu0 %v5868
        %8188 = vmatprep.subr.bf16.mxu0 %v6049
        %8189 = vmatpush2.bf16.msra.mxu0 %v6048
        %8190 = vmatprep.subr.bf16.mxu0 %v6037
        %8191 = vmatpush2.bf16.msra.mxu0 %v6036
        %8192 = vmatprep.subr.bf16.mxu0 %v6025
        %8193 = vmatpush2.bf16.msra.mxu0 %v6024
        %8194 = vmatprep.subr.bf16.mxu0 %v6013
        %8195 = vmatpush2.bf16.msra.mxu0 %v6012
        %8196 = vmatprep.subr.bf16.mxu0 %v6001
        %8197 = vmatpush2.bf16.msra.mxu0 %v6000
        %8198 = vmatprep.subr.bf16.mxu0 %v5989
        %8199 = vmatpush2.bf16.msra.mxu0 %v5988
        %8200 = vmatprep.subr.bf16.mxu0 %v5977
        %8201 = vmatpush2.bf16.msra.mxu0 %v5976
        %8202 = vmatprep.subr.bf16.mxu0 %v5965
        %8203 = vmatpush2.bf16.msra.mxu0 %v5964
        %8204 = vmatprep.mubr.bf16.mxu0 %v1149
        %8205 = vmatmul.mubr.bf16.gmra.mxu0 %v1148
        %v8206 = vpop.f32.mrf.mxu0
        %v8207 = vadd.f32 %v2355, %v8206
        %v8208 = vpop.f32.mrf.mxu0
        %v8209 = vadd.f32 %v2359, %v8208
        %v8210 = vpop.f32.mrf.mxu0
        %v8211 = vadd.f32 %v2355, %v8210
        %v8212 = vpop.f32.mrf.mxu0
        %v8213 = vadd.f32 %v2359, %v8212
        %8214 = vmatprep.mubr.bf16.mxu0 %v1161
        %8215 = vmatmul.mubr.bf16.gmra.mxu0 %v1160
        %v8216 = vpop.f32.mrf.mxu0
        %v8217 = vadd.f32 %v2355, %v8216
        %v8218 = vpop.f32.mrf.mxu0
        %v8219 = vadd.f32 %v2359, %v8218
        %v8220 = vpop.f32.mrf.mxu0
        %v8221 = vadd.f32 %v2355, %v8220
        %v8222 = vpop.f32.mrf.mxu0
        %v8223 = vadd.f32 %v2359, %v8222
        %8224 = vmatprep.mubr.bf16.mxu0 %v1173
        %8225 = vmatmul.mubr.bf16.gmra.mxu0 %v1172
        %v8226 = vpop.f32.mrf.mxu0
        %v8227 = vadd.f32 %v2355, %v8226
        %v8228 = vpop.f32.mrf.mxu0
        %v8229 = vadd.f32 %v2359, %v8228
        %v8230 = vpop.f32.mrf.mxu0
        %v8231 = vadd.f32 %v2355, %v8230
        %v8232 = vpop.f32.mrf.mxu0
        %v8233 = vadd.f32 %v2359, %v8232
        %8234 = vmatprep.mubr.bf16.mxu0 %v1185
        %8235 = vmatmul.mubr.bf16.gmra.mxu0 %v1184
        %v8236 = vpop.f32.mrf.mxu0
        %v8237 = vadd.f32 %v2355, %v8236
        %v8238 = vpop.f32.mrf.mxu0
        %v8239 = vadd.f32 %v2359, %v8238
        %v8240 = vpop.f32.mrf.mxu0
        %v8241 = vadd.f32 %v2355, %v8240
        %v8242 = vpop.f32.mrf.mxu0
        %v8243 = vadd.f32 %v2359, %v8242
        %8244 = vdwg.mxu0
        %8245 = vmatprep.subr.bf16.mxu0 %v6145
        %8246 = vmatpush1.bf16.msra.mxu0 %v6144
        %8247 = vmatprep.subr.bf16.mxu0 %v6133
        %8248 = vmatpush1.bf16.msra.mxu0 %v6132
        %8249 = vmatprep.subr.bf16.mxu0 %v6121
        %8250 = vmatpush1.bf16.msra.mxu0 %v6120
        %8251 = vmatprep.subr.bf16.mxu0 %v6109
        %8252 = vmatpush1.bf16.msra.mxu0 %v6108
        %8253 = vmatprep.subr.bf16.mxu0 %v6097
        %8254 = vmatpush1.bf16.msra.mxu0 %v6096
        %8255 = vmatprep.subr.bf16.mxu0 %v6085
        %8256 = vmatpush1.bf16.msra.mxu0 %v6084
        %8257 = vmatprep.subr.bf16.mxu0 %v6073
        %8258 = vmatpush1.bf16.msra.mxu0 %v6072
        %8259 = vmatprep.subr.bf16.mxu0 %v6061
        %8260 = vmatpush1.bf16.msra.mxu0 %v6060
        %8261 = vmatprep.subr.bf16.mxu0 %v6241
        %8262 = vmatpush2.bf16.msra.mxu0 %v6240
        %8263 = vmatprep.subr.bf16.mxu0 %v6229
        %8264 = vmatpush2.bf16.msra.mxu0 %v6228
        %8265 = vmatprep.subr.bf16.mxu0 %v6217
        %8266 = vmatpush2.bf16.msra.mxu0 %v6216
        %8267 = vmatprep.subr.bf16.mxu0 %v6205
        %8268 = vmatpush2.bf16.msra.mxu0 %v6204
        %8269 = vmatprep.subr.bf16.mxu0 %v6193
        %8270 = vmatpush2.bf16.msra.mxu0 %v6192
        %8271 = vmatprep.subr.bf16.mxu0 %v6181
        %8272 = vmatpush2.bf16.msra.mxu0 %v6180
        %8273 = vmatprep.subr.bf16.mxu0 %v6169
        %8274 = vmatpush2.bf16.msra.mxu0 %v6168
        %8275 = vmatprep.subr.bf16.mxu0 %v6157
        %8276 = vmatpush2.bf16.msra.mxu0 %v6156
        %8277 = vmatprep.mubr.bf16.mxu0 %v1151
        %8278 = vmatmul.mubr.bf16.gmra.mxu0 %v1150
        %v8279 = vpop.f32.mrf.mxu0
        %v8280 = vadd.f32 %v8207, %v8279
        %v8281 = vpop.f32.mrf.mxu0
        %v8282 = vadd.f32 %v8209, %v8281
        %v8283 = vpop.f32.mrf.mxu0
        %v8284 = vadd.f32 %v8211, %v8283
        %v8285 = vpop.f32.mrf.mxu0
        %v8286 = vadd.f32 %v8213, %v8285
        %8287 = vmatprep.mubr.bf16.mxu0 %v1163
        %8288 = vmatmul.mubr.bf16.gmra.mxu0 %v1162
        %v8289 = vpop.f32.mrf.mxu0
        %v8290 = vadd.f32 %v8217, %v8289
        %v8291 = vpop.f32.mrf.mxu0
        %v8292 = vadd.f32 %v8219, %v8291
        %v8293 = vpop.f32.mrf.mxu0
        %v8294 = vadd.f32 %v8221, %v8293
        %v8295 = vpop.f32.mrf.mxu0
        %v8296 = vadd.f32 %v8223, %v8295
        %8297 = vmatprep.mubr.bf16.mxu0 %v1175
        %8298 = vmatmul.mubr.bf16.gmra.mxu0 %v1174
        %v8299 = vpop.f32.mrf.mxu0
        %v8300 = vadd.f32 %v8227, %v8299
        %v8301 = vpop.f32.mrf.mxu0
        %v8302 = vadd.f32 %v8229, %v8301
        %v8303 = vpop.f32.mrf.mxu0
        %v8304 = vadd.f32 %v8231, %v8303
        %v8305 = vpop.f32.mrf.mxu0
        %v8306 = vadd.f32 %v8233, %v8305
        %8307 = vmatprep.mubr.bf16.mxu0 %v1187
        %8308 = vmatmul.mubr.bf16.gmra.mxu0 %v1186
        %v8309 = vpop.f32.mrf.mxu0
        %v8310 = vadd.f32 %v8237, %v8309
        %v8311 = vpop.f32.mrf.mxu0
        %v8312 = vadd.f32 %v8239, %v8311
        %v8313 = vpop.f32.mrf.mxu0
        %v8314 = vadd.f32 %v8241, %v8313
        %v8315 = vpop.f32.mrf.mxu0
        %v8316 = vadd.f32 %v8243, %v8315
        %8317 = vdwg.mxu0
        %8318 = vmatprep.subr.bf16.mxu0 %v6337
        %8319 = vmatpush1.bf16.msra.mxu0 %v6336
        %8320 = vmatprep.subr.bf16.mxu0 %v6325
        %8321 = vmatpush1.bf16.msra.mxu0 %v6324
        %8322 = vmatprep.subr.bf16.mxu0 %v6313
        %8323 = vmatpush1.bf16.msra.mxu0 %v6312
        %8324 = vmatprep.subr.bf16.mxu0 %v6301
        %8325 = vmatpush1.bf16.msra.mxu0 %v6300
        %8326 = vmatprep.subr.bf16.mxu0 %v6289
        %8327 = vmatpush1.bf16.msra.mxu0 %v6288
        %8328 = vmatprep.subr.bf16.mxu0 %v6277
        %8329 = vmatpush1.bf16.msra.mxu0 %v6276
        %8330 = vmatprep.subr.bf16.mxu0 %v6265
        %8331 = vmatpush1.bf16.msra.mxu0 %v6264
        %8332 = vmatprep.subr.bf16.mxu0 %v6253
        %8333 = vmatpush1.bf16.msra.mxu0 %v6252
        %8334 = vmatprep.subr.bf16.mxu0 %v6433
        %8335 = vmatpush2.bf16.msra.mxu0 %v6432
        %8336 = vmatprep.subr.bf16.mxu0 %v6421
        %8337 = vmatpush2.bf16.msra.mxu0 %v6420
        %8338 = vmatprep.subr.bf16.mxu0 %v6409
        %8339 = vmatpush2.bf16.msra.mxu0 %v6408
        %8340 = vmatprep.subr.bf16.mxu0 %v6397
        %8341 = vmatpush2.bf16.msra.mxu0 %v6396
        %8342 = vmatprep.subr.bf16.mxu0 %v6385
        %8343 = vmatpush2.bf16.msra.mxu0 %v6384
        %8344 = vmatprep.subr.bf16.mxu0 %v6373
        %8345 = vmatpush2.bf16.msra.mxu0 %v6372
        %8346 = vmatprep.subr.bf16.mxu0 %v6361
        %8347 = vmatpush2.bf16.msra.mxu0 %v6360
        %8348 = vmatprep.subr.bf16.mxu0 %v6349
        %8349 = vmatpush2.bf16.msra.mxu0 %v6348
        %8350 = vmatprep.mubr.bf16.mxu0 %v1153
        %8351 = vmatmul.mubr.bf16.gmra.mxu0 %v1152
        %v8352 = vpop.f32.mrf.mxu0
        %v8353 = vadd.f32 %v8280, %v8352
        %v8354 = vpop.f32.mrf.mxu0
        %v8355 = vadd.f32 %v8282, %v8354
        %v8356 = vpop.f32.mrf.mxu0
        %v8357 = vadd.f32 %v8284, %v8356
        %v8358 = vpop.f32.mrf.mxu0
        %v8359 = vadd.f32 %v8286, %v8358
        %8360 = vmatprep.mubr.bf16.mxu0 %v1165
        %8361 = vmatmul.mubr.bf16.gmra.mxu0 %v1164
        %v8362 = vpop.f32.mrf.mxu0
        %v8363 = vadd.f32 %v8290, %v8362
        %v8364 = vpop.f32.mrf.mxu0
        %v8365 = vadd.f32 %v8292, %v8364
        %v8366 = vpop.f32.mrf.mxu0
        %v8367 = vadd.f32 %v8294, %v8366
        %v8368 = vpop.f32.mrf.mxu0
        %v8369 = vadd.f32 %v8296, %v8368
        %8370 = vmatprep.mubr.bf16.mxu0 %v1177
        %8371 = vmatmul.mubr.bf16.gmra.mxu0 %v1176
        %v8372 = vpop.f32.mrf.mxu0
        %v8373 = vadd.f32 %v8300, %v8372
        %v8374 = vpop.f32.mrf.mxu0
        %v8375 = vadd.f32 %v8302, %v8374
        %v8376 = vpop.f32.mrf.mxu0
        %v8377 = vadd.f32 %v8304, %v8376
        %v8378 = vpop.f32.mrf.mxu0
        %v8379 = vadd.f32 %v8306, %v8378
        %8380 = vmatprep.mubr.bf16.mxu0 %v1189
        %8381 = vmatmul.mubr.bf16.gmra.mxu0 %v1188
        %v8382 = vpop.f32.mrf.mxu0
        %v8383 = vadd.f32 %v8310, %v8382
        %v8384 = vpop.f32.mrf.mxu0
        %v8385 = vadd.f32 %v8312, %v8384
        %v8386 = vpop.f32.mrf.mxu0
        %v8387 = vadd.f32 %v8314, %v8386
        %v8388 = vpop.f32.mrf.mxu0
        %v8389 = vadd.f32 %v8316, %v8388
        %8390 = vdwg.mxu0
        %8391 = vmatprep.subr.bf16.mxu0 %v6529
        %8392 = vmatpush1.bf16.msra.mxu0 %v6528
        %8393 = vmatprep.subr.bf16.mxu0 %v6517
        %8394 = vmatpush1.bf16.msra.mxu0 %v6516
        %8395 = vmatprep.subr.bf16.mxu0 %v6505
        %8396 = vmatpush1.bf16.msra.mxu0 %v6504
        %8397 = vmatprep.subr.bf16.mxu0 %v6493
        %8398 = vmatpush1.bf16.msra.mxu0 %v6492
        %8399 = vmatprep.subr.bf16.mxu0 %v6481
        %8400 = vmatpush1.bf16.msra.mxu0 %v6480
        %8401 = vmatprep.subr.bf16.mxu0 %v6469
        %8402 = vmatpush1.bf16.msra.mxu0 %v6468
        %8403 = vmatprep.subr.bf16.mxu0 %v6457
        %8404 = vmatpush1.bf16.msra.mxu0 %v6456
        %8405 = vmatprep.subr.bf16.mxu0 %v6445
        %8406 = vmatpush1.bf16.msra.mxu0 %v6444
        %8407 = vmatprep.subr.bf16.mxu0 %v6625
        %8408 = vmatpush2.bf16.msra.mxu0 %v6624
        %8409 = vmatprep.subr.bf16.mxu0 %v6613
        %8410 = vmatpush2.bf16.msra.mxu0 %v6612
        %8411 = vmatprep.subr.bf16.mxu0 %v6601
        %8412 = vmatpush2.bf16.msra.mxu0 %v6600
        %8413 = vmatprep.subr.bf16.mxu0 %v6589
        %8414 = vmatpush2.bf16.msra.mxu0 %v6588
        %8415 = vmatprep.subr.bf16.mxu0 %v6577
        %8416 = vmatpush2.bf16.msra.mxu0 %v6576
        %8417 = vmatprep.subr.bf16.mxu0 %v6565
        %8418 = vmatpush2.bf16.msra.mxu0 %v6564
        %8419 = vmatprep.subr.bf16.mxu0 %v6553
        %8420 = vmatpush2.bf16.msra.mxu0 %v6552
        %8421 = vmatprep.subr.bf16.mxu0 %v6541
        %8422 = vmatpush2.bf16.msra.mxu0 %v6540
        %8423 = vmatprep.mubr.bf16.mxu0 %v1155
        %8424 = vmatmul.mubr.bf16.gmra.mxu0 %v1154
        %v8425 = vpop.f32.mrf.mxu0
        %v8426 = vadd.f32 %v8353, %v8425
        %v8427 = vpop.f32.mrf.mxu0
        %v8428 = vadd.f32 %v8355, %v8427
        %v8429 = vpop.f32.mrf.mxu0
        %v8430 = vadd.f32 %v8357, %v8429
        %v8431 = vpop.f32.mrf.mxu0
        %v8432 = vadd.f32 %v8359, %v8431
        %8433 = vmatprep.mubr.bf16.mxu0 %v1167
        %8434 = vmatmul.mubr.bf16.gmra.mxu0 %v1166
        %v8435 = vpop.f32.mrf.mxu0
        %v8436 = vadd.f32 %v8363, %v8435
        %v8437 = vpop.f32.mrf.mxu0
        %v8438 = vadd.f32 %v8365, %v8437
        %v8439 = vpop.f32.mrf.mxu0
        %v8440 = vadd.f32 %v8367, %v8439
        %v8441 = vpop.f32.mrf.mxu0
        %v8442 = vadd.f32 %v8369, %v8441
        %8443 = vmatprep.mubr.bf16.mxu0 %v1179
        %8444 = vmatmul.mubr.bf16.gmra.mxu0 %v1178
        %v8445 = vpop.f32.mrf.mxu0
        %v8446 = vadd.f32 %v8373, %v8445
        %v8447 = vpop.f32.mrf.mxu0
        %v8448 = vadd.f32 %v8375, %v8447
        %v8449 = vpop.f32.mrf.mxu0
        %v8450 = vadd.f32 %v8377, %v8449
        %v8451 = vpop.f32.mrf.mxu0
        %v8452 = vadd.f32 %v8379, %v8451
        %8453 = vmatprep.mubr.bf16.mxu0 %v1191
        %8454 = vmatmul.mubr.bf16.gmra.mxu0 %v1190
        %v8455 = vpop.f32.mrf.mxu0
        %v8456 = vadd.f32 %v8383, %v8455
        %v8457 = vpop.f32.mrf.mxu0
        %v8458 = vadd.f32 %v8385, %v8457
        %v8459 = vpop.f32.mrf.mxu0
        %v8460 = vadd.f32 %v8387, %v8459
        %v8461 = vpop.f32.mrf.mxu0
        %v8462 = vadd.f32 %v8389, %v8461
        %8463 = vdwg.mxu0
        %8464 = vmatprep.subr.bf16.mxu0 %v6721
        %8465 = vmatpush1.bf16.msra.mxu0 %v6720
        %8466 = vmatprep.subr.bf16.mxu0 %v6709
        %8467 = vmatpush1.bf16.msra.mxu0 %v6708
        %8468 = vmatprep.subr.bf16.mxu0 %v6697
        %8469 = vmatpush1.bf16.msra.mxu0 %v6696
        %8470 = vmatprep.subr.bf16.mxu0 %v6685
        %8471 = vmatpush1.bf16.msra.mxu0 %v6684
        %8472 = vmatprep.subr.bf16.mxu0 %v6673
        %8473 = vmatpush1.bf16.msra.mxu0 %v6672
        %8474 = vmatprep.subr.bf16.mxu0 %v6661
        %8475 = vmatpush1.bf16.msra.mxu0 %v6660
        %8476 = vmatprep.subr.bf16.mxu0 %v6649
        %8477 = vmatpush1.bf16.msra.mxu0 %v6648
        %8478 = vmatprep.subr.bf16.mxu0 %v6637
        %8479 = vmatpush1.bf16.msra.mxu0 %v6636
        %8480 = vmatprep.subr.bf16.mxu0 %v6817
        %8481 = vmatpush2.bf16.msra.mxu0 %v6816
        %8482 = vmatprep.subr.bf16.mxu0 %v6805
        %8483 = vmatpush2.bf16.msra.mxu0 %v6804
        %8484 = vmatprep.subr.bf16.mxu0 %v6793
        %8485 = vmatpush2.bf16.msra.mxu0 %v6792
        %8486 = vmatprep.subr.bf16.mxu0 %v6781
        %8487 = vmatpush2.bf16.msra.mxu0 %v6780
        %8488 = vmatprep.subr.bf16.mxu0 %v6769
        %8489 = vmatpush2.bf16.msra.mxu0 %v6768
        %8490 = vmatprep.subr.bf16.mxu0 %v6757
        %8491 = vmatpush2.bf16.msra.mxu0 %v6756
        %8492 = vmatprep.subr.bf16.mxu0 %v6745
        %8493 = vmatpush2.bf16.msra.mxu0 %v6744
        %8494 = vmatprep.subr.bf16.mxu0 %v6733
        %8495 = vmatpush2.bf16.msra.mxu0 %v6732
        %8496 = vmatprep.mubr.bf16.mxu0 %v1157
        %8497 = vmatmul.mubr.bf16.gmra.mxu0 %v1156
        %v8498 = vpop.f32.mrf.mxu0
        %v8499 = vadd.f32 %v8426, %v8498
        %v8500 = vpop.f32.mrf.mxu0
        %v8501 = vadd.f32 %v8428, %v8500
        %v8502 = vpop.f32.mrf.mxu0
        %v8503 = vadd.f32 %v8430, %v8502
        %v8504 = vpop.f32.mrf.mxu0
        %v8505 = vadd.f32 %v8432, %v8504
        %8506 = vmatprep.mubr.bf16.mxu0 %v1169
        %8507 = vmatmul.mubr.bf16.gmra.mxu0 %v1168
        %v8508 = vpop.f32.mrf.mxu0
        %v8509 = vadd.f32 %v8436, %v8508
        %v8510 = vpop.f32.mrf.mxu0
        %v8511 = vadd.f32 %v8438, %v8510
        %v8512 = vpop.f32.mrf.mxu0
        %v8513 = vadd.f32 %v8440, %v8512
        %v8514 = vpop.f32.mrf.mxu0
        %v8515 = vadd.f32 %v8442, %v8514
        %8516 = vmatprep.mubr.bf16.mxu0 %v1181
        %8517 = vmatmul.mubr.bf16.gmra.mxu0 %v1180
        %v8518 = vpop.f32.mrf.mxu0
        %v8519 = vadd.f32 %v8446, %v8518
        %v8520 = vpop.f32.mrf.mxu0
        %v8521 = vadd.f32 %v8448, %v8520
        %v8522 = vpop.f32.mrf.mxu0
        %v8523 = vadd.f32 %v8450, %v8522
        %v8524 = vpop.f32.mrf.mxu0
        %v8525 = vadd.f32 %v8452, %v8524
        %8526 = vmatprep.mubr.bf16.mxu0 %v1193
        %8527 = vmatmul.mubr.bf16.gmra.mxu0 %v1192
        %v8528 = vpop.f32.mrf.mxu0
        %v8529 = vadd.f32 %v8456, %v8528
        %v8530 = vpop.f32.mrf.mxu0
        %v8531 = vadd.f32 %v8458, %v8530
        %v8532 = vpop.f32.mrf.mxu0
        %v8533 = vadd.f32 %v8460, %v8532
        %v8534 = vpop.f32.mrf.mxu0
        %v8535 = vadd.f32 %v8462, %v8534
        %8536 = vdwg.mxu0
        %8537 = vmatprep.subr.bf16.mxu0 %v6913
        %8538 = vmatpush1.bf16.msra.mxu0 %v6912
        %8539 = vmatprep.subr.bf16.mxu0 %v6901
        %8540 = vmatpush1.bf16.msra.mxu0 %v6900
        %8541 = vmatprep.subr.bf16.mxu0 %v6889
        %8542 = vmatpush1.bf16.msra.mxu0 %v6888
        %8543 = vmatprep.subr.bf16.mxu0 %v6877
        %8544 = vmatpush1.bf16.msra.mxu0 %v6876
        %8545 = vmatprep.subr.bf16.mxu0 %v6865
        %8546 = vmatpush1.bf16.msra.mxu0 %v6864
        %8547 = vmatprep.subr.bf16.mxu0 %v6853
        %8548 = vmatpush1.bf16.msra.mxu0 %v6852
        %8549 = vmatprep.subr.bf16.mxu0 %v6841
        %8550 = vmatpush1.bf16.msra.mxu0 %v6840
        %8551 = vmatprep.subr.bf16.mxu0 %v6829
        %8552 = vmatpush1.bf16.msra.mxu0 %v6828
        %8553 = vmatprep.subr.bf16.mxu0 %v7009
        %8554 = vmatpush2.bf16.msra.mxu0 %v7008
        %8555 = vmatprep.subr.bf16.mxu0 %v6997
        %8556 = vmatpush2.bf16.msra.mxu0 %v6996
        %8557 = vmatprep.subr.bf16.mxu0 %v6985
        %8558 = vmatpush2.bf16.msra.mxu0 %v6984
        %8559 = vmatprep.subr.bf16.mxu0 %v6973
        %8560 = vmatpush2.bf16.msra.mxu0 %v6972
        %8561 = vmatprep.subr.bf16.mxu0 %v6961
        %8562 = vmatpush2.bf16.msra.mxu0 %v6960
        %8563 = vmatprep.subr.bf16.mxu0 %v6949
        %8564 = vmatpush2.bf16.msra.mxu0 %v6948
        %8565 = vmatprep.subr.bf16.mxu0 %v6937
        %8566 = vmatpush2.bf16.msra.mxu0 %v6936
        %8567 = vmatprep.subr.bf16.mxu0 %v6925
        %8568 = vmatpush2.bf16.msra.mxu0 %v6924
        %8569 = vmatprep.mubr.bf16.mxu0 %v1159
        %8570 = vmatmul.mubr.bf16.gmra.mxu0 %v1158
        %v8571 = vpop.f32.mrf.mxu0
        %v8572 = vadd.f32 %v8499, %v8571
        %v8573 = vpop.f32.mrf.mxu0
        %v8574 = vadd.f32 %v8501, %v8573
        %v8575 = vpop.f32.mrf.mxu0
        %v8576 = vadd.f32 %v8503, %v8575
        %v8577 = vpop.f32.mrf.mxu0
        %v8578 = vadd.f32 %v8505, %v8577
        %8579 = vmatprep.mubr.bf16.mxu0 %v1171
        %8580 = vmatmul.mubr.bf16.gmra.mxu0 %v1170
        %v8581 = vpop.f32.mrf.mxu0
        %v8582 = vadd.f32 %v8509, %v8581
        %v8583 = vpop.f32.mrf.mxu0
        %v8584 = vadd.f32 %v8511, %v8583
        %v8585 = vpop.f32.mrf.mxu0
        %v8586 = vadd.f32 %v8513, %v8585
        %v8587 = vpop.f32.mrf.mxu0
        %v8588 = vadd.f32 %v8515, %v8587
        %8589 = vmatprep.mubr.bf16.mxu0 %v1183
        %8590 = vmatmul.mubr.bf16.gmra.mxu0 %v1182
        %v8591 = vpop.f32.mrf.mxu0
        %v8592 = vadd.f32 %v8519, %v8591
        %v8593 = vpop.f32.mrf.mxu0
        %v8594 = vadd.f32 %v8521, %v8593
        %v8595 = vpop.f32.mrf.mxu0
        %v8596 = vadd.f32 %v8523, %v8595
        %v8597 = vpop.f32.mrf.mxu0
        %v8598 = vadd.f32 %v8525, %v8597
        %8599 = vmatprep.mubr.bf16.mxu0 %v1195
        %8600 = vmatmul.mubr.bf16.gmra.mxu0 %v1194
        %v8601 = vpop.f32.mrf.mxu0
        %v8602 = vadd.f32 %v8529, %v8601
        %v8603 = vpop.f32.mrf.mxu0
        %v8604 = vadd.f32 %v8531, %v8603
        %v8605 = vpop.f32.mrf.mxu0
        %v8606 = vadd.f32 %v8533, %v8605
        %v8607 = vpop.f32.mrf.mxu0
        %v8608 = vadd.f32 %v8535, %v8607
        %8609 = vdwg.mxu0
        %8610 = vmatprep.subr.bf16.mxu0 %v5955
        %8611 = vmatpush1.bf16.msra.mxu0 %v5954
        %8612 = vmatprep.subr.bf16.mxu0 %v5943
        %8613 = vmatpush1.bf16.msra.mxu0 %v5942
        %8614 = vmatprep.subr.bf16.mxu0 %v5931
        %8615 = vmatpush1.bf16.msra.mxu0 %v5930
        %8616 = vmatprep.subr.bf16.mxu0 %v5919
        %8617 = vmatpush1.bf16.msra.mxu0 %v5918
        %8618 = vmatprep.subr.bf16.mxu0 %v5907
        %8619 = vmatpush1.bf16.msra.mxu0 %v5906
        %8620 = vmatprep.subr.bf16.mxu0 %v5895
        %8621 = vmatpush1.bf16.msra.mxu0 %v5894
        %8622 = vmatprep.subr.bf16.mxu0 %v5883
        %8623 = vmatpush1.bf16.msra.mxu0 %v5882
        %8624 = vmatprep.subr.bf16.mxu0 %v5871
        %8625 = vmatpush1.bf16.msra.mxu0 %v5870
        %8626 = vmatprep.subr.bf16.mxu0 %v6051
        %8627 = vmatpush2.bf16.msra.mxu0 %v6050
        %8628 = vmatprep.subr.bf16.mxu0 %v6039
        %8629 = vmatpush2.bf16.msra.mxu0 %v6038
        %8630 = vmatprep.subr.bf16.mxu0 %v6027
        %8631 = vmatpush2.bf16.msra.mxu0 %v6026
        %8632 = vmatprep.subr.bf16.mxu0 %v6015
        %8633 = vmatpush2.bf16.msra.mxu0 %v6014
        %8634 = vmatprep.subr.bf16.mxu0 %v6003
        %8635 = vmatpush2.bf16.msra.mxu0 %v6002
        %8636 = vmatprep.subr.bf16.mxu0 %v5991
        %8637 = vmatpush2.bf16.msra.mxu0 %v5990
        %8638 = vmatprep.subr.bf16.mxu0 %v5979
        %8639 = vmatpush2.bf16.msra.mxu0 %v5978
        %8640 = vmatprep.subr.bf16.mxu0 %v5967
        %8641 = vmatpush2.bf16.msra.mxu0 %v5966
        %8642 = vmatprep.mubr.bf16.mxu0 %v1149
        %8643 = vmatmul.mubr.bf16.gmra.mxu0 %v1148
        %v8644 = vpop.f32.mrf.mxu0
        %v8645 = vadd.f32 %v2363, %v8644
        %v8646 = vpop.f32.mrf.mxu0
        %v8647 = vadd.f32 %v2367, %v8646
        %v8648 = vpop.f32.mrf.mxu0
        %v8649 = vadd.f32 %v2363, %v8648
        %v8650 = vpop.f32.mrf.mxu0
        %v8651 = vadd.f32 %v2367, %v8650
        %8652 = vmatprep.mubr.bf16.mxu0 %v1161
        %8653 = vmatmul.mubr.bf16.gmra.mxu0 %v1160
        %v8654 = vpop.f32.mrf.mxu0
        %v8655 = vadd.f32 %v2363, %v8654
        %v8656 = vpop.f32.mrf.mxu0
        %v8657 = vadd.f32 %v2367, %v8656
        %v8658 = vpop.f32.mrf.mxu0
        %v8659 = vadd.f32 %v2363, %v8658
        %v8660 = vpop.f32.mrf.mxu0
        %v8661 = vadd.f32 %v2367, %v8660
        %8662 = vmatprep.mubr.bf16.mxu0 %v1173
        %8663 = vmatmul.mubr.bf16.gmra.mxu0 %v1172
        %v8664 = vpop.f32.mrf.mxu0
        %v8665 = vadd.f32 %v2363, %v8664
        %v8666 = vpop.f32.mrf.mxu0
        %v8667 = vadd.f32 %v2367, %v8666
        %v8668 = vpop.f32.mrf.mxu0
        %v8669 = vadd.f32 %v2363, %v8668
        %v8670 = vpop.f32.mrf.mxu0
        %v8671 = vadd.f32 %v2367, %v8670
        %8672 = vmatprep.mubr.bf16.mxu0 %v1185
        %8673 = vmatmul.mubr.bf16.gmra.mxu0 %v1184
        %v8674 = vpop.f32.mrf.mxu0
        %v8675 = vadd.f32 %v2363, %v8674
        %v8676 = vpop.f32.mrf.mxu0
        %v8677 = vadd.f32 %v2367, %v8676
        %v8678 = vpop.f32.mrf.mxu0
        %v8679 = vadd.f32 %v2363, %v8678
        %v8680 = vpop.f32.mrf.mxu0
        %v8681 = vadd.f32 %v2367, %v8680
        %8682 = vdwg.mxu0
        %8683 = vmatprep.subr.bf16.mxu0 %v6147
        %8684 = vmatpush1.bf16.msra.mxu0 %v6146
        %8685 = vmatprep.subr.bf16.mxu0 %v6135
        %8686 = vmatpush1.bf16.msra.mxu0 %v6134
        %8687 = vmatprep.subr.bf16.mxu0 %v6123
        %8688 = vmatpush1.bf16.msra.mxu0 %v6122
        %8689 = vmatprep.subr.bf16.mxu0 %v6111
        %8690 = vmatpush1.bf16.msra.mxu0 %v6110
        %8691 = vmatprep.subr.bf16.mxu0 %v6099
        %8692 = vmatpush1.bf16.msra.mxu0 %v6098
        %8693 = vmatprep.subr.bf16.mxu0 %v6087
        %8694 = vmatpush1.bf16.msra.mxu0 %v6086
        %8695 = vmatprep.subr.bf16.mxu0 %v6075
        %8696 = vmatpush1.bf16.msra.mxu0 %v6074
        %8697 = vmatprep.subr.bf16.mxu0 %v6063
        %8698 = vmatpush1.bf16.msra.mxu0 %v6062
        %8699 = vmatprep.subr.bf16.mxu0 %v6243
        %8700 = vmatpush2.bf16.msra.mxu0 %v6242
        %8701 = vmatprep.subr.bf16.mxu0 %v6231
        %8702 = vmatpush2.bf16.msra.mxu0 %v6230
        %8703 = vmatprep.subr.bf16.mxu0 %v6219
        %8704 = vmatpush2.bf16.msra.mxu0 %v6218
        %8705 = vmatprep.subr.bf16.mxu0 %v6207
        %8706 = vmatpush2.bf16.msra.mxu0 %v6206
        %8707 = vmatprep.subr.bf16.mxu0 %v6195
        %8708 = vmatpush2.bf16.msra.mxu0 %v6194
        %8709 = vmatprep.subr.bf16.mxu0 %v6183
        %8710 = vmatpush2.bf16.msra.mxu0 %v6182
        %8711 = vmatprep.subr.bf16.mxu0 %v6171
        %8712 = vmatpush2.bf16.msra.mxu0 %v6170
        %8713 = vmatprep.subr.bf16.mxu0 %v6159
        %8714 = vmatpush2.bf16.msra.mxu0 %v6158
        %8715 = vmatprep.mubr.bf16.mxu0 %v1151
        %8716 = vmatmul.mubr.bf16.gmra.mxu0 %v1150
        %v8717 = vpop.f32.mrf.mxu0
        %v8718 = vadd.f32 %v8645, %v8717
        %v8719 = vpop.f32.mrf.mxu0
        %v8720 = vadd.f32 %v8647, %v8719
        %v8721 = vpop.f32.mrf.mxu0
        %v8722 = vadd.f32 %v8649, %v8721
        %v8723 = vpop.f32.mrf.mxu0
        %v8724 = vadd.f32 %v8651, %v8723
        %8725 = vmatprep.mubr.bf16.mxu0 %v1163
        %8726 = vmatmul.mubr.bf16.gmra.mxu0 %v1162
        %v8727 = vpop.f32.mrf.mxu0
        %v8728 = vadd.f32 %v8655, %v8727
        %v8729 = vpop.f32.mrf.mxu0
        %v8730 = vadd.f32 %v8657, %v8729
        %v8731 = vpop.f32.mrf.mxu0
        %v8732 = vadd.f32 %v8659, %v8731
        %v8733 = vpop.f32.mrf.mxu0
        %v8734 = vadd.f32 %v8661, %v8733
        %8735 = vmatprep.mubr.bf16.mxu0 %v1175
        %8736 = vmatmul.mubr.bf16.gmra.mxu0 %v1174
        %v8737 = vpop.f32.mrf.mxu0
        %v8738 = vadd.f32 %v8665, %v8737
        %v8739 = vpop.f32.mrf.mxu0
        %v8740 = vadd.f32 %v8667, %v8739
        %v8741 = vpop.f32.mrf.mxu0
        %v8742 = vadd.f32 %v8669, %v8741
        %v8743 = vpop.f32.mrf.mxu0
        %v8744 = vadd.f32 %v8671, %v8743
        %8745 = vmatprep.mubr.bf16.mxu0 %v1187
        %8746 = vmatmul.mubr.bf16.gmra.mxu0 %v1186
        %v8747 = vpop.f32.mrf.mxu0
        %v8748 = vadd.f32 %v8675, %v8747
        %v8749 = vpop.f32.mrf.mxu0
        %v8750 = vadd.f32 %v8677, %v8749
        %v8751 = vpop.f32.mrf.mxu0
        %v8752 = vadd.f32 %v8679, %v8751
        %v8753 = vpop.f32.mrf.mxu0
        %v8754 = vadd.f32 %v8681, %v8753
        %8755 = vdwg.mxu0
        %8756 = vmatprep.subr.bf16.mxu0 %v6339
        %8757 = vmatpush1.bf16.msra.mxu0 %v6338
        %8758 = vmatprep.subr.bf16.mxu0 %v6327
        %8759 = vmatpush1.bf16.msra.mxu0 %v6326
        %8760 = vmatprep.subr.bf16.mxu0 %v6315
        %8761 = vmatpush1.bf16.msra.mxu0 %v6314
        %8762 = vmatprep.subr.bf16.mxu0 %v6303
        %8763 = vmatpush1.bf16.msra.mxu0 %v6302
        %8764 = vmatprep.subr.bf16.mxu0 %v6291
        %8765 = vmatpush1.bf16.msra.mxu0 %v6290
        %8766 = vmatprep.subr.bf16.mxu0 %v6279
        %8767 = vmatpush1.bf16.msra.mxu0 %v6278
        %8768 = vmatprep.subr.bf16.mxu0 %v6267
        %8769 = vmatpush1.bf16.msra.mxu0 %v6266
        %8770 = vmatprep.subr.bf16.mxu0 %v6255
        %8771 = vmatpush1.bf16.msra.mxu0 %v6254
        %8772 = vmatprep.subr.bf16.mxu0 %v6435
        %8773 = vmatpush2.bf16.msra.mxu0 %v6434
        %8774 = vmatprep.subr.bf16.mxu0 %v6423
        %8775 = vmatpush2.bf16.msra.mxu0 %v6422
        %8776 = vmatprep.subr.bf16.mxu0 %v6411
        %8777 = vmatpush2.bf16.msra.mxu0 %v6410
        %8778 = vmatprep.subr.bf16.mxu0 %v6399
        %8779 = vmatpush2.bf16.msra.mxu0 %v6398
        %8780 = vmatprep.subr.bf16.mxu0 %v6387
        %8781 = vmatpush2.bf16.msra.mxu0 %v6386
        %8782 = vmatprep.subr.bf16.mxu0 %v6375
        %8783 = vmatpush2.bf16.msra.mxu0 %v6374
        %8784 = vmatprep.subr.bf16.mxu0 %v6363
        %8785 = vmatpush2.bf16.msra.mxu0 %v6362
        %8786 = vmatprep.subr.bf16.mxu0 %v6351
        %8787 = vmatpush2.bf16.msra.mxu0 %v6350
        %8788 = vmatprep.mubr.bf16.mxu0 %v1153
        %8789 = vmatmul.mubr.bf16.gmra.mxu0 %v1152
        %v8790 = vpop.f32.mrf.mxu0
        %v8791 = vadd.f32 %v8718, %v8790
        %v8792 = vpop.f32.mrf.mxu0
        %v8793 = vadd.f32 %v8720, %v8792
        %v8794 = vpop.f32.mrf.mxu0
        %v8795 = vadd.f32 %v8722, %v8794
        %v8796 = vpop.f32.mrf.mxu0
        %v8797 = vadd.f32 %v8724, %v8796
        %8798 = vmatprep.mubr.bf16.mxu0 %v1165
        %8799 = vmatmul.mubr.bf16.gmra.mxu0 %v1164
        %v8800 = vpop.f32.mrf.mxu0
        %v8801 = vadd.f32 %v8728, %v8800
        %v8802 = vpop.f32.mrf.mxu0
        %v8803 = vadd.f32 %v8730, %v8802
        %v8804 = vpop.f32.mrf.mxu0
        %v8805 = vadd.f32 %v8732, %v8804
        %v8806 = vpop.f32.mrf.mxu0
        %v8807 = vadd.f32 %v8734, %v8806
        %8808 = vmatprep.mubr.bf16.mxu0 %v1177
        %8809 = vmatmul.mubr.bf16.gmra.mxu0 %v1176
        %v8810 = vpop.f32.mrf.mxu0
        %v8811 = vadd.f32 %v8738, %v8810
        %v8812 = vpop.f32.mrf.mxu0
        %v8813 = vadd.f32 %v8740, %v8812
        %v8814 = vpop.f32.mrf.mxu0
        %v8815 = vadd.f32 %v8742, %v8814
        %v8816 = vpop.f32.mrf.mxu0
        %v8817 = vadd.f32 %v8744, %v8816
        %8818 = vmatprep.mubr.bf16.mxu0 %v1189
        %8819 = vmatmul.mubr.bf16.gmra.mxu0 %v1188
        %v8820 = vpop.f32.mrf.mxu0
        %v8821 = vadd.f32 %v8748, %v8820
        %v8822 = vpop.f32.mrf.mxu0
        %v8823 = vadd.f32 %v8750, %v8822
        %v8824 = vpop.f32.mrf.mxu0
        %v8825 = vadd.f32 %v8752, %v8824
        %v8826 = vpop.f32.mrf.mxu0
        %v8827 = vadd.f32 %v8754, %v8826
        %8828 = vdwg.mxu0
        %8829 = vmatprep.subr.bf16.mxu0 %v6531
        %8830 = vmatpush1.bf16.msra.mxu0 %v6530
        %8831 = vmatprep.subr.bf16.mxu0 %v6519
        %8832 = vmatpush1.bf16.msra.mxu0 %v6518
        %8833 = vmatprep.subr.bf16.mxu0 %v6507
        %8834 = vmatpush1.bf16.msra.mxu0 %v6506
        %8835 = vmatprep.subr.bf16.mxu0 %v6495
        %8836 = vmatpush1.bf16.msra.mxu0 %v6494
        %8837 = vmatprep.subr.bf16.mxu0 %v6483
        %8838 = vmatpush1.bf16.msra.mxu0 %v6482
        %8839 = vmatprep.subr.bf16.mxu0 %v6471
        %8840 = vmatpush1.bf16.msra.mxu0 %v6470
        %8841 = vmatprep.subr.bf16.mxu0 %v6459
        %8842 = vmatpush1.bf16.msra.mxu0 %v6458
        %8843 = vmatprep.subr.bf16.mxu0 %v6447
        %8844 = vmatpush1.bf16.msra.mxu0 %v6446
        %8845 = vmatprep.subr.bf16.mxu0 %v6627
        %8846 = vmatpush2.bf16.msra.mxu0 %v6626
        %8847 = vmatprep.subr.bf16.mxu0 %v6615
        %8848 = vmatpush2.bf16.msra.mxu0 %v6614
        %8849 = vmatprep.subr.bf16.mxu0 %v6603
        %8850 = vmatpush2.bf16.msra.mxu0 %v6602
        %8851 = vmatprep.subr.bf16.mxu0 %v6591
        %8852 = vmatpush2.bf16.msra.mxu0 %v6590
        %8853 = vmatprep.subr.bf16.mxu0 %v6579
        %8854 = vmatpush2.bf16.msra.mxu0 %v6578
        %8855 = vmatprep.subr.bf16.mxu0 %v6567
        %8856 = vmatpush2.bf16.msra.mxu0 %v6566
        %8857 = vmatprep.subr.bf16.mxu0 %v6555
        %8858 = vmatpush2.bf16.msra.mxu0 %v6554
        %8859 = vmatprep.subr.bf16.mxu0 %v6543
        %8860 = vmatpush2.bf16.msra.mxu0 %v6542
        %8861 = vmatprep.mubr.bf16.mxu0 %v1155
        %8862 = vmatmul.mubr.bf16.gmra.mxu0 %v1154
        %v8863 = vpop.f32.mrf.mxu0
        %v8864 = vadd.f32 %v8791, %v8863
        %v8865 = vpop.f32.mrf.mxu0
        %v8866 = vadd.f32 %v8793, %v8865
        %v8867 = vpop.f32.mrf.mxu0
        %v8868 = vadd.f32 %v8795, %v8867
        %v8869 = vpop.f32.mrf.mxu0
        %v8870 = vadd.f32 %v8797, %v8869
        %8871 = vmatprep.mubr.bf16.mxu0 %v1167
        %8872 = vmatmul.mubr.bf16.gmra.mxu0 %v1166
        %v8873 = vpop.f32.mrf.mxu0
        %v8874 = vadd.f32 %v8801, %v8873
        %v8875 = vpop.f32.mrf.mxu0
        %v8876 = vadd.f32 %v8803, %v8875
        %v8877 = vpop.f32.mrf.mxu0
        %v8878 = vadd.f32 %v8805, %v8877
        %v8879 = vpop.f32.mrf.mxu0
        %v8880 = vadd.f32 %v8807, %v8879
        %8881 = vmatprep.mubr.bf16.mxu0 %v1179
        %8882 = vmatmul.mubr.bf16.gmra.mxu0 %v1178
        %v8883 = vpop.f32.mrf.mxu0
        %v8884 = vadd.f32 %v8811, %v8883
        %v8885 = vpop.f32.mrf.mxu0
        %v8886 = vadd.f32 %v8813, %v8885
        %v8887 = vpop.f32.mrf.mxu0
        %v8888 = vadd.f32 %v8815, %v8887
        %v8889 = vpop.f32.mrf.mxu0
        %v8890 = vadd.f32 %v8817, %v8889
        %8891 = vmatprep.mubr.bf16.mxu0 %v1191
        %8892 = vmatmul.mubr.bf16.gmra.mxu0 %v1190
        %v8893 = vpop.f32.mrf.mxu0
        %v8894 = vadd.f32 %v8821, %v8893
        %v8895 = vpop.f32.mrf.mxu0
        %v8896 = vadd.f32 %v8823, %v8895
        %v8897 = vpop.f32.mrf.mxu0
        %v8898 = vadd.f32 %v8825, %v8897
        %v8899 = vpop.f32.mrf.mxu0
        %v8900 = vadd.f32 %v8827, %v8899
        %8901 = vdwg.mxu0
        %8902 = vmatprep.subr.bf16.mxu0 %v6723
        %8903 = vmatpush1.bf16.msra.mxu0 %v6722
        %8904 = vmatprep.subr.bf16.mxu0 %v6711
        %8905 = vmatpush1.bf16.msra.mxu0 %v6710
        %8906 = vmatprep.subr.bf16.mxu0 %v6699
        %8907 = vmatpush1.bf16.msra.mxu0 %v6698
        %8908 = vmatprep.subr.bf16.mxu0 %v6687
        %8909 = vmatpush1.bf16.msra.mxu0 %v6686
        %8910 = vmatprep.subr.bf16.mxu0 %v6675
        %8911 = vmatpush1.bf16.msra.mxu0 %v6674
        %8912 = vmatprep.subr.bf16.mxu0 %v6663
        %8913 = vmatpush1.bf16.msra.mxu0 %v6662
        %8914 = vmatprep.subr.bf16.mxu0 %v6651
        %8915 = vmatpush1.bf16.msra.mxu0 %v6650
        %8916 = vmatprep.subr.bf16.mxu0 %v6639
        %8917 = vmatpush1.bf16.msra.mxu0 %v6638
        %8918 = vmatprep.subr.bf16.mxu0 %v6819
        %8919 = vmatpush2.bf16.msra.mxu0 %v6818
        %8920 = vmatprep.subr.bf16.mxu0 %v6807
        %8921 = vmatpush2.bf16.msra.mxu0 %v6806
        %8922 = vmatprep.subr.bf16.mxu0 %v6795
        %8923 = vmatpush2.bf16.msra.mxu0 %v6794
        %8924 = vmatprep.subr.bf16.mxu0 %v6783
        %8925 = vmatpush2.bf16.msra.mxu0 %v6782
        %8926 = vmatprep.subr.bf16.mxu0 %v6771
        %8927 = vmatpush2.bf16.msra.mxu0 %v6770
        %8928 = vmatprep.subr.bf16.mxu0 %v6759
        %8929 = vmatpush2.bf16.msra.mxu0 %v6758
        %8930 = vmatprep.subr.bf16.mxu0 %v6747
        %8931 = vmatpush2.bf16.msra.mxu0 %v6746
        %8932 = vmatprep.subr.bf16.mxu0 %v6735
        %8933 = vmatpush2.bf16.msra.mxu0 %v6734
        %8934 = vmatprep.mubr.bf16.mxu0 %v1157
        %8935 = vmatmul.mubr.bf16.gmra.mxu0 %v1156
        %v8936 = vpop.f32.mrf.mxu0
        %v8937 = vadd.f32 %v8864, %v8936
        %v8938 = vpop.f32.mrf.mxu0
        %v8939 = vadd.f32 %v8866, %v8938
        %v8940 = vpop.f32.mrf.mxu0
        %v8941 = vadd.f32 %v8868, %v8940
        %v8942 = vpop.f32.mrf.mxu0
        %v8943 = vadd.f32 %v8870, %v8942
        %8944 = vmatprep.mubr.bf16.mxu0 %v1169
        %8945 = vmatmul.mubr.bf16.gmra.mxu0 %v1168
        %v8946 = vpop.f32.mrf.mxu0
        %v8947 = vadd.f32 %v8874, %v8946
        %v8948 = vpop.f32.mrf.mxu0
        %v8949 = vadd.f32 %v8876, %v8948
        %v8950 = vpop.f32.mrf.mxu0
        %v8951 = vadd.f32 %v8878, %v8950
        %v8952 = vpop.f32.mrf.mxu0
        %v8953 = vadd.f32 %v8880, %v8952
        %8954 = vmatprep.mubr.bf16.mxu0 %v1181
        %8955 = vmatmul.mubr.bf16.gmra.mxu0 %v1180
        %v8956 = vpop.f32.mrf.mxu0
        %v8957 = vadd.f32 %v8884, %v8956
        %v8958 = vpop.f32.mrf.mxu0
        %v8959 = vadd.f32 %v8886, %v8958
        %v8960 = vpop.f32.mrf.mxu0
        %v8961 = vadd.f32 %v8888, %v8960
        %v8962 = vpop.f32.mrf.mxu0
        %v8963 = vadd.f32 %v8890, %v8962
        %8964 = vmatprep.mubr.bf16.mxu0 %v1193
        %8965 = vmatmul.mubr.bf16.gmra.mxu0 %v1192
        %v8966 = vpop.f32.mrf.mxu0
        %v8967 = vadd.f32 %v8894, %v8966
        %v8968 = vpop.f32.mrf.mxu0
        %v8969 = vadd.f32 %v8896, %v8968
        %v8970 = vpop.f32.mrf.mxu0
        %v8971 = vadd.f32 %v8898, %v8970
        %v8972 = vpop.f32.mrf.mxu0
        %v8973 = vadd.f32 %v8900, %v8972
        %8974 = vdwg.mxu0
        %8975 = vmatprep.subr.bf16.mxu0 %v6915
        %8976 = vmatpush1.bf16.msra.mxu0 %v6914
        %8977 = vmatprep.subr.bf16.mxu0 %v6903
        %8978 = vmatpush1.bf16.msra.mxu0 %v6902
        %8979 = vmatprep.subr.bf16.mxu0 %v6891
        %8980 = vmatpush1.bf16.msra.mxu0 %v6890
        %8981 = vmatprep.subr.bf16.mxu0 %v6879
        %8982 = vmatpush1.bf16.msra.mxu0 %v6878
        %8983 = vmatprep.subr.bf16.mxu0 %v6867
        %8984 = vmatpush1.bf16.msra.mxu0 %v6866
        %8985 = vmatprep.subr.bf16.mxu0 %v6855
        %8986 = vmatpush1.bf16.msra.mxu0 %v6854
        %8987 = vmatprep.subr.bf16.mxu0 %v6843
        %8988 = vmatpush1.bf16.msra.mxu0 %v6842
        %8989 = vmatprep.subr.bf16.mxu0 %v6831
        %8990 = vmatpush1.bf16.msra.mxu0 %v6830
        %8991 = vmatprep.subr.bf16.mxu0 %v7011
        %8992 = vmatpush2.bf16.msra.mxu0 %v7010
        %8993 = vmatprep.subr.bf16.mxu0 %v6999
        %8994 = vmatpush2.bf16.msra.mxu0 %v6998
        %8995 = vmatprep.subr.bf16.mxu0 %v6987
        %8996 = vmatpush2.bf16.msra.mxu0 %v6986
        %8997 = vmatprep.subr.bf16.mxu0 %v6975
        %8998 = vmatpush2.bf16.msra.mxu0 %v6974
        %8999 = vmatprep.subr.bf16.mxu0 %v6963
        %9000 = vmatpush2.bf16.msra.mxu0 %v6962
        %9001 = vmatprep.subr.bf16.mxu0 %v6951
        %9002 = vmatpush2.bf16.msra.mxu0 %v6950
        %9003 = vmatprep.subr.bf16.mxu0 %v6939
        %9004 = vmatpush2.bf16.msra.mxu0 %v6938
        %9005 = vmatprep.subr.bf16.mxu0 %v6927
        %9006 = vmatpush2.bf16.msra.mxu0 %v6926
        %9007 = vmatprep.mubr.bf16.mxu0 %v1159
        %9008 = vmatmul.mubr.bf16.gmra.mxu0 %v1158
        %v9009 = vpop.f32.mrf.mxu0
        %v9010 = vadd.f32 %v8937, %v9009
        %v9011 = vpop.f32.mrf.mxu0
        %v9012 = vadd.f32 %v8939, %v9011
        %v9013 = vpop.f32.mrf.mxu0
        %v9014 = vadd.f32 %v8941, %v9013
        %v9015 = vpop.f32.mrf.mxu0
        %v9016 = vadd.f32 %v8943, %v9015
        %9017 = vmatprep.mubr.bf16.mxu0 %v1171
        %9018 = vmatmul.mubr.bf16.gmra.mxu0 %v1170
        %v9019 = vpop.f32.mrf.mxu0
        %v9020 = vadd.f32 %v8947, %v9019
        %v9021 = vpop.f32.mrf.mxu0
        %v9022 = vadd.f32 %v8949, %v9021
        %v9023 = vpop.f32.mrf.mxu0
        %v9024 = vadd.f32 %v8951, %v9023
        %v9025 = vpop.f32.mrf.mxu0
        %v9026 = vadd.f32 %v8953, %v9025
        %9027 = vmatprep.mubr.bf16.mxu0 %v1183
        %9028 = vmatmul.mubr.bf16.gmra.mxu0 %v1182
        %v9029 = vpop.f32.mrf.mxu0
        %v9030 = vadd.f32 %v8957, %v9029
        %v9031 = vpop.f32.mrf.mxu0
        %v9032 = vadd.f32 %v8959, %v9031
        %v9033 = vpop.f32.mrf.mxu0
        %v9034 = vadd.f32 %v8961, %v9033
        %v9035 = vpop.f32.mrf.mxu0
        %v9036 = vadd.f32 %v8963, %v9035
        %9037 = vmatprep.mubr.bf16.mxu0 %v1195
        %9038 = vmatmul.mubr.bf16.gmra.mxu0 %v1194
        %v9039 = vpop.f32.mrf.mxu0
        %v9040 = vadd.f32 %v8967, %v9039
        %v9041 = vpop.f32.mrf.mxu0
        %v9042 = vadd.f32 %v8969, %v9041
        %v9043 = vpop.f32.mrf.mxu0
        %v9044 = vadd.f32 %v8971, %v9043
        %v9045 = vpop.f32.mrf.mxu0
        %v9046 = vadd.f32 %v8973, %v9045
        %9047 = vdwg.mxu0
        %9048 = vmatprep.subr.bf16.mxu0 %v5957
        %9049 = vmatpush1.bf16.msra.mxu0 %v5956
        %9050 = vmatprep.subr.bf16.mxu0 %v5945
        %9051 = vmatpush1.bf16.msra.mxu0 %v5944
        %9052 = vmatprep.subr.bf16.mxu0 %v5933
        %9053 = vmatpush1.bf16.msra.mxu0 %v5932
        %9054 = vmatprep.subr.bf16.mxu0 %v5921
        %9055 = vmatpush1.bf16.msra.mxu0 %v5920
        %9056 = vmatprep.subr.bf16.mxu0 %v5909
        %9057 = vmatpush1.bf16.msra.mxu0 %v5908
        %9058 = vmatprep.subr.bf16.mxu0 %v5897
        %9059 = vmatpush1.bf16.msra.mxu0 %v5896
        %9060 = vmatprep.subr.bf16.mxu0 %v5885
        %9061 = vmatpush1.bf16.msra.mxu0 %v5884
        %9062 = vmatprep.subr.bf16.mxu0 %v5873
        %9063 = vmatpush1.bf16.msra.mxu0 %v5872
        %9064 = vmatprep.subr.bf16.mxu0 %v6053
        %9065 = vmatpush2.bf16.msra.mxu0 %v6052
        %9066 = vmatprep.subr.bf16.mxu0 %v6041
        %9067 = vmatpush2.bf16.msra.mxu0 %v6040
        %9068 = vmatprep.subr.bf16.mxu0 %v6029
        %9069 = vmatpush2.bf16.msra.mxu0 %v6028
        %9070 = vmatprep.subr.bf16.mxu0 %v6017
        %9071 = vmatpush2.bf16.msra.mxu0 %v6016
        %9072 = vmatprep.subr.bf16.mxu0 %v6005
        %9073 = vmatpush2.bf16.msra.mxu0 %v6004
        %9074 = vmatprep.subr.bf16.mxu0 %v5993
        %9075 = vmatpush2.bf16.msra.mxu0 %v5992
        %9076 = vmatprep.subr.bf16.mxu0 %v5981
        %9077 = vmatpush2.bf16.msra.mxu0 %v5980
        %9078 = vmatprep.subr.bf16.mxu0 %v5969
        %9079 = vmatpush2.bf16.msra.mxu0 %v5968
        %9080 = vmatprep.mubr.bf16.mxu0 %v1149
        %9081 = vmatmul.mubr.bf16.gmra.mxu0 %v1148
        %v9082 = vpop.f32.mrf.mxu0
        %v9083 = vadd.f32 %v2371, %v9082
        %v9084 = vpop.f32.mrf.mxu0
        %v9085 = vadd.f32 %v2375, %v9084
        %v9086 = vpop.f32.mrf.mxu0
        %v9087 = vadd.f32 %v2371, %v9086
        %v9088 = vpop.f32.mrf.mxu0
        %v9089 = vadd.f32 %v2375, %v9088
        %9090 = vmatprep.mubr.bf16.mxu0 %v1161
        %9091 = vmatmul.mubr.bf16.gmra.mxu0 %v1160
        %v9092 = vpop.f32.mrf.mxu0
        %v9093 = vadd.f32 %v2371, %v9092
        %v9094 = vpop.f32.mrf.mxu0
        %v9095 = vadd.f32 %v2375, %v9094
        %v9096 = vpop.f32.mrf.mxu0
        %v9097 = vadd.f32 %v2371, %v9096
        %v9098 = vpop.f32.mrf.mxu0
        %v9099 = vadd.f32 %v2375, %v9098
        %9100 = vmatprep.mubr.bf16.mxu0 %v1173
        %9101 = vmatmul.mubr.bf16.gmra.mxu0 %v1172
        %v9102 = vpop.f32.mrf.mxu0
        %v9103 = vadd.f32 %v2371, %v9102
        %v9104 = vpop.f32.mrf.mxu0
        %v9105 = vadd.f32 %v2375, %v9104
        %v9106 = vpop.f32.mrf.mxu0
        %v9107 = vadd.f32 %v2371, %v9106
        %v9108 = vpop.f32.mrf.mxu0
        %v9109 = vadd.f32 %v2375, %v9108
        %9110 = vmatprep.mubr.bf16.mxu0 %v1185
        %9111 = vmatmul.mubr.bf16.gmra.mxu0 %v1184
        %v9112 = vpop.f32.mrf.mxu0
        %v9113 = vadd.f32 %v2371, %v9112
        %v9114 = vpop.f32.mrf.mxu0
        %v9115 = vadd.f32 %v2375, %v9114
        %v9116 = vpop.f32.mrf.mxu0
        %v9117 = vadd.f32 %v2371, %v9116
        %v9118 = vpop.f32.mrf.mxu0
        %v9119 = vadd.f32 %v2375, %v9118
        %9120 = vdwg.mxu0
        %9121 = vmatprep.subr.bf16.mxu0 %v6149
        %9122 = vmatpush1.bf16.msra.mxu0 %v6148
        %9123 = vmatprep.subr.bf16.mxu0 %v6137
        %9124 = vmatpush1.bf16.msra.mxu0 %v6136
        %9125 = vmatprep.subr.bf16.mxu0 %v6125
        %9126 = vmatpush1.bf16.msra.mxu0 %v6124
        %9127 = vmatprep.subr.bf16.mxu0 %v6113
        %9128 = vmatpush1.bf16.msra.mxu0 %v6112
        %9129 = vmatprep.subr.bf16.mxu0 %v6101
        %9130 = vmatpush1.bf16.msra.mxu0 %v6100
        %9131 = vmatprep.subr.bf16.mxu0 %v6089
        %9132 = vmatpush1.bf16.msra.mxu0 %v6088
        %9133 = vmatprep.subr.bf16.mxu0 %v6077
        %9134 = vmatpush1.bf16.msra.mxu0 %v6076
        %9135 = vmatprep.subr.bf16.mxu0 %v6065
        %9136 = vmatpush1.bf16.msra.mxu0 %v6064
        %9137 = vmatprep.subr.bf16.mxu0 %v6245
        %9138 = vmatpush2.bf16.msra.mxu0 %v6244
        %9139 = vmatprep.subr.bf16.mxu0 %v6233
        %9140 = vmatpush2.bf16.msra.mxu0 %v6232
        %9141 = vmatprep.subr.bf16.mxu0 %v6221
        %9142 = vmatpush2.bf16.msra.mxu0 %v6220
        %9143 = vmatprep.subr.bf16.mxu0 %v6209
        %9144 = vmatpush2.bf16.msra.mxu0 %v6208
        %9145 = vmatprep.subr.bf16.mxu0 %v6197
        %9146 = vmatpush2.bf16.msra.mxu0 %v6196
        %9147 = vmatprep.subr.bf16.mxu0 %v6185
        %9148 = vmatpush2.bf16.msra.mxu0 %v6184
        %9149 = vmatprep.subr.bf16.mxu0 %v6173
        %9150 = vmatpush2.bf16.msra.mxu0 %v6172
        %9151 = vmatprep.subr.bf16.mxu0 %v6161
        %9152 = vmatpush2.bf16.msra.mxu0 %v6160
        %9153 = vmatprep.mubr.bf16.mxu0 %v1151
        %9154 = vmatmul.mubr.bf16.gmra.mxu0 %v1150
        %v9155 = vpop.f32.mrf.mxu0
        %v9156 = vadd.f32 %v9083, %v9155
        %v9157 = vpop.f32.mrf.mxu0
        %v9158 = vadd.f32 %v9085, %v9157
        %v9159 = vpop.f32.mrf.mxu0
        %v9160 = vadd.f32 %v9087, %v9159
        %v9161 = vpop.f32.mrf.mxu0
        %v9162 = vadd.f32 %v9089, %v9161
        %9163 = vmatprep.mubr.bf16.mxu0 %v1163
        %9164 = vmatmul.mubr.bf16.gmra.mxu0 %v1162
        %v9165 = vpop.f32.mrf.mxu0
        %v9166 = vadd.f32 %v9093, %v9165
        %v9167 = vpop.f32.mrf.mxu0
        %v9168 = vadd.f32 %v9095, %v9167
        %v9169 = vpop.f32.mrf.mxu0
        %v9170 = vadd.f32 %v9097, %v9169
        %v9171 = vpop.f32.mrf.mxu0
        %v9172 = vadd.f32 %v9099, %v9171
        %9173 = vmatprep.mubr.bf16.mxu0 %v1175
        %9174 = vmatmul.mubr.bf16.gmra.mxu0 %v1174
        %v9175 = vpop.f32.mrf.mxu0
        %v9176 = vadd.f32 %v9103, %v9175
        %v9177 = vpop.f32.mrf.mxu0
        %v9178 = vadd.f32 %v9105, %v9177
        %v9179 = vpop.f32.mrf.mxu0
        %v9180 = vadd.f32 %v9107, %v9179
        %v9181 = vpop.f32.mrf.mxu0
        %v9182 = vadd.f32 %v9109, %v9181
        %9183 = vmatprep.mubr.bf16.mxu0 %v1187
        %9184 = vmatmul.mubr.bf16.gmra.mxu0 %v1186
        %v9185 = vpop.f32.mrf.mxu0
        %v9186 = vadd.f32 %v9113, %v9185
        %v9187 = vpop.f32.mrf.mxu0
        %v9188 = vadd.f32 %v9115, %v9187
        %v9189 = vpop.f32.mrf.mxu0
        %v9190 = vadd.f32 %v9117, %v9189
        %v9191 = vpop.f32.mrf.mxu0
        %v9192 = vadd.f32 %v9119, %v9191
        %9193 = vdwg.mxu0
        %9194 = vmatprep.subr.bf16.mxu0 %v6341
        %9195 = vmatpush1.bf16.msra.mxu0 %v6340
        %9196 = vmatprep.subr.bf16.mxu0 %v6329
        %9197 = vmatpush1.bf16.msra.mxu0 %v6328
        %9198 = vmatprep.subr.bf16.mxu0 %v6317
        %9199 = vmatpush1.bf16.msra.mxu0 %v6316
        %9200 = vmatprep.subr.bf16.mxu0 %v6305
        %9201 = vmatpush1.bf16.msra.mxu0 %v6304
        %9202 = vmatprep.subr.bf16.mxu0 %v6293
        %9203 = vmatpush1.bf16.msra.mxu0 %v6292
        %9204 = vmatprep.subr.bf16.mxu0 %v6281
        %9205 = vmatpush1.bf16.msra.mxu0 %v6280
        %9206 = vmatprep.subr.bf16.mxu0 %v6269
        %9207 = vmatpush1.bf16.msra.mxu0 %v6268
        %9208 = vmatprep.subr.bf16.mxu0 %v6257
        %9209 = vmatpush1.bf16.msra.mxu0 %v6256
        %9210 = vmatprep.subr.bf16.mxu0 %v6437
        %9211 = vmatpush2.bf16.msra.mxu0 %v6436
        %9212 = vmatprep.subr.bf16.mxu0 %v6425
        %9213 = vmatpush2.bf16.msra.mxu0 %v6424
        %9214 = vmatprep.subr.bf16.mxu0 %v6413
        %9215 = vmatpush2.bf16.msra.mxu0 %v6412
        %9216 = vmatprep.subr.bf16.mxu0 %v6401
        %9217 = vmatpush2.bf16.msra.mxu0 %v6400
        %9218 = vmatprep.subr.bf16.mxu0 %v6389
        %9219 = vmatpush2.bf16.msra.mxu0 %v6388
        %9220 = vmatprep.subr.bf16.mxu0 %v6377
        %9221 = vmatpush2.bf16.msra.mxu0 %v6376
        %9222 = vmatprep.subr.bf16.mxu0 %v6365
        %9223 = vmatpush2.bf16.msra.mxu0 %v6364
        %9224 = vmatprep.subr.bf16.mxu0 %v6353
        %9225 = vmatpush2.bf16.msra.mxu0 %v6352
        %9226 = vmatprep.mubr.bf16.mxu0 %v1153
        %9227 = vmatmul.mubr.bf16.gmra.mxu0 %v1152
        %v9228 = vpop.f32.mrf.mxu0
        %v9229 = vadd.f32 %v9156, %v9228
        %v9230 = vpop.f32.mrf.mxu0
        %v9231 = vadd.f32 %v9158, %v9230
        %v9232 = vpop.f32.mrf.mxu0
        %v9233 = vadd.f32 %v9160, %v9232
        %v9234 = vpop.f32.mrf.mxu0
        %v9235 = vadd.f32 %v9162, %v9234
        %9236 = vmatprep.mubr.bf16.mxu0 %v1165
        %9237 = vmatmul.mubr.bf16.gmra.mxu0 %v1164
        %v9238 = vpop.f32.mrf.mxu0
        %v9239 = vadd.f32 %v9166, %v9238
        %v9240 = vpop.f32.mrf.mxu0
        %v9241 = vadd.f32 %v9168, %v9240
        %v9242 = vpop.f32.mrf.mxu0
        %v9243 = vadd.f32 %v9170, %v9242
        %v9244 = vpop.f32.mrf.mxu0
        %v9245 = vadd.f32 %v9172, %v9244
        %9246 = vmatprep.mubr.bf16.mxu0 %v1177
        %9247 = vmatmul.mubr.bf16.gmra.mxu0 %v1176
        %v9248 = vpop.f32.mrf.mxu0
        %v9249 = vadd.f32 %v9176, %v9248
        %v9250 = vpop.f32.mrf.mxu0
        %v9251 = vadd.f32 %v9178, %v9250
        %v9252 = vpop.f32.mrf.mxu0
        %v9253 = vadd.f32 %v9180, %v9252
        %v9254 = vpop.f32.mrf.mxu0
        %v9255 = vadd.f32 %v9182, %v9254
        %9256 = vmatprep.mubr.bf16.mxu0 %v1189
        %9257 = vmatmul.mubr.bf16.gmra.mxu0 %v1188
        %v9258 = vpop.f32.mrf.mxu0
        %v9259 = vadd.f32 %v9186, %v9258
        %v9260 = vpop.f32.mrf.mxu0
        %v9261 = vadd.f32 %v9188, %v9260
        %v9262 = vpop.f32.mrf.mxu0
        %v9263 = vadd.f32 %v9190, %v9262
        %v9264 = vpop.f32.mrf.mxu0
        %v9265 = vadd.f32 %v9192, %v9264
        %9266 = vdwg.mxu0
        %9267 = vmatprep.subr.bf16.mxu0 %v6533
        %9268 = vmatpush1.bf16.msra.mxu0 %v6532
        %9269 = vmatprep.subr.bf16.mxu0 %v6521
        %9270 = vmatpush1.bf16.msra.mxu0 %v6520
        %9271 = vmatprep.subr.bf16.mxu0 %v6509
        %9272 = vmatpush1.bf16.msra.mxu0 %v6508
        %9273 = vmatprep.subr.bf16.mxu0 %v6497
        %9274 = vmatpush1.bf16.msra.mxu0 %v6496
        %9275 = vmatprep.subr.bf16.mxu0 %v6485
        %9276 = vmatpush1.bf16.msra.mxu0 %v6484
        %9277 = vmatprep.subr.bf16.mxu0 %v6473
        %9278 = vmatpush1.bf16.msra.mxu0 %v6472
        %9279 = vmatprep.subr.bf16.mxu0 %v6461
        %9280 = vmatpush1.bf16.msra.mxu0 %v6460
        %9281 = vmatprep.subr.bf16.mxu0 %v6449
        %9282 = vmatpush1.bf16.msra.mxu0 %v6448
        %9283 = vmatprep.subr.bf16.mxu0 %v6629
        %9284 = vmatpush2.bf16.msra.mxu0 %v6628
        %9285 = vmatprep.subr.bf16.mxu0 %v6617
        %9286 = vmatpush2.bf16.msra.mxu0 %v6616
        %9287 = vmatprep.subr.bf16.mxu0 %v6605
        %9288 = vmatpush2.bf16.msra.mxu0 %v6604
        %9289 = vmatprep.subr.bf16.mxu0 %v6593
        %9290 = vmatpush2.bf16.msra.mxu0 %v6592
        %9291 = vmatprep.subr.bf16.mxu0 %v6581
        %9292 = vmatpush2.bf16.msra.mxu0 %v6580
        %9293 = vmatprep.subr.bf16.mxu0 %v6569
        %9294 = vmatpush2.bf16.msra.mxu0 %v6568
        %9295 = vmatprep.subr.bf16.mxu0 %v6557
        %9296 = vmatpush2.bf16.msra.mxu0 %v6556
        %9297 = vmatprep.subr.bf16.mxu0 %v6545
        %9298 = vmatpush2.bf16.msra.mxu0 %v6544
        %9299 = vmatprep.mubr.bf16.mxu0 %v1155
        %9300 = vmatmul.mubr.bf16.gmra.mxu0 %v1154
        %v9301 = vpop.f32.mrf.mxu0
        %v9302 = vadd.f32 %v9229, %v9301
        %v9303 = vpop.f32.mrf.mxu0
        %v9304 = vadd.f32 %v9231, %v9303
        %v9305 = vpop.f32.mrf.mxu0
        %v9306 = vadd.f32 %v9233, %v9305
        %v9307 = vpop.f32.mrf.mxu0
        %v9308 = vadd.f32 %v9235, %v9307
        %9309 = vmatprep.mubr.bf16.mxu0 %v1167
        %9310 = vmatmul.mubr.bf16.gmra.mxu0 %v1166
        %v9311 = vpop.f32.mrf.mxu0
        %v9312 = vadd.f32 %v9239, %v9311
        %v9313 = vpop.f32.mrf.mxu0
        %v9314 = vadd.f32 %v9241, %v9313
        %v9315 = vpop.f32.mrf.mxu0
        %v9316 = vadd.f32 %v9243, %v9315
        %v9317 = vpop.f32.mrf.mxu0
        %v9318 = vadd.f32 %v9245, %v9317
        %9319 = vmatprep.mubr.bf16.mxu0 %v1179
        %9320 = vmatmul.mubr.bf16.gmra.mxu0 %v1178
        %v9321 = vpop.f32.mrf.mxu0
        %v9322 = vadd.f32 %v9249, %v9321
        %v9323 = vpop.f32.mrf.mxu0
        %v9324 = vadd.f32 %v9251, %v9323
        %v9325 = vpop.f32.mrf.mxu0
        %v9326 = vadd.f32 %v9253, %v9325
        %v9327 = vpop.f32.mrf.mxu0
        %v9328 = vadd.f32 %v9255, %v9327
        %9329 = vmatprep.mubr.bf16.mxu0 %v1191
        %9330 = vmatmul.mubr.bf16.gmra.mxu0 %v1190
        %v9331 = vpop.f32.mrf.mxu0
        %v9332 = vadd.f32 %v9259, %v9331
        %v9333 = vpop.f32.mrf.mxu0
        %v9334 = vadd.f32 %v9261, %v9333
        %v9335 = vpop.f32.mrf.mxu0
        %v9336 = vadd.f32 %v9263, %v9335
        %v9337 = vpop.f32.mrf.mxu0
        %v9338 = vadd.f32 %v9265, %v9337
        %9339 = vdwg.mxu0
        %9340 = vmatprep.subr.bf16.mxu0 %v6725
        %9341 = vmatpush1.bf16.msra.mxu0 %v6724
        %9342 = vmatprep.subr.bf16.mxu0 %v6713
        %9343 = vmatpush1.bf16.msra.mxu0 %v6712
        %9344 = vmatprep.subr.bf16.mxu0 %v6701
        %9345 = vmatpush1.bf16.msra.mxu0 %v6700
        %9346 = vmatprep.subr.bf16.mxu0 %v6689
        %9347 = vmatpush1.bf16.msra.mxu0 %v6688
        %9348 = vmatprep.subr.bf16.mxu0 %v6677
        %9349 = vmatpush1.bf16.msra.mxu0 %v6676
        %9350 = vmatprep.subr.bf16.mxu0 %v6665
        %9351 = vmatpush1.bf16.msra.mxu0 %v6664
        %9352 = vmatprep.subr.bf16.mxu0 %v6653
        %9353 = vmatpush1.bf16.msra.mxu0 %v6652
        %9354 = vmatprep.subr.bf16.mxu0 %v6641
        %9355 = vmatpush1.bf16.msra.mxu0 %v6640
        %9356 = vmatprep.subr.bf16.mxu0 %v6821
        %9357 = vmatpush2.bf16.msra.mxu0 %v6820
        %9358 = vmatprep.subr.bf16.mxu0 %v6809
        %9359 = vmatpush2.bf16.msra.mxu0 %v6808
        %9360 = vmatprep.subr.bf16.mxu0 %v6797
        %9361 = vmatpush2.bf16.msra.mxu0 %v6796
        %9362 = vmatprep.subr.bf16.mxu0 %v6785
        %9363 = vmatpush2.bf16.msra.mxu0 %v6784
        %9364 = vmatprep.subr.bf16.mxu0 %v6773
        %9365 = vmatpush2.bf16.msra.mxu0 %v6772
        %9366 = vmatprep.subr.bf16.mxu0 %v6761
        %9367 = vmatpush2.bf16.msra.mxu0 %v6760
        %9368 = vmatprep.subr.bf16.mxu0 %v6749
        %9369 = vmatpush2.bf16.msra.mxu0 %v6748
        %9370 = vmatprep.subr.bf16.mxu0 %v6737
        %9371 = vmatpush2.bf16.msra.mxu0 %v6736
        %9372 = vmatprep.mubr.bf16.mxu0 %v1157
        %9373 = vmatmul.mubr.bf16.gmra.mxu0 %v1156
        %v9374 = vpop.f32.mrf.mxu0
        %v9375 = vadd.f32 %v9302, %v9374
        %v9376 = vpop.f32.mrf.mxu0
        %v9377 = vadd.f32 %v9304, %v9376
        %v9378 = vpop.f32.mrf.mxu0
        %v9379 = vadd.f32 %v9306, %v9378
        %v9380 = vpop.f32.mrf.mxu0
        %v9381 = vadd.f32 %v9308, %v9380
        %9382 = vmatprep.mubr.bf16.mxu0 %v1169
        %9383 = vmatmul.mubr.bf16.gmra.mxu0 %v1168
        %v9384 = vpop.f32.mrf.mxu0
        %v9385 = vadd.f32 %v9312, %v9384
        %v9386 = vpop.f32.mrf.mxu0
        %v9387 = vadd.f32 %v9314, %v9386
        %v9388 = vpop.f32.mrf.mxu0
        %v9389 = vadd.f32 %v9316, %v9388
        %v9390 = vpop.f32.mrf.mxu0
        %v9391 = vadd.f32 %v9318, %v9390
        %9392 = vmatprep.mubr.bf16.mxu0 %v1181
        %9393 = vmatmul.mubr.bf16.gmra.mxu0 %v1180
        %v9394 = vpop.f32.mrf.mxu0
        %v9395 = vadd.f32 %v9322, %v9394
        %v9396 = vpop.f32.mrf.mxu0
        %v9397 = vadd.f32 %v9324, %v9396
        %v9398 = vpop.f32.mrf.mxu0
        %v9399 = vadd.f32 %v9326, %v9398
        %v9400 = vpop.f32.mrf.mxu0
        %v9401 = vadd.f32 %v9328, %v9400
        %9402 = vmatprep.mubr.bf16.mxu0 %v1193
        %9403 = vmatmul.mubr.bf16.gmra.mxu0 %v1192
        %v9404 = vpop.f32.mrf.mxu0
        %v9405 = vadd.f32 %v9332, %v9404
        %v9406 = vpop.f32.mrf.mxu0
        %v9407 = vadd.f32 %v9334, %v9406
        %v9408 = vpop.f32.mrf.mxu0
        %v9409 = vadd.f32 %v9336, %v9408
        %v9410 = vpop.f32.mrf.mxu0
        %v9411 = vadd.f32 %v9338, %v9410
        %9412 = vdwg.mxu0
        %9413 = vmatprep.subr.bf16.mxu0 %v6917
        %9414 = vmatpush1.bf16.msra.mxu0 %v6916
        %9415 = vmatprep.subr.bf16.mxu0 %v6905
        %9416 = vmatpush1.bf16.msra.mxu0 %v6904
        %9417 = vmatprep.subr.bf16.mxu0 %v6893
        %9418 = vmatpush1.bf16.msra.mxu0 %v6892
        %9419 = vmatprep.subr.bf16.mxu0 %v6881
        %9420 = vmatpush1.bf16.msra.mxu0 %v6880
        %9421 = vmatprep.subr.bf16.mxu0 %v6869
        %9422 = vmatpush1.bf16.msra.mxu0 %v6868
        %9423 = vmatprep.subr.bf16.mxu0 %v6857
        %9424 = vmatpush1.bf16.msra.mxu0 %v6856
        %9425 = vmatprep.subr.bf16.mxu0 %v6845
        %9426 = vmatpush1.bf16.msra.mxu0 %v6844
        %9427 = vmatprep.subr.bf16.mxu0 %v6833
        %9428 = vmatpush1.bf16.msra.mxu0 %v6832
        %9429 = vmatprep.subr.bf16.mxu0 %v7013
        %9430 = vmatpush2.bf16.msra.mxu0 %v7012
        %9431 = vmatprep.subr.bf16.mxu0 %v7001
        %9432 = vmatpush2.bf16.msra.mxu0 %v7000
        %9433 = vmatprep.subr.bf16.mxu0 %v6989
        %9434 = vmatpush2.bf16.msra.mxu0 %v6988
        %9435 = vmatprep.subr.bf16.mxu0 %v6977
        %9436 = vmatpush2.bf16.msra.mxu0 %v6976
        %9437 = vmatprep.subr.bf16.mxu0 %v6965
        %9438 = vmatpush2.bf16.msra.mxu0 %v6964
        %9439 = vmatprep.subr.bf16.mxu0 %v6953
        %9440 = vmatpush2.bf16.msra.mxu0 %v6952
        %9441 = vmatprep.subr.bf16.mxu0 %v6941
        %9442 = vmatpush2.bf16.msra.mxu0 %v6940
        %9443 = vmatprep.subr.bf16.mxu0 %v6929
        %9444 = vmatpush2.bf16.msra.mxu0 %v6928
        %9445 = vmatprep.mubr.bf16.mxu0 %v1159
        %9446 = vmatmul.mubr.bf16.gmra.mxu0 %v1158
        %v9447 = vpop.f32.mrf.mxu0
        %v9448 = vadd.f32 %v9375, %v9447
        %v9449 = vpop.f32.mrf.mxu0
        %v9450 = vadd.f32 %v9377, %v9449
        %v9451 = vpop.f32.mrf.mxu0
        %v9452 = vadd.f32 %v9379, %v9451
        %v9453 = vpop.f32.mrf.mxu0
        %v9454 = vadd.f32 %v9381, %v9453
        %9455 = vmatprep.mubr.bf16.mxu0 %v1171
        %9456 = vmatmul.mubr.bf16.gmra.mxu0 %v1170
        %v9457 = vpop.f32.mrf.mxu0
        %v9458 = vadd.f32 %v9385, %v9457
        %v9459 = vpop.f32.mrf.mxu0
        %v9460 = vadd.f32 %v9387, %v9459
        %v9461 = vpop.f32.mrf.mxu0
        %v9462 = vadd.f32 %v9389, %v9461
        %v9463 = vpop.f32.mrf.mxu0
        %v9464 = vadd.f32 %v9391, %v9463
        %9465 = vmatprep.mubr.bf16.mxu0 %v1183
        %9466 = vmatmul.mubr.bf16.gmra.mxu0 %v1182
        %v9467 = vpop.f32.mrf.mxu0
        %v9468 = vadd.f32 %v9395, %v9467
        %v9469 = vpop.f32.mrf.mxu0
        %v9470 = vadd.f32 %v9397, %v9469
        %v9471 = vpop.f32.mrf.mxu0
        %v9472 = vadd.f32 %v9399, %v9471
        %v9473 = vpop.f32.mrf.mxu0
        %v9474 = vadd.f32 %v9401, %v9473
        %9475 = vmatprep.mubr.bf16.mxu0 %v1195
        %9476 = vmatmul.mubr.bf16.gmra.mxu0 %v1194
        %v9477 = vpop.f32.mrf.mxu0
        %v9478 = vadd.f32 %v9405, %v9477
        %v9479 = vpop.f32.mrf.mxu0
        %v9480 = vadd.f32 %v9407, %v9479
        %v9481 = vpop.f32.mrf.mxu0
        %v9482 = vadd.f32 %v9409, %v9481
        %v9483 = vpop.f32.mrf.mxu0
        %v9484 = vadd.f32 %v9411, %v9483
        %9485 = vdwg.mxu0
        %9486 = vmatprep.subr.bf16.mxu0 %v5959
        %9487 = vmatpush1.bf16.msra.mxu0 %v5958
        %9488 = vmatprep.subr.bf16.mxu0 %v5947
        %9489 = vmatpush1.bf16.msra.mxu0 %v5946
        %9490 = vmatprep.subr.bf16.mxu0 %v5935
        %9491 = vmatpush1.bf16.msra.mxu0 %v5934
        %9492 = vmatprep.subr.bf16.mxu0 %v5923
        %9493 = vmatpush1.bf16.msra.mxu0 %v5922
        %9494 = vmatprep.subr.bf16.mxu0 %v5911
        %9495 = vmatpush1.bf16.msra.mxu0 %v5910
        %9496 = vmatprep.subr.bf16.mxu0 %v5899
        %9497 = vmatpush1.bf16.msra.mxu0 %v5898
        %9498 = vmatprep.subr.bf16.mxu0 %v5887
        %9499 = vmatpush1.bf16.msra.mxu0 %v5886
        %9500 = vmatprep.subr.bf16.mxu0 %v5875
        %9501 = vmatpush1.bf16.msra.mxu0 %v5874
        %9502 = vmatprep.subr.bf16.mxu0 %v6055
        %9503 = vmatpush2.bf16.msra.mxu0 %v6054
        %9504 = vmatprep.subr.bf16.mxu0 %v6043
        %9505 = vmatpush2.bf16.msra.mxu0 %v6042
        %9506 = vmatprep.subr.bf16.mxu0 %v6031
        %9507 = vmatpush2.bf16.msra.mxu0 %v6030
        %9508 = vmatprep.subr.bf16.mxu0 %v6019
        %9509 = vmatpush2.bf16.msra.mxu0 %v6018
        %9510 = vmatprep.subr.bf16.mxu0 %v6007
        %9511 = vmatpush2.bf16.msra.mxu0 %v6006
        %9512 = vmatprep.subr.bf16.mxu0 %v5995
        %9513 = vmatpush2.bf16.msra.mxu0 %v5994
        %9514 = vmatprep.subr.bf16.mxu0 %v5983
        %9515 = vmatpush2.bf16.msra.mxu0 %v5982
        %9516 = vmatprep.subr.bf16.mxu0 %v5971
        %9517 = vmatpush2.bf16.msra.mxu0 %v5970
        %9518 = vmatprep.mubr.bf16.mxu0 %v1149
        %9519 = vmatmul.mubr.bf16.gmra.mxu0 %v1148
        %v9520 = vpop.f32.mrf.mxu0
        %v9521 = vadd.f32 %v2379, %v9520
        %v9522 = vpop.f32.mrf.mxu0
        %v9523 = vadd.f32 %v2383, %v9522
        %v9524 = vpop.f32.mrf.mxu0
        %v9525 = vadd.f32 %v2379, %v9524
        %v9526 = vpop.f32.mrf.mxu0
        %v9527 = vadd.f32 %v2383, %v9526
        %9528 = vmatprep.mubr.bf16.mxu0 %v1161
        %9529 = vmatmul.mubr.bf16.gmra.mxu0 %v1160
        %v9530 = vpop.f32.mrf.mxu0
        %v9531 = vadd.f32 %v2379, %v9530
        %v9532 = vpop.f32.mrf.mxu0
        %v9533 = vadd.f32 %v2383, %v9532
        %v9534 = vpop.f32.mrf.mxu0
        %v9535 = vadd.f32 %v2379, %v9534
        %v9536 = vpop.f32.mrf.mxu0
        %v9537 = vadd.f32 %v2383, %v9536
        %9538 = vmatprep.mubr.bf16.mxu0 %v1173
        %9539 = vmatmul.mubr.bf16.gmra.mxu0 %v1172
        %v9540 = vpop.f32.mrf.mxu0
        %v9541 = vadd.f32 %v2379, %v9540
        %v9542 = vpop.f32.mrf.mxu0
        %v9543 = vadd.f32 %v2383, %v9542
        %v9544 = vpop.f32.mrf.mxu0
        %v9545 = vadd.f32 %v2379, %v9544
        %v9546 = vpop.f32.mrf.mxu0
        %v9547 = vadd.f32 %v2383, %v9546
        %9548 = vmatprep.mubr.bf16.mxu0 %v1185
        %9549 = vmatmul.mubr.bf16.gmra.mxu0 %v1184
        %v9550 = vpop.f32.mrf.mxu0
        %v9551 = vadd.f32 %v2379, %v9550
        %v9552 = vpop.f32.mrf.mxu0
        %v9553 = vadd.f32 %v2383, %v9552
        %v9554 = vpop.f32.mrf.mxu0
        %v9555 = vadd.f32 %v2379, %v9554
        %v9556 = vpop.f32.mrf.mxu0
        %v9557 = vadd.f32 %v2383, %v9556
        %9558 = vdwg.mxu0
        %9559 = vmatprep.subr.bf16.mxu0 %v6151
        %9560 = vmatpush1.bf16.msra.mxu0 %v6150
        %9561 = vmatprep.subr.bf16.mxu0 %v6139
        %9562 = vmatpush1.bf16.msra.mxu0 %v6138
        %9563 = vmatprep.subr.bf16.mxu0 %v6127
        %9564 = vmatpush1.bf16.msra.mxu0 %v6126
        %9565 = vmatprep.subr.bf16.mxu0 %v6115
        %9566 = vmatpush1.bf16.msra.mxu0 %v6114
        %9567 = vmatprep.subr.bf16.mxu0 %v6103
        %9568 = vmatpush1.bf16.msra.mxu0 %v6102
        %9569 = vmatprep.subr.bf16.mxu0 %v6091
        %9570 = vmatpush1.bf16.msra.mxu0 %v6090
        %9571 = vmatprep.subr.bf16.mxu0 %v6079
        %9572 = vmatpush1.bf16.msra.mxu0 %v6078
        %9573 = vmatprep.subr.bf16.mxu0 %v6067
        %9574 = vmatpush1.bf16.msra.mxu0 %v6066
        %9575 = vmatprep.subr.bf16.mxu0 %v6247
        %9576 = vmatpush2.bf16.msra.mxu0 %v6246
        %9577 = vmatprep.subr.bf16.mxu0 %v6235
        %9578 = vmatpush2.bf16.msra.mxu0 %v6234
        %9579 = vmatprep.subr.bf16.mxu0 %v6223
        %9580 = vmatpush2.bf16.msra.mxu0 %v6222
        %9581 = vmatprep.subr.bf16.mxu0 %v6211
        %9582 = vmatpush2.bf16.msra.mxu0 %v6210
        %9583 = vmatprep.subr.bf16.mxu0 %v6199
        %9584 = vmatpush2.bf16.msra.mxu0 %v6198
        %9585 = vmatprep.subr.bf16.mxu0 %v6187
        %9586 = vmatpush2.bf16.msra.mxu0 %v6186
        %9587 = vmatprep.subr.bf16.mxu0 %v6175
        %9588 = vmatpush2.bf16.msra.mxu0 %v6174
        %9589 = vmatprep.subr.bf16.mxu0 %v6163
        %9590 = vmatpush2.bf16.msra.mxu0 %v6162
        %9591 = vmatprep.mubr.bf16.mxu0 %v1151
        %9592 = vmatmul.mubr.bf16.gmra.mxu0 %v1150
        %v9593 = vpop.f32.mrf.mxu0
        %v9594 = vadd.f32 %v9521, %v9593
        %v9595 = vpop.f32.mrf.mxu0
        %v9596 = vadd.f32 %v9523, %v9595
        %v9597 = vpop.f32.mrf.mxu0
        %v9598 = vadd.f32 %v9525, %v9597
        %v9599 = vpop.f32.mrf.mxu0
        %v9600 = vadd.f32 %v9527, %v9599
        %9601 = vmatprep.mubr.bf16.mxu0 %v1163
        %9602 = vmatmul.mubr.bf16.gmra.mxu0 %v1162
        %v9603 = vpop.f32.mrf.mxu0
        %v9604 = vadd.f32 %v9531, %v9603
        %v9605 = vpop.f32.mrf.mxu0
        %v9606 = vadd.f32 %v9533, %v9605
        %v9607 = vpop.f32.mrf.mxu0
        %v9608 = vadd.f32 %v9535, %v9607
        %v9609 = vpop.f32.mrf.mxu0
        %v9610 = vadd.f32 %v9537, %v9609
        %9611 = vmatprep.mubr.bf16.mxu0 %v1175
        %9612 = vmatmul.mubr.bf16.gmra.mxu0 %v1174
        %v9613 = vpop.f32.mrf.mxu0
        %v9614 = vadd.f32 %v9541, %v9613
        %v9615 = vpop.f32.mrf.mxu0
        %v9616 = vadd.f32 %v9543, %v9615
        %v9617 = vpop.f32.mrf.mxu0
        %v9618 = vadd.f32 %v9545, %v9617
        %v9619 = vpop.f32.mrf.mxu0
        %v9620 = vadd.f32 %v9547, %v9619
        %9621 = vmatprep.mubr.bf16.mxu0 %v1187
        %9622 = vmatmul.mubr.bf16.gmra.mxu0 %v1186
        %v9623 = vpop.f32.mrf.mxu0
        %v9624 = vadd.f32 %v9551, %v9623
        %v9625 = vpop.f32.mrf.mxu0
        %v9626 = vadd.f32 %v9553, %v9625
        %v9627 = vpop.f32.mrf.mxu0
        %v9628 = vadd.f32 %v9555, %v9627
        %v9629 = vpop.f32.mrf.mxu0
        %v9630 = vadd.f32 %v9557, %v9629
        %9631 = vdwg.mxu0
        %9632 = vmatprep.subr.bf16.mxu0 %v6343
        %9633 = vmatpush1.bf16.msra.mxu0 %v6342
        %9634 = vmatprep.subr.bf16.mxu0 %v6331
        %9635 = vmatpush1.bf16.msra.mxu0 %v6330
        %9636 = vmatprep.subr.bf16.mxu0 %v6319
        %9637 = vmatpush1.bf16.msra.mxu0 %v6318
        %9638 = vmatprep.subr.bf16.mxu0 %v6307
        %9639 = vmatpush1.bf16.msra.mxu0 %v6306
        %9640 = vmatprep.subr.bf16.mxu0 %v6295
        %9641 = vmatpush1.bf16.msra.mxu0 %v6294
        %9642 = vmatprep.subr.bf16.mxu0 %v6283
        %9643 = vmatpush1.bf16.msra.mxu0 %v6282
        %9644 = vmatprep.subr.bf16.mxu0 %v6271
        %9645 = vmatpush1.bf16.msra.mxu0 %v6270
        %9646 = vmatprep.subr.bf16.mxu0 %v6259
        %9647 = vmatpush1.bf16.msra.mxu0 %v6258
        %9648 = vmatprep.subr.bf16.mxu0 %v6439
        %9649 = vmatpush2.bf16.msra.mxu0 %v6438
        %9650 = vmatprep.subr.bf16.mxu0 %v6427
        %9651 = vmatpush2.bf16.msra.mxu0 %v6426
        %9652 = vmatprep.subr.bf16.mxu0 %v6415
        %9653 = vmatpush2.bf16.msra.mxu0 %v6414
        %9654 = vmatprep.subr.bf16.mxu0 %v6403
        %9655 = vmatpush2.bf16.msra.mxu0 %v6402
        %9656 = vmatprep.subr.bf16.mxu0 %v6391
        %9657 = vmatpush2.bf16.msra.mxu0 %v6390
        %9658 = vmatprep.subr.bf16.mxu0 %v6379
        %9659 = vmatpush2.bf16.msra.mxu0 %v6378
        %9660 = vmatprep.subr.bf16.mxu0 %v6367
        %9661 = vmatpush2.bf16.msra.mxu0 %v6366
        %9662 = vmatprep.subr.bf16.mxu0 %v6355
        %9663 = vmatpush2.bf16.msra.mxu0 %v6354
        %9664 = vmatprep.mubr.bf16.mxu0 %v1153
        %9665 = vmatmul.mubr.bf16.gmra.mxu0 %v1152
        %v9666 = vpop.f32.mrf.mxu0
        %v9667 = vadd.f32 %v9594, %v9666
        %v9668 = vpop.f32.mrf.mxu0
        %v9669 = vadd.f32 %v9596, %v9668
        %v9670 = vpop.f32.mrf.mxu0
        %v9671 = vadd.f32 %v9598, %v9670
        %v9672 = vpop.f32.mrf.mxu0
        %v9673 = vadd.f32 %v9600, %v9672
        %9674 = vmatprep.mubr.bf16.mxu0 %v1165
        %9675 = vmatmul.mubr.bf16.gmra.mxu0 %v1164
        %v9676 = vpop.f32.mrf.mxu0
        %v9677 = vadd.f32 %v9604, %v9676
        %v9678 = vpop.f32.mrf.mxu0
        %v9679 = vadd.f32 %v9606, %v9678
        %v9680 = vpop.f32.mrf.mxu0
        %v9681 = vadd.f32 %v9608, %v9680
        %v9682 = vpop.f32.mrf.mxu0
        %v9683 = vadd.f32 %v9610, %v9682
        %9684 = vmatprep.mubr.bf16.mxu0 %v1177
        %9685 = vmatmul.mubr.bf16.gmra.mxu0 %v1176
        %v9686 = vpop.f32.mrf.mxu0
        %v9687 = vadd.f32 %v9614, %v9686
        %v9688 = vpop.f32.mrf.mxu0
        %v9689 = vadd.f32 %v9616, %v9688
        %v9690 = vpop.f32.mrf.mxu0
        %v9691 = vadd.f32 %v9618, %v9690
        %v9692 = vpop.f32.mrf.mxu0
        %v9693 = vadd.f32 %v9620, %v9692
        %9694 = vmatprep.mubr.bf16.mxu0 %v1189
        %9695 = vmatmul.mubr.bf16.gmra.mxu0 %v1188
        %v9696 = vpop.f32.mrf.mxu0
        %v9697 = vadd.f32 %v9624, %v9696
        %v9698 = vpop.f32.mrf.mxu0
        %v9699 = vadd.f32 %v9626, %v9698
        %v9700 = vpop.f32.mrf.mxu0
        %v9701 = vadd.f32 %v9628, %v9700
        %v9702 = vpop.f32.mrf.mxu0
        %v9703 = vadd.f32 %v9630, %v9702
        %9704 = vdwg.mxu0
        %9705 = vmatprep.subr.bf16.mxu0 %v6535
        %9706 = vmatpush1.bf16.msra.mxu0 %v6534
        %9707 = vmatprep.subr.bf16.mxu0 %v6523
        %9708 = vmatpush1.bf16.msra.mxu0 %v6522
        %9709 = vmatprep.subr.bf16.mxu0 %v6511
        %9710 = vmatpush1.bf16.msra.mxu0 %v6510
        %9711 = vmatprep.subr.bf16.mxu0 %v6499
        %9712 = vmatpush1.bf16.msra.mxu0 %v6498
        %9713 = vmatprep.subr.bf16.mxu0 %v6487
        %9714 = vmatpush1.bf16.msra.mxu0 %v6486
        %9715 = vmatprep.subr.bf16.mxu0 %v6475
        %9716 = vmatpush1.bf16.msra.mxu0 %v6474
        %9717 = vmatprep.subr.bf16.mxu0 %v6463
        %9718 = vmatpush1.bf16.msra.mxu0 %v6462
        %9719 = vmatprep.subr.bf16.mxu0 %v6451
        %9720 = vmatpush1.bf16.msra.mxu0 %v6450
        %9721 = vmatprep.subr.bf16.mxu0 %v6631
        %9722 = vmatpush2.bf16.msra.mxu0 %v6630
        %9723 = vmatprep.subr.bf16.mxu0 %v6619
        %9724 = vmatpush2.bf16.msra.mxu0 %v6618
        %9725 = vmatprep.subr.bf16.mxu0 %v6607
        %9726 = vmatpush2.bf16.msra.mxu0 %v6606
        %9727 = vmatprep.subr.bf16.mxu0 %v6595
        %9728 = vmatpush2.bf16.msra.mxu0 %v6594
        %9729 = vmatprep.subr.bf16.mxu0 %v6583
        %9730 = vmatpush2.bf16.msra.mxu0 %v6582
        %9731 = vmatprep.subr.bf16.mxu0 %v6571
        %9732 = vmatpush2.bf16.msra.mxu0 %v6570
        %9733 = vmatprep.subr.bf16.mxu0 %v6559
        %9734 = vmatpush2.bf16.msra.mxu0 %v6558
        %9735 = vmatprep.subr.bf16.mxu0 %v6547
        %9736 = vmatpush2.bf16.msra.mxu0 %v6546
        %9737 = vmatprep.mubr.bf16.mxu0 %v1155
        %9738 = vmatmul.mubr.bf16.gmra.mxu0 %v1154
        %v9739 = vpop.f32.mrf.mxu0
        %v9740 = vadd.f32 %v9667, %v9739
        %v9741 = vpop.f32.mrf.mxu0
        %v9742 = vadd.f32 %v9669, %v9741
        %v9743 = vpop.f32.mrf.mxu0
        %v9744 = vadd.f32 %v9671, %v9743
        %v9745 = vpop.f32.mrf.mxu0
        %v9746 = vadd.f32 %v9673, %v9745
        %9747 = vmatprep.mubr.bf16.mxu0 %v1167
        %9748 = vmatmul.mubr.bf16.gmra.mxu0 %v1166
        %v9749 = vpop.f32.mrf.mxu0
        %v9750 = vadd.f32 %v9677, %v9749
        %v9751 = vpop.f32.mrf.mxu0
        %v9752 = vadd.f32 %v9679, %v9751
        %v9753 = vpop.f32.mrf.mxu0
        %v9754 = vadd.f32 %v9681, %v9753
        %v9755 = vpop.f32.mrf.mxu0
        %v9756 = vadd.f32 %v9683, %v9755
        %9757 = vmatprep.mubr.bf16.mxu0 %v1179
        %9758 = vmatmul.mubr.bf16.gmra.mxu0 %v1178
        %v9759 = vpop.f32.mrf.mxu0
        %v9760 = vadd.f32 %v9687, %v9759
        %v9761 = vpop.f32.mrf.mxu0
        %v9762 = vadd.f32 %v9689, %v9761
        %v9763 = vpop.f32.mrf.mxu0
        %v9764 = vadd.f32 %v9691, %v9763
        %v9765 = vpop.f32.mrf.mxu0
        %v9766 = vadd.f32 %v9693, %v9765
        %9767 = vmatprep.mubr.bf16.mxu0 %v1191
        %9768 = vmatmul.mubr.bf16.gmra.mxu0 %v1190
        %v9769 = vpop.f32.mrf.mxu0
        %v9770 = vadd.f32 %v9697, %v9769
        %v9771 = vpop.f32.mrf.mxu0
        %v9772 = vadd.f32 %v9699, %v9771
        %v9773 = vpop.f32.mrf.mxu0
        %v9774 = vadd.f32 %v9701, %v9773
        %v9775 = vpop.f32.mrf.mxu0
        %v9776 = vadd.f32 %v9703, %v9775
        %9777 = vdwg.mxu0
        %9778 = vmatprep.subr.bf16.mxu0 %v6727
        %9779 = vmatpush1.bf16.msra.mxu0 %v6726
        %9780 = vmatprep.subr.bf16.mxu0 %v6715
        %9781 = vmatpush1.bf16.msra.mxu0 %v6714
        %9782 = vmatprep.subr.bf16.mxu0 %v6703
        %9783 = vmatpush1.bf16.msra.mxu0 %v6702
        %9784 = vmatprep.subr.bf16.mxu0 %v6691
        %9785 = vmatpush1.bf16.msra.mxu0 %v6690
        %9786 = vmatprep.subr.bf16.mxu0 %v6679
        %9787 = vmatpush1.bf16.msra.mxu0 %v6678
        %9788 = vmatprep.subr.bf16.mxu0 %v6667
        %9789 = vmatpush1.bf16.msra.mxu0 %v6666
        %9790 = vmatprep.subr.bf16.mxu0 %v6655
        %9791 = vmatpush1.bf16.msra.mxu0 %v6654
        %9792 = vmatprep.subr.bf16.mxu0 %v6643
        %9793 = vmatpush1.bf16.msra.mxu0 %v6642
        %9794 = vmatprep.subr.bf16.mxu0 %v6823
        %9795 = vmatpush2.bf16.msra.mxu0 %v6822
        %9796 = vmatprep.subr.bf16.mxu0 %v6811
        %9797 = vmatpush2.bf16.msra.mxu0 %v6810
        %9798 = vmatprep.subr.bf16.mxu0 %v6799
        %9799 = vmatpush2.bf16.msra.mxu0 %v6798
        %9800 = vmatprep.subr.bf16.mxu0 %v6787
        %9801 = vmatpush2.bf16.msra.mxu0 %v6786
        %9802 = vmatprep.subr.bf16.mxu0 %v6775
        %9803 = vmatpush2.bf16.msra.mxu0 %v6774
        %9804 = vmatprep.subr.bf16.mxu0 %v6763
        %9805 = vmatpush2.bf16.msra.mxu0 %v6762
        %9806 = vmatprep.subr.bf16.mxu0 %v6751
        %9807 = vmatpush2.bf16.msra.mxu0 %v6750
        %9808 = vmatprep.subr.bf16.mxu0 %v6739
        %9809 = vmatpush2.bf16.msra.mxu0 %v6738
        %9810 = vmatprep.mubr.bf16.mxu0 %v1157
        %9811 = vmatmul.mubr.bf16.gmra.mxu0 %v1156
        %v9812 = vpop.f32.mrf.mxu0
        %v9813 = vadd.f32 %v9740, %v9812
        %v9814 = vpop.f32.mrf.mxu0
        %v9815 = vadd.f32 %v9742, %v9814
        %v9816 = vpop.f32.mrf.mxu0
        %v9817 = vadd.f32 %v9744, %v9816
        %v9818 = vpop.f32.mrf.mxu0
        %v9819 = vadd.f32 %v9746, %v9818
        %9820 = vmatprep.mubr.bf16.mxu0 %v1169
        %9821 = vmatmul.mubr.bf16.gmra.mxu0 %v1168
        %v9822 = vpop.f32.mrf.mxu0
        %v9823 = vadd.f32 %v9750, %v9822
        %v9824 = vpop.f32.mrf.mxu0
        %v9825 = vadd.f32 %v9752, %v9824
        %v9826 = vpop.f32.mrf.mxu0
        %v9827 = vadd.f32 %v9754, %v9826
        %v9828 = vpop.f32.mrf.mxu0
        %v9829 = vadd.f32 %v9756, %v9828
        %9830 = vmatprep.mubr.bf16.mxu0 %v1181
        %9831 = vmatmul.mubr.bf16.gmra.mxu0 %v1180
        %v9832 = vpop.f32.mrf.mxu0
        %v9833 = vadd.f32 %v9760, %v9832
        %v9834 = vpop.f32.mrf.mxu0
        %v9835 = vadd.f32 %v9762, %v9834
        %v9836 = vpop.f32.mrf.mxu0
        %v9837 = vadd.f32 %v9764, %v9836
        %v9838 = vpop.f32.mrf.mxu0
        %v9839 = vadd.f32 %v9766, %v9838
        %9840 = vmatprep.mubr.bf16.mxu0 %v1193
        %9841 = vmatmul.mubr.bf16.gmra.mxu0 %v1192
        %v9842 = vpop.f32.mrf.mxu0
        %v9843 = vadd.f32 %v9770, %v9842
        %v9844 = vpop.f32.mrf.mxu0
        %v9845 = vadd.f32 %v9772, %v9844
        %v9846 = vpop.f32.mrf.mxu0
        %v9847 = vadd.f32 %v9774, %v9846
        %v9848 = vpop.f32.mrf.mxu0
        %v9849 = vadd.f32 %v9776, %v9848
        %9850 = vdwg.mxu0
        %9851 = vmatprep.subr.bf16.mxu0 %v6919
        %9852 = vmatpush1.bf16.msra.mxu0 %v6918
        %9853 = vmatprep.subr.bf16.mxu0 %v6907
        %9854 = vmatpush1.bf16.msra.mxu0 %v6906
        %9855 = vmatprep.subr.bf16.mxu0 %v6895
        %9856 = vmatpush1.bf16.msra.mxu0 %v6894
        %9857 = vmatprep.subr.bf16.mxu0 %v6883
        %9858 = vmatpush1.bf16.msra.mxu0 %v6882
        %9859 = vmatprep.subr.bf16.mxu0 %v6871
        %9860 = vmatpush1.bf16.msra.mxu0 %v6870
        %9861 = vmatprep.subr.bf16.mxu0 %v6859
        %9862 = vmatpush1.bf16.msra.mxu0 %v6858
        %9863 = vmatprep.subr.bf16.mxu0 %v6847
        %9864 = vmatpush1.bf16.msra.mxu0 %v6846
        %9865 = vmatprep.subr.bf16.mxu0 %v6835
        %9866 = vmatpush1.bf16.msra.mxu0 %v6834
        %9867 = vmatprep.subr.bf16.mxu0 %v7015
        %9868 = vmatpush2.bf16.msra.mxu0 %v7014
        %9869 = vmatprep.subr.bf16.mxu0 %v7003
        %9870 = vmatpush2.bf16.msra.mxu0 %v7002
        %9871 = vmatprep.subr.bf16.mxu0 %v6991
        %9872 = vmatpush2.bf16.msra.mxu0 %v6990
        %9873 = vmatprep.subr.bf16.mxu0 %v6979
        %9874 = vmatpush2.bf16.msra.mxu0 %v6978
        %9875 = vmatprep.subr.bf16.mxu0 %v6967
        %9876 = vmatpush2.bf16.msra.mxu0 %v6966
        %9877 = vmatprep.subr.bf16.mxu0 %v6955
        %9878 = vmatpush2.bf16.msra.mxu0 %v6954
        %9879 = vmatprep.subr.bf16.mxu0 %v6943
        %9880 = vmatpush2.bf16.msra.mxu0 %v6942
        %9881 = vmatprep.subr.bf16.mxu0 %v6931
        %9882 = vmatpush2.bf16.msra.mxu0 %v6930
        %9883 = vmatprep.mubr.bf16.mxu0 %v1159
        %9884 = vmatmul.mubr.bf16.gmra.mxu0 %v1158
        %v9885 = vpop.f32.mrf.mxu0
        %v9886 = vadd.f32 %v9813, %v9885
        %v9887 = vpop.f32.mrf.mxu0
        %v9888 = vadd.f32 %v9815, %v9887
        %v9889 = vpop.f32.mrf.mxu0
        %v9890 = vadd.f32 %v9817, %v9889
        %v9891 = vpop.f32.mrf.mxu0
        %v9892 = vadd.f32 %v9819, %v9891
        %9893 = vmatprep.mubr.bf16.mxu0 %v1171
        %9894 = vmatmul.mubr.bf16.gmra.mxu0 %v1170
        %v9895 = vpop.f32.mrf.mxu0
        %v9896 = vadd.f32 %v9823, %v9895
        %v9897 = vpop.f32.mrf.mxu0
        %v9898 = vadd.f32 %v9825, %v9897
        %v9899 = vpop.f32.mrf.mxu0
        %v9900 = vadd.f32 %v9827, %v9899
        %v9901 = vpop.f32.mrf.mxu0
        %v9902 = vadd.f32 %v9829, %v9901
        %9903 = vmatprep.mubr.bf16.mxu0 %v1183
        %9904 = vmatmul.mubr.bf16.gmra.mxu0 %v1182
        %v9905 = vpop.f32.mrf.mxu0
        %v9906 = vadd.f32 %v9833, %v9905
        %v9907 = vpop.f32.mrf.mxu0
        %v9908 = vadd.f32 %v9835, %v9907
        %v9909 = vpop.f32.mrf.mxu0
        %v9910 = vadd.f32 %v9837, %v9909
        %v9911 = vpop.f32.mrf.mxu0
        %v9912 = vadd.f32 %v9839, %v9911
        %9913 = vmatprep.mubr.bf16.mxu0 %v1195
        %9914 = vmatmul.mubr.bf16.gmra.mxu0 %v1194
        %v9915 = vpop.f32.mrf.mxu0
        %v9916 = vadd.f32 %v9843, %v9915
        %v9917 = vpop.f32.mrf.mxu0
        %v9918 = vadd.f32 %v9845, %v9917
        %v9919 = vpop.f32.mrf.mxu0
        %v9920 = vadd.f32 %v9847, %v9919
        %v9921 = vpop.f32.mrf.mxu0
        %v9922 = vadd.f32 %v9849, %v9921
        %9923 = vdwg.mxu0
        %9924 = vmatprep.subr.bf16.mxu0 %v5961
        %9925 = vmatpush1.bf16.msra.mxu0 %v5960
        %9926 = vmatprep.subr.bf16.mxu0 %v5949
        %9927 = vmatpush1.bf16.msra.mxu0 %v5948
        %9928 = vmatprep.subr.bf16.mxu0 %v5937
        %9929 = vmatpush1.bf16.msra.mxu0 %v5936
        %9930 = vmatprep.subr.bf16.mxu0 %v5925
        %9931 = vmatpush1.bf16.msra.mxu0 %v5924
        %9932 = vmatprep.subr.bf16.mxu0 %v5913
        %9933 = vmatpush1.bf16.msra.mxu0 %v5912
        %9934 = vmatprep.subr.bf16.mxu0 %v5901
        %9935 = vmatpush1.bf16.msra.mxu0 %v5900
        %9936 = vmatprep.subr.bf16.mxu0 %v5889
        %9937 = vmatpush1.bf16.msra.mxu0 %v5888
        %9938 = vmatprep.subr.bf16.mxu0 %v5877
        %9939 = vmatpush1.bf16.msra.mxu0 %v5876
        %9940 = vmatprep.subr.bf16.mxu0 %v6057
        %9941 = vmatpush2.bf16.msra.mxu0 %v6056
        %9942 = vmatprep.subr.bf16.mxu0 %v6045
        %9943 = vmatpush2.bf16.msra.mxu0 %v6044
        %9944 = vmatprep.subr.bf16.mxu0 %v6033
        %9945 = vmatpush2.bf16.msra.mxu0 %v6032
        %9946 = vmatprep.subr.bf16.mxu0 %v6021
        %9947 = vmatpush2.bf16.msra.mxu0 %v6020
        %9948 = vmatprep.subr.bf16.mxu0 %v6009
        %9949 = vmatpush2.bf16.msra.mxu0 %v6008
        %9950 = vmatprep.subr.bf16.mxu0 %v5997
        %9951 = vmatpush2.bf16.msra.mxu0 %v5996
        %9952 = vmatprep.subr.bf16.mxu0 %v5985
        %9953 = vmatpush2.bf16.msra.mxu0 %v5984
        %9954 = vmatprep.subr.bf16.mxu0 %v5973
        %9955 = vmatpush2.bf16.msra.mxu0 %v5972
        %9956 = vmatprep.mubr.bf16.mxu0 %v1149
        %9957 = vmatmul.mubr.bf16.gmra.mxu0 %v1148
        %v9958 = vpop.f32.mrf.mxu0
        %v9959 = vadd.f32 %v2387, %v9958
        %v9960 = vpop.f32.mrf.mxu0
        %v9961 = vadd.f32 %v2391, %v9960
        %v9962 = vpop.f32.mrf.mxu0
        %v9963 = vadd.f32 %v2387, %v9962
        %v9964 = vpop.f32.mrf.mxu0
        %v9965 = vadd.f32 %v2391, %v9964
        %9966 = vmatprep.mubr.bf16.mxu0 %v1161
        %9967 = vmatmul.mubr.bf16.gmra.mxu0 %v1160
        %v9968 = vpop.f32.mrf.mxu0
        %v9969 = vadd.f32 %v2387, %v9968
        %v9970 = vpop.f32.mrf.mxu0
        %v9971 = vadd.f32 %v2391, %v9970
        %v9972 = vpop.f32.mrf.mxu0
        %v9973 = vadd.f32 %v2387, %v9972
        %v9974 = vpop.f32.mrf.mxu0
        %v9975 = vadd.f32 %v2391, %v9974
        %9976 = vmatprep.mubr.bf16.mxu0 %v1173
        %9977 = vmatmul.mubr.bf16.gmra.mxu0 %v1172
        %v9978 = vpop.f32.mrf.mxu0
        %v9979 = vadd.f32 %v2387, %v9978
        %v9980 = vpop.f32.mrf.mxu0
        %v9981 = vadd.f32 %v2391, %v9980
        %v9982 = vpop.f32.mrf.mxu0
        %v9983 = vadd.f32 %v2387, %v9982
        %v9984 = vpop.f32.mrf.mxu0
        %v9985 = vadd.f32 %v2391, %v9984
        %9986 = vmatprep.mubr.bf16.mxu0 %v1185
        %9987 = vmatmul.mubr.bf16.gmra.mxu0 %v1184
        %v9988 = vpop.f32.mrf.mxu0
        %v9989 = vadd.f32 %v2387, %v9988
        %v9990 = vpop.f32.mrf.mxu0
        %v9991 = vadd.f32 %v2391, %v9990
        %v9992 = vpop.f32.mrf.mxu0
        %v9993 = vadd.f32 %v2387, %v9992
        %v9994 = vpop.f32.mrf.mxu0
        %v9995 = vadd.f32 %v2391, %v9994
        %9996 = vdwg.mxu0
        %9997 = vmatprep.subr.bf16.mxu0 %v6153
        %9998 = vmatpush1.bf16.msra.mxu0 %v6152
        %9999 = vmatprep.subr.bf16.mxu0 %v6141
        %10000 = vmatpush1.bf16.msra.mxu0 %v6140
        %10001 = vmatprep.subr.bf16.mxu0 %v6129
        %10002 = vmatpush1.bf16.msra.mxu0 %v6128
        %10003 = vmatprep.subr.bf16.mxu0 %v6117
        %10004 = vmatpush1.bf16.msra.mxu0 %v6116
        %10005 = vmatprep.subr.bf16.mxu0 %v6105
        %10006 = vmatpush1.bf16.msra.mxu0 %v6104
        %10007 = vmatprep.subr.bf16.mxu0 %v6093
        %10008 = vmatpush1.bf16.msra.mxu0 %v6092
        %10009 = vmatprep.subr.bf16.mxu0 %v6081
        %10010 = vmatpush1.bf16.msra.mxu0 %v6080
        %10011 = vmatprep.subr.bf16.mxu0 %v6069
        %10012 = vmatpush1.bf16.msra.mxu0 %v6068
        %10013 = vmatprep.subr.bf16.mxu0 %v6249
        %10014 = vmatpush2.bf16.msra.mxu0 %v6248
        %10015 = vmatprep.subr.bf16.mxu0 %v6237
        %10016 = vmatpush2.bf16.msra.mxu0 %v6236
        %10017 = vmatprep.subr.bf16.mxu0 %v6225
        %10018 = vmatpush2.bf16.msra.mxu0 %v6224
        %10019 = vmatprep.subr.bf16.mxu0 %v6213
        %10020 = vmatpush2.bf16.msra.mxu0 %v6212
        %10021 = vmatprep.subr.bf16.mxu0 %v6201
        %10022 = vmatpush2.bf16.msra.mxu0 %v6200
        %10023 = vmatprep.subr.bf16.mxu0 %v6189
        %10024 = vmatpush2.bf16.msra.mxu0 %v6188
        %10025 = vmatprep.subr.bf16.mxu0 %v6177
        %10026 = vmatpush2.bf16.msra.mxu0 %v6176
        %10027 = vmatprep.subr.bf16.mxu0 %v6165
        %10028 = vmatpush2.bf16.msra.mxu0 %v6164
        %10029 = vmatprep.mubr.bf16.mxu0 %v1151
        %10030 = vmatmul.mubr.bf16.gmra.mxu0 %v1150
        %v10031 = vpop.f32.mrf.mxu0
        %v10032 = vadd.f32 %v9959, %v10031
        %v10033 = vpop.f32.mrf.mxu0
        %v10034 = vadd.f32 %v9961, %v10033
        %v10035 = vpop.f32.mrf.mxu0
        %v10036 = vadd.f32 %v9963, %v10035
        %v10037 = vpop.f32.mrf.mxu0
        %v10038 = vadd.f32 %v9965, %v10037
        %10039 = vmatprep.mubr.bf16.mxu0 %v1163
        %10040 = vmatmul.mubr.bf16.gmra.mxu0 %v1162
        %v10041 = vpop.f32.mrf.mxu0
        %v10042 = vadd.f32 %v9969, %v10041
        %v10043 = vpop.f32.mrf.mxu0
        %v10044 = vadd.f32 %v9971, %v10043
        %v10045 = vpop.f32.mrf.mxu0
        %v10046 = vadd.f32 %v9973, %v10045
        %v10047 = vpop.f32.mrf.mxu0
        %v10048 = vadd.f32 %v9975, %v10047
        %10049 = vmatprep.mubr.bf16.mxu0 %v1175
        %10050 = vmatmul.mubr.bf16.gmra.mxu0 %v1174
        %v10051 = vpop.f32.mrf.mxu0
        %v10052 = vadd.f32 %v9979, %v10051
        %v10053 = vpop.f32.mrf.mxu0
        %v10054 = vadd.f32 %v9981, %v10053
        %v10055 = vpop.f32.mrf.mxu0
        %v10056 = vadd.f32 %v9983, %v10055
        %v10057 = vpop.f32.mrf.mxu0
        %v10058 = vadd.f32 %v9985, %v10057
        %10059 = vmatprep.mubr.bf16.mxu0 %v1187
        %10060 = vmatmul.mubr.bf16.gmra.mxu0 %v1186
        %v10061 = vpop.f32.mrf.mxu0
        %v10062 = vadd.f32 %v9989, %v10061
        %v10063 = vpop.f32.mrf.mxu0
        %v10064 = vadd.f32 %v9991, %v10063
        %v10065 = vpop.f32.mrf.mxu0
        %v10066 = vadd.f32 %v9993, %v10065
        %v10067 = vpop.f32.mrf.mxu0
        %v10068 = vadd.f32 %v9995, %v10067
        %10069 = vdwg.mxu0
        %10070 = vmatprep.subr.bf16.mxu0 %v6345
        %10071 = vmatpush1.bf16.msra.mxu0 %v6344
        %10072 = vmatprep.subr.bf16.mxu0 %v6333
        %10073 = vmatpush1.bf16.msra.mxu0 %v6332
        %10074 = vmatprep.subr.bf16.mxu0 %v6321
        %10075 = vmatpush1.bf16.msra.mxu0 %v6320
        %10076 = vmatprep.subr.bf16.mxu0 %v6309
        %10077 = vmatpush1.bf16.msra.mxu0 %v6308
        %10078 = vmatprep.subr.bf16.mxu0 %v6297
        %10079 = vmatpush1.bf16.msra.mxu0 %v6296
        %10080 = vmatprep.subr.bf16.mxu0 %v6285
        %10081 = vmatpush1.bf16.msra.mxu0 %v6284
        %10082 = vmatprep.subr.bf16.mxu0 %v6273
        %10083 = vmatpush1.bf16.msra.mxu0 %v6272
        %10084 = vmatprep.subr.bf16.mxu0 %v6261
        %10085 = vmatpush1.bf16.msra.mxu0 %v6260
        %10086 = vmatprep.subr.bf16.mxu0 %v6441
        %10087 = vmatpush2.bf16.msra.mxu0 %v6440
        %10088 = vmatprep.subr.bf16.mxu0 %v6429
        %10089 = vmatpush2.bf16.msra.mxu0 %v6428
        %10090 = vmatprep.subr.bf16.mxu0 %v6417
        %10091 = vmatpush2.bf16.msra.mxu0 %v6416
        %10092 = vmatprep.subr.bf16.mxu0 %v6405
        %10093 = vmatpush2.bf16.msra.mxu0 %v6404
        %10094 = vmatprep.subr.bf16.mxu0 %v6393
        %10095 = vmatpush2.bf16.msra.mxu0 %v6392
        %10096 = vmatprep.subr.bf16.mxu0 %v6381
        %10097 = vmatpush2.bf16.msra.mxu0 %v6380
        %10098 = vmatprep.subr.bf16.mxu0 %v6369
        %10099 = vmatpush2.bf16.msra.mxu0 %v6368
        %10100 = vmatprep.subr.bf16.mxu0 %v6357
        %10101 = vmatpush2.bf16.msra.mxu0 %v6356
        %10102 = vmatprep.mubr.bf16.mxu0 %v1153
        %10103 = vmatmul.mubr.bf16.gmra.mxu0 %v1152
        %v10104 = vpop.f32.mrf.mxu0
        %v10105 = vadd.f32 %v10032, %v10104
        %v10106 = vpop.f32.mrf.mxu0
        %v10107 = vadd.f32 %v10034, %v10106
        %v10108 = vpop.f32.mrf.mxu0
        %v10109 = vadd.f32 %v10036, %v10108
        %v10110 = vpop.f32.mrf.mxu0
        %v10111 = vadd.f32 %v10038, %v10110
        %10112 = vmatprep.mubr.bf16.mxu0 %v1165
        %10113 = vmatmul.mubr.bf16.gmra.mxu0 %v1164
        %v10114 = vpop.f32.mrf.mxu0
        %v10115 = vadd.f32 %v10042, %v10114
        %v10116 = vpop.f32.mrf.mxu0
        %v10117 = vadd.f32 %v10044, %v10116
        %v10118 = vpop.f32.mrf.mxu0
        %v10119 = vadd.f32 %v10046, %v10118
        %v10120 = vpop.f32.mrf.mxu0
        %v10121 = vadd.f32 %v10048, %v10120
        %10122 = vmatprep.mubr.bf16.mxu0 %v1177
        %10123 = vmatmul.mubr.bf16.gmra.mxu0 %v1176
        %v10124 = vpop.f32.mrf.mxu0
        %v10125 = vadd.f32 %v10052, %v10124
        %v10126 = vpop.f32.mrf.mxu0
        %v10127 = vadd.f32 %v10054, %v10126
        %v10128 = vpop.f32.mrf.mxu0
        %v10129 = vadd.f32 %v10056, %v10128
        %v10130 = vpop.f32.mrf.mxu0
        %v10131 = vadd.f32 %v10058, %v10130
        %10132 = vmatprep.mubr.bf16.mxu0 %v1189
        %10133 = vmatmul.mubr.bf16.gmra.mxu0 %v1188
        %v10134 = vpop.f32.mrf.mxu0
        %v10135 = vadd.f32 %v10062, %v10134
        %v10136 = vpop.f32.mrf.mxu0
        %v10137 = vadd.f32 %v10064, %v10136
        %v10138 = vpop.f32.mrf.mxu0
        %v10139 = vadd.f32 %v10066, %v10138
        %v10140 = vpop.f32.mrf.mxu0
        %v10141 = vadd.f32 %v10068, %v10140
        %10142 = vdwg.mxu0
        %10143 = vmatprep.subr.bf16.mxu0 %v6537
        %10144 = vmatpush1.bf16.msra.mxu0 %v6536
        %10145 = vmatprep.subr.bf16.mxu0 %v6525
        %10146 = vmatpush1.bf16.msra.mxu0 %v6524
        %10147 = vmatprep.subr.bf16.mxu0 %v6513
        %10148 = vmatpush1.bf16.msra.mxu0 %v6512
        %10149 = vmatprep.subr.bf16.mxu0 %v6501
        %10150 = vmatpush1.bf16.msra.mxu0 %v6500
        %10151 = vmatprep.subr.bf16.mxu0 %v6489
        %10152 = vmatpush1.bf16.msra.mxu0 %v6488
        %10153 = vmatprep.subr.bf16.mxu0 %v6477
        %10154 = vmatpush1.bf16.msra.mxu0 %v6476
        %10155 = vmatprep.subr.bf16.mxu0 %v6465
        %10156 = vmatpush1.bf16.msra.mxu0 %v6464
        %10157 = vmatprep.subr.bf16.mxu0 %v6453
        %10158 = vmatpush1.bf16.msra.mxu0 %v6452
        %10159 = vmatprep.subr.bf16.mxu0 %v6633
        %10160 = vmatpush2.bf16.msra.mxu0 %v6632
        %10161 = vmatprep.subr.bf16.mxu0 %v6621
        %10162 = vmatpush2.bf16.msra.mxu0 %v6620
        %10163 = vmatprep.subr.bf16.mxu0 %v6609
        %10164 = vmatpush2.bf16.msra.mxu0 %v6608
        %10165 = vmatprep.subr.bf16.mxu0 %v6597
        %10166 = vmatpush2.bf16.msra.mxu0 %v6596
        %10167 = vmatprep.subr.bf16.mxu0 %v6585
        %10168 = vmatpush2.bf16.msra.mxu0 %v6584
        %10169 = vmatprep.subr.bf16.mxu0 %v6573
        %10170 = vmatpush2.bf16.msra.mxu0 %v6572
        %10171 = vmatprep.subr.bf16.mxu0 %v6561
        %10172 = vmatpush2.bf16.msra.mxu0 %v6560
        %10173 = vmatprep.subr.bf16.mxu0 %v6549
        %10174 = vmatpush2.bf16.msra.mxu0 %v6548
        %10175 = vmatprep.mubr.bf16.mxu0 %v1155
        %10176 = vmatmul.mubr.bf16.gmra.mxu0 %v1154
        %v10177 = vpop.f32.mrf.mxu0
        %v10178 = vadd.f32 %v10105, %v10177
        %v10179 = vpop.f32.mrf.mxu0
        %v10180 = vadd.f32 %v10107, %v10179
        %v10181 = vpop.f32.mrf.mxu0
        %v10182 = vadd.f32 %v10109, %v10181
        %v10183 = vpop.f32.mrf.mxu0
        %v10184 = vadd.f32 %v10111, %v10183
        %10185 = vmatprep.mubr.bf16.mxu0 %v1167
        %10186 = vmatmul.mubr.bf16.gmra.mxu0 %v1166
        %v10187 = vpop.f32.mrf.mxu0
        %v10188 = vadd.f32 %v10115, %v10187
        %v10189 = vpop.f32.mrf.mxu0
        %v10190 = vadd.f32 %v10117, %v10189
        %v10191 = vpop.f32.mrf.mxu0
        %v10192 = vadd.f32 %v10119, %v10191
        %v10193 = vpop.f32.mrf.mxu0
        %v10194 = vadd.f32 %v10121, %v10193
        %10195 = vmatprep.mubr.bf16.mxu0 %v1179
        %10196 = vmatmul.mubr.bf16.gmra.mxu0 %v1178
        %v10197 = vpop.f32.mrf.mxu0
        %v10198 = vadd.f32 %v10125, %v10197
        %v10199 = vpop.f32.mrf.mxu0
        %v10200 = vadd.f32 %v10127, %v10199
        %v10201 = vpop.f32.mrf.mxu0
        %v10202 = vadd.f32 %v10129, %v10201
        %v10203 = vpop.f32.mrf.mxu0
        %v10204 = vadd.f32 %v10131, %v10203
        %10205 = vmatprep.mubr.bf16.mxu0 %v1191
        %10206 = vmatmul.mubr.bf16.gmra.mxu0 %v1190
        %v10207 = vpop.f32.mrf.mxu0
        %v10208 = vadd.f32 %v10135, %v10207
        %v10209 = vpop.f32.mrf.mxu0
        %v10210 = vadd.f32 %v10137, %v10209
        %v10211 = vpop.f32.mrf.mxu0
        %v10212 = vadd.f32 %v10139, %v10211
        %v10213 = vpop.f32.mrf.mxu0
        %v10214 = vadd.f32 %v10141, %v10213
        %10215 = vdwg.mxu0
        %10216 = vmatprep.subr.bf16.mxu0 %v6729
        %10217 = vmatpush1.bf16.msra.mxu0 %v6728
        %10218 = vmatprep.subr.bf16.mxu0 %v6717
        %10219 = vmatpush1.bf16.msra.mxu0 %v6716
        %10220 = vmatprep.subr.bf16.mxu0 %v6705
        %10221 = vmatpush1.bf16.msra.mxu0 %v6704
        %10222 = vmatprep.subr.bf16.mxu0 %v6693
        %10223 = vmatpush1.bf16.msra.mxu0 %v6692
        %10224 = vmatprep.subr.bf16.mxu0 %v6681
        %10225 = vmatpush1.bf16.msra.mxu0 %v6680
        %10226 = vmatprep.subr.bf16.mxu0 %v6669
        %10227 = vmatpush1.bf16.msra.mxu0 %v6668
        %10228 = vmatprep.subr.bf16.mxu0 %v6657
        %10229 = vmatpush1.bf16.msra.mxu0 %v6656
        %10230 = vmatprep.subr.bf16.mxu0 %v6645
        %10231 = vmatpush1.bf16.msra.mxu0 %v6644
        %10232 = vmatprep.subr.bf16.mxu0 %v6825
        %10233 = vmatpush2.bf16.msra.mxu0 %v6824
        %10234 = vmatprep.subr.bf16.mxu0 %v6813
        %10235 = vmatpush2.bf16.msra.mxu0 %v6812
        %10236 = vmatprep.subr.bf16.mxu0 %v6801
        %10237 = vmatpush2.bf16.msra.mxu0 %v6800
        %10238 = vmatprep.subr.bf16.mxu0 %v6789
        %10239 = vmatpush2.bf16.msra.mxu0 %v6788
        %10240 = vmatprep.subr.bf16.mxu0 %v6777
        %10241 = vmatpush2.bf16.msra.mxu0 %v6776
        %10242 = vmatprep.subr.bf16.mxu0 %v6765
        %10243 = vmatpush2.bf16.msra.mxu0 %v6764
        %10244 = vmatprep.subr.bf16.mxu0 %v6753
        %10245 = vmatpush2.bf16.msra.mxu0 %v6752
        %10246 = vmatprep.subr.bf16.mxu0 %v6741
        %10247 = vmatpush2.bf16.msra.mxu0 %v6740
        %10248 = vmatprep.mubr.bf16.mxu0 %v1157
        %10249 = vmatmul.mubr.bf16.gmra.mxu0 %v1156
        %v10250 = vpop.f32.mrf.mxu0
        %v10251 = vadd.f32 %v10178, %v10250
        %v10252 = vpop.f32.mrf.mxu0
        %v10253 = vadd.f32 %v10180, %v10252
        %v10254 = vpop.f32.mrf.mxu0
        %v10255 = vadd.f32 %v10182, %v10254
        %v10256 = vpop.f32.mrf.mxu0
        %v10257 = vadd.f32 %v10184, %v10256
        %10258 = vmatprep.mubr.bf16.mxu0 %v1169
        %10259 = vmatmul.mubr.bf16.gmra.mxu0 %v1168
        %v10260 = vpop.f32.mrf.mxu0
        %v10261 = vadd.f32 %v10188, %v10260
        %v10262 = vpop.f32.mrf.mxu0
        %v10263 = vadd.f32 %v10190, %v10262
        %v10264 = vpop.f32.mrf.mxu0
        %v10265 = vadd.f32 %v10192, %v10264
        %v10266 = vpop.f32.mrf.mxu0
        %v10267 = vadd.f32 %v10194, %v10266
        %10268 = vmatprep.mubr.bf16.mxu0 %v1181
        %10269 = vmatmul.mubr.bf16.gmra.mxu0 %v1180
        %v10270 = vpop.f32.mrf.mxu0
        %v10271 = vadd.f32 %v10198, %v10270
        %v10272 = vpop.f32.mrf.mxu0
        %v10273 = vadd.f32 %v10200, %v10272
        %v10274 = vpop.f32.mrf.mxu0
        %v10275 = vadd.f32 %v10202, %v10274
        %v10276 = vpop.f32.mrf.mxu0
        %v10277 = vadd.f32 %v10204, %v10276
        %10278 = vmatprep.mubr.bf16.mxu0 %v1193
        %10279 = vmatmul.mubr.bf16.gmra.mxu0 %v1192
        %v10280 = vpop.f32.mrf.mxu0
        %v10281 = vadd.f32 %v10208, %v10280
        %v10282 = vpop.f32.mrf.mxu0
        %v10283 = vadd.f32 %v10210, %v10282
        %v10284 = vpop.f32.mrf.mxu0
        %v10285 = vadd.f32 %v10212, %v10284
        %v10286 = vpop.f32.mrf.mxu0
        %v10287 = vadd.f32 %v10214, %v10286
        %10288 = vdwg.mxu0
        %10289 = vmatprep.subr.bf16.mxu0 %v6921
        %10290 = vmatpush1.bf16.msra.mxu0 %v6920
        %10291 = vmatprep.subr.bf16.mxu0 %v6909
        %10292 = vmatpush1.bf16.msra.mxu0 %v6908
        %10293 = vmatprep.subr.bf16.mxu0 %v6897
        %10294 = vmatpush1.bf16.msra.mxu0 %v6896
        %10295 = vmatprep.subr.bf16.mxu0 %v6885
        %10296 = vmatpush1.bf16.msra.mxu0 %v6884
        %10297 = vmatprep.subr.bf16.mxu0 %v6873
        %10298 = vmatpush1.bf16.msra.mxu0 %v6872
        %10299 = vmatprep.subr.bf16.mxu0 %v6861
        %10300 = vmatpush1.bf16.msra.mxu0 %v6860
        %10301 = vmatprep.subr.bf16.mxu0 %v6849
        %10302 = vmatpush1.bf16.msra.mxu0 %v6848
        %10303 = vmatprep.subr.bf16.mxu0 %v6837
        %10304 = vmatpush1.bf16.msra.mxu0 %v6836
        %10305 = vmatprep.subr.bf16.mxu0 %v7017
        %10306 = vmatpush2.bf16.msra.mxu0 %v7016
        %10307 = vmatprep.subr.bf16.mxu0 %v7005
        %10308 = vmatpush2.bf16.msra.mxu0 %v7004
        %10309 = vmatprep.subr.bf16.mxu0 %v6993
        %10310 = vmatpush2.bf16.msra.mxu0 %v6992
        %10311 = vmatprep.subr.bf16.mxu0 %v6981
        %10312 = vmatpush2.bf16.msra.mxu0 %v6980
        %10313 = vmatprep.subr.bf16.mxu0 %v6969
        %10314 = vmatpush2.bf16.msra.mxu0 %v6968
        %10315 = vmatprep.subr.bf16.mxu0 %v6957
        %10316 = vmatpush2.bf16.msra.mxu0 %v6956
        %10317 = vmatprep.subr.bf16.mxu0 %v6945
        %10318 = vmatpush2.bf16.msra.mxu0 %v6944
        %10319 = vmatprep.subr.bf16.mxu0 %v6933
        %10320 = vmatpush2.bf16.msra.mxu0 %v6932
        %10321 = vmatprep.mubr.bf16.mxu0 %v1159
        %10322 = vmatmul.mubr.bf16.gmra.mxu0 %v1158
        %v10323 = vpop.f32.mrf.mxu0
        %v10324 = vadd.f32 %v10251, %v10323
        %v10325 = vpop.f32.mrf.mxu0
        %v10326 = vadd.f32 %v10253, %v10325
        %v10327 = vpop.f32.mrf.mxu0
        %v10328 = vadd.f32 %v10255, %v10327
        %v10329 = vpop.f32.mrf.mxu0
        %v10330 = vadd.f32 %v10257, %v10329
        %10331 = vmatprep.mubr.bf16.mxu0 %v1171
        %10332 = vmatmul.mubr.bf16.gmra.mxu0 %v1170
        %v10333 = vpop.f32.mrf.mxu0
        %v10334 = vadd.f32 %v10261, %v10333
        %v10335 = vpop.f32.mrf.mxu0
        %v10336 = vadd.f32 %v10263, %v10335
        %v10337 = vpop.f32.mrf.mxu0
        %v10338 = vadd.f32 %v10265, %v10337
        %v10339 = vpop.f32.mrf.mxu0
        %v10340 = vadd.f32 %v10267, %v10339
        %10341 = vmatprep.mubr.bf16.mxu0 %v1183
        %10342 = vmatmul.mubr.bf16.gmra.mxu0 %v1182
        %v10343 = vpop.f32.mrf.mxu0
        %v10344 = vadd.f32 %v10271, %v10343
        %v10345 = vpop.f32.mrf.mxu0
        %v10346 = vadd.f32 %v10273, %v10345
        %v10347 = vpop.f32.mrf.mxu0
        %v10348 = vadd.f32 %v10275, %v10347
        %v10349 = vpop.f32.mrf.mxu0
        %v10350 = vadd.f32 %v10277, %v10349
        %10351 = vmatprep.mubr.bf16.mxu0 %v1195
        %10352 = vmatmul.mubr.bf16.gmra.mxu0 %v1194
        %v10353 = vpop.f32.mrf.mxu0
        %v10354 = vadd.f32 %v10281, %v10353
        %v10355 = vpop.f32.mrf.mxu0
        %v10356 = vadd.f32 %v10283, %v10355
        %v10357 = vpop.f32.mrf.mxu0
        %v10358 = vadd.f32 %v10285, %v10357
        %v10359 = vpop.f32.mrf.mxu0
        %v10360 = vadd.f32 %v10287, %v10359
        %10361 = vdwg.mxu0
        %10362 = vmatprep.subr.bf16.mxu0 %v5963
        %10363 = vmatpush1.bf16.msra.mxu0 %v5962
        %10364 = vmatprep.subr.bf16.mxu0 %v5951
        %10365 = vmatpush1.bf16.msra.mxu0 %v5950
        %10366 = vmatprep.subr.bf16.mxu0 %v5939
        %10367 = vmatpush1.bf16.msra.mxu0 %v5938
        %10368 = vmatprep.subr.bf16.mxu0 %v5927
        %10369 = vmatpush1.bf16.msra.mxu0 %v5926
        %10370 = vmatprep.subr.bf16.mxu0 %v5915
        %10371 = vmatpush1.bf16.msra.mxu0 %v5914
        %10372 = vmatprep.subr.bf16.mxu0 %v5903
        %10373 = vmatpush1.bf16.msra.mxu0 %v5902
        %10374 = vmatprep.subr.bf16.mxu0 %v5891
        %10375 = vmatpush1.bf16.msra.mxu0 %v5890
        %10376 = vmatprep.subr.bf16.mxu0 %v5879
        %10377 = vmatpush1.bf16.msra.mxu0 %v5878
        %10378 = vmatprep.subr.bf16.mxu0 %v6059
        %10379 = vmatpush2.bf16.msra.mxu0 %v6058
        %10380 = vmatprep.subr.bf16.mxu0 %v6047
        %10381 = vmatpush2.bf16.msra.mxu0 %v6046
        %10382 = vmatprep.subr.bf16.mxu0 %v6035
        %10383 = vmatpush2.bf16.msra.mxu0 %v6034
        %10384 = vmatprep.subr.bf16.mxu0 %v6023
        %10385 = vmatpush2.bf16.msra.mxu0 %v6022
        %10386 = vmatprep.subr.bf16.mxu0 %v6011
        %10387 = vmatpush2.bf16.msra.mxu0 %v6010
        %10388 = vmatprep.subr.bf16.mxu0 %v5999
        %10389 = vmatpush2.bf16.msra.mxu0 %v5998
        %10390 = vmatprep.subr.bf16.mxu0 %v5987
        %10391 = vmatpush2.bf16.msra.mxu0 %v5986
        %10392 = vmatprep.subr.bf16.mxu0 %v5975
        %10393 = vmatpush2.bf16.msra.mxu0 %v5974
        %10394 = vmatprep.mubr.bf16.mxu0 %v1149
        %10395 = vmatmul.mubr.bf16.gmra.mxu0 %v1148
        %v10396 = vpop.f32.mrf.mxu0
        %v10397 = vadd.f32 %v2395, %v10396
        %v10398 = vpop.f32.mrf.mxu0
        %v10399 = vadd.f32 %v2399, %v10398
        %v10400 = vpop.f32.mrf.mxu0
        %v10401 = vadd.f32 %v2395, %v10400
        %v10402 = vpop.f32.mrf.mxu0
        %v10403 = vadd.f32 %v2399, %v10402
        %10404 = vmatprep.mubr.bf16.mxu0 %v1161
        %10405 = vmatmul.mubr.bf16.gmra.mxu0 %v1160
        %v10406 = vpop.f32.mrf.mxu0
        %v10407 = vadd.f32 %v2395, %v10406
        %v10408 = vpop.f32.mrf.mxu0
        %v10409 = vadd.f32 %v2399, %v10408
        %v10410 = vpop.f32.mrf.mxu0
        %v10411 = vadd.f32 %v2395, %v10410
        %v10412 = vpop.f32.mrf.mxu0
        %v10413 = vadd.f32 %v2399, %v10412
        %10414 = vmatprep.mubr.bf16.mxu0 %v1173
        %10415 = vmatmul.mubr.bf16.gmra.mxu0 %v1172
        %v10416 = vpop.f32.mrf.mxu0
        %v10417 = vadd.f32 %v2395, %v10416
        %v10418 = vpop.f32.mrf.mxu0
        %v10419 = vadd.f32 %v2399, %v10418
        %v10420 = vpop.f32.mrf.mxu0
        %v10421 = vadd.f32 %v2395, %v10420
        %v10422 = vpop.f32.mrf.mxu0
        %v10423 = vadd.f32 %v2399, %v10422
        %10424 = vmatprep.mubr.bf16.mxu0 %v1185
        %10425 = vmatmul.mubr.bf16.gmra.mxu0 %v1184
        %v10426 = vpop.f32.mrf.mxu0
        %v10427 = vadd.f32 %v2395, %v10426
        %v10428 = vpop.f32.mrf.mxu0
        %v10429 = vadd.f32 %v2399, %v10428
        %v10430 = vpop.f32.mrf.mxu0
        %v10431 = vadd.f32 %v2395, %v10430
        %v10432 = vpop.f32.mrf.mxu0
        %v10433 = vadd.f32 %v2399, %v10432
        %10434 = vdwg.mxu0
        %10435 = vmatprep.subr.bf16.mxu0 %v6155
        %10436 = vmatpush1.bf16.msra.mxu0 %v6154
        %10437 = vmatprep.subr.bf16.mxu0 %v6143
        %10438 = vmatpush1.bf16.msra.mxu0 %v6142
        %10439 = vmatprep.subr.bf16.mxu0 %v6131
        %10440 = vmatpush1.bf16.msra.mxu0 %v6130
        %10441 = vmatprep.subr.bf16.mxu0 %v6119
        %10442 = vmatpush1.bf16.msra.mxu0 %v6118
        %10443 = vmatprep.subr.bf16.mxu0 %v6107
        %10444 = vmatpush1.bf16.msra.mxu0 %v6106
        %10445 = vmatprep.subr.bf16.mxu0 %v6095
        %10446 = vmatpush1.bf16.msra.mxu0 %v6094
        %10447 = vmatprep.subr.bf16.mxu0 %v6083
        %10448 = vmatpush1.bf16.msra.mxu0 %v6082
        %10449 = vmatprep.subr.bf16.mxu0 %v6071
        %10450 = vmatpush1.bf16.msra.mxu0 %v6070
        %10451 = vmatprep.subr.bf16.mxu0 %v6251
        %10452 = vmatpush2.bf16.msra.mxu0 %v6250
        %10453 = vmatprep.subr.bf16.mxu0 %v6239
        %10454 = vmatpush2.bf16.msra.mxu0 %v6238
        %10455 = vmatprep.subr.bf16.mxu0 %v6227
        %10456 = vmatpush2.bf16.msra.mxu0 %v6226
        %10457 = vmatprep.subr.bf16.mxu0 %v6215
        %10458 = vmatpush2.bf16.msra.mxu0 %v6214
        %10459 = vmatprep.subr.bf16.mxu0 %v6203
        %10460 = vmatpush2.bf16.msra.mxu0 %v6202
        %10461 = vmatprep.subr.bf16.mxu0 %v6191
        %10462 = vmatpush2.bf16.msra.mxu0 %v6190
        %10463 = vmatprep.subr.bf16.mxu0 %v6179
        %10464 = vmatpush2.bf16.msra.mxu0 %v6178
        %10465 = vmatprep.subr.bf16.mxu0 %v6167
        %10466 = vmatpush2.bf16.msra.mxu0 %v6166
        %10467 = vmatprep.mubr.bf16.mxu0 %v1151
        %10468 = vmatmul.mubr.bf16.gmra.mxu0 %v1150
        %v10469 = vpop.f32.mrf.mxu0
        %v10470 = vadd.f32 %v10397, %v10469
        %v10471 = vpop.f32.mrf.mxu0
        %v10472 = vadd.f32 %v10399, %v10471
        %v10473 = vpop.f32.mrf.mxu0
        %v10474 = vadd.f32 %v10401, %v10473
        %v10475 = vpop.f32.mrf.mxu0
        %v10476 = vadd.f32 %v10403, %v10475
        %10477 = vmatprep.mubr.bf16.mxu0 %v1163
        %10478 = vmatmul.mubr.bf16.gmra.mxu0 %v1162
        %v10479 = vpop.f32.mrf.mxu0
        %v10480 = vadd.f32 %v10407, %v10479
        %v10481 = vpop.f32.mrf.mxu0
        %v10482 = vadd.f32 %v10409, %v10481
        %v10483 = vpop.f32.mrf.mxu0
        %v10484 = vadd.f32 %v10411, %v10483
        %v10485 = vpop.f32.mrf.mxu0
        %v10486 = vadd.f32 %v10413, %v10485
        %10487 = vmatprep.mubr.bf16.mxu0 %v1175
        %10488 = vmatmul.mubr.bf16.gmra.mxu0 %v1174
        %v10489 = vpop.f32.mrf.mxu0
        %v10490 = vadd.f32 %v10417, %v10489
        %v10491 = vpop.f32.mrf.mxu0
        %v10492 = vadd.f32 %v10419, %v10491
        %v10493 = vpop.f32.mrf.mxu0
        %v10494 = vadd.f32 %v10421, %v10493
        %v10495 = vpop.f32.mrf.mxu0
        %v10496 = vadd.f32 %v10423, %v10495
        %10497 = vmatprep.mubr.bf16.mxu0 %v1187
        %10498 = vmatmul.mubr.bf16.gmra.mxu0 %v1186
        %v10499 = vpop.f32.mrf.mxu0
        %v10500 = vadd.f32 %v10427, %v10499
        %v10501 = vpop.f32.mrf.mxu0
        %v10502 = vadd.f32 %v10429, %v10501
        %v10503 = vpop.f32.mrf.mxu0
        %v10504 = vadd.f32 %v10431, %v10503
        %v10505 = vpop.f32.mrf.mxu0
        %v10506 = vadd.f32 %v10433, %v10505
        %10507 = vdwg.mxu0
        %10508 = vmatprep.subr.bf16.mxu0 %v6347
        %10509 = vmatpush1.bf16.msra.mxu0 %v6346
        %10510 = vmatprep.subr.bf16.mxu0 %v6335
        %10511 = vmatpush1.bf16.msra.mxu0 %v6334
        %10512 = vmatprep.subr.bf16.mxu0 %v6323
        %10513 = vmatpush1.bf16.msra.mxu0 %v6322
        %10514 = vmatprep.subr.bf16.mxu0 %v6311
        %10515 = vmatpush1.bf16.msra.mxu0 %v6310
        %10516 = vmatprep.subr.bf16.mxu0 %v6299
        %10517 = vmatpush1.bf16.msra.mxu0 %v6298
        %10518 = vmatprep.subr.bf16.mxu0 %v6287
        %10519 = vmatpush1.bf16.msra.mxu0 %v6286
        %10520 = vmatprep.subr.bf16.mxu0 %v6275
        %10521 = vmatpush1.bf16.msra.mxu0 %v6274
        %10522 = vmatprep.subr.bf16.mxu0 %v6263
        %10523 = vmatpush1.bf16.msra.mxu0 %v6262
        %10524 = vmatprep.subr.bf16.mxu0 %v6443
        %10525 = vmatpush2.bf16.msra.mxu0 %v6442
        %10526 = vmatprep.subr.bf16.mxu0 %v6431
        %10527 = vmatpush2.bf16.msra.mxu0 %v6430
        %10528 = vmatprep.subr.bf16.mxu0 %v6419
        %10529 = vmatpush2.bf16.msra.mxu0 %v6418
        %10530 = vmatprep.subr.bf16.mxu0 %v6407
        %10531 = vmatpush2.bf16.msra.mxu0 %v6406
        %10532 = vmatprep.subr.bf16.mxu0 %v6395
        %10533 = vmatpush2.bf16.msra.mxu0 %v6394
        %10534 = vmatprep.subr.bf16.mxu0 %v6383
        %10535 = vmatpush2.bf16.msra.mxu0 %v6382
        %10536 = vmatprep.subr.bf16.mxu0 %v6371
        %10537 = vmatpush2.bf16.msra.mxu0 %v6370
        %10538 = vmatprep.subr.bf16.mxu0 %v6359
        %10539 = vmatpush2.bf16.msra.mxu0 %v6358
        %10540 = vmatprep.mubr.bf16.mxu0 %v1153
        %10541 = vmatmul.mubr.bf16.gmra.mxu0 %v1152
        %v10542 = vpop.f32.mrf.mxu0
        %v10543 = vadd.f32 %v10470, %v10542
        %v10544 = vpop.f32.mrf.mxu0
        %v10545 = vadd.f32 %v10472, %v10544
        %v10546 = vpop.f32.mrf.mxu0
        %v10547 = vadd.f32 %v10474, %v10546
        %v10548 = vpop.f32.mrf.mxu0
        %v10549 = vadd.f32 %v10476, %v10548
        %10550 = vmatprep.mubr.bf16.mxu0 %v1165
        %10551 = vmatmul.mubr.bf16.gmra.mxu0 %v1164
        %v10552 = vpop.f32.mrf.mxu0
        %v10553 = vadd.f32 %v10480, %v10552
        %v10554 = vpop.f32.mrf.mxu0
        %v10555 = vadd.f32 %v10482, %v10554
        %v10556 = vpop.f32.mrf.mxu0
        %v10557 = vadd.f32 %v10484, %v10556
        %v10558 = vpop.f32.mrf.mxu0
        %v10559 = vadd.f32 %v10486, %v10558
        %10560 = vmatprep.mubr.bf16.mxu0 %v1177
        %10561 = vmatmul.mubr.bf16.gmra.mxu0 %v1176
        %v10562 = vpop.f32.mrf.mxu0
        %v10563 = vadd.f32 %v10490, %v10562
        %v10564 = vpop.f32.mrf.mxu0
        %v10565 = vadd.f32 %v10492, %v10564
        %v10566 = vpop.f32.mrf.mxu0
        %v10567 = vadd.f32 %v10494, %v10566
        %v10568 = vpop.f32.mrf.mxu0
        %v10569 = vadd.f32 %v10496, %v10568
        %10570 = vmatprep.mubr.bf16.mxu0 %v1189
        %10571 = vmatmul.mubr.bf16.gmra.mxu0 %v1188
        %v10572 = vpop.f32.mrf.mxu0
        %v10573 = vadd.f32 %v10500, %v10572
        %v10574 = vpop.f32.mrf.mxu0
        %v10575 = vadd.f32 %v10502, %v10574
        %v10576 = vpop.f32.mrf.mxu0
        %v10577 = vadd.f32 %v10504, %v10576
        %v10578 = vpop.f32.mrf.mxu0
        %v10579 = vadd.f32 %v10506, %v10578
        %10580 = vdwg.mxu0
        %10581 = vmatprep.subr.bf16.mxu0 %v6539
        %10582 = vmatpush1.bf16.msra.mxu0 %v6538
        %10583 = vmatprep.subr.bf16.mxu0 %v6527
        %10584 = vmatpush1.bf16.msra.mxu0 %v6526
        %10585 = vmatprep.subr.bf16.mxu0 %v6515
        %10586 = vmatpush1.bf16.msra.mxu0 %v6514
        %10587 = vmatprep.subr.bf16.mxu0 %v6503
        %10588 = vmatpush1.bf16.msra.mxu0 %v6502
        %10589 = vmatprep.subr.bf16.mxu0 %v6491
        %10590 = vmatpush1.bf16.msra.mxu0 %v6490
        %10591 = vmatprep.subr.bf16.mxu0 %v6479
        %10592 = vmatpush1.bf16.msra.mxu0 %v6478
        %10593 = vmatprep.subr.bf16.mxu0 %v6467
        %10594 = vmatpush1.bf16.msra.mxu0 %v6466
        %10595 = vmatprep.subr.bf16.mxu0 %v6455
        %10596 = vmatpush1.bf16.msra.mxu0 %v6454
        %10597 = vmatprep.subr.bf16.mxu0 %v6635
        %10598 = vmatpush2.bf16.msra.mxu0 %v6634
        %10599 = vmatprep.subr.bf16.mxu0 %v6623
        %10600 = vmatpush2.bf16.msra.mxu0 %v6622
        %10601 = vmatprep.subr.bf16.mxu0 %v6611
        %10602 = vmatpush2.bf16.msra.mxu0 %v6610
        %10603 = vmatprep.subr.bf16.mxu0 %v6599
        %10604 = vmatpush2.bf16.msra.mxu0 %v6598
        %10605 = vmatprep.subr.bf16.mxu0 %v6587
        %10606 = vmatpush2.bf16.msra.mxu0 %v6586
        %10607 = vmatprep.subr.bf16.mxu0 %v6575
        %10608 = vmatpush2.bf16.msra.mxu0 %v6574
        %10609 = vmatprep.subr.bf16.mxu0 %v6563
        %10610 = vmatpush2.bf16.msra.mxu0 %v6562
        %10611 = vmatprep.subr.bf16.mxu0 %v6551
        %10612 = vmatpush2.bf16.msra.mxu0 %v6550
        %10613 = vmatprep.mubr.bf16.mxu0 %v1155
        %10614 = vmatmul.mubr.bf16.gmra.mxu0 %v1154
        %v10615 = vpop.f32.mrf.mxu0
        %v10616 = vadd.f32 %v10543, %v10615
        %v10617 = vpop.f32.mrf.mxu0
        %v10618 = vadd.f32 %v10545, %v10617
        %v10619 = vpop.f32.mrf.mxu0
        %v10620 = vadd.f32 %v10547, %v10619
        %v10621 = vpop.f32.mrf.mxu0
        %v10622 = vadd.f32 %v10549, %v10621
        %10623 = vmatprep.mubr.bf16.mxu0 %v1167
        %10624 = vmatmul.mubr.bf16.gmra.mxu0 %v1166
        %v10625 = vpop.f32.mrf.mxu0
        %v10626 = vadd.f32 %v10553, %v10625
        %v10627 = vpop.f32.mrf.mxu0
        %v10628 = vadd.f32 %v10555, %v10627
        %v10629 = vpop.f32.mrf.mxu0
        %v10630 = vadd.f32 %v10557, %v10629
        %v10631 = vpop.f32.mrf.mxu0
        %v10632 = vadd.f32 %v10559, %v10631
        %10633 = vmatprep.mubr.bf16.mxu0 %v1179
        %10634 = vmatmul.mubr.bf16.gmra.mxu0 %v1178
        %v10635 = vpop.f32.mrf.mxu0
        %v10636 = vadd.f32 %v10563, %v10635
        %v10637 = vpop.f32.mrf.mxu0
        %v10638 = vadd.f32 %v10565, %v10637
        %v10639 = vpop.f32.mrf.mxu0
        %v10640 = vadd.f32 %v10567, %v10639
        %v10641 = vpop.f32.mrf.mxu0
        %v10642 = vadd.f32 %v10569, %v10641
        %10643 = vmatprep.mubr.bf16.mxu0 %v1191
        %10644 = vmatmul.mubr.bf16.gmra.mxu0 %v1190
        %v10645 = vpop.f32.mrf.mxu0
        %v10646 = vadd.f32 %v10573, %v10645
        %v10647 = vpop.f32.mrf.mxu0
        %v10648 = vadd.f32 %v10575, %v10647
        %v10649 = vpop.f32.mrf.mxu0
        %v10650 = vadd.f32 %v10577, %v10649
        %v10651 = vpop.f32.mrf.mxu0
        %v10652 = vadd.f32 %v10579, %v10651
        %10653 = vdwg.mxu0
        %10654 = vmatprep.subr.bf16.mxu0 %v6731
        %10655 = vmatpush1.bf16.msra.mxu0 %v6730
        %10656 = vmatprep.subr.bf16.mxu0 %v6719
        %10657 = vmatpush1.bf16.msra.mxu0 %v6718
        %10658 = vmatprep.subr.bf16.mxu0 %v6707
        %10659 = vmatpush1.bf16.msra.mxu0 %v6706
        %10660 = vmatprep.subr.bf16.mxu0 %v6695
        %10661 = vmatpush1.bf16.msra.mxu0 %v6694
        %10662 = vmatprep.subr.bf16.mxu0 %v6683
        %10663 = vmatpush1.bf16.msra.mxu0 %v6682
        %10664 = vmatprep.subr.bf16.mxu0 %v6671
        %10665 = vmatpush1.bf16.msra.mxu0 %v6670
        %10666 = vmatprep.subr.bf16.mxu0 %v6659
        %10667 = vmatpush1.bf16.msra.mxu0 %v6658
        %10668 = vmatprep.subr.bf16.mxu0 %v6647
        %10669 = vmatpush1.bf16.msra.mxu0 %v6646
        %10670 = vmatprep.subr.bf16.mxu0 %v6827
        %10671 = vmatpush2.bf16.msra.mxu0 %v6826
        %10672 = vmatprep.subr.bf16.mxu0 %v6815
        %10673 = vmatpush2.bf16.msra.mxu0 %v6814
        %10674 = vmatprep.subr.bf16.mxu0 %v6803
        %10675 = vmatpush2.bf16.msra.mxu0 %v6802
        %10676 = vmatprep.subr.bf16.mxu0 %v6791
        %10677 = vmatpush2.bf16.msra.mxu0 %v6790
        %10678 = vmatprep.subr.bf16.mxu0 %v6779
        %10679 = vmatpush2.bf16.msra.mxu0 %v6778
        %10680 = vmatprep.subr.bf16.mxu0 %v6767
        %10681 = vmatpush2.bf16.msra.mxu0 %v6766
        %10682 = vmatprep.subr.bf16.mxu0 %v6755
        %10683 = vmatpush2.bf16.msra.mxu0 %v6754
        %10684 = vmatprep.subr.bf16.mxu0 %v6743
        %10685 = vmatpush2.bf16.msra.mxu0 %v6742
        %10686 = vmatprep.mubr.bf16.mxu0 %v1157
        %10687 = vmatmul.mubr.bf16.gmra.mxu0 %v1156
        %v10688 = vpop.f32.mrf.mxu0
        %v10689 = vadd.f32 %v10616, %v10688
        %v10690 = vpop.f32.mrf.mxu0
        %v10691 = vadd.f32 %v10618, %v10690
        %v10692 = vpop.f32.mrf.mxu0
        %v10693 = vadd.f32 %v10620, %v10692
        %v10694 = vpop.f32.mrf.mxu0
        %v10695 = vadd.f32 %v10622, %v10694
        %10696 = vmatprep.mubr.bf16.mxu0 %v1169
        %10697 = vmatmul.mubr.bf16.gmra.mxu0 %v1168
        %v10698 = vpop.f32.mrf.mxu0
        %v10699 = vadd.f32 %v10626, %v10698
        %v10700 = vpop.f32.mrf.mxu0
        %v10701 = vadd.f32 %v10628, %v10700
        %v10702 = vpop.f32.mrf.mxu0
        %v10703 = vadd.f32 %v10630, %v10702
        %v10704 = vpop.f32.mrf.mxu0
        %v10705 = vadd.f32 %v10632, %v10704
        %10706 = vmatprep.mubr.bf16.mxu0 %v1181
        %10707 = vmatmul.mubr.bf16.gmra.mxu0 %v1180
        %v10708 = vpop.f32.mrf.mxu0
        %v10709 = vadd.f32 %v10636, %v10708
        %v10710 = vpop.f32.mrf.mxu0
        %v10711 = vadd.f32 %v10638, %v10710
        %v10712 = vpop.f32.mrf.mxu0
        %v10713 = vadd.f32 %v10640, %v10712
        %v10714 = vpop.f32.mrf.mxu0
        %v10715 = vadd.f32 %v10642, %v10714
        %10716 = vmatprep.mubr.bf16.mxu0 %v1193
        %10717 = vmatmul.mubr.bf16.gmra.mxu0 %v1192
        %v10718 = vpop.f32.mrf.mxu0
        %v10719 = vadd.f32 %v10646, %v10718
        %v10720 = vpop.f32.mrf.mxu0
        %v10721 = vadd.f32 %v10648, %v10720
        %v10722 = vpop.f32.mrf.mxu0
        %v10723 = vadd.f32 %v10650, %v10722
        %v10724 = vpop.f32.mrf.mxu0
        %v10725 = vadd.f32 %v10652, %v10724
        %10726 = vdwg.mxu0
        %10727 = vmatprep.subr.bf16.mxu0 %v6923
        %10728 = vmatpush1.bf16.msra.mxu0 %v6922
        %10729 = vmatprep.subr.bf16.mxu0 %v6911
        %10730 = vmatpush1.bf16.msra.mxu0 %v6910
        %10731 = vmatprep.subr.bf16.mxu0 %v6899
        %10732 = vmatpush1.bf16.msra.mxu0 %v6898
        %10733 = vmatprep.subr.bf16.mxu0 %v6887
        %10734 = vmatpush1.bf16.msra.mxu0 %v6886
        %10735 = vmatprep.subr.bf16.mxu0 %v6875
        %10736 = vmatpush1.bf16.msra.mxu0 %v6874
        %10737 = vmatprep.subr.bf16.mxu0 %v6863
        %10738 = vmatpush1.bf16.msra.mxu0 %v6862
        %10739 = vmatprep.subr.bf16.mxu0 %v6851
        %10740 = vmatpush1.bf16.msra.mxu0 %v6850
        %10741 = vmatprep.subr.bf16.mxu0 %v6839
        %10742 = vmatpush1.bf16.msra.mxu0 %v6838
        %10743 = vmatprep.subr.bf16.mxu0 %v7019
        %10744 = vmatpush2.bf16.msra.mxu0 %v7018
        %10745 = vmatprep.subr.bf16.mxu0 %v7007
        %10746 = vmatpush2.bf16.msra.mxu0 %v7006
        %10747 = vmatprep.subr.bf16.mxu0 %v6995
        %10748 = vmatpush2.bf16.msra.mxu0 %v6994
        %10749 = vmatprep.subr.bf16.mxu0 %v6983
        %10750 = vmatpush2.bf16.msra.mxu0 %v6982
        %10751 = vmatprep.subr.bf16.mxu0 %v6971
        %10752 = vmatpush2.bf16.msra.mxu0 %v6970
        %10753 = vmatprep.subr.bf16.mxu0 %v6959
        %10754 = vmatpush2.bf16.msra.mxu0 %v6958
        %10755 = vmatprep.subr.bf16.mxu0 %v6947
        %10756 = vmatpush2.bf16.msra.mxu0 %v6946
        %10757 = vmatprep.subr.bf16.mxu0 %v6935
        %10758 = vmatpush2.bf16.msra.mxu0 %v6934
        %10759 = vmatprep.mubr.bf16.mxu0 %v1159
        %10760 = vmatmul.mubr.bf16.gmra.mxu0 %v1158
        %v10761 = vpop.f32.mrf.mxu0
        %v10762 = vadd.f32 %v10689, %v10761
        %v10763 = vpop.f32.mrf.mxu0
        %v10764 = vadd.f32 %v10691, %v10763
        %v10765 = vpop.f32.mrf.mxu0
        %v10766 = vadd.f32 %v10693, %v10765
        %v10767 = vpop.f32.mrf.mxu0
        %v10768 = vadd.f32 %v10695, %v10767
        %10769 = vmatprep.mubr.bf16.mxu0 %v1171
        %10770 = vmatmul.mubr.bf16.gmra.mxu0 %v1170
        %v10771 = vpop.f32.mrf.mxu0
        %v10772 = vadd.f32 %v10699, %v10771
        %v10773 = vpop.f32.mrf.mxu0
        %v10774 = vadd.f32 %v10701, %v10773
        %v10775 = vpop.f32.mrf.mxu0
        %v10776 = vadd.f32 %v10703, %v10775
        %v10777 = vpop.f32.mrf.mxu0
        %v10778 = vadd.f32 %v10705, %v10777
        %10779 = vmatprep.mubr.bf16.mxu0 %v1183
        %10780 = vmatmul.mubr.bf16.gmra.mxu0 %v1182
        %v10781 = vpop.f32.mrf.mxu0
        %v10782 = vadd.f32 %v10709, %v10781
        %v10783 = vpop.f32.mrf.mxu0
        %v10784 = vadd.f32 %v10711, %v10783
        %v10785 = vpop.f32.mrf.mxu0
        %v10786 = vadd.f32 %v10713, %v10785
        %v10787 = vpop.f32.mrf.mxu0
        %v10788 = vadd.f32 %v10715, %v10787
        %10789 = vmatprep.mubr.bf16.mxu0 %v1195
        %10790 = vmatmul.mubr.bf16.gmra.mxu0 %v1194
        %v10791 = vpop.f32.mrf.mxu0
        %v10792 = vadd.f32 %v10719, %v10791
        %v10793 = vpop.f32.mrf.mxu0
        %v10794 = vadd.f32 %v10721, %v10793
        %v10795 = vpop.f32.mrf.mxu0
        %v10796 = vadd.f32 %v10723, %v10795
        %v10797 = vpop.f32.mrf.mxu0
        %v10798 = vadd.f32 %v10725, %v10797
        %10799 = vdwg.mxu0
        %v10800 = vpack.c.bf16 %v8576, %v8572
        %v10801 = vpack.c.bf16 %v8578, %v8574
        %v10802 = vpack.c.bf16 %v9014, %v9010
        %v10803 = vpack.c.bf16 %v9016, %v9012
        %v10804 = vpack.c.bf16 %v9452, %v9448
        %v10805 = vpack.c.bf16 %v9454, %v9450
        %v10806 = vpack.c.bf16 %v9890, %v9886
        %v10807 = vpack.c.bf16 %v9892, %v9888
        %v10808 = vpack.c.bf16 %v10328, %v10324
        %v10809 = vpack.c.bf16 %v10330, %v10326
        %v10810 = vpack.c.bf16 %v10766, %v10762
        %v10811 = vpack.c.bf16 %v10768, %v10764
        %v10812 = vpack.c.bf16 %v8586, %v8582
        %v10813 = vpack.c.bf16 %v8588, %v8584
        %v10814 = vpack.c.bf16 %v9024, %v9020
        %v10815 = vpack.c.bf16 %v9026, %v9022
        %v10816 = vpack.c.bf16 %v9462, %v9458
        %v10817 = vpack.c.bf16 %v9464, %v9460
        %v10818 = vpack.c.bf16 %v9900, %v9896
        %v10819 = vpack.c.bf16 %v9902, %v9898
        %v10820 = vpack.c.bf16 %v10338, %v10334
        %v10821 = vpack.c.bf16 %v10340, %v10336
        %v10822 = vpack.c.bf16 %v10776, %v10772
        %v10823 = vpack.c.bf16 %v10778, %v10774
        %v10824 = vpack.c.bf16 %v8596, %v8592
        %v10825 = vpack.c.bf16 %v8598, %v8594
        %v10826 = vpack.c.bf16 %v9034, %v9030
        %v10827 = vpack.c.bf16 %v9036, %v9032
        %v10828 = vpack.c.bf16 %v9472, %v9468
        %v10829 = vpack.c.bf16 %v9474, %v9470
        %v10830 = vpack.c.bf16 %v9910, %v9906
        %v10831 = vpack.c.bf16 %v9912, %v9908
        %v10832 = vpack.c.bf16 %v10348, %v10344
        %v10833 = vpack.c.bf16 %v10350, %v10346
        %v10834 = vpack.c.bf16 %v10786, %v10782
        %v10835 = vpack.c.bf16 %v10788, %v10784
        %v10836 = vpack.c.bf16 %v8606, %v8602
        %v10837 = vpack.c.bf16 %v8608, %v8604
        %v10838 = vpack.c.bf16 %v9044, %v9040
        %v10839 = vpack.c.bf16 %v9046, %v9042
        %v10840 = vpack.c.bf16 %v9482, %v9478
        %v10841 = vpack.c.bf16 %v9484, %v9480
        %v10842 = vpack.c.bf16 %v9920, %v9916
        %v10843 = vpack.c.bf16 %v9922, %v9918
        %v10844 = vpack.c.bf16 %v10358, %v10354
        %v10845 = vpack.c.bf16 %v10360, %v10356
        %v10846 = vpack.c.bf16 %v10796, %v10792
        %v10847 = vpack.c.bf16 %v10798, %v10794
        %v10848 = vmul.bf16 %v10800, 981678723
        %v10849 = vmul.bf16 %v10801, 981678723
        %v10850 = vmul.bf16 %v10802, 981678723
        %v10851 = vmul.bf16 %v10803, 981678723
        %v10852 = vmul.bf16 %v10804, 981678723
        %v10853 = vmul.bf16 %v10805, 981678723
        %v10854 = vmul.bf16 %v10806, 981678723
        %v10855 = vmul.bf16 %v10807, 981678723
        %v10856 = vmul.bf16 %v10808, 981678723
        %v10857 = vmul.bf16 %v10809, 981678723
        %v10858 = vmul.bf16 %v10810, 981678723
        %v10859 = vmul.bf16 %v10811, 981678723
        %v10860 = vmul.bf16 %v10812, 981678723
        %v10861 = vmul.bf16 %v10813, 981678723
        %v10862 = vmul.bf16 %v10814, 981678723
        %v10863 = vmul.bf16 %v10815, 981678723
        %v10864 = vmul.bf16 %v10816, 981678723
        %v10865 = vmul.bf16 %v10817, 981678723
        %v10866 = vmul.bf16 %v10818, 981678723
        %v10867 = vmul.bf16 %v10819, 981678723
        %v10868 = vmul.bf16 %v10820, 981678723
        %v10869 = vmul.bf16 %v10821, 981678723
        %v10870 = vmul.bf16 %v10822, 981678723
        %v10871 = vmul.bf16 %v10823, 981678723
        %v10872 = vmul.bf16 %v10824, 981678723
        %v10873 = vmul.bf16 %v10825, 981678723
        %v10874 = vmul.bf16 %v10826, 981678723
        %v10875 = vmul.bf16 %v10827, 981678723
        %v10876 = vmul.bf16 %v10828, 981678723
        %v10877 = vmul.bf16 %v10829, 981678723
        %v10878 = vmul.bf16 %v10830, 981678723
        %v10879 = vmul.bf16 %v10831, 981678723
        %v10880 = vmul.bf16 %v10832, 981678723
        %v10881 = vmul.bf16 %v10833, 981678723
        %v10882 = vmul.bf16 %v10834, 981678723
        %v10883 = vmul.bf16 %v10835, 981678723
        %v10884 = vmul.bf16 %v10836, 981678723
        %v10885 = vmul.bf16 %v10837, 981678723
        %v10886 = vmul.bf16 %v10838, 981678723
        %v10887 = vmul.bf16 %v10839, 981678723
        %v10888 = vmul.bf16 %v10840, 981678723
        %v10889 = vmul.bf16 %v10841, 981678723
        %v10890 = vmul.bf16 %v10842, 981678723
        %v10891 = vmul.bf16 %v10843, 981678723
        %v10892 = vmul.bf16 %v10844, 981678723
        %v10893 = vmul.bf16 %v10845, 981678723
        %v10894 = vmul.bf16 %v10846, 981678723
        %v10895 = vmul.bf16 %v10847, 981678723
        %v10896 = vmax.bf16 %v10800, %v10848
        %v10897 = vmax.bf16 %v10801, %v10849
        %v10898 = vmax.bf16 %v10802, %v10850
        %v10899 = vmax.bf16 %v10803, %v10851
        %v10900 = vmax.bf16 %v10804, %v10852
        %v10901 = vmax.bf16 %v10805, %v10853
        %v10902 = vmax.bf16 %v10806, %v10854
        %v10903 = vmax.bf16 %v10807, %v10855
        %v10904 = vmax.bf16 %v10808, %v10856
        %v10905 = vmax.bf16 %v10809, %v10857
        %v10906 = vmax.bf16 %v10810, %v10858
        %v10907 = vmax.bf16 %v10811, %v10859
        %v10908 = vmax.bf16 %v10812, %v10860
        %v10909 = vmax.bf16 %v10813, %v10861
        %v10910 = vmax.bf16 %v10814, %v10862
        %v10911 = vmax.bf16 %v10815, %v10863
        %v10912 = vmax.bf16 %v10816, %v10864
        %v10913 = vmax.bf16 %v10817, %v10865
        %v10914 = vmax.bf16 %v10818, %v10866
        %v10915 = vmax.bf16 %v10819, %v10867
        %v10916 = vmax.bf16 %v10820, %v10868
        %v10917 = vmax.bf16 %v10821, %v10869
        %v10918 = vmax.bf16 %v10822, %v10870
        %v10919 = vmax.bf16 %v10823, %v10871
        %v10920 = vmax.bf16 %v10824, %v10872
        %v10921 = vmax.bf16 %v10825, %v10873
        %v10922 = vmax.bf16 %v10826, %v10874
        %v10923 = vmax.bf16 %v10827, %v10875
        %v10924 = vmax.bf16 %v10828, %v10876
        %v10925 = vmax.bf16 %v10829, %v10877
        %v10926 = vmax.bf16 %v10830, %v10878
        %v10927 = vmax.bf16 %v10831, %v10879
        %v10928 = vmax.bf16 %v10832, %v10880
        %v10929 = vmax.bf16 %v10833, %v10881
        %v10930 = vmax.bf16 %v10834, %v10882
        %v10931 = vmax.bf16 %v10835, %v10883
        %v10932 = vmax.bf16 %v10836, %v10884
        %v10933 = vmax.bf16 %v10837, %v10885
        %v10934 = vmax.bf16 %v10838, %v10886
        %v10935 = vmax.bf16 %v10839, %v10887
        %v10936 = vmax.bf16 %v10840, %v10888
        %v10937 = vmax.bf16 %v10841, %v10889
        %v10938 = vmax.bf16 %v10842, %v10890
        %v10939 = vmax.bf16 %v10843, %v10891
        %v10940 = vmax.bf16 %v10844, %v10892
        %v10941 = vmax.bf16 %v10845, %v10893
        %v10942 = vmax.bf16 %v10846, %v10894
        %v10943 = vmax.bf16 %v10847, %v10895
        %v10944 = vld [vmem:[#allocation10] sm:$0xf]
        %v10945 = vld [vmem:[#allocation10 + $0x4] sm:$0xf]
        %v10946 = vld [vmem:[#allocation10 + $0x8] sm:$0xf]
        %v10947 = vld [vmem:[#allocation10 + $0xc] sm:$0xf]
        %v10948 = vld [vmem:[#allocation10 + $0x10] sm:$0xf]
        %v10949 = vld [vmem:[#allocation10 + $0x14] sm:$0xf]
        %v10950 = vld [vmem:[#allocation10 + $0x18] sm:$0xf]
        %v10951 = vld [vmem:[#allocation10 + $0x1c] sm:$0xf]
        %v10952 = vld [vmem:[#allocation10 + $0x20] sm:$0xf]
        %v10953 = vld [vmem:[#allocation10 + $0x24] sm:$0xf]
        %v10954 = vld [vmem:[#allocation10 + $0x28] sm:$0xf]
        %v10955 = vld [vmem:[#allocation10 + $0x2c] sm:$0xf]
        %v10956 = vld [vmem:[#allocation10 + $0x30] sm:$0xf]
        %v10957 = vld [vmem:[#allocation10 + $0x34] sm:$0xf]
        %v10958 = vld [vmem:[#allocation10 + $0x38] sm:$0xf]
        %v10959 = vld [vmem:[#allocation10 + $0x3c] sm:$0xf]
        %v10960 = vld [vmem:[#allocation10 + $0x40] sm:$0xf]
        %v10961 = vld [vmem:[#allocation10 + $0x44] sm:$0xf]
        %v10962 = vld [vmem:[#allocation10 + $0x48] sm:$0xf]
        %v10963 = vld [vmem:[#allocation10 + $0x4c] sm:$0xf]
        %v10964 = vld [vmem:[#allocation10 + $0x50] sm:$0xf]
        %v10965 = vld [vmem:[#allocation10 + $0x54] sm:$0xf]
        %v10966 = vld [vmem:[#allocation10 + $0x58] sm:$0xf]
        %v10967 = vld [vmem:[#allocation10 + $0x5c] sm:$0xf]
        %v10968 = vld [vmem:[#allocation10 + $0x60] sm:$0xf]
        %v10969 = vld [vmem:[#allocation10 + $0x64] sm:$0xf]
        %v10970 = vld [vmem:[#allocation10 + $0x68] sm:$0xf]
        %v10971 = vld [vmem:[#allocation10 + $0x6c] sm:$0xf]
        %v10972 = vld [vmem:[#allocation10 + $0x70] sm:$0xf]
        %v10973 = vld [vmem:[#allocation10 + $0x74] sm:$0xf]
        %v10974 = vld [vmem:[#allocation10 + $0x78] sm:$0xf]
        %v10975 = vld [vmem:[#allocation10 + $0x7c] sm:$0xf]
        %v10976 = vld [vmem:[#allocation10 + $0x80] sm:$0xf]
        %v10977 = vld [vmem:[#allocation10 + $0x84] sm:$0xf]
        %v10978 = vld [vmem:[#allocation10 + $0x88] sm:$0xf]
        %v10979 = vld [vmem:[#allocation10 + $0x8c] sm:$0xf]
        %v10980 = vld [vmem:[#allocation10 + $0x90] sm:$0xf]
        %v10981 = vld [vmem:[#allocation10 + $0x94] sm:$0xf]
        %v10982 = vld [vmem:[#allocation10 + $0x98] sm:$0xf]
        %v10983 = vld [vmem:[#allocation10 + $0x9c] sm:$0xf]
        %v10984 = vld [vmem:[#allocation10 + $0xa0] sm:$0xf]
        %v10985 = vld [vmem:[#allocation10 + $0xa4] sm:$0xf]
        %v10986 = vld [vmem:[#allocation10 + $0xa8] sm:$0xf]
        %v10987 = vld [vmem:[#allocation10 + $0xac] sm:$0xf]
        %v10988 = vld [vmem:[#allocation10 + $0xb0] sm:$0xf]
        %v10989 = vld [vmem:[#allocation10 + $0xb4] sm:$0xf]
        %v10990 = vld [vmem:[#allocation10 + $0xb8] sm:$0xf]
        %v10991 = vld [vmem:[#allocation10 + $0xbc] sm:$0xf]
        %v10992 = vld [vmem:[#allocation10 + $0xc0] sm:$0xf]
        %v10993 = vld [vmem:[#allocation10 + $0xc4] sm:$0xf]
        %v10994 = vld [vmem:[#allocation10 + $0xc8] sm:$0xf]
        %v10995 = vld [vmem:[#allocation10 + $0xcc] sm:$0xf]
        %v10996 = vld [vmem:[#allocation10 + $0xd0] sm:$0xf]
        %v10997 = vld [vmem:[#allocation10 + $0xd4] sm:$0xf]
        %v10998 = vld [vmem:[#allocation10 + $0xd8] sm:$0xf]
        %v10999 = vld [vmem:[#allocation10 + $0xdc] sm:$0xf]
        %v11000 = vld [vmem:[#allocation10 + $0xe0] sm:$0xf]
        %v11001 = vld [vmem:[#allocation10 + $0xe4] sm:$0xf]
        %v11002 = vld [vmem:[#allocation10 + $0xe8] sm:$0xf]
        %v11003 = vld [vmem:[#allocation10 + $0xec] sm:$0xf]
        %v11004 = vld [vmem:[#allocation10 + $0xf0] sm:$0xf]
        %v11005 = vld [vmem:[#allocation10 + $0xf4] sm:$0xf]
        %v11006 = vld [vmem:[#allocation10 + $0xf8] sm:$0xf]
        %v11007 = vld [vmem:[#allocation10 + $0xfc] sm:$0xf]
        %v11008 = vld [vmem:[#allocation10 + $0x100] sm:$0xf]
        %v11009 = vld [vmem:[#allocation10 + $0x104] sm:$0xf]
        %v11010 = vld [vmem:[#allocation10 + $0x108] sm:$0xf]
        %v11011 = vld [vmem:[#allocation10 + $0x10c] sm:$0xf]
        %v11012 = vld [vmem:[#allocation10 + $0x110] sm:$0xf]
        %v11013 = vld [vmem:[#allocation10 + $0x114] sm:$0xf]
        %v11014 = vld [vmem:[#allocation10 + $0x118] sm:$0xf]
        %v11015 = vld [vmem:[#allocation10 + $0x11c] sm:$0xf]
        %v11016 = vld [vmem:[#allocation10 + $0x120] sm:$0xf]
        %v11017 = vld [vmem:[#allocation10 + $0x124] sm:$0xf]
        %v11018 = vld [vmem:[#allocation10 + $0x128] sm:$0xf]
        %v11019 = vld [vmem:[#allocation10 + $0x12c] sm:$0xf]
        %v11020 = vld [vmem:[#allocation10 + $0x130] sm:$0xf]
        %v11021 = vld [vmem:[#allocation10 + $0x134] sm:$0xf]
        %v11022 = vld [vmem:[#allocation10 + $0x138] sm:$0xf]
        %v11023 = vld [vmem:[#allocation10 + $0x13c] sm:$0xf]
        %v11024 = vld [vmem:[#allocation10 + $0x140] sm:$0xf]
        %v11025 = vld [vmem:[#allocation10 + $0x144] sm:$0xf]
        %v11026 = vld [vmem:[#allocation10 + $0x148] sm:$0xf]
        %v11027 = vld [vmem:[#allocation10 + $0x14c] sm:$0xf]
        %v11028 = vld [vmem:[#allocation10 + $0x150] sm:$0xf]
        %v11029 = vld [vmem:[#allocation10 + $0x154] sm:$0xf]
        %v11030 = vld [vmem:[#allocation10 + $0x158] sm:$0xf]
        %v11031 = vld [vmem:[#allocation10 + $0x15c] sm:$0xf]
        %v11032 = vld [vmem:[#allocation10 + $0x160] sm:$0xf]
        %v11033 = vld [vmem:[#allocation10 + $0x164] sm:$0xf]
        %v11034 = vld [vmem:[#allocation10 + $0x168] sm:$0xf]
        %v11035 = vld [vmem:[#allocation10 + $0x16c] sm:$0xf]
        %v11036 = vld [vmem:[#allocation10 + $0x170] sm:$0xf]
        %v11037 = vld [vmem:[#allocation10 + $0x174] sm:$0xf]
        %v11038 = vld [vmem:[#allocation10 + $0x178] sm:$0xf]
        %v11039 = vld [vmem:[#allocation10 + $0x17c] sm:$0xf]
        %v11040 = vld [vmem:[#allocation10 + $0x180] sm:$0xf]
        %v11041 = vld [vmem:[#allocation10 + $0x184] sm:$0xf]
        %v11042 = vld [vmem:[#allocation10 + $0x188] sm:$0xf]
        %v11043 = vld [vmem:[#allocation10 + $0x18c] sm:$0xf]
        %v11044 = vld [vmem:[#allocation10 + $0x190] sm:$0xf]
        %v11045 = vld [vmem:[#allocation10 + $0x194] sm:$0xf]
        %v11046 = vld [vmem:[#allocation10 + $0x198] sm:$0xf]
        %v11047 = vld [vmem:[#allocation10 + $0x19c] sm:$0xf]
        %v11048 = vld [vmem:[#allocation10 + $0x1a0] sm:$0xf]
        %v11049 = vld [vmem:[#allocation10 + $0x1a4] sm:$0xf]
        %v11050 = vld [vmem:[#allocation10 + $0x1a8] sm:$0xf]
        %v11051 = vld [vmem:[#allocation10 + $0x1ac] sm:$0xf]
        %v11052 = vld [vmem:[#allocation10 + $0x1b0] sm:$0xf]
        %v11053 = vld [vmem:[#allocation10 + $0x1b4] sm:$0xf]
        %v11054 = vld [vmem:[#allocation10 + $0x1b8] sm:$0xf]
        %v11055 = vld [vmem:[#allocation10 + $0x1bc] sm:$0xf]
        %v11056 = vld [vmem:[#allocation10 + $0x1c0] sm:$0xf]
        %v11057 = vld [vmem:[#allocation10 + $0x1c4] sm:$0xf]
        %v11058 = vld [vmem:[#allocation10 + $0x1c8] sm:$0xf]
        %v11059 = vld [vmem:[#allocation10 + $0x1cc] sm:$0xf]
        %v11060 = vld [vmem:[#allocation10 + $0x1d0] sm:$0xf]
        %v11061 = vld [vmem:[#allocation10 + $0x1d4] sm:$0xf]
        %v11062 = vld [vmem:[#allocation10 + $0x1d8] sm:$0xf]
        %v11063 = vld [vmem:[#allocation10 + $0x1dc] sm:$0xf]
        %v11064 = vld [vmem:[#allocation10 + $0x1e0] sm:$0xf]
        %v11065 = vld [vmem:[#allocation10 + $0x1e4] sm:$0xf]
        %v11066 = vld [vmem:[#allocation10 + $0x1e8] sm:$0xf]
        %v11067 = vld [vmem:[#allocation10 + $0x1ec] sm:$0xf]
        %v11068 = vld [vmem:[#allocation10 + $0x1f0] sm:$0xf]
        %v11069 = vld [vmem:[#allocation10 + $0x1f4] sm:$0xf]
        %v11070 = vld [vmem:[#allocation10 + $0x1f8] sm:$0xf]
        %v11071 = vld [vmem:[#allocation10 + $0x1fc] sm:$0xf]
        %v11072 = vld [vmem:[#allocation10 + $0x200] sm:$0xf]
        %v11073 = vld [vmem:[#allocation10 + $0x204] sm:$0xf]
        %v11074 = vld [vmem:[#allocation10 + $0x208] sm:$0xf]
        %v11075 = vld [vmem:[#allocation10 + $0x20c] sm:$0xf]
        %v11076 = vld [vmem:[#allocation10 + $0x210] sm:$0xf]
        %v11077 = vld [vmem:[#allocation10 + $0x214] sm:$0xf]
        %v11078 = vld [vmem:[#allocation10 + $0x218] sm:$0xf]
        %v11079 = vld [vmem:[#allocation10 + $0x21c] sm:$0xf]
        %v11080 = vld [vmem:[#allocation10 + $0x220] sm:$0xf]
        %v11081 = vld [vmem:[#allocation10 + $0x224] sm:$0xf]
        %v11082 = vld [vmem:[#allocation10 + $0x228] sm:$0xf]
        %v11083 = vld [vmem:[#allocation10 + $0x22c] sm:$0xf]
        %v11084 = vld [vmem:[#allocation10 + $0x230] sm:$0xf]
        %v11085 = vld [vmem:[#allocation10 + $0x234] sm:$0xf]
        %v11086 = vld [vmem:[#allocation10 + $0x238] sm:$0xf]
        %v11087 = vld [vmem:[#allocation10 + $0x23c] sm:$0xf]
        %v11088 = vld [vmem:[#allocation10 + $0x240] sm:$0xf]
        %v11089 = vld [vmem:[#allocation10 + $0x244] sm:$0xf]
        %v11090 = vld [vmem:[#allocation10 + $0x248] sm:$0xf]
        %v11091 = vld [vmem:[#allocation10 + $0x24c] sm:$0xf]
        %v11092 = vld [vmem:[#allocation10 + $0x250] sm:$0xf]
        %v11093 = vld [vmem:[#allocation10 + $0x254] sm:$0xf]
        %v11094 = vld [vmem:[#allocation10 + $0x258] sm:$0xf]
        %v11095 = vld [vmem:[#allocation10 + $0x25c] sm:$0xf]
        %v11096 = vld [vmem:[#allocation10 + $0x260] sm:$0xf]
        %v11097 = vld [vmem:[#allocation10 + $0x264] sm:$0xf]
        %v11098 = vld [vmem:[#allocation10 + $0x268] sm:$0xf]
        %v11099 = vld [vmem:[#allocation10 + $0x26c] sm:$0xf]
        %v11100 = vld [vmem:[#allocation10 + $0x270] sm:$0xf]
        %v11101 = vld [vmem:[#allocation10 + $0x274] sm:$0xf]
        %v11102 = vld [vmem:[#allocation10 + $0x278] sm:$0xf]
        %v11103 = vld [vmem:[#allocation10 + $0x27c] sm:$0xf]
        %v11104 = vld [vmem:[#allocation10 + $0x280] sm:$0xf]
        %v11105 = vld [vmem:[#allocation10 + $0x284] sm:$0xf]
        %v11106 = vld [vmem:[#allocation10 + $0x288] sm:$0xf]
        %v11107 = vld [vmem:[#allocation10 + $0x28c] sm:$0xf]
        %v11108 = vld [vmem:[#allocation10 + $0x290] sm:$0xf]
        %v11109 = vld [vmem:[#allocation10 + $0x294] sm:$0xf]
        %v11110 = vld [vmem:[#allocation10 + $0x298] sm:$0xf]
        %v11111 = vld [vmem:[#allocation10 + $0x29c] sm:$0xf]
        %v11112 = vld [vmem:[#allocation10 + $0x2a0] sm:$0xf]
        %v11113 = vld [vmem:[#allocation10 + $0x2a4] sm:$0xf]
        %v11114 = vld [vmem:[#allocation10 + $0x2a8] sm:$0xf]
        %v11115 = vld [vmem:[#allocation10 + $0x2ac] sm:$0xf]
        %v11116 = vld [vmem:[#allocation10 + $0x2b0] sm:$0xf]
        %v11117 = vld [vmem:[#allocation10 + $0x2b4] sm:$0xf]
        %v11118 = vld [vmem:[#allocation10 + $0x2b8] sm:$0xf]
        %v11119 = vld [vmem:[#allocation10 + $0x2bc] sm:$0xf]
        %v11120 = vld [vmem:[#allocation10 + $0x2c0] sm:$0xf]
        %v11121 = vld [vmem:[#allocation10 + $0x2c4] sm:$0xf]
        %v11122 = vld [vmem:[#allocation10 + $0x2c8] sm:$0xf]
        %v11123 = vld [vmem:[#allocation10 + $0x2cc] sm:$0xf]
        %v11124 = vld [vmem:[#allocation10 + $0x2d0] sm:$0xf]
        %v11125 = vld [vmem:[#allocation10 + $0x2d4] sm:$0xf]
        %v11126 = vld [vmem:[#allocation10 + $0x2d8] sm:$0xf]
        %v11127 = vld [vmem:[#allocation10 + $0x2dc] sm:$0xf]
        %v11128 = vld [vmem:[#allocation10 + $0x2e0] sm:$0xf]
        %v11129 = vld [vmem:[#allocation10 + $0x2e4] sm:$0xf]
        %v11130 = vld [vmem:[#allocation10 + $0x2e8] sm:$0xf]
        %v11131 = vld [vmem:[#allocation10 + $0x2ec] sm:$0xf]
        %v11132 = vld [vmem:[#allocation10 + $0x2f0] sm:$0xf]
        %v11133 = vld [vmem:[#allocation10 + $0x2f4] sm:$0xf]
        %v11134 = vld [vmem:[#allocation10 + $0x2f8] sm:$0xf]
        %v11135 = vld [vmem:[#allocation10 + $0x2fc] sm:$0xf]
        %v11136 = vld [vmem:[#allocation11] sm:$0x1]
        %v11138 = vlaneseq
        %v11139 = vshrl.u32 %v11138, 7
        %v11140 = vsub.s32 0, %v11139
        %v11141 = vrot.slane %v11136, %v11140
        %v11335 = vunpack.c.l.b16 %v10944
        %v11336 = vunpack.c.l.b16 %v10945
        %v11337 = vunpack.c.l.b16 %v10946
        %v11338 = vunpack.c.l.b16 %v10947
        %v11339 = vunpack.c.l.b16 %v10948
        %v11340 = vunpack.c.l.b16 %v10949
        %v11341 = vunpack.c.l.b16 %v10950
        %v11342 = vunpack.c.l.b16 %v10951
        %v11343 = vunpack.c.l.b16 %v10952
        %v11344 = vunpack.c.l.b16 %v10953
        %v11345 = vunpack.c.l.b16 %v10954
        %v11346 = vunpack.c.l.b16 %v10955
        %v11347 = vunpack.c.l.b16 %v10956
        %v11348 = vunpack.c.l.b16 %v10957
        %v11349 = vunpack.c.l.b16 %v10958
        %v11350 = vunpack.c.l.b16 %v10959
        %v11351 = vunpack.c.l.b16 %v10960
        %v11352 = vunpack.c.l.b16 %v10961
        %v11353 = vunpack.c.l.b16 %v10962
        %v11354 = vunpack.c.l.b16 %v10963
        %v11355 = vunpack.c.l.b16 %v10964
        %v11356 = vunpack.c.l.b16 %v10965
        %v11357 = vunpack.c.l.b16 %v10966
        %v11358 = vunpack.c.l.b16 %v10967
        %v11359 = vunpack.c.l.b16 %v10968
        %v11360 = vunpack.c.l.b16 %v10969
        %v11361 = vunpack.c.l.b16 %v10970
        %v11362 = vunpack.c.l.b16 %v10971
        %v11363 = vunpack.c.l.b16 %v10972
        %v11364 = vunpack.c.l.b16 %v10973
        %v11365 = vunpack.c.l.b16 %v10974
        %v11366 = vunpack.c.l.b16 %v10975
        %v11367 = vunpack.c.l.b16 %v10976
        %v11368 = vunpack.c.l.b16 %v10977
        %v11369 = vunpack.c.l.b16 %v10978
        %v11370 = vunpack.c.l.b16 %v10979
        %v11371 = vunpack.c.l.b16 %v10980
        %v11372 = vunpack.c.l.b16 %v10981
        %v11373 = vunpack.c.l.b16 %v10982
        %v11374 = vunpack.c.l.b16 %v10983
        %v11375 = vunpack.c.l.b16 %v10984
        %v11376 = vunpack.c.l.b16 %v10985
        %v11377 = vunpack.c.l.b16 %v10986
        %v11378 = vunpack.c.l.b16 %v10987
        %v11379 = vunpack.c.l.b16 %v10988
        %v11380 = vunpack.c.l.b16 %v10989
        %v11381 = vunpack.c.l.b16 %v10990
        %v11382 = vunpack.c.l.b16 %v10991
        %v11383 = vunpack.c.l.b16 %v10992
        %v11384 = vunpack.c.l.b16 %v10993
        %v11385 = vunpack.c.l.b16 %v10994
        %v11386 = vunpack.c.l.b16 %v10995
        %v11387 = vunpack.c.l.b16 %v10996
        %v11388 = vunpack.c.l.b16 %v10997
        %v11389 = vunpack.c.l.b16 %v10998
        %v11390 = vunpack.c.l.b16 %v10999
        %v11391 = vunpack.c.l.b16 %v11000
        %v11392 = vunpack.c.l.b16 %v11001
        %v11393 = vunpack.c.l.b16 %v11002
        %v11394 = vunpack.c.l.b16 %v11003
        %v11395 = vunpack.c.l.b16 %v11004
        %v11396 = vunpack.c.l.b16 %v11005
        %v11397 = vunpack.c.l.b16 %v11006
        %v11398 = vunpack.c.l.b16 %v11007
        %v11399 = vunpack.c.l.b16 %v11008
        %v11400 = vunpack.c.l.b16 %v11009
        %v11401 = vunpack.c.l.b16 %v11010
        %v11402 = vunpack.c.l.b16 %v11011
        %v11403 = vunpack.c.l.b16 %v11012
        %v11404 = vunpack.c.l.b16 %v11013
        %v11405 = vunpack.c.l.b16 %v11014
        %v11406 = vunpack.c.l.b16 %v11015
        %v11407 = vunpack.c.l.b16 %v11016
        %v11408 = vunpack.c.l.b16 %v11017
        %v11409 = vunpack.c.l.b16 %v11018
        %v11410 = vunpack.c.l.b16 %v11019
        %v11411 = vunpack.c.l.b16 %v11020
        %v11412 = vunpack.c.l.b16 %v11021
        %v11413 = vunpack.c.l.b16 %v11022
        %v11414 = vunpack.c.l.b16 %v11023
        %v11415 = vunpack.c.l.b16 %v11024
        %v11416 = vunpack.c.l.b16 %v11025
        %v11417 = vunpack.c.l.b16 %v11026
        %v11418 = vunpack.c.l.b16 %v11027
        %v11419 = vunpack.c.l.b16 %v11028
        %v11420 = vunpack.c.l.b16 %v11029
        %v11421 = vunpack.c.l.b16 %v11030
        %v11422 = vunpack.c.l.b16 %v11031
        %v11423 = vunpack.c.l.b16 %v11032
        %v11424 = vunpack.c.l.b16 %v11033
        %v11425 = vunpack.c.l.b16 %v11034
        %v11426 = vunpack.c.l.b16 %v11035
        %v11427 = vunpack.c.l.b16 %v11036
        %v11428 = vunpack.c.l.b16 %v11037
        %v11429 = vunpack.c.l.b16 %v11038
        %v11430 = vunpack.c.l.b16 %v11039
        %v11431 = vunpack.c.l.b16 %v11040
        %v11432 = vunpack.c.l.b16 %v11041
        %v11433 = vunpack.c.l.b16 %v11042
        %v11434 = vunpack.c.l.b16 %v11043
        %v11435 = vunpack.c.l.b16 %v11044
        %v11436 = vunpack.c.l.b16 %v11045
        %v11437 = vunpack.c.l.b16 %v11046
        %v11438 = vunpack.c.l.b16 %v11047
        %v11439 = vunpack.c.l.b16 %v11048
        %v11440 = vunpack.c.l.b16 %v11049
        %v11441 = vunpack.c.l.b16 %v11050
        %v11442 = vunpack.c.l.b16 %v11051
        %v11443 = vunpack.c.l.b16 %v11052
        %v11444 = vunpack.c.l.b16 %v11053
        %v11445 = vunpack.c.l.b16 %v11054
        %v11446 = vunpack.c.l.b16 %v11055
        %v11447 = vunpack.c.l.b16 %v11056
        %v11448 = vunpack.c.l.b16 %v11057
        %v11449 = vunpack.c.l.b16 %v11058
        %v11450 = vunpack.c.l.b16 %v11059
        %v11451 = vunpack.c.l.b16 %v11060
        %v11452 = vunpack.c.l.b16 %v11061
        %v11453 = vunpack.c.l.b16 %v11062
        %v11454 = vunpack.c.l.b16 %v11063
        %v11455 = vunpack.c.l.b16 %v11064
        %v11456 = vunpack.c.l.b16 %v11065
        %v11457 = vunpack.c.l.b16 %v11066
        %v11458 = vunpack.c.l.b16 %v11067
        %v11459 = vunpack.c.l.b16 %v11068
        %v11460 = vunpack.c.l.b16 %v11069
        %v11461 = vunpack.c.l.b16 %v11070
        %v11462 = vunpack.c.l.b16 %v11071
        %v11463 = vunpack.c.l.b16 %v11072
        %v11464 = vunpack.c.l.b16 %v11073
        %v11465 = vunpack.c.l.b16 %v11074
        %v11466 = vunpack.c.l.b16 %v11075
        %v11467 = vunpack.c.l.b16 %v11076
        %v11468 = vunpack.c.l.b16 %v11077
        %v11469 = vunpack.c.l.b16 %v11078
        %v11470 = vunpack.c.l.b16 %v11079
        %v11471 = vunpack.c.l.b16 %v11080
        %v11472 = vunpack.c.l.b16 %v11081
        %v11473 = vunpack.c.l.b16 %v11082
        %v11474 = vunpack.c.l.b16 %v11083
        %v11475 = vunpack.c.l.b16 %v11084
        %v11476 = vunpack.c.l.b16 %v11085
        %v11477 = vunpack.c.l.b16 %v11086
        %v11478 = vunpack.c.l.b16 %v11087
        %v11479 = vunpack.c.l.b16 %v11088
        %v11480 = vunpack.c.l.b16 %v11089
        %v11481 = vunpack.c.l.b16 %v11090
        %v11482 = vunpack.c.l.b16 %v11091
        %v11483 = vunpack.c.l.b16 %v11092
        %v11484 = vunpack.c.l.b16 %v11093
        %v11485 = vunpack.c.l.b16 %v11094
        %v11486 = vunpack.c.l.b16 %v11095
        %v11487 = vunpack.c.l.b16 %v11096
        %v11488 = vunpack.c.l.b16 %v11097
        %v11489 = vunpack.c.l.b16 %v11098
        %v11490 = vunpack.c.l.b16 %v11099
        %v11491 = vunpack.c.l.b16 %v11100
        %v11492 = vunpack.c.l.b16 %v11101
        %v11493 = vunpack.c.l.b16 %v11102
        %v11494 = vunpack.c.l.b16 %v11103
        %v11495 = vunpack.c.l.b16 %v11104
        %v11496 = vunpack.c.l.b16 %v11105
        %v11497 = vunpack.c.l.b16 %v11106
        %v11498 = vunpack.c.l.b16 %v11107
        %v11499 = vunpack.c.l.b16 %v11108
        %v11500 = vunpack.c.l.b16 %v11109
        %v11501 = vunpack.c.l.b16 %v11110
        %v11502 = vunpack.c.l.b16 %v11111
        %v11503 = vunpack.c.l.b16 %v11112
        %v11504 = vunpack.c.l.b16 %v11113
        %v11505 = vunpack.c.l.b16 %v11114
        %v11506 = vunpack.c.l.b16 %v11115
        %v11507 = vunpack.c.l.b16 %v11116
        %v11508 = vunpack.c.l.b16 %v11117
        %v11509 = vunpack.c.l.b16 %v11118
        %v11510 = vunpack.c.l.b16 %v11119
        %v11511 = vunpack.c.l.b16 %v11120
        %v11512 = vunpack.c.l.b16 %v11121
        %v11513 = vunpack.c.l.b16 %v11122
        %v11514 = vunpack.c.l.b16 %v11123
        %v11515 = vunpack.c.l.b16 %v11124
        %v11516 = vunpack.c.l.b16 %v11125
        %v11517 = vunpack.c.l.b16 %v11126
        %v11518 = vunpack.c.l.b16 %v11127
        %v11519 = vunpack.c.l.b16 %v11128
        %v11520 = vunpack.c.l.b16 %v11129
        %v11521 = vunpack.c.l.b16 %v11130
        %v11522 = vunpack.c.l.b16 %v11131
        %v11523 = vunpack.c.l.b16 %v11132
        %v11524 = vunpack.c.l.b16 %v11133
        %v11525 = vunpack.c.l.b16 %v11134
        %v11526 = vunpack.c.l.b16 %v11135
        %v11527 = vpack.c.b16 %v11336, %v11335
        %v11528 = vpack.c.b16 %v11338, %v11337
        %v11529 = vpack.c.b16 %v11340, %v11339
        %v11530 = vpack.c.b16 %v11342, %v11341
        %v11531 = vpack.c.b16 %v11344, %v11343
        %v11532 = vpack.c.b16 %v11346, %v11345
        %v11533 = vpack.c.b16 %v11348, %v11347
        %v11534 = vpack.c.b16 %v11350, %v11349
        %v11535 = vpack.c.b16 %v11352, %v11351
        %v11536 = vpack.c.b16 %v11354, %v11353
        %v11537 = vpack.c.b16 %v11356, %v11355
        %v11538 = vpack.c.b16 %v11358, %v11357
        %v11539 = vpack.c.b16 %v11360, %v11359
        %v11540 = vpack.c.b16 %v11362, %v11361
        %v11541 = vpack.c.b16 %v11364, %v11363
        %v11542 = vpack.c.b16 %v11366, %v11365
        %v11543 = vpack.c.b16 %v11368, %v11367
        %v11544 = vpack.c.b16 %v11370, %v11369
        %v11545 = vpack.c.b16 %v11372, %v11371
        %v11546 = vpack.c.b16 %v11374, %v11373
        %v11547 = vpack.c.b16 %v11376, %v11375
        %v11548 = vpack.c.b16 %v11378, %v11377
        %v11549 = vpack.c.b16 %v11380, %v11379
        %v11550 = vpack.c.b16 %v11382, %v11381
        %v11551 = vpack.c.b16 %v11384, %v11383
        %v11552 = vpack.c.b16 %v11386, %v11385
        %v11553 = vpack.c.b16 %v11388, %v11387
        %v11554 = vpack.c.b16 %v11390, %v11389
        %v11555 = vpack.c.b16 %v11392, %v11391
        %v11556 = vpack.c.b16 %v11394, %v11393
        %v11557 = vpack.c.b16 %v11396, %v11395
        %v11558 = vpack.c.b16 %v11398, %v11397
        %v11559 = vpack.c.b16 %v11400, %v11399
        %v11560 = vpack.c.b16 %v11402, %v11401
        %v11561 = vpack.c.b16 %v11404, %v11403
        %v11562 = vpack.c.b16 %v11406, %v11405
        %v11563 = vpack.c.b16 %v11408, %v11407
        %v11564 = vpack.c.b16 %v11410, %v11409
        %v11565 = vpack.c.b16 %v11412, %v11411
        %v11566 = vpack.c.b16 %v11414, %v11413
        %v11567 = vpack.c.b16 %v11416, %v11415
        %v11568 = vpack.c.b16 %v11418, %v11417
        %v11569 = vpack.c.b16 %v11420, %v11419
        %v11570 = vpack.c.b16 %v11422, %v11421
        %v11571 = vpack.c.b16 %v11424, %v11423
        %v11572 = vpack.c.b16 %v11426, %v11425
        %v11573 = vpack.c.b16 %v11428, %v11427
        %v11574 = vpack.c.b16 %v11430, %v11429
        %v11575 = vpack.c.b16 %v11432, %v11431
        %v11576 = vpack.c.b16 %v11434, %v11433
        %v11577 = vpack.c.b16 %v11436, %v11435
        %v11578 = vpack.c.b16 %v11438, %v11437
        %v11579 = vpack.c.b16 %v11440, %v11439
        %v11580 = vpack.c.b16 %v11442, %v11441
        %v11581 = vpack.c.b16 %v11444, %v11443
        %v11582 = vpack.c.b16 %v11446, %v11445
        %v11583 = vpack.c.b16 %v11448, %v11447
        %v11584 = vpack.c.b16 %v11450, %v11449
        %v11585 = vpack.c.b16 %v11452, %v11451
        %v11586 = vpack.c.b16 %v11454, %v11453
        %v11587 = vpack.c.b16 %v11456, %v11455
        %v11588 = vpack.c.b16 %v11458, %v11457
        %v11589 = vpack.c.b16 %v11460, %v11459
        %v11590 = vpack.c.b16 %v11462, %v11461
        %v11591 = vpack.c.b16 %v11464, %v11463
        %v11592 = vpack.c.b16 %v11466, %v11465
        %v11593 = vpack.c.b16 %v11468, %v11467
        %v11594 = vpack.c.b16 %v11470, %v11469
        %v11595 = vpack.c.b16 %v11472, %v11471
        %v11596 = vpack.c.b16 %v11474, %v11473
        %v11597 = vpack.c.b16 %v11476, %v11475
        %v11598 = vpack.c.b16 %v11478, %v11477
        %v11599 = vpack.c.b16 %v11480, %v11479
        %v11600 = vpack.c.b16 %v11482, %v11481
        %v11601 = vpack.c.b16 %v11484, %v11483
        %v11602 = vpack.c.b16 %v11486, %v11485
        %v11603 = vpack.c.b16 %v11488, %v11487
        %v11604 = vpack.c.b16 %v11490, %v11489
        %v11605 = vpack.c.b16 %v11492, %v11491
        %v11606 = vpack.c.b16 %v11494, %v11493
        %v11607 = vpack.c.b16 %v11496, %v11495
        %v11608 = vpack.c.b16 %v11498, %v11497
        %v11609 = vpack.c.b16 %v11500, %v11499
        %v11610 = vpack.c.b16 %v11502, %v11501
        %v11611 = vpack.c.b16 %v11504, %v11503
        %v11612 = vpack.c.b16 %v11506, %v11505
        %v11613 = vpack.c.b16 %v11508, %v11507
        %v11614 = vpack.c.b16 %v11510, %v11509
        %v11615 = vpack.c.b16 %v11512, %v11511
        %v11616 = vpack.c.b16 %v11514, %v11513
        %v11617 = vpack.c.b16 %v11516, %v11515
        %v11618 = vpack.c.b16 %v11518, %v11517
        %v11619 = vpack.c.b16 %v11520, %v11519
        %v11620 = vpack.c.b16 %v11522, %v11521
        %v11621 = vpack.c.b16 %v11524, %v11523
        %v11622 = vpack.c.b16 %v11526, %v11525
        %11719 = vmatprep.subr.bf16.mxu0 0
        %11720 = vmatpush1.bf16.msra.mxu0 %v11534
        %11721 = vmatprep.subr.bf16.mxu0 0
        %11722 = vmatpush1.bf16.msra.mxu0 %v11533
        %11723 = vmatprep.subr.bf16.mxu0 0
        %11724 = vmatpush1.bf16.msra.mxu0 %v11532
        %11725 = vmatprep.subr.bf16.mxu0 0
        %11726 = vmatpush1.bf16.msra.mxu0 %v11531
        %11727 = vmatprep.subr.bf16.mxu0 0
        %11728 = vmatpush1.bf16.msra.mxu0 %v11530
        %11729 = vmatprep.subr.bf16.mxu0 0
        %11730 = vmatpush1.bf16.msra.mxu0 %v11529
        %11731 = vmatprep.subr.bf16.mxu0 0
        %11732 = vmatpush1.bf16.msra.mxu0 %v11528
        %11733 = vmatprep.subr.bf16.mxu0 0
        %11734 = vmatpush1.bf16.msra.mxu0 %v11527
        %11735 = vmatprep.subr.bf16.mxu0 0
        %11736 = vmatpush2.bf16.msra.mxu0 %v11542
        %11737 = vmatprep.subr.bf16.mxu0 0
        %11738 = vmatpush2.bf16.msra.mxu0 %v11541
        %11739 = vmatprep.subr.bf16.mxu0 0
        %11740 = vmatpush2.bf16.msra.mxu0 %v11540
        %11741 = vmatprep.subr.bf16.mxu0 0
        %11742 = vmatpush2.bf16.msra.mxu0 %v11539
        %11743 = vmatprep.subr.bf16.mxu0 0
        %11744 = vmatpush2.bf16.msra.mxu0 %v11538
        %11745 = vmatprep.subr.bf16.mxu0 0
        %11746 = vmatpush2.bf16.msra.mxu0 %v11537
        %11747 = vmatprep.subr.bf16.mxu0 0
        %11748 = vmatpush2.bf16.msra.mxu0 %v11536
        %11749 = vmatprep.subr.bf16.mxu0 0
        %11750 = vmatpush2.bf16.msra.mxu0 %v11535
        %11751 = vmatprep.mubr.bf16.mxu0 %v10897
        %11752 = vmatmul.mubr.bf16.gmra.mxu0 %v10896
        %v11753 = vpop.f32.mrf.mxu0
        %v11754 = vadd.f32 %v11141, %v11753
        %v11755 = vpop.f32.mrf.mxu0
        %v11756 = vpop.f32.mrf.mxu0
        %v11757 = vadd.f32 %v11141, %v11756
        %v11758 = vpop.f32.mrf.mxu0
        %11759 = vmatprep.mubr.bf16.mxu0 %v10909
        %11760 = vmatmul.mubr.bf16.gmra.mxu0 %v10908
        %v11761 = vpop.f32.mrf.mxu0
        %v11762 = vadd.f32 %v11141, %v11761
        %v11763 = vpop.f32.mrf.mxu0
        %v11764 = vpop.f32.mrf.mxu0
        %v11765 = vadd.f32 %v11141, %v11764
        %v11766 = vpop.f32.mrf.mxu0
        %11767 = vmatprep.mubr.bf16.mxu0 %v10921
        %11768 = vmatmul.mubr.bf16.gmra.mxu0 %v10920
        %v11769 = vpop.f32.mrf.mxu0
        %v11770 = vadd.f32 %v11141, %v11769
        %v11771 = vpop.f32.mrf.mxu0
        %v11772 = vpop.f32.mrf.mxu0
        %v11773 = vadd.f32 %v11141, %v11772
        %v11774 = vpop.f32.mrf.mxu0
        %11775 = vmatprep.mubr.bf16.mxu0 %v10933
        %11776 = vmatmul.mubr.bf16.gmra.mxu0 %v10932
        %v11777 = vpop.f32.mrf.mxu0
        %v11778 = vadd.f32 %v11141, %v11777
        %v11779 = vpop.f32.mrf.mxu0
        %v11780 = vpop.f32.mrf.mxu0
        %v11781 = vadd.f32 %v11141, %v11780
        %v11782 = vpop.f32.mrf.mxu0
        %11783 = vdwg.mxu0
        %11784 = vmatprep.subr.bf16.mxu0 0
        %11785 = vmatpush1.bf16.msra.mxu0 %v11550
        %11786 = vmatprep.subr.bf16.mxu0 0
        %11787 = vmatpush1.bf16.msra.mxu0 %v11549
        %11788 = vmatprep.subr.bf16.mxu0 0
        %11789 = vmatpush1.bf16.msra.mxu0 %v11548
        %11790 = vmatprep.subr.bf16.mxu0 0
        %11791 = vmatpush1.bf16.msra.mxu0 %v11547
        %11792 = vmatprep.subr.bf16.mxu0 0
        %11793 = vmatpush1.bf16.msra.mxu0 %v11546
        %11794 = vmatprep.subr.bf16.mxu0 0
        %11795 = vmatpush1.bf16.msra.mxu0 %v11545
        %11796 = vmatprep.subr.bf16.mxu0 0
        %11797 = vmatpush1.bf16.msra.mxu0 %v11544
        %11798 = vmatprep.subr.bf16.mxu0 0
        %11799 = vmatpush1.bf16.msra.mxu0 %v11543
        %11800 = vmatprep.subr.bf16.mxu0 0
        %11801 = vmatpush2.bf16.msra.mxu0 %v11558
        %11802 = vmatprep.subr.bf16.mxu0 0
        %11803 = vmatpush2.bf16.msra.mxu0 %v11557
        %11804 = vmatprep.subr.bf16.mxu0 0
        %11805 = vmatpush2.bf16.msra.mxu0 %v11556
        %11806 = vmatprep.subr.bf16.mxu0 0
        %11807 = vmatpush2.bf16.msra.mxu0 %v11555
        %11808 = vmatprep.subr.bf16.mxu0 0
        %11809 = vmatpush2.bf16.msra.mxu0 %v11554
        %11810 = vmatprep.subr.bf16.mxu0 0
        %11811 = vmatpush2.bf16.msra.mxu0 %v11553
        %11812 = vmatprep.subr.bf16.mxu0 0
        %11813 = vmatpush2.bf16.msra.mxu0 %v11552
        %11814 = vmatprep.subr.bf16.mxu0 0
        %11815 = vmatpush2.bf16.msra.mxu0 %v11551
        %11816 = vmatprep.mubr.bf16.mxu0 %v10899
        %11817 = vmatmul.mubr.bf16.gmra.mxu0 %v10898
        %v11818 = vpop.f32.mrf.mxu0
        %v11819 = vadd.f32 %v11754, %v11818
        %v11820 = vpop.f32.mrf.mxu0
        %v11821 = vpop.f32.mrf.mxu0
        %v11822 = vadd.f32 %v11757, %v11821
        %v11823 = vpop.f32.mrf.mxu0
        %11824 = vmatprep.mubr.bf16.mxu0 %v10911
        %11825 = vmatmul.mubr.bf16.gmra.mxu0 %v10910
        %v11826 = vpop.f32.mrf.mxu0
        %v11827 = vadd.f32 %v11762, %v11826
        %v11828 = vpop.f32.mrf.mxu0
        %v11829 = vpop.f32.mrf.mxu0
        %v11830 = vadd.f32 %v11765, %v11829
        %v11831 = vpop.f32.mrf.mxu0
        %11832 = vmatprep.mubr.bf16.mxu0 %v10923
        %11833 = vmatmul.mubr.bf16.gmra.mxu0 %v10922
        %v11834 = vpop.f32.mrf.mxu0
        %v11835 = vadd.f32 %v11770, %v11834
        %v11836 = vpop.f32.mrf.mxu0
        %v11837 = vpop.f32.mrf.mxu0
        %v11838 = vadd.f32 %v11773, %v11837
        %v11839 = vpop.f32.mrf.mxu0
        %11840 = vmatprep.mubr.bf16.mxu0 %v10935
        %11841 = vmatmul.mubr.bf16.gmra.mxu0 %v10934
        %v11842 = vpop.f32.mrf.mxu0
        %v11843 = vadd.f32 %v11778, %v11842
        %v11844 = vpop.f32.mrf.mxu0
        %v11845 = vpop.f32.mrf.mxu0
        %v11846 = vadd.f32 %v11781, %v11845
        %v11847 = vpop.f32.mrf.mxu0
        %11848 = vdwg.mxu0
        %11849 = vmatprep.subr.bf16.mxu0 0
        %11850 = vmatpush1.bf16.msra.mxu0 %v11566
        %11851 = vmatprep.subr.bf16.mxu0 0
        %11852 = vmatpush1.bf16.msra.mxu0 %v11565
        %11853 = vmatprep.subr.bf16.mxu0 0
        %11854 = vmatpush1.bf16.msra.mxu0 %v11564
        %11855 = vmatprep.subr.bf16.mxu0 0
        %11856 = vmatpush1.bf16.msra.mxu0 %v11563
        %11857 = vmatprep.subr.bf16.mxu0 0
        %11858 = vmatpush1.bf16.msra.mxu0 %v11562
        %11859 = vmatprep.subr.bf16.mxu0 0
        %11860 = vmatpush1.bf16.msra.mxu0 %v11561
        %11861 = vmatprep.subr.bf16.mxu0 0
        %11862 = vmatpush1.bf16.msra.mxu0 %v11560
        %11863 = vmatprep.subr.bf16.mxu0 0
        %11864 = vmatpush1.bf16.msra.mxu0 %v11559
        %11865 = vmatprep.subr.bf16.mxu0 0
        %11866 = vmatpush2.bf16.msra.mxu0 %v11574
        %11867 = vmatprep.subr.bf16.mxu0 0
        %11868 = vmatpush2.bf16.msra.mxu0 %v11573
        %11869 = vmatprep.subr.bf16.mxu0 0
        %11870 = vmatpush2.bf16.msra.mxu0 %v11572
        %11871 = vmatprep.subr.bf16.mxu0 0
        %11872 = vmatpush2.bf16.msra.mxu0 %v11571
        %11873 = vmatprep.subr.bf16.mxu0 0
        %11874 = vmatpush2.bf16.msra.mxu0 %v11570
        %11875 = vmatprep.subr.bf16.mxu0 0
        %11876 = vmatpush2.bf16.msra.mxu0 %v11569
        %11877 = vmatprep.subr.bf16.mxu0 0
        %11878 = vmatpush2.bf16.msra.mxu0 %v11568
        %11879 = vmatprep.subr.bf16.mxu0 0
        %11880 = vmatpush2.bf16.msra.mxu0 %v11567
        %11881 = vmatprep.mubr.bf16.mxu0 %v10901
        %11882 = vmatmul.mubr.bf16.gmra.mxu0 %v10900
        %v11883 = vpop.f32.mrf.mxu0
        %v11884 = vadd.f32 %v11819, %v11883
        %v11885 = vpop.f32.mrf.mxu0
        %v11886 = vpop.f32.mrf.mxu0
        %v11887 = vadd.f32 %v11822, %v11886
        %v11888 = vpop.f32.mrf.mxu0
        %11889 = vmatprep.mubr.bf16.mxu0 %v10913
        %11890 = vmatmul.mubr.bf16.gmra.mxu0 %v10912
        %v11891 = vpop.f32.mrf.mxu0
        %v11892 = vadd.f32 %v11827, %v11891
        %v11893 = vpop.f32.mrf.mxu0
        %v11894 = vpop.f32.mrf.mxu0
        %v11895 = vadd.f32 %v11830, %v11894
        %v11896 = vpop.f32.mrf.mxu0
        %11897 = vmatprep.mubr.bf16.mxu0 %v10925
        %11898 = vmatmul.mubr.bf16.gmra.mxu0 %v10924
        %v11899 = vpop.f32.mrf.mxu0
        %v11900 = vadd.f32 %v11835, %v11899
        %v11901 = vpop.f32.mrf.mxu0
        %v11902 = vpop.f32.mrf.mxu0
        %v11903 = vadd.f32 %v11838, %v11902
        %v11904 = vpop.f32.mrf.mxu0
        %11905 = vmatprep.mubr.bf16.mxu0 %v10937
        %11906 = vmatmul.mubr.bf16.gmra.mxu0 %v10936
        %v11907 = vpop.f32.mrf.mxu0
        %v11908 = vadd.f32 %v11843, %v11907
        %v11909 = vpop.f32.mrf.mxu0
        %v11910 = vpop.f32.mrf.mxu0
        %v11911 = vadd.f32 %v11846, %v11910
        %v11912 = vpop.f32.mrf.mxu0
        %11913 = vdwg.mxu0
        %11914 = vmatprep.subr.bf16.mxu0 0
        %11915 = vmatpush1.bf16.msra.mxu0 %v11582
        %11916 = vmatprep.subr.bf16.mxu0 0
        %11917 = vmatpush1.bf16.msra.mxu0 %v11581
        %11918 = vmatprep.subr.bf16.mxu0 0
        %11919 = vmatpush1.bf16.msra.mxu0 %v11580
        %11920 = vmatprep.subr.bf16.mxu0 0
        %11921 = vmatpush1.bf16.msra.mxu0 %v11579
        %11922 = vmatprep.subr.bf16.mxu0 0
        %11923 = vmatpush1.bf16.msra.mxu0 %v11578
        %11924 = vmatprep.subr.bf16.mxu0 0
        %11925 = vmatpush1.bf16.msra.mxu0 %v11577
        %11926 = vmatprep.subr.bf16.mxu0 0
        %11927 = vmatpush1.bf16.msra.mxu0 %v11576
        %11928 = vmatprep.subr.bf16.mxu0 0
        %11929 = vmatpush1.bf16.msra.mxu0 %v11575
        %11930 = vmatprep.subr.bf16.mxu0 0
        %11931 = vmatpush2.bf16.msra.mxu0 %v11590
        %11932 = vmatprep.subr.bf16.mxu0 0
        %11933 = vmatpush2.bf16.msra.mxu0 %v11589
        %11934 = vmatprep.subr.bf16.mxu0 0
        %11935 = vmatpush2.bf16.msra.mxu0 %v11588
        %11936 = vmatprep.subr.bf16.mxu0 0
        %11937 = vmatpush2.bf16.msra.mxu0 %v11587
        %11938 = vmatprep.subr.bf16.mxu0 0
        %11939 = vmatpush2.bf16.msra.mxu0 %v11586
        %11940 = vmatprep.subr.bf16.mxu0 0
        %11941 = vmatpush2.bf16.msra.mxu0 %v11585
        %11942 = vmatprep.subr.bf16.mxu0 0
        %11943 = vmatpush2.bf16.msra.mxu0 %v11584
        %11944 = vmatprep.subr.bf16.mxu0 0
        %11945 = vmatpush2.bf16.msra.mxu0 %v11583
        %11946 = vmatprep.mubr.bf16.mxu0 %v10903
        %11947 = vmatmul.mubr.bf16.gmra.mxu0 %v10902
        %v11948 = vpop.f32.mrf.mxu0
        %v11949 = vadd.f32 %v11884, %v11948
        %v11950 = vpop.f32.mrf.mxu0
        %v11951 = vpop.f32.mrf.mxu0
        %v11952 = vadd.f32 %v11887, %v11951
        %v11953 = vpop.f32.mrf.mxu0
        %11954 = vmatprep.mubr.bf16.mxu0 %v10915
        %11955 = vmatmul.mubr.bf16.gmra.mxu0 %v10914
        %v11956 = vpop.f32.mrf.mxu0
        %v11957 = vadd.f32 %v11892, %v11956
        %v11958 = vpop.f32.mrf.mxu0
        %v11959 = vpop.f32.mrf.mxu0
        %v11960 = vadd.f32 %v11895, %v11959
        %v11961 = vpop.f32.mrf.mxu0
        %11962 = vmatprep.mubr.bf16.mxu0 %v10927
        %11963 = vmatmul.mubr.bf16.gmra.mxu0 %v10926
        %v11964 = vpop.f32.mrf.mxu0
        %v11965 = vadd.f32 %v11900, %v11964
        %v11966 = vpop.f32.mrf.mxu0
        %v11967 = vpop.f32.mrf.mxu0
        %v11968 = vadd.f32 %v11903, %v11967
        %v11969 = vpop.f32.mrf.mxu0
        %11970 = vmatprep.mubr.bf16.mxu0 %v10939
        %11971 = vmatmul.mubr.bf16.gmra.mxu0 %v10938
        %v11972 = vpop.f32.mrf.mxu0
        %v11973 = vadd.f32 %v11908, %v11972
        %v11974 = vpop.f32.mrf.mxu0
        %v11975 = vpop.f32.mrf.mxu0
        %v11976 = vadd.f32 %v11911, %v11975
        %v11977 = vpop.f32.mrf.mxu0
        %11978 = vdwg.mxu0
        %11979 = vmatprep.subr.bf16.mxu0 0
        %11980 = vmatpush1.bf16.msra.mxu0 %v11598
        %11981 = vmatprep.subr.bf16.mxu0 0
        %11982 = vmatpush1.bf16.msra.mxu0 %v11597
        %11983 = vmatprep.subr.bf16.mxu0 0
        %11984 = vmatpush1.bf16.msra.mxu0 %v11596
        %11985 = vmatprep.subr.bf16.mxu0 0
        %11986 = vmatpush1.bf16.msra.mxu0 %v11595
        %11987 = vmatprep.subr.bf16.mxu0 0
        %11988 = vmatpush1.bf16.msra.mxu0 %v11594
        %11989 = vmatprep.subr.bf16.mxu0 0
        %11990 = vmatpush1.bf16.msra.mxu0 %v11593
        %11991 = vmatprep.subr.bf16.mxu0 0
        %11992 = vmatpush1.bf16.msra.mxu0 %v11592
        %11993 = vmatprep.subr.bf16.mxu0 0
        %11994 = vmatpush1.bf16.msra.mxu0 %v11591
        %11995 = vmatprep.subr.bf16.mxu0 0
        %11996 = vmatpush2.bf16.msra.mxu0 %v11606
        %11997 = vmatprep.subr.bf16.mxu0 0
        %11998 = vmatpush2.bf16.msra.mxu0 %v11605
        %11999 = vmatprep.subr.bf16.mxu0 0
        %12000 = vmatpush2.bf16.msra.mxu0 %v11604
        %12001 = vmatprep.subr.bf16.mxu0 0
        %12002 = vmatpush2.bf16.msra.mxu0 %v11603
        %12003 = vmatprep.subr.bf16.mxu0 0
        %12004 = vmatpush2.bf16.msra.mxu0 %v11602
        %12005 = vmatprep.subr.bf16.mxu0 0
        %12006 = vmatpush2.bf16.msra.mxu0 %v11601
        %12007 = vmatprep.subr.bf16.mxu0 0
        %12008 = vmatpush2.bf16.msra.mxu0 %v11600
        %12009 = vmatprep.subr.bf16.mxu0 0
        %12010 = vmatpush2.bf16.msra.mxu0 %v11599
        %12011 = vmatprep.mubr.bf16.mxu0 %v10905
        %12012 = vmatmul.mubr.bf16.gmra.mxu0 %v10904
        %v12013 = vpop.f32.mrf.mxu0
        %v12014 = vadd.f32 %v11949, %v12013
        %v12015 = vpop.f32.mrf.mxu0
        %v12016 = vpop.f32.mrf.mxu0
        %v12017 = vadd.f32 %v11952, %v12016
        %v12018 = vpop.f32.mrf.mxu0
        %12019 = vmatprep.mubr.bf16.mxu0 %v10917
        %12020 = vmatmul.mubr.bf16.gmra.mxu0 %v10916
        %v12021 = vpop.f32.mrf.mxu0
        %v12022 = vadd.f32 %v11957, %v12021
        %v12023 = vpop.f32.mrf.mxu0
        %v12024 = vpop.f32.mrf.mxu0
        %v12025 = vadd.f32 %v11960, %v12024
        %v12026 = vpop.f32.mrf.mxu0
        %12027 = vmatprep.mubr.bf16.mxu0 %v10929
        %12028 = vmatmul.mubr.bf16.gmra.mxu0 %v10928
        %v12029 = vpop.f32.mrf.mxu0
        %v12030 = vadd.f32 %v11965, %v12029
        %v12031 = vpop.f32.mrf.mxu0
        %v12032 = vpop.f32.mrf.mxu0
        %v12033 = vadd.f32 %v11968, %v12032
        %v12034 = vpop.f32.mrf.mxu0
        %12035 = vmatprep.mubr.bf16.mxu0 %v10941
        %12036 = vmatmul.mubr.bf16.gmra.mxu0 %v10940
        %v12037 = vpop.f32.mrf.mxu0
        %v12038 = vadd.f32 %v11973, %v12037
        %v12039 = vpop.f32.mrf.mxu0
        %v12040 = vpop.f32.mrf.mxu0
        %v12041 = vadd.f32 %v11976, %v12040
        %v12042 = vpop.f32.mrf.mxu0
        %12043 = vdwg.mxu0
        %12044 = vmatprep.subr.bf16.mxu0 0
        %12045 = vmatpush1.bf16.msra.mxu0 %v11614
        %12046 = vmatprep.subr.bf16.mxu0 0
        %12047 = vmatpush1.bf16.msra.mxu0 %v11613
        %12048 = vmatprep.subr.bf16.mxu0 0
        %12049 = vmatpush1.bf16.msra.mxu0 %v11612
        %12050 = vmatprep.subr.bf16.mxu0 0
        %12051 = vmatpush1.bf16.msra.mxu0 %v11611
        %12052 = vmatprep.subr.bf16.mxu0 0
        %12053 = vmatpush1.bf16.msra.mxu0 %v11610
        %12054 = vmatprep.subr.bf16.mxu0 0
        %12055 = vmatpush1.bf16.msra.mxu0 %v11609
        %12056 = vmatprep.subr.bf16.mxu0 0
        %12057 = vmatpush1.bf16.msra.mxu0 %v11608
        %12058 = vmatprep.subr.bf16.mxu0 0
        %12059 = vmatpush1.bf16.msra.mxu0 %v11607
        %12060 = vmatprep.subr.bf16.mxu0 0
        %12061 = vmatpush2.bf16.msra.mxu0 %v11622
        %12062 = vmatprep.subr.bf16.mxu0 0
        %12063 = vmatpush2.bf16.msra.mxu0 %v11621
        %12064 = vmatprep.subr.bf16.mxu0 0
        %12065 = vmatpush2.bf16.msra.mxu0 %v11620
        %12066 = vmatprep.subr.bf16.mxu0 0
        %12067 = vmatpush2.bf16.msra.mxu0 %v11619
        %12068 = vmatprep.subr.bf16.mxu0 0
        %12069 = vmatpush2.bf16.msra.mxu0 %v11618
        %12070 = vmatprep.subr.bf16.mxu0 0
        %12071 = vmatpush2.bf16.msra.mxu0 %v11617
        %12072 = vmatprep.subr.bf16.mxu0 0
        %12073 = vmatpush2.bf16.msra.mxu0 %v11616
        %12074 = vmatprep.subr.bf16.mxu0 0
        %12075 = vmatpush2.bf16.msra.mxu0 %v11615
        %12076 = vmatprep.mubr.bf16.mxu0 %v10907
        %12077 = vmatmul.mubr.bf16.gmra.mxu0 %v10906
        %v12078 = vpop.f32.mrf.mxu0
        %v12079 = vadd.f32 %v12014, %v12078
        %v12080 = vpop.f32.mrf.mxu0
        %v12081 = vpop.f32.mrf.mxu0
        %v12082 = vadd.f32 %v12017, %v12081
        %v12083 = vpop.f32.mrf.mxu0
        %12084 = vmatprep.mubr.bf16.mxu0 %v10919
        %12085 = vmatmul.mubr.bf16.gmra.mxu0 %v10918
        %v12086 = vpop.f32.mrf.mxu0
        %v12087 = vadd.f32 %v12022, %v12086
        %v12088 = vpop.f32.mrf.mxu0
        %v12089 = vpop.f32.mrf.mxu0
        %v12090 = vadd.f32 %v12025, %v12089
        %v12091 = vpop.f32.mrf.mxu0
        %12092 = vmatprep.mubr.bf16.mxu0 %v10931
        %12093 = vmatmul.mubr.bf16.gmra.mxu0 %v10930
        %v12094 = vpop.f32.mrf.mxu0
        %v12095 = vadd.f32 %v12030, %v12094
        %v12096 = vpop.f32.mrf.mxu0
        %v12097 = vpop.f32.mrf.mxu0
        %v12098 = vadd.f32 %v12033, %v12097
        %v12099 = vpop.f32.mrf.mxu0
        %12100 = vmatprep.mubr.bf16.mxu0 %v10943
        %12101 = vmatmul.mubr.bf16.gmra.mxu0 %v10942
        %v12102 = vpop.f32.mrf.mxu0
        %v12103 = vadd.f32 %v12038, %v12102
        %v12104 = vpop.f32.mrf.mxu0
        %v12105 = vpop.f32.mrf.mxu0
        %v12106 = vadd.f32 %v12041, %v12105
        %v12107 = vpop.f32.mrf.mxu0
        %12108 = vdwg.mxu0
        %12109 = vst [vmem:[%s354] sm:$0xff] %v12079
        %12110 = vst [vmem:[%s354 + $0x8] sm:$0xff] %v12082
        %12111 = vst [vmem:[%s354 + $0x10] sm:$0xff] %v12087
        %12112 = vst [vmem:[%s354 + $0x18] sm:$0xff] %v12090
        %12113 = vst [vmem:[%s354 + $0x20] sm:$0xff] %v12095
        %12114 = vst [vmem:[%s354 + $0x28] sm:$0xff] %v12098
        %12115 = vst [vmem:[%s354 + $0x30] sm:$0xff] %v12103
        %12116 = vst [vmem:[%s354 + $0x38] sm:$0xff] %v12106
        %s12117 = sand.u32 %s185, 1
        %s12118 = scalar_lea.sflag [#allocation4], %s12117
        %s12119 = sand.u32 %s185, 1
        %s12120 = smul.addr %s12119, 64
        %s12121 = scalar_lea.vmem [#allocation13], %s12120
        // Predicated region
        $region73: #{tpu_custom_call.1} parent=47 // pred_check
          %p12122 = pneg %p195
        $region74: #{tpu_custom_call.1} parent=47 // pred_check_branch
          %12124 = sbr.rel (%p12122) target = $region76
        $region75: #{tpu_custom_call.1} parent=47 // pred_region
          %s12125 = smul.u32 8, %s25
          %s12127 = ssub.s32 1024, 1024
          %12128 = vsyncadd %s12118, %s12127
          %s12129 = smul.addr %s12125, 128
          %s12130 = scalar_lea.hbm %s7, %s12129
          %s12131 = sshll.u32 %s12121, 4
          %s12132 = int_to_ptr.vmem [resolvable:$true] %s12131
          %12137 = dma.vmem_to_hbm [thread:$0]  %s12132, 1024, %s12130, %s12118, 128, 128, 8
        $region76: #{tpu_custom_call.1} parent=47 // pred_fallthru
          _
      $region48: #{tpu_custom_call.1} parent=5 // pred_fallthru
        _
      %p12138 = scmp.le.s32.totalorder 2, %s20
      // Predicated region
      $region77: #{tpu_custom_call.1} parent=5 // pred_check
        %p12139 = pneg %p12138
      $region78: #{tpu_custom_call.1} parent=5 // pred_check_branch
        %12141 = sbr.rel (%p12139) target = $region80
      $region79: #{tpu_custom_call.1} parent=5 // pred_region
        %s12142 = ssub.s32 %s20, 2
        // Predicated region
        $region81: #{tpu_custom_call.1} parent=79 // pred_check
          %p12143 = pneg %p201
        $region82: #{tpu_custom_call.1} parent=79 // pred_check_branch
          %12145 = sbr.rel (%p12143) target = $region84
        $region83: #{tpu_custom_call.1} parent=79 // pred_region
          %s12146 = sand.u32 %s186, 1
          %s12147 = scalar_lea.sflag [#allocation4], %s12146
          %s12148 = sand.u32 %s186, 1
          %s12149 = smul.addr %s12148, 64
          %s12150 = scalar_lea.vmem [#allocation13], %s12149
          %12151 = dma.done %s12147, 1024
        $region84: #{tpu_custom_call.1} parent=79 // pred_fallthru
          _
      $region80: #{tpu_custom_call.1} parent=5 // pred_fallthru
        _
    $region6: #{tpu_custom_call.1} parent=1 // loop_footer
      %s24 = sadd.s32 1, %s20
    $region7: #{tpu_custom_call.1} parent=1 // loop_footer_branch
      %19 = sbr.rel target = $region3
    $region8: #{tpu_custom_call.1} parent=1 // loop_exit
      _
    %12152 = vsyncpa [#allocation3], 1
    %s12153 = scalar_lea.sflag [#allocation3], 1
    %12154 = vsyncpa %s12153, 1
    %12155 = vsyncpa [#allocation6], 1
    %12156 = vsyncpa [#allocation9], 1
    %12157 = vsyncpa [#allocation12], 1
    %12158 = vsyncpa [#allocation4], 1
    %s12159 = scalar_lea.sflag [#allocation4], 1
    %12160 = vsyncpa %s12159, 1

</llo_original>
